<compile_context>
chip_gen: v5e
topology: v5e:2x2
jax: 0.10.0
libtpu: 0.0.40
codegen_flags: <defaults>
</compile_context>

<pallas_src>
import math

import jax
import jax.numpy as jnp
from jax import lax
from jax.experimental import pallas as pl
from jax.experimental.pallas import tpu as pltpu

SDS = jax.ShapeDtypeStruct
F32 = jnp.float32
BF16 = jnp.bfloat16
LANES = 128                      # lane-dense width for the router / route-prob output


def _layernorm(x, g, b, eps=1e-5):
    mu = jnp.mean(x, axis=-1, keepdims=True)
    xc = x - mu
    var = jnp.mean(xc * xc, axis=-1, keepdims=True)          # biased var (PyTorch LN)
    return xc * lax.rsqrt(var + eps) * g + b


# --------------------------------------------------------------------------- #
# Fused kernel: embed -> (LN, MHA, +res) -> (LN, Switch-FFN, +res) -> LN -> gen
# --------------------------------------------------------------------------- #
def make_fused_kernel(seq_len, b_tile, heads, n_experts, d_model, d_ff, n_vocab):
    T = b_tile * seq_len                     # tokens per grid step (batch-major)
    dk = d_model // heads
    scale = 1.0 / math.sqrt(dk)

    def kernel(tok_ref, emb_ref,
               wq_ref, bq_ref, wk_ref, bk_ref, wv_ref, bv_ref, wo_ref, bo_ref,
               ln1g_ref, ln1b_ref, ln2g_ref, ln2b_ref, lnfg_ref, lnfb_ref,
               wr_ref, br_ref, w1_ref, b1_ref, w2_ref, b2_ref,
               wg_ref, bg_ref,
               logits_ref, rp_ref,
               att_scratch):
        # ---- src_embed: one-hot MXU gather (exact: single nonzero per row) ----
        # TODO(synk): for a real vocab (32k+) keep the table in HBM and DMA-gather rows.
        tok = tok_ref[...]                                    # [T, 1] int32
        vocab_iota = lax.broadcasted_iota(jnp.int32, (T, n_vocab), 1)
        onehot_tok = (vocab_iota == tok).astype(F32)
        x = jnp.dot(onehot_tok, emb_ref[...], preferred_element_type=F32)   # [T, D] f32

        # ---- pre-norm multi-head self attention -------------------------------
        z1 = _layernorm(x, ln1g_ref[...], ln1b_ref[...])
        z1b = z1.astype(BF16)
        q = (jnp.dot(z1b, wq_ref[...], preferred_element_type=F32) + bq_ref[...]).astype(BF16)
        k = (jnp.dot(z1b, wk_ref[...], preferred_element_type=F32) + bk_ref[...]).astype(BF16)
        v = (jnp.dot(z1b, wv_ref[...], preferred_element_type=F32) + bv_ref[...]).astype(BF16)
        q3 = q.reshape(b_tile, seq_len, d_model)
        k3 = k.reshape(b_tile, seq_len, d_model)
        v3 = v.reshape(b_tile, seq_len, d_model)

        row = lax.broadcasted_iota(jnp.int32, (1, seq_len, seq_len), 1)
        col = lax.broadcasted_iota(jnp.int32, (1, seq_len, seq_len), 2)
        causal = col <= row                                   # subsequent mask

        # Heads stay folded in the lane axis; each head's output goes into its lane
        # slice of att_scratch, then a SINGLE K=128 output-projection matmul runs.
        # TODO(synk): for long sequences switch to a KV-blocked online-softmax loop.
        for h in range(heads):
            sl = slice(h * dk, (h + 1) * dk)
            qh = q3[:, :, sl]
            kh = k3[:, :, sl]
            vh = v3[:, :, sl]
            s = jnp.einsum('bqd,bkd->bqk', qh, kh,
                           preferred_element_type=F32) * scale
            s = jnp.where(causal, s, jnp.float32(-1e30))
            m = jnp.max(s, axis=-1, keepdims=True)
            p = jnp.exp(s - m)
            p = p * pl.reciprocal(jnp.sum(p, axis=-1, keepdims=True), approx=True)
            oh = jnp.einsum('bqk,bkd->bqd', p.astype(BF16), vh,
                            preferred_element_type=F32)       # [b, S, dk] f32
            att_scratch[:, sl] = oh.reshape(T, dk)
        att = att_scratch[...].astype(BF16)                   # [T, D]
        x = x + jnp.dot(att, wo_ref[...], preferred_element_type=F32) + bo_ref[...]

        # ---- pre-norm Switch feed-forward --------------------------------------
        z2 = _layernorm(x, ln2g_ref[...], ln2b_ref[...])
        # Router kept f32 for exact routing parity; wr/br are padded to 128 lanes in
        # the wrapper (pad columns get logit -1e30 -> probability exactly 0), so all
        # routing math and the route-prob output are lane-dense.
        rl = jnp.dot(z2, wr_ref[...], preferred_element_type=F32) + br_ref[...]
        rm = jnp.max(rl, axis=-1, keepdims=True)
        re = jnp.exp(rl - rm)
        rp = re * pl.reciprocal(jnp.sum(re, axis=-1, keepdims=True), approx=True)  # [T,128]
        rp_max = jnp.max(rp, axis=-1, keepdims=True)          # [T, 1]
        iota_e = lax.broadcasted_iota(jnp.int32, (T, LANES), 1)
        first = jnp.min(jnp.where(rp >= rp_max, iota_e, LANES),
                        axis=-1, keepdims=True)               # first-max (torch argmax tie-break)
        onehot = (iota_e == first).astype(F32)                # [T, 128]

        # TODO(synk): at production sizes sort tokens by expert in the wrapper and
        # stream one expert's (w1, w2) per grid step via scalar-prefetched group
        # offsets, so each token is matmul'd once and weights fit v7x's 64 MiB VMEM.
        z2b = z2.astype(BF16)
        y = jnp.zeros((T, d_model), F32)
        for ei in range(n_experts):
            hdn = jnp.maximum(
                jnp.dot(z2b, w1_ref[ei], preferred_element_type=F32) + b1_ref[ei], 0.0)
            oe = jnp.dot(hdn.astype(BF16), w2_ref[ei],
                         preferred_element_type=F32) + b2_ref[ei]
            y = y + onehot[:, ei:ei + 1] * oe
        x = x + y * rp_max                                    # is_scale_prob=True

        # ---- final LayerNorm + generator ----------------------------------------
        z3 = _layernorm(x, lnfg_ref[...], lnfb_ref[...])
        logits_ref[...] = jnp.dot(z3.astype(BF16), wg_ref[...],
                                  preferred_element_type=F32) + bg_ref[...]
        rp_ref[...] = rp                                      # lane-dense routing probs

    return kernel


# --------------------------------------------------------------------------- #
# Parameters (deterministic, synthetic). Matmul weights stored bf16.           #
# --------------------------------------------------------------------------- #
def init_params(key, n_vocab, d_model, d_ff, n_experts):
    ks = iter(jax.random.split(key, 16))

    def w(shape, scale=0.02, dtype=F32):
        return (scale * jax.random.normal(next(ks), shape, dtype=F32)).astype(dtype)

    z = lambda s: jnp.zeros(s, F32)
    o = lambda s: jnp.ones(s, F32)
    return dict(
        emb=w((n_vocab, d_model), 1.0),                       # table kept f32 (exact gather)
        wq_t=w((d_model, d_model), dtype=BF16), bq=z((1, d_model)),
        wk_t=w((d_model, d_model), dtype=BF16), bk=z((1, d_model)),
        wv_t=w((d_model, d_model), dtype=BF16), bv=z((1, d_model)),
        wo_t=w((d_model, d_model), dtype=BF16), bo=z((1, d_model)),
        ln1_g=o((1, d_model)), ln1_b=z((1, d_model)),
        ln2_g=o((1, d_model)), ln2_b=z((1, d_model)),
        lnf_g=o((1, d_model)), lnf_b=z((1, d_model)),
        wr_t=w((d_model, n_experts)), br=z((1, n_experts)),   # router kept f32
        w1_t=w((n_experts, d_model, d_ff), dtype=BF16), b1=z((n_experts, 1, d_ff)),
        w2_t=w((n_experts, d_ff, d_model), dtype=BF16), b2=z((n_experts, 1, d_model)),
        wg_t=w((d_model, n_vocab), dtype=BF16), bg=z((1, n_vocab)),
    )


def _num_batch_tiles(batch, seq_len):
    # Split the batch only on parts with 2 TensorCores (v7x); single tile otherwise
    # (v5e/v6e are single-TC, so a multi-step grid is pure serial overhead).
    try:
        kind = jax.devices()[0].device_kind.lower()
    except Exception:
        kind = ""
    if "v7" in kind and batch % 2 == 0 and ((batch // 2) * seq_len) % 8 == 0:
        return 2
    return 1


# --------------------------------------------------------------------------- #
# Forward pass (== AutoregressiveModel.forward, eval mode, drop_tokens off)    #
# --------------------------------------------------------------------------- #
def autoregressive_forward(tokens, p, heads, n_tiles=None):
    S, B = tokens.shape
    V, D = p['emb'].shape
    E = p['wr_t'].shape[1]
    d_ff = p['w1_t'].shape[-1]
    N = S * B

    if n_tiles is None:
        n_tiles = _num_batch_tiles(B, S)
    b_tile = B // n_tiles
    T = b_tile * S

    # Internal layout is batch-major [B*S, ...]; outputs transposed back at the end.
    tok_bm = jnp.transpose(tokens).reshape(N, 1).astype(jnp.int32)

    # Router weights padded to one lane-dense 128-wide tile; pad experts get prob 0.
    wr_pad = jnp.zeros((D, LANES), F32).at[:, :E].set(p['wr_t'].astype(F32))
    br_pad = jnp.full((1, LANES), -1e30, F32).at[:, :E].set(p['br'].astype(F32))

    kernel = make_fused_kernel(S, b_tile, heads, E, D, d_ff, V)

    weights = [
        p['emb'],
        p['wq_t'], p['bq'], p['wk_t'], p['bk'], p['wv_t'], p['bv'], p['wo_t'], p['bo'],
        p['ln1_g'], p['ln1_b'], p['ln2_g'], p['ln2_b'], p['lnf_g'], p['lnf_b'],
        wr_pad, br_pad, p['w1_t'], p['b1'], p['w2_t'], p['b2'],
        p['wg_t'], p['bg'],
    ]

    def _const_spec(shape):
        # Full-array block, constant index -> DMA'd to VMEM once, reused every step.
        # TODO(synk): single-buffer these constant blocks (pl.Buffered(1)) once the
        # auto-pipeliner supports it, to halve weight-resident VMEM at real sizes.
        if len(shape) == 2:
            return pl.BlockSpec(shape, lambda i: (0, 0))
        return pl.BlockSpec(shape, lambda i: (0, 0, 0))

    grid_spec = pltpu.PrefetchScalarGridSpec(
        num_scalar_prefetch=0,
        grid=(n_tiles,),
        in_specs=[pl.BlockSpec((T, 1), lambda i: (i, 0))]          # token ids
                 + [_const_spec(w.shape) for w in weights],
        out_specs=(
            pl.BlockSpec((T, V), lambda i: (i, 0)),                # logits (lane-dense)
            pl.BlockSpec((T, LANES), lambda i: (i, 0)),            # route probs (lane-dense)
        ),
        scratch_shapes=[pltpu.VMEM((T, D), F32)],                  # head-concat buffer
    )

    weight_bytes = sum(int(w.size) * w.dtype.itemsize for w in weights)
    io_bytes = N * 4 + N * V * 4 + N * LANES * 4
    vmem_limit = int(min(100 << 20, max(32 << 20, 3 * weight_bytes + io_bytes + (8 << 20))))

    flops = n_tiles * (
        2 * T * V * D                               # embedding one-hot matmul
        + 3 * 2 * T * D * D                         # q/k/v projections
        + 2 * 2 * T * S * D                         # attention scores + weighted values
        + 2 * T * D * D                             # output projection
        + 2 * T * D * LANES                         # router
        + E * (2 * T * D * d_ff + 2 * T * d_ff * D)  # dense expert sweep
        + 2 * T * D * V                             # generator
    )
    cost = pl.CostEstimate(flops=flops,
                           transcendentals=n_tiles * (heads * T * S + T * LANES),
                           bytes_accessed=weight_bytes + io_bytes)

    logits_bm, rp_bm = pl.pallas_call(
        kernel,
        grid_spec=grid_spec,
        out_shape=(SDS((N, V), F32), SDS((N, LANES), F32)),
        compiler_params=pltpu.CompilerParams(
            dimension_semantics=("parallel",),
            vmem_limit_bytes=vmem_limit),
        cost_estimate=cost,
    )(tok_bm, *weights)

    # ---- wrapper-side reductions over the dense route-prob output ------------
    res = jnp.transpose(logits_bm.reshape(B, S, V), (1, 0, 2))           # [S, B, V]
    rp_tok = rp_bm[:, :E]                                                # [N, E] batch-major
    route_idx = jnp.argmax(rp_tok, axis=-1)                              # first-max, matches kernel
    counts = jnp.sum((route_idx[:, None] == jnp.arange(E)[None, :]).astype(jnp.int32),
                     axis=0).reshape(1, E)
    route_prob = jnp.sum(rp_tok, axis=0).reshape(1, E)
    route_prob_max = jnp.transpose(jnp.max(rp_tok, axis=-1).reshape(B, S)).reshape(1, N)
    n_dropped = [0]                   # drop_tokens disabled => nothing dropped
    return res, counts, route_prob, n_dropped, route_prob_max


# --------------------------------------------------------------------------- #
if __name__ == "__main__":
    # lane-aligned demo sizes: d_model = n_vocab = 128, d_ff = 256
    n_vocab, d_model, heads, d_ff, n_experts = 128, 128, 4, 256, 4
    seq_len, batch = 16, 8

    key = jax.random.PRNGKey(0)
    pkey, tkey = jax.random.split(key)
    params = init_params(pkey, n_vocab, d_model, d_ff, n_experts)
    tokens = jax.random.randint(tkey, (seq_len, batch), 0, n_vocab, dtype=jnp.int32)

    res, counts, route_prob, n_dropped, route_prob_max = autoregressive_forward(
        tokens, params, heads)

    jax.block_until_ready(res)
    jax.block_until_ready(counts)
    jax.block_until_ready(route_prob)
    jax.block_until_ready(route_prob_max)

    N = seq_len * batch
    assert res.shape == (seq_len, batch, n_vocab)
    assert counts.shape == (1, n_experts)
    assert route_prob.shape == (1, n_experts)
    assert route_prob_max.shape == (1, N)
    assert bool(jnp.all(jnp.isfinite(res)))
    assert int(jnp.sum(counts)) == N        # every token routed to exactly one expert
    assert n_dropped == [0]
    print("KERNEL_OK")
</pallas_src>

<mosaic_0001>
module attributes {stable_mosaic.version = 11 : i64} {
  func.func @kernel(%arg0: i32, %arg1: memref<128x1xi32, #tpu.memory_space<vmem>>, %arg2: memref<128x128xf32, #tpu.memory_space<vmem>>, %arg3: memref<128x128xbf16, #tpu.memory_space<vmem>>, %arg4: memref<1x128xf32, #tpu.memory_space<vmem>>, %arg5: memref<128x128xbf16, #tpu.memory_space<vmem>>, %arg6: memref<1x128xf32, #tpu.memory_space<vmem>>, %arg7: memref<128x128xbf16, #tpu.memory_space<vmem>>, %arg8: memref<1x128xf32, #tpu.memory_space<vmem>>, %arg9: memref<128x128xbf16, #tpu.memory_space<vmem>>, %arg10: memref<1x128xf32, #tpu.memory_space<vmem>>, %arg11: memref<1x128xf32, #tpu.memory_space<vmem>>, %arg12: memref<1x128xf32, #tpu.memory_space<vmem>>, %arg13: memref<1x128xf32, #tpu.memory_space<vmem>>, %arg14: memref<1x128xf32, #tpu.memory_space<vmem>>, %arg15: memref<1x128xf32, #tpu.memory_space<vmem>>, %arg16: memref<1x128xf32, #tpu.memory_space<vmem>>, %arg17: memref<128x128xf32, #tpu.memory_space<vmem>>, %arg18: memref<1x128xf32, #tpu.memory_space<vmem>>, %arg19: memref<4x128x256xbf16, #tpu.memory_space<vmem>>, %arg20: memref<4x1x256xf32, #tpu.memory_space<vmem>>, %arg21: memref<4x256x128xbf16, #tpu.memory_space<vmem>>, %arg22: memref<4x1x128xf32, #tpu.memory_space<vmem>>, %arg23: memref<128x128xbf16, #tpu.memory_space<vmem>>, %arg24: memref<1x128xf32, #tpu.memory_space<vmem>>, %arg25: memref<128x128xf32, #tpu.memory_space<vmem>>, %arg26: memref<128x128xf32, #tpu.memory_space<vmem>>, %arg27: memref<128x128xf32, #tpu.memory_space<vmem>>) attributes {dimension_semantics = [#tpu.dimension_semantics<parallel>], iteration_bounds = array<i64: 1>, scalar_prefetch = 0 : i64, scratch_operands = 1 : i64, tpu.core_type = #tpu.core_type<tc>, window_params = [{transform_indices = @transform_0, window_bounds = array<i64: 128, 1>}, {pipeline_mode = #tpu.pipeline_mode<synchronous>, transform_indices = @transform_1, window_bounds = array<i64: 128, 128>}, {pipeline_mode = #tpu.pipeline_mode<synchronous>, transform_indices = @transform_2, window_bounds = array<i64: 128, 128>}, {pipeline_mode = #tpu.pipeline_mode<synchronous>, transform_indices = @transform_3, window_bounds = array<i64: 1, 128>}, {pipeline_mode = #tpu.pipeline_mode<synchronous>, transform_indices = @transform_4, window_bounds = array<i64: 128, 128>}, {pipeline_mode = #tpu.pipeline_mode<synchronous>, transform_indices = @transform_5, window_bounds = array<i64: 1, 128>}, {pipeline_mode = #tpu.pipeline_mode<synchronous>, transform_indices = @transform_6, window_bounds = array<i64: 128, 128>}, {pipeline_mode = #tpu.pipeline_mode<synchronous>, transform_indices = @transform_7, window_bounds = array<i64: 1, 128>}, {pipeline_mode = #tpu.pipeline_mode<synchronous>, transform_indices = @transform_8, window_bounds = array<i64: 128, 128>}, {pipeline_mode = #tpu.pipeline_mode<synchronous>, transform_indices = @transform_9, window_bounds = array<i64: 1, 128>}, {pipeline_mode = #tpu.pipeline_mode<synchronous>, transform_indices = @transform_10, window_bounds = array<i64: 1, 128>}, {pipeline_mode = #tpu.pipeline_mode<synchronous>, transform_indices = @transform_11, window_bounds = array<i64: 1, 128>}, {pipeline_mode = #tpu.pipeline_mode<synchronous>, transform_indices = @transform_12, window_bounds = array<i64: 1, 128>}, {pipeline_mode = #tpu.pipeline_mode<synchronous>, transform_indices = @transform_13, window_bounds = array<i64: 1, 128>}, {pipeline_mode = #tpu.pipeline_mode<synchronous>, transform_indices = @transform_14, window_bounds = array<i64: 1, 128>}, {pipeline_mode = #tpu.pipeline_mode<synchronous>, transform_indices = @transform_15, window_bounds = array<i64: 1, 128>}, {pipeline_mode = #tpu.pipeline_mode<synchronous>, transform_indices = @transform_16, window_bounds = array<i64: 128, 128>}, {pipeline_mode = #tpu.pipeline_mode<synchronous>, transform_indices = @transform_17, window_bounds = array<i64: 1, 128>}, {pipeline_mode = #tpu.pipeline_mode<synchronous>, transform_indices = @transform_18, window_bounds = array<i64: 4, 128, 256>}, {pipeline_mode = #tpu.pipeline_mode<synchronous>, transform_indices = @transform_19, window_bounds = array<i64: 4, 1, 256>}, {pipeline_mode = #tpu.pipeline_mode<synchronous>, transform_indices = @transform_20, window_bounds = array<i64: 4, 256, 128>}, {pipeline_mode = #tpu.pipeline_mode<synchronous>, transform_indices = @transform_21, window_bounds = array<i64: 4, 1, 128>}, {pipeline_mode = #tpu.pipeline_mode<synchronous>, transform_indices = @transform_22, window_bounds = array<i64: 128, 128>}, {pipeline_mode = #tpu.pipeline_mode<synchronous>, transform_indices = @transform_23, window_bounds = array<i64: 1, 128>}, {transform_indices = @transform_24, window_bounds = array<i64: 128, 128>}, {transform_indices = @transform_25, window_bounds = array<i64: 128, 128>}]} {
    %c0 = arith.constant 0 : index
    %c0_0 = arith.constant 0 : index
    %0 = vector.load %arg1[%c0, %c0_0] : memref<128x1xi32, #tpu.memory_space<vmem>>, vector<128x1xi32>
    %1 = tpu.iota {dimensions = array<i32: 1>} : vector<128x128xi32>
    %2 = vector.broadcast %0 : vector<128x1xi32> to vector<128x128xi32>
    %3 = arith.cmpi eq, %1, %2 : vector<128x128xi32>
    %4 = arith.extui %3 : vector<128x128xi1> to vector<128x128xi32>
    %5 = arith.sitofp %4 : vector<128x128xi32> to vector<128x128xf32>
    %c0_1 = arith.constant 0 : index
    %c0_2 = arith.constant 0 : index
    %6 = vector.load %arg2[%c0_1, %c0_2] : memref<128x128xf32, #tpu.memory_space<vmem>>, vector<128x128xf32>
    %cst = arith.constant dense<0.000000e+00> : vector<128x128xf32>
    %7 = tpu.matmul %5, %6, %cst {dimension_numbers = #tpu.dot_dimension_numbers<[1], [0], [0], [1], [0, 0, 1, 1], [], []>} : vector<128x128xf32>, vector<128x128xf32>, vector<128x128xf32> -> vector<128x128xf32>
    %c0_3 = arith.constant 0 : index
    %c0_4 = arith.constant 0 : index
    %8 = vector.load %arg11[%c0_3, %c0_4] : memref<1x128xf32, #tpu.memory_space<vmem>>, vector<1x128xf32>
    %c0_5 = arith.constant 0 : index
    %c0_6 = arith.constant 0 : index
    %9 = vector.load %arg12[%c0_5, %c0_6] : memref<1x128xf32, #tpu.memory_space<vmem>>, vector<1x128xf32>
    %cst_7 = arith.constant dense<0.000000e+00> : vector<128xf32>
    %10 = vector.multi_reduction <add>, %7, %cst_7 [1] : vector<128x128xf32> to vector<128xf32>
    %11 = vector.shape_cast %10 : vector<128xf32> to vector<128x1xf32>
    %cst_8 = arith.constant 1.280000e+02 : f32
    %12 = vector.broadcast %cst_8 : f32 to vector<128x1xf32>
    %13 = arith.divf %11, %12 : vector<128x1xf32>
    %14 = vector.broadcast %13 : vector<128x1xf32> to vector<128x128xf32>
    %15 = arith.subf %7, %14 : vector<128x128xf32>
    %16 = arith.mulf %15, %15 : vector<128x128xf32>
    %cst_9 = arith.constant dense<0.000000e+00> : vector<128xf32>
    %17 = vector.multi_reduction <add>, %16, %cst_9 [1] : vector<128x128xf32> to vector<128xf32>
    %18 = vector.shape_cast %17 : vector<128xf32> to vector<128x1xf32>
    %cst_10 = arith.constant 1.280000e+02 : f32
    %19 = vector.broadcast %cst_10 : f32 to vector<128x1xf32>
    %20 = arith.divf %18, %19 : vector<128x1xf32>
    %cst_11 = arith.constant 9.99999974E-6 : f32
    %21 = vector.broadcast %cst_11 : f32 to vector<128x1xf32>
    %22 = arith.addf %20, %21 : vector<128x1xf32>
    %23 = math.rsqrt %22 : vector<128x1xf32>
    %24 = vector.broadcast %23 : vector<128x1xf32> to vector<128x128xf32>
    %25 = arith.mulf %15, %24 : vector<128x128xf32>
    %26 = vector.broadcast %8 : vector<1x128xf32> to vector<128x128xf32>
    %27 = arith.mulf %25, %26 : vector<128x128xf32>
    %28 = vector.broadcast %9 : vector<1x128xf32> to vector<128x128xf32>
    %29 = arith.addf %27, %28 : vector<128x128xf32>
    %30 = arith.truncf %29 : vector<128x128xf32> to vector<128x128xbf16>
    %c0_12 = arith.constant 0 : index
    %c0_13 = arith.constant 0 : index
    %31 = vector.load %arg3[%c0_12, %c0_13] : memref<128x128xbf16, #tpu.memory_space<vmem>>, vector<128x128xbf16>
    %cst_14 = arith.constant dense<0.000000e+00> : vector<128x128xf32>
    %32 = tpu.matmul %30, %31, %cst_14 {dimension_numbers = #tpu.dot_dimension_numbers<[1], [0], [0], [1], [0, 0, 1, 1], [], []>} : vector<128x128xbf16>, vector<128x128xbf16>, vector<128x128xf32> -> vector<128x128xf32>
    %c0_15 = arith.constant 0 : index
    %c0_16 = arith.constant 0 : index
    %33 = vector.load %arg4[%c0_15, %c0_16] : memref<1x128xf32, #tpu.memory_space<vmem>>, vector<1x128xf32>
    %34 = vector.broadcast %33 : vector<1x128xf32> to vector<128x128xf32>
    %35 = arith.addf %32, %34 : vector<128x128xf32>
    %36 = arith.truncf %35 : vector<128x128xf32> to vector<128x128xbf16>
    %c0_17 = arith.constant 0 : index
    %c0_18 = arith.constant 0 : index
    %37 = vector.load %arg5[%c0_17, %c0_18] : memref<128x128xbf16, #tpu.memory_space<vmem>>, vector<128x128xbf16>
    %cst_19 = arith.constant dense<0.000000e+00> : vector<128x128xf32>
    %38 = tpu.matmul %30, %37, %cst_19 {dimension_numbers = #tpu.dot_dimension_numbers<[1], [0], [0], [1], [0, 0, 1, 1], [], []>} : vector<128x128xbf16>, vector<128x128xbf16>, vector<128x128xf32> -> vector<128x128xf32>
    %c0_20 = arith.constant 0 : index
    %c0_21 = arith.constant 0 : index
    %39 = vector.load %arg6[%c0_20, %c0_21] : memref<1x128xf32, #tpu.memory_space<vmem>>, vector<1x128xf32>
    %40 = vector.broadcast %39 : vector<1x128xf32> to vector<128x128xf32>
    %41 = arith.addf %38, %40 : vector<128x128xf32>
    %42 = arith.truncf %41 : vector<128x128xf32> to vector<128x128xbf16>
    %c0_22 = arith.constant 0 : index
    %c0_23 = arith.constant 0 : index
    %43 = vector.load %arg7[%c0_22, %c0_23] : memref<128x128xbf16, #tpu.memory_space<vmem>>, vector<128x128xbf16>
    %cst_24 = arith.constant dense<0.000000e+00> : vector<128x128xf32>
    %44 = tpu.matmul %30, %43, %cst_24 {dimension_numbers = #tpu.dot_dimension_numbers<[1], [0], [0], [1], [0, 0, 1, 1], [], []>} : vector<128x128xbf16>, vector<128x128xbf16>, vector<128x128xf32> -> vector<128x128xf32>
    %c0_25 = arith.constant 0 : index
    %c0_26 = arith.constant 0 : index
    %45 = vector.load %arg8[%c0_25, %c0_26] : memref<1x128xf32, #tpu.memory_space<vmem>>, vector<1x128xf32>
    %46 = vector.broadcast %45 : vector<1x128xf32> to vector<128x128xf32>
    %47 = arith.addf %44, %46 : vector<128x128xf32>
    %48 = arith.truncf %47 : vector<128x128xf32> to vector<128x128xbf16>
    %49 = vector.shape_cast %36 : vector<128x128xbf16> to vector<8x16x128xbf16>
    %50 = vector.shape_cast %42 : vector<128x128xbf16> to vector<8x16x128xbf16>
    %51 = vector.shape_cast %48 : vector<128x128xbf16> to vector<8x16x128xbf16>
    %52 = tpu.iota {dimensions = array<i32: 1>} : vector<1x16x16xi32>
    %53 = tpu.iota {dimensions = array<i32: 2>} : vector<1x16x16xi32>
    %54 = arith.cmpi sle, %53, %52 : vector<1x16x16xi32>
    %55 = vector.extract_strided_slice %49 {offsets = [0, 0, 0], sizes = [8, 16, 32], strides = [1, 1, 1]} : vector<8x16x128xbf16> to vector<8x16x32xbf16>
    %56 = vector.extract_strided_slice %50 {offsets = [0, 0, 0], sizes = [8, 16, 32], strides = [1, 1, 1]} : vector<8x16x128xbf16> to vector<8x16x32xbf16>
    %57 = vector.extract_strided_slice %51 {offsets = [0, 0, 0], sizes = [8, 16, 32], strides = [1, 1, 1]} : vector<8x16x128xbf16> to vector<8x16x32xbf16>
    "tpu.trace_start"() <{level = 10 : i32, message = "bqd,bkd->bqk"}> : () -> ()
    %cst_27 = arith.constant dense<0.000000e+00> : vector<8x16x16xf32>
    %58 = tpu.matmul %55, %56, %cst_27 {dimension_numbers = #tpu.dot_dimension_numbers<[2], [2], [1], [1], [0, 0, 0, 1, 1, 1], [0], [0]>} : vector<8x16x32xbf16>, vector<8x16x32xbf16>, vector<8x16x16xf32> -> vector<8x16x16xf32>
    "tpu.trace_stop"() : () -> ()
    %cst_28 = arith.constant 0.176776692 : f32
    %59 = vector.broadcast %cst_28 : f32 to vector<8x16x16xf32>
    %60 = arith.mulf %58, %59 : vector<8x16x16xf32>
    %cst_29 = arith.constant -1.000000e+30 : f32
    %61 = vector.shape_cast %54 : vector<1x16x16xi1> to vector<1x16x16xi1>
    %62 = vector.broadcast %61 : vector<1x16x16xi1> to vector<8x16x16xi1>
    %63 = vector.broadcast %cst_29 : f32 to vector<8x16x16xf32>
    %64 = arith.select %62, %60, %63 : vector<8x16x16xi1>, vector<8x16x16xf32>
    %cst_30 = arith.constant dense<0xFF800000> : vector<8x16xf32>
    %65 = vector.multi_reduction <maximumf>, %64, %cst_30 [2] : vector<8x16x16xf32> to vector<8x16xf32>
    %66 = vector.shape_cast %65 : vector<8x16xf32> to vector<8x16x1xf32>
    %67 = vector.broadcast %66 : vector<8x16x1xf32> to vector<8x16x16xf32>
    %68 = arith.subf %64, %67 : vector<8x16x16xf32>
    %69 = math.exp %68 : vector<8x16x16xf32>
    %cst_31 = arith.constant dense<0.000000e+00> : vector<8x16xf32>
    %70 = vector.multi_reduction <add>, %69, %cst_31 [2] : vector<8x16x16xf32> to vector<8x16xf32>
    %71 = vector.shape_cast %70 : vector<8x16xf32> to vector<8x16x1xf32>
    %72 = tpu.reciprocal %71 {approx = true} : vector<8x16x1xf32> -> vector<8x16x1xf32>
    %73 = vector.broadcast %72 : vector<8x16x1xf32> to vector<8x16x16xf32>
    %74 = arith.mulf %69, %73 : vector<8x16x16xf32>
    %75 = arith.truncf %74 : vector<8x16x16xf32> to vector<8x16x16xbf16>
    "tpu.trace_start"() <{level = 10 : i32, message = "bqk,bkd->bqd"}> : () -> ()
    %cst_32 = arith.constant dense<0.000000e+00> : vector<8x16x32xf32>
    %76 = tpu.matmul %75, %57, %cst_32 {dimension_numbers = #tpu.dot_dimension_numbers<[2], [1], [1], [2], [0, 0, 0, 1, 1, 2], [0], [0]>} : vector<8x16x16xbf16>, vector<8x16x32xbf16>, vector<8x16x32xf32> -> vector<8x16x32xf32>
    "tpu.trace_stop"() : () -> ()
    %77 = vector.shape_cast %76 : vector<8x16x32xf32> to vector<128x32xf32>
    %c0_33 = arith.constant 0 : index
    %c0_34 = arith.constant 0 : index
    %78 = vector.load %arg27[%c0_33, %c0_34] : memref<128x128xf32, #tpu.memory_space<vmem>>, vector<128x32xf32>
    tpu.vector_store %arg27[%c0_33, %c0_34], %77 {strides = array<i32>} : memref<128x128xf32, #tpu.memory_space<vmem>>, vector<128x32xf32>,
    %79 = vector.extract_strided_slice %49 {offsets = [0, 0, 32], sizes = [8, 16, 32], strides = [1, 1, 1]} : vector<8x16x128xbf16> to vector<8x16x32xbf16>
    %80 = vector.extract_strided_slice %50 {offsets = [0, 0, 32], sizes = [8, 16, 32], strides = [1, 1, 1]} : vector<8x16x128xbf16> to vector<8x16x32xbf16>
    %81 = vector.extract_strided_slice %51 {offsets = [0, 0, 32], sizes = [8, 16, 32], strides = [1, 1, 1]} : vector<8x16x128xbf16> to vector<8x16x32xbf16>
    "tpu.trace_start"() <{level = 10 : i32, message = "bqd,bkd->bqk"}> : () -> ()
    %cst_35 = arith.constant dense<0.000000e+00> : vector<8x16x16xf32>
    %82 = tpu.matmul %79, %80, %cst_35 {dimension_numbers = #tpu.dot_dimension_numbers<[2], [2], [1], [1], [0, 0, 0, 1, 1, 1], [0], [0]>} : vector<8x16x32xbf16>, vector<8x16x32xbf16>, vector<8x16x16xf32> -> vector<8x16x16xf32>
    "tpu.trace_stop"() : () -> ()
    %cst_36 = arith.constant 0.176776692 : f32
    %83 = vector.broadcast %cst_36 : f32 to vector<8x16x16xf32>
    %84 = arith.mulf %82, %83 : vector<8x16x16xf32>
    %cst_37 = arith.constant -1.000000e+30 : f32
    %85 = vector.shape_cast %54 : vector<1x16x16xi1> to vector<1x16x16xi1>
    %86 = vector.broadcast %85 : vector<1x16x16xi1> to vector<8x16x16xi1>
    %87 = vector.broadcast %cst_37 : f32 to vector<8x16x16xf32>
    %88 = arith.select %86, %84, %87 : vector<8x16x16xi1>, vector<8x16x16xf32>
    %cst_38 = arith.constant dense<0xFF800000> : vector<8x16xf32>
    %89 = vector.multi_reduction <maximumf>, %88, %cst_38 [2] : vector<8x16x16xf32> to vector<8x16xf32>
    %90 = vector.shape_cast %89 : vector<8x16xf32> to vector<8x16x1xf32>
    %91 = vector.broadcast %90 : vector<8x16x1xf32> to vector<8x16x16xf32>
    %92 = arith.subf %88, %91 : vector<8x16x16xf32>
    %93 = math.exp %92 : vector<8x16x16xf32>
    %cst_39 = arith.constant dense<0.000000e+00> : vector<8x16xf32>
    %94 = vector.multi_reduction <add>, %93, %cst_39 [2] : vector<8x16x16xf32> to vector<8x16xf32>
    %95 = vector.shape_cast %94 : vector<8x16xf32> to vector<8x16x1xf32>
    %96 = tpu.reciprocal %95 {approx = true} : vector<8x16x1xf32> -> vector<8x16x1xf32>
    %97 = vector.broadcast %96 : vector<8x16x1xf32> to vector<8x16x16xf32>
    %98 = arith.mulf %93, %97 : vector<8x16x16xf32>
    %99 = arith.truncf %98 : vector<8x16x16xf32> to vector<8x16x16xbf16>
    "tpu.trace_start"() <{level = 10 : i32, message = "bqk,bkd->bqd"}> : () -> ()
    %cst_40 = arith.constant dense<0.000000e+00> : vector<8x16x32xf32>
    %100 = tpu.matmul %99, %81, %cst_40 {dimension_numbers = #tpu.dot_dimension_numbers<[2], [1], [1], [2], [0, 0, 0, 1, 1, 2], [0], [0]>} : vector<8x16x16xbf16>, vector<8x16x32xbf16>, vector<8x16x32xf32> -> vector<8x16x32xf32>
    "tpu.trace_stop"() : () -> ()
    %101 = vector.shape_cast %100 : vector<8x16x32xf32> to vector<128x32xf32>
    %c0_41 = arith.constant 0 : index
    %c32 = arith.constant 32 : index
    %102 = vector.load %arg27[%c0_41, %c32] : memref<128x128xf32, #tpu.memory_space<vmem>>, vector<128x32xf32>
    tpu.vector_store %arg27[%c0_41, %c32], %101 {strides = array<i32>} : memref<128x128xf32, #tpu.memory_space<vmem>>, vector<128x32xf32>,
    %103 = vector.extract_strided_slice %49 {offsets = [0, 0, 64], sizes = [8, 16, 32], strides = [1, 1, 1]} : vector<8x16x128xbf16> to vector<8x16x32xbf16>
    %104 = vector.extract_strided_slice %50 {offsets = [0, 0, 64], sizes = [8, 16, 32], strides = [1, 1, 1]} : vector<8x16x128xbf16> to vector<8x16x32xbf16>
    %105 = vector.extract_strided_slice %51 {offsets = [0, 0, 64], sizes = [8, 16, 32], strides = [1, 1, 1]} : vector<8x16x128xbf16> to vector<8x16x32xbf16>
    "tpu.trace_start"() <{level = 10 : i32, message = "bqd,bkd->bqk"}> : () -> ()
    %cst_42 = arith.constant dense<0.000000e+00> : vector<8x16x16xf32>
    %106 = tpu.matmul %103, %104, %cst_42 {dimension_numbers = #tpu.dot_dimension_numbers<[2], [2], [1], [1], [0, 0, 0, 1, 1, 1], [0], [0]>} : vector<8x16x32xbf16>, vector<8x16x32xbf16>, vector<8x16x16xf32> -> vector<8x16x16xf32>
    "tpu.trace_stop"() : () -> ()
    %cst_43 = arith.constant 0.176776692 : f32
    %107 = vector.broadcast %cst_43 : f32 to vector<8x16x16xf32>
    %108 = arith.mulf %106, %107 : vector<8x16x16xf32>
    %cst_44 = arith.constant -1.000000e+30 : f32
    %109 = vector.shape_cast %54 : vector<1x16x16xi1> to vector<1x16x16xi1>
    %110 = vector.broadcast %109 : vector<1x16x16xi1> to vector<8x16x16xi1>
    %111 = vector.broadcast %cst_44 : f32 to vector<8x16x16xf32>
    %112 = arith.select %110, %108, %111 : vector<8x16x16xi1>, vector<8x16x16xf32>
    %cst_45 = arith.constant dense<0xFF800000> : vector<8x16xf32>
    %113 = vector.multi_reduction <maximumf>, %112, %cst_45 [2] : vector<8x16x16xf32> to vector<8x16xf32>
    %114 = vector.shape_cast %113 : vector<8x16xf32> to vector<8x16x1xf32>
    %115 = vector.broadcast %114 : vector<8x16x1xf32> to vector<8x16x16xf32>
    %116 = arith.subf %112, %115 : vector<8x16x16xf32>
    %117 = math.exp %116 : vector<8x16x16xf32>
    %cst_46 = arith.constant dense<0.000000e+00> : vector<8x16xf32>
    %118 = vector.multi_reduction <add>, %117, %cst_46 [2] : vector<8x16x16xf32> to vector<8x16xf32>
    %119 = vector.shape_cast %118 : vector<8x16xf32> to vector<8x16x1xf32>
    %120 = tpu.reciprocal %119 {approx = true} : vector<8x16x1xf32> -> vector<8x16x1xf32>
    %121 = vector.broadcast %120 : vector<8x16x1xf32> to vector<8x16x16xf32>
    %122 = arith.mulf %117, %121 : vector<8x16x16xf32>
    %123 = arith.truncf %122 : vector<8x16x16xf32> to vector<8x16x16xbf16>
    "tpu.trace_start"() <{level = 10 : i32, message = "bqk,bkd->bqd"}> : () -> ()
    %cst_47 = arith.constant dense<0.000000e+00> : vector<8x16x32xf32>
    %124 = tpu.matmul %123, %105, %cst_47 {dimension_numbers = #tpu.dot_dimension_numbers<[2], [1], [1], [2], [0, 0, 0, 1, 1, 2], [0], [0]>} : vector<8x16x16xbf16>, vector<8x16x32xbf16>, vector<8x16x32xf32> -> vector<8x16x32xf32>
    "tpu.trace_stop"() : () -> ()
    %125 = vector.shape_cast %124 : vector<8x16x32xf32> to vector<128x32xf32>
    %c0_48 = arith.constant 0 : index
    %c64 = arith.constant 64 : index
    %126 = vector.load %arg27[%c0_48, %c64] : memref<128x128xf32, #tpu.memory_space<vmem>>, vector<128x32xf32>
    tpu.vector_store %arg27[%c0_48, %c64], %125 {strides = array<i32>} : memref<128x128xf32, #tpu.memory_space<vmem>>, vector<128x32xf32>,
    %127 = vector.extract_strided_slice %49 {offsets = [0, 0, 96], sizes = [8, 16, 32], strides = [1, 1, 1]} : vector<8x16x128xbf16> to vector<8x16x32xbf16>
    %128 = vector.extract_strided_slice %50 {offsets = [0, 0, 96], sizes = [8, 16, 32], strides = [1, 1, 1]} : vector<8x16x128xbf16> to vector<8x16x32xbf16>
    %129 = vector.extract_strided_slice %51 {offsets = [0, 0, 96], sizes = [8, 16, 32], strides = [1, 1, 1]} : vector<8x16x128xbf16> to vector<8x16x32xbf16>
    "tpu.trace_start"() <{level = 10 : i32, message = "bqd,bkd->bqk"}> : () -> ()
    %cst_49 = arith.constant dense<0.000000e+00> : vector<8x16x16xf32>
    %130 = tpu.matmul %127, %128, %cst_49 {dimension_numbers = #tpu.dot_dimension_numbers<[2], [2], [1], [1], [0, 0, 0, 1, 1, 1], [0], [0]>} : vector<8x16x32xbf16>, vector<8x16x32xbf16>, vector<8x16x16xf32> -> vector<8x16x16xf32>
    "tpu.trace_stop"() : () -> ()
    %cst_50 = arith.constant 0.176776692 : f32
    %131 = vector.broadcast %cst_50 : f32 to vector<8x16x16xf32>
    %132 = arith.mulf %130, %131 : vector<8x16x16xf32>
    %cst_51 = arith.constant -1.000000e+30 : f32
    %133 = vector.shape_cast %54 : vector<1x16x16xi1> to vector<1x16x16xi1>
    %134 = vector.broadcast %133 : vector<1x16x16xi1> to vector<8x16x16xi1>
    %135 = vector.broadcast %cst_51 : f32 to vector<8x16x16xf32>
    %136 = arith.select %134, %132, %135 : vector<8x16x16xi1>, vector<8x16x16xf32>
    %cst_52 = arith.constant dense<0xFF800000> : vector<8x16xf32>
    %137 = vector.multi_reduction <maximumf>, %136, %cst_52 [2] : vector<8x16x16xf32> to vector<8x16xf32>
    %138 = vector.shape_cast %137 : vector<8x16xf32> to vector<8x16x1xf32>
    %139 = vector.broadcast %138 : vector<8x16x1xf32> to vector<8x16x16xf32>
    %140 = arith.subf %136, %139 : vector<8x16x16xf32>
    %141 = math.exp %140 : vector<8x16x16xf32>
    %cst_53 = arith.constant dense<0.000000e+00> : vector<8x16xf32>
    %142 = vector.multi_reduction <add>, %141, %cst_53 [2] : vector<8x16x16xf32> to vector<8x16xf32>
    %143 = vector.shape_cast %142 : vector<8x16xf32> to vector<8x16x1xf32>
    %144 = tpu.reciprocal %143 {approx = true} : vector<8x16x1xf32> -> vector<8x16x1xf32>
    %145 = vector.broadcast %144 : vector<8x16x1xf32> to vector<8x16x16xf32>
    %146 = arith.mulf %141, %145 : vector<8x16x16xf32>
    %147 = arith.truncf %146 : vector<8x16x16xf32> to vector<8x16x16xbf16>
    "tpu.trace_start"() <{level = 10 : i32, message = "bqk,bkd->bqd"}> : () -> ()
    %cst_54 = arith.constant dense<0.000000e+00> : vector<8x16x32xf32>
    %148 = tpu.matmul %147, %129, %cst_54 {dimension_numbers = #tpu.dot_dimension_numbers<[2], [1], [1], [2], [0, 0, 0, 1, 1, 2], [0], [0]>} : vector<8x16x16xbf16>, vector<8x16x32xbf16>, vector<8x16x32xf32> -> vector<8x16x32xf32>
    "tpu.trace_stop"() : () -> ()
    %149 = vector.shape_cast %148 : vector<8x16x32xf32> to vector<128x32xf32>
    %c0_55 = arith.constant 0 : index
    %c96 = arith.constant 96 : index
    %150 = vector.load %arg27[%c0_55, %c96] : memref<128x128xf32, #tpu.memory_space<vmem>>, vector<128x32xf32>
    tpu.vector_store %arg27[%c0_55, %c96], %149 {strides = array<i32>} : memref<128x128xf32, #tpu.memory_space<vmem>>, vector<128x32xf32>,
    %c0_56 = arith.constant 0 : index
    %c0_57 = arith.constant 0 : index
    %151 = vector.load %arg27[%c0_56, %c0_57] : memref<128x128xf32, #tpu.memory_space<vmem>>, vector<128x128xf32>
    %152 = arith.truncf %151 : vector<128x128xf32> to vector<128x128xbf16>
    %c0_58 = arith.constant 0 : index
    %c0_59 = arith.constant 0 : index
    %153 = vector.load %arg9[%c0_58, %c0_59] : memref<128x128xbf16, #tpu.memory_space<vmem>>, vector<128x128xbf16>
    %cst_60 = arith.constant dense<0.000000e+00> : vector<128x128xf32>
    %154 = tpu.matmul %152, %153, %cst_60 {dimension_numbers = #tpu.dot_dimension_numbers<[1], [0], [0], [1], [0, 0, 1, 1], [], []>} : vector<128x128xbf16>, vector<128x128xbf16>, vector<128x128xf32> -> vector<128x128xf32>
    %155 = arith.addf %7, %154 : vector<128x128xf32>
    %c0_61 = arith.constant 0 : index
    %c0_62 = arith.constant 0 : index
    %156 = vector.load %arg10[%c0_61, %c0_62] : memref<1x128xf32, #tpu.memory_space<vmem>>, vector<1x128xf32>
    %157 = vector.broadcast %156 : vector<1x128xf32> to vector<128x128xf32>
    %158 = arith.addf %155, %157 : vector<128x128xf32>
    %c0_63 = arith.constant 0 : index
    %c0_64 = arith.constant 0 : index
    %159 = vector.load %arg13[%c0_63, %c0_64] : memref<1x128xf32, #tpu.memory_space<vmem>>, vector<1x128xf32>
    %c0_65 = arith.constant 0 : index
    %c0_66 = arith.constant 0 : index
    %160 = vector.load %arg14[%c0_65, %c0_66] : memref<1x128xf32, #tpu.memory_space<vmem>>, vector<1x128xf32>
    %cst_67 = arith.constant dense<0.000000e+00> : vector<128xf32>
    %161 = vector.multi_reduction <add>, %158, %cst_67 [1] : vector<128x128xf32> to vector<128xf32>
    %162 = vector.shape_cast %161 : vector<128xf32> to vector<128x1xf32>
    %cst_68 = arith.constant 1.280000e+02 : f32
    %163 = vector.broadcast %cst_68 : f32 to vector<128x1xf32>
    %164 = arith.divf %162, %163 : vector<128x1xf32>
    %165 = vector.broadcast %164 : vector<128x1xf32> to vector<128x128xf32>
    %166 = arith.subf %158, %165 : vector<128x128xf32>
    %167 = arith.mulf %166, %166 : vector<128x128xf32>
    %cst_69 = arith.constant dense<0.000000e+00> : vector<128xf32>
    %168 = vector.multi_reduction <add>, %167, %cst_69 [1] : vector<128x128xf32> to vector<128xf32>
    %169 = vector.shape_cast %168 : vector<128xf32> to vector<128x1xf32>
    %cst_70 = arith.constant 1.280000e+02 : f32
    %170 = vector.broadcast %cst_70 : f32 to vector<128x1xf32>
    %171 = arith.divf %169, %170 : vector<128x1xf32>
    %cst_71 = arith.constant 9.99999974E-6 : f32
    %172 = vector.broadcast %cst_71 : f32 to vector<128x1xf32>
    %173 = arith.addf %171, %172 : vector<128x1xf32>
    %174 = math.rsqrt %173 : vector<128x1xf32>
    %175 = vector.broadcast %174 : vector<128x1xf32> to vector<128x128xf32>
    %176 = arith.mulf %166, %175 : vector<128x128xf32>
    %177 = vector.broadcast %159 : vector<1x128xf32> to vector<128x128xf32>
    %178 = arith.mulf %176, %177 : vector<128x128xf32>
    %179 = vector.broadcast %160 : vector<1x128xf32> to vector<128x128xf32>
    %180 = arith.addf %178, %179 : vector<128x128xf32>
    %c0_72 = arith.constant 0 : index
    %c0_73 = arith.constant 0 : index
    %181 = vector.load %arg17[%c0_72, %c0_73] : memref<128x128xf32, #tpu.memory_space<vmem>>, vector<128x128xf32>
    %cst_74 = arith.constant dense<0.000000e+00> : vector<128x128xf32>
    %182 = tpu.matmul %180, %181, %cst_74 {dimension_numbers = #tpu.dot_dimension_numbers<[1], [0], [0], [1], [0, 0, 1, 1], [], []>} : vector<128x128xf32>, vector<128x128xf32>, vector<128x128xf32> -> vector<128x128xf32>
    %c0_75 = arith.constant 0 : index
    %c0_76 = arith.constant 0 : index
    %183 = vector.load %arg18[%c0_75, %c0_76] : memref<1x128xf32, #tpu.memory_space<vmem>>, vector<1x128xf32>
    %184 = vector.broadcast %183 : vector<1x128xf32> to vector<128x128xf32>
    %185 = arith.addf %182, %184 : vector<128x128xf32>
    %cst_77 = arith.constant dense<0xFF800000> : vector<128xf32>
    %186 = vector.multi_reduction <maximumf>, %185, %cst_77 [1] : vector<128x128xf32> to vector<128xf32>
    %187 = vector.shape_cast %186 : vector<128xf32> to vector<128x1xf32>
    %188 = vector.broadcast %187 : vector<128x1xf32> to vector<128x128xf32>
    %189 = arith.subf %185, %188 : vector<128x128xf32>
    %190 = math.exp %189 : vector<128x128xf32>
    %cst_78 = arith.constant dense<0.000000e+00> : vector<128xf32>
    %191 = vector.multi_reduction <add>, %190, %cst_78 [1] : vector<128x128xf32> to vector<128xf32>
    %192 = vector.shape_cast %191 : vector<128xf32> to vector<128x1xf32>
    %193 = tpu.reciprocal %192 {approx = true} : vector<128x1xf32> -> vector<128x1xf32>
    %194 = vector.broadcast %193 : vector<128x1xf32> to vector<128x128xf32>
    %195 = arith.mulf %190, %194 : vector<128x128xf32>
    %cst_79 = arith.constant dense<0xFF800000> : vector<128xf32>
    %196 = vector.multi_reduction <maximumf>, %195, %cst_79 [1] : vector<128x128xf32> to vector<128xf32>
    %197 = vector.shape_cast %196 : vector<128xf32> to vector<128x1xf32>
    %198 = tpu.iota {dimensions = array<i32: 1>} : vector<128x128xi32>
    %199 = vector.broadcast %197 : vector<128x1xf32> to vector<128x128xf32>
    %200 = arith.cmpf oge, %195, %199 : vector<128x128xf32>
    %c128_i32 = arith.constant 128 : i32
    %201 = vector.broadcast %c128_i32 : i32 to vector<128x128xi32>
    %202 = arith.select %200, %198, %201 : vector<128x128xi1>, vector<128x128xi32>
    %cst_80 = arith.constant dense<2147483647> : vector<128xi32>
    %203 = vector.multi_reduction <minsi>, %202, %cst_80 [1] : vector<128x128xi32> to vector<128xi32>
    %204 = vector.shape_cast %203 : vector<128xi32> to vector<128x1xi32>
    %205 = vector.broadcast %204 : vector<128x1xi32> to vector<128x128xi32>
    %206 = arith.cmpi eq, %198, %205 : vector<128x128xi32>
    %207 = arith.extui %206 : vector<128x128xi1> to vector<128x128xi32>
    %208 = arith.sitofp %207 : vector<128x128xi32> to vector<128x128xf32>
    %209 = arith.truncf %180 : vector<128x128xf32> to vector<128x128xbf16>
    %cst_81 = arith.constant 0.000000e+00 : f32
    %210 = vector.broadcast %cst_81 : f32 to vector<128x128xf32>
    %c0_82 = arith.constant 0 : index
    %c0_83 = arith.constant 0 : index
    %c0_84 = arith.constant 0 : index
    %211 = vector.load %arg19[%c0_82, %c0_83, %c0_84] : memref<4x128x256xbf16, #tpu.memory_space<vmem>>, vector<1x128x256xbf16>
    %212 = vector.shape_cast %211 : vector<1x128x256xbf16> to vector<128x256xbf16>
    %cst_85 = arith.constant dense<0.000000e+00> : vector<128x256xf32>
    %213 = tpu.matmul %209, %212, %cst_85 {dimension_numbers = #tpu.dot_dimension_numbers<[1], [0], [0], [1], [0, 0, 1, 1], [], []>} : vector<128x128xbf16>, vector<128x256xbf16>, vector<128x256xf32> -> vector<128x256xf32>
    %c0_86 = arith.constant 0 : index
    %c0_87 = arith.constant 0 : index
    %c0_88 = arith.constant 0 : index
    %214 = vector.load %arg20[%c0_86, %c0_87, %c0_88] : memref<4x1x256xf32, #tpu.memory_space<vmem>>, vector<1x1x256xf32>
    %215 = vector.shape_cast %214 : vector<1x1x256xf32> to vector<1x256xf32>
    %216 = vector.broadcast %215 : vector<1x256xf32> to vector<128x256xf32>
    %217 = arith.addf %213, %216 : vector<128x256xf32>
    %cst_89 = arith.constant 0.000000e+00 : f32
    %218 = vector.broadcast %cst_89 : f32 to vector<128x256xf32>
    %219 = arith.maximumf %217, %218 : vector<128x256xf32>
    %220 = arith.truncf %219 : vector<128x256xf32> to vector<128x256xbf16>
    %c0_90 = arith.constant 0 : index
    %c0_91 = arith.constant 0 : index
    %c0_92 = arith.constant 0 : index
    %221 = vector.load %arg21[%c0_90, %c0_91, %c0_92] : memref<4x256x128xbf16, #tpu.memory_space<vmem>>, vector<1x256x128xbf16>
    %222 = vector.shape_cast %221 : vector<1x256x128xbf16> to vector<256x128xbf16>
    %cst_93 = arith.constant dense<0.000000e+00> : vector<128x128xf32>
    %223 = tpu.matmul %220, %222, %cst_93 {dimension_numbers = #tpu.dot_dimension_numbers<[1], [0], [0], [1], [0, 0, 1, 1], [], []>} : vector<128x256xbf16>, vector<256x128xbf16>, vector<128x128xf32> -> vector<128x128xf32>
    %c0_94 = arith.constant 0 : index
    %c0_95 = arith.constant 0 : index
    %c0_96 = arith.constant 0 : index
    %224 = vector.load %arg22[%c0_94, %c0_95, %c0_96] : memref<4x1x128xf32, #tpu.memory_space<vmem>>, vector<1x1x128xf32>
    %225 = vector.shape_cast %224 : vector<1x1x128xf32> to vector<1x128xf32>
    %226 = vector.broadcast %225 : vector<1x128xf32> to vector<128x128xf32>
    %227 = arith.addf %223, %226 : vector<128x128xf32>
    %228 = vector.extract_strided_slice %208 {offsets = [0, 0], sizes = [128, 1], strides = [1, 1]} : vector<128x128xf32> to vector<128x1xf32>
    %229 = vector.broadcast %228 : vector<128x1xf32> to vector<128x128xf32>
    %230 = arith.mulf %229, %227 : vector<128x128xf32>
    %231 = arith.addf %210, %230 : vector<128x128xf32>
    %c1 = arith.constant 1 : index
    %c0_97 = arith.constant 0 : index
    %c0_98 = arith.constant 0 : index
    %232 = vector.load %arg19[%c1, %c0_97, %c0_98] : memref<4x128x256xbf16, #tpu.memory_space<vmem>>, vector<1x128x256xbf16>
    %233 = vector.shape_cast %232 : vector<1x128x256xbf16> to vector<128x256xbf16>
    %cst_99 = arith.constant dense<0.000000e+00> : vector<128x256xf32>
    %234 = tpu.matmul %209, %233, %cst_99 {dimension_numbers = #tpu.dot_dimension_numbers<[1], [0], [0], [1], [0, 0, 1, 1], [], []>} : vector<128x128xbf16>, vector<128x256xbf16>, vector<128x256xf32> -> vector<128x256xf32>
    %c1_100 = arith.constant 1 : index
    %c0_101 = arith.constant 0 : index
    %c0_102 = arith.constant 0 : index
    %235 = vector.load %arg20[%c1_100, %c0_101, %c0_102] : memref<4x1x256xf32, #tpu.memory_space<vmem>>, vector<1x1x256xf32>
    %236 = vector.shape_cast %235 : vector<1x1x256xf32> to vector<1x256xf32>
    %237 = vector.broadcast %236 : vector<1x256xf32> to vector<128x256xf32>
    %238 = arith.addf %234, %237 : vector<128x256xf32>
    %cst_103 = arith.constant 0.000000e+00 : f32
    %239 = vector.broadcast %cst_103 : f32 to vector<128x256xf32>
    %240 = arith.maximumf %238, %239 : vector<128x256xf32>
    %241 = arith.truncf %240 : vector<128x256xf32> to vector<128x256xbf16>
    %c1_104 = arith.constant 1 : index
    %c0_105 = arith.constant 0 : index
    %c0_106 = arith.constant 0 : index
    %242 = vector.load %arg21[%c1_104, %c0_105, %c0_106] : memref<4x256x128xbf16, #tpu.memory_space<vmem>>, vector<1x256x128xbf16>
    %243 = vector.shape_cast %242 : vector<1x256x128xbf16> to vector<256x128xbf16>
    %cst_107 = arith.constant dense<0.000000e+00> : vector<128x128xf32>
    %244 = tpu.matmul %241, %243, %cst_107 {dimension_numbers = #tpu.dot_dimension_numbers<[1], [0], [0], [1], [0, 0, 1, 1], [], []>} : vector<128x256xbf16>, vector<256x128xbf16>, vector<128x128xf32> -> vector<128x128xf32>
    %c1_108 = arith.constant 1 : index
    %c0_109 = arith.constant 0 : index
    %c0_110 = arith.constant 0 : index
    %245 = vector.load %arg22[%c1_108, %c0_109, %c0_110] : memref<4x1x128xf32, #tpu.memory_space<vmem>>, vector<1x1x128xf32>
    %246 = vector.shape_cast %245 : vector<1x1x128xf32> to vector<1x128xf32>
    %247 = vector.broadcast %246 : vector<1x128xf32> to vector<128x128xf32>
    %248 = arith.addf %244, %247 : vector<128x128xf32>
    %249 = vector.extract_strided_slice %208 {offsets = [0, 1], sizes = [128, 1], strides = [1, 1]} : vector<128x128xf32> to vector<128x1xf32>
    %250 = vector.broadcast %249 : vector<128x1xf32> to vector<128x128xf32>
    %251 = arith.mulf %250, %248 : vector<128x128xf32>
    %252 = arith.addf %231, %251 : vector<128x128xf32>
    %c2 = arith.constant 2 : index
    %c0_111 = arith.constant 0 : index
    %c0_112 = arith.constant 0 : index
    %253 = vector.load %arg19[%c2, %c0_111, %c0_112] : memref<4x128x256xbf16, #tpu.memory_space<vmem>>, vector<1x128x256xbf16>
    %254 = vector.shape_cast %253 : vector<1x128x256xbf16> to vector<128x256xbf16>
    %cst_113 = arith.constant dense<0.000000e+00> : vector<128x256xf32>
    %255 = tpu.matmul %209, %254, %cst_113 {dimension_numbers = #tpu.dot_dimension_numbers<[1], [0], [0], [1], [0, 0, 1, 1], [], []>} : vector<128x128xbf16>, vector<128x256xbf16>, vector<128x256xf32> -> vector<128x256xf32>
    %c2_114 = arith.constant 2 : index
    %c0_115 = arith.constant 0 : index
    %c0_116 = arith.constant 0 : index
    %256 = vector.load %arg20[%c2_114, %c0_115, %c0_116] : memref<4x1x256xf32, #tpu.memory_space<vmem>>, vector<1x1x256xf32>
    %257 = vector.shape_cast %256 : vector<1x1x256xf32> to vector<1x256xf32>
    %258 = vector.broadcast %257 : vector<1x256xf32> to vector<128x256xf32>
    %259 = arith.addf %255, %258 : vector<128x256xf32>
    %cst_117 = arith.constant 0.000000e+00 : f32
    %260 = vector.broadcast %cst_117 : f32 to vector<128x256xf32>
    %261 = arith.maximumf %259, %260 : vector<128x256xf32>
    %262 = arith.truncf %261 : vector<128x256xf32> to vector<128x256xbf16>
    %c2_118 = arith.constant 2 : index
    %c0_119 = arith.constant 0 : index
    %c0_120 = arith.constant 0 : index
    %263 = vector.load %arg21[%c2_118, %c0_119, %c0_120] : memref<4x256x128xbf16, #tpu.memory_space<vmem>>, vector<1x256x128xbf16>
    %264 = vector.shape_cast %263 : vector<1x256x128xbf16> to vector<256x128xbf16>
    %cst_121 = arith.constant dense<0.000000e+00> : vector<128x128xf32>
    %265 = tpu.matmul %262, %264, %cst_121 {dimension_numbers = #tpu.dot_dimension_numbers<[1], [0], [0], [1], [0, 0, 1, 1], [], []>} : vector<128x256xbf16>, vector<256x128xbf16>, vector<128x128xf32> -> vector<128x128xf32>
    %c2_122 = arith.constant 2 : index
    %c0_123 = arith.constant 0 : index
    %c0_124 = arith.constant 0 : index
    %266 = vector.load %arg22[%c2_122, %c0_123, %c0_124] : memref<4x1x128xf32, #tpu.memory_space<vmem>>, vector<1x1x128xf32>
    %267 = vector.shape_cast %266 : vector<1x1x128xf32> to vector<1x128xf32>
    %268 = vector.broadcast %267 : vector<1x128xf32> to vector<128x128xf32>
    %269 = arith.addf %265, %268 : vector<128x128xf32>
    %270 = vector.extract_strided_slice %208 {offsets = [0, 2], sizes = [128, 1], strides = [1, 1]} : vector<128x128xf32> to vector<128x1xf32>
    %271 = vector.broadcast %270 : vector<128x1xf32> to vector<128x128xf32>
    %272 = arith.mulf %271, %269 : vector<128x128xf32>
    %273 = arith.addf %252, %272 : vector<128x128xf32>
    %c3 = arith.constant 3 : index
    %c0_125 = arith.constant 0 : index
    %c0_126 = arith.constant 0 : index
    %274 = vector.load %arg19[%c3, %c0_125, %c0_126] : memref<4x128x256xbf16, #tpu.memory_space<vmem>>, vector<1x128x256xbf16>
    %275 = vector.shape_cast %274 : vector<1x128x256xbf16> to vector<128x256xbf16>
    %cst_127 = arith.constant dense<0.000000e+00> : vector<128x256xf32>
    %276 = tpu.matmul %209, %275, %cst_127 {dimension_numbers = #tpu.dot_dimension_numbers<[1], [0], [0], [1], [0, 0, 1, 1], [], []>} : vector<128x128xbf16>, vector<128x256xbf16>, vector<128x256xf32> -> vector<128x256xf32>
    %c3_128 = arith.constant 3 : index
    %c0_129 = arith.constant 0 : index
    %c0_130 = arith.constant 0 : index
    %277 = vector.load %arg20[%c3_128, %c0_129, %c0_130] : memref<4x1x256xf32, #tpu.memory_space<vmem>>, vector<1x1x256xf32>
    %278 = vector.shape_cast %277 : vector<1x1x256xf32> to vector<1x256xf32>
    %279 = vector.broadcast %278 : vector<1x256xf32> to vector<128x256xf32>
    %280 = arith.addf %276, %279 : vector<128x256xf32>
    %cst_131 = arith.constant 0.000000e+00 : f32
    %281 = vector.broadcast %cst_131 : f32 to vector<128x256xf32>
    %282 = arith.maximumf %280, %281 : vector<128x256xf32>
    %283 = arith.truncf %282 : vector<128x256xf32> to vector<128x256xbf16>
    %c3_132 = arith.constant 3 : index
    %c0_133 = arith.constant 0 : index
    %c0_134 = arith.constant 0 : index
    %284 = vector.load %arg21[%c3_132, %c0_133, %c0_134] : memref<4x256x128xbf16, #tpu.memory_space<vmem>>, vector<1x256x128xbf16>
    %285 = vector.shape_cast %284 : vector<1x256x128xbf16> to vector<256x128xbf16>
    %cst_135 = arith.constant dense<0.000000e+00> : vector<128x128xf32>
    %286 = tpu.matmul %283, %285, %cst_135 {dimension_numbers = #tpu.dot_dimension_numbers<[1], [0], [0], [1], [0, 0, 1, 1], [], []>} : vector<128x256xbf16>, vector<256x128xbf16>, vector<128x128xf32> -> vector<128x128xf32>
    %c3_136 = arith.constant 3 : index
    %c0_137 = arith.constant 0 : index
    %c0_138 = arith.constant 0 : index
    %287 = vector.load %arg22[%c3_136, %c0_137, %c0_138] : memref<4x1x128xf32, #tpu.memory_space<vmem>>, vector<1x1x128xf32>
    %288 = vector.shape_cast %287 : vector<1x1x128xf32> to vector<1x128xf32>
    %289 = vector.broadcast %288 : vector<1x128xf32> to vector<128x128xf32>
    %290 = arith.addf %286, %289 : vector<128x128xf32>
    %291 = vector.extract_strided_slice %208 {offsets = [0, 3], sizes = [128, 1], strides = [1, 1]} : vector<128x128xf32> to vector<128x1xf32>
    %292 = vector.broadcast %291 : vector<128x1xf32> to vector<128x128xf32>
    %293 = arith.mulf %292, %290 : vector<128x128xf32>
    %294 = arith.addf %273, %293 : vector<128x128xf32>
    %295 = vector.broadcast %197 : vector<128x1xf32> to vector<128x128xf32>
    %296 = arith.mulf %294, %295 : vector<128x128xf32>
    %297 = arith.addf %158, %296 : vector<128x128xf32>
    %c0_139 = arith.constant 0 : index
    %c0_140 = arith.constant 0 : index
    %298 = vector.load %arg15[%c0_139, %c0_140] : memref<1x128xf32, #tpu.memory_space<vmem>>, vector<1x128xf32>
    %c0_141 = arith.constant 0 : index
    %c0_142 = arith.constant 0 : index
    %299 = vector.load %arg16[%c0_141, %c0_142] : memref<1x128xf32, #tpu.memory_space<vmem>>, vector<1x128xf32>
    %cst_143 = arith.constant dense<0.000000e+00> : vector<128xf32>
    %300 = vector.multi_reduction <add>, %297, %cst_143 [1] : vector<128x128xf32> to vector<128xf32>
    %301 = vector.shape_cast %300 : vector<128xf32> to vector<128x1xf32>
    %cst_144 = arith.constant 1.280000e+02 : f32
    %302 = vector.broadcast %cst_144 : f32 to vector<128x1xf32>
    %303 = arith.divf %301, %302 : vector<128x1xf32>
    %304 = vector.broadcast %303 : vector<128x1xf32> to vector<128x128xf32>
    %305 = arith.subf %297, %304 : vector<128x128xf32>
    %306 = arith.mulf %305, %305 : vector<128x128xf32>
    %cst_145 = arith.constant dense<0.000000e+00> : vector<128xf32>
    %307 = vector.multi_reduction <add>, %306, %cst_145 [1] : vector<128x128xf32> to vector<128xf32>
    %308 = vector.shape_cast %307 : vector<128xf32> to vector<128x1xf32>
    %cst_146 = arith.constant 1.280000e+02 : f32
    %309 = vector.broadcast %cst_146 : f32 to vector<128x1xf32>
    %310 = arith.divf %308, %309 : vector<128x1xf32>
    %cst_147 = arith.constant 9.99999974E-6 : f32
    %311 = vector.broadcast %cst_147 : f32 to vector<128x1xf32>
    %312 = arith.addf %310, %311 : vector<128x1xf32>
    %313 = math.rsqrt %312 : vector<128x1xf32>
    %314 = vector.broadcast %313 : vector<128x1xf32> to vector<128x128xf32>
    %315 = arith.mulf %305, %314 : vector<128x128xf32>
    %316 = vector.broadcast %298 : vector<1x128xf32> to vector<128x128xf32>
    %317 = arith.mulf %315, %316 : vector<128x128xf32>
    %318 = vector.broadcast %299 : vector<1x128xf32> to vector<128x128xf32>
    %319 = arith.addf %317, %318 : vector<128x128xf32>
    %320 = arith.truncf %319 : vector<128x128xf32> to vector<128x128xbf16>
    %c0_148 = arith.constant 0 : index
    %c0_149 = arith.constant 0 : index
    %321 = vector.load %arg23[%c0_148, %c0_149] : memref<128x128xbf16, #tpu.memory_space<vmem>>, vector<128x128xbf16>
    %cst_150 = arith.constant dense<0.000000e+00> : vector<128x128xf32>
    %322 = tpu.matmul %320, %321, %cst_150 {dimension_numbers = #tpu.dot_dimension_numbers<[1], [0], [0], [1], [0, 0, 1, 1], [], []>} : vector<128x128xbf16>, vector<128x128xbf16>, vector<128x128xf32> -> vector<128x128xf32>
    %c0_151 = arith.constant 0 : index
    %c0_152 = arith.constant 0 : index
    %323 = vector.load %arg24[%c0_151, %c0_152] : memref<1x128xf32, #tpu.memory_space<vmem>>, vector<1x128xf32>
    %324 = vector.broadcast %323 : vector<1x128xf32> to vector<128x128xf32>
    %325 = arith.addf %322, %324 : vector<128x128xf32>
    %c0_153 = arith.constant 0 : index
    %c0_154 = arith.constant 0 : index
    %326 = vector.load %arg25[%c0_153, %c0_154] : memref<128x128xf32, #tpu.memory_space<vmem>>, vector<128x128xf32>
    tpu.vector_store %arg25[%c0_153, %c0_154], %325 {strides = array<i32>} : memref<128x128xf32, #tpu.memory_space<vmem>>, vector<128x128xf32>,
    %c0_155 = arith.constant 0 : index
    %c0_156 = arith.constant 0 : index
    %327 = vector.load %arg26[%c0_155, %c0_156] : memref<128x128xf32, #tpu.memory_space<vmem>>, vector<128x128xf32>
    tpu.vector_store %arg26[%c0_155, %c0_156], %195 {strides = array<i32>} : memref<128x128xf32, #tpu.memory_space<vmem>>, vector<128x128xf32>,
    return
  }
  func.func @transform_0(%arg0: i32) -> (i32, i32) {
    %c0_i32 = arith.constant 0 : i32
    %c0_i32_0 = arith.constant 0 : i32
    return %arg0, %c0_i32 : i32, i32
  }
  func.func @transform_1(%arg0: i32) -> (i32, i32) {
    %c0_i32 = arith.constant 0 : i32
    %c0_i32_0 = arith.constant 0 : i32
    %c0_i32_1 = arith.constant 0 : i32
    return %c0_i32, %c0_i32_0 : i32, i32
  }
  func.func @transform_2(%arg0: i32) -> (i32, i32) {
    %c0_i32 = arith.constant 0 : i32
    %c0_i32_0 = arith.constant 0 : i32
    %c0_i32_1 = arith.constant 0 : i32
    return %c0_i32, %c0_i32_0 : i32, i32
  }
  func.func @transform_3(%arg0: i32) -> (i32, i32) {
    %c0_i32 = arith.constant 0 : i32
    %c0_i32_0 = arith.constant 0 : i32
    %c0_i32_1 = arith.constant 0 : i32
    return %c0_i32, %c0_i32_0 : i32, i32
  }
  func.func @transform_4(%arg0: i32) -> (i32, i32) {
    %c0_i32 = arith.constant 0 : i32
    %c0_i32_0 = arith.constant 0 : i32
    %c0_i32_1 = arith.constant 0 : i32
    return %c0_i32, %c0_i32_0 : i32, i32
  }
  func.func @transform_5(%arg0: i32) -> (i32, i32) {
    %c0_i32 = arith.constant 0 : i32
    %c0_i32_0 = arith.constant 0 : i32
    %c0_i32_1 = arith.constant 0 : i32
    return %c0_i32, %c0_i32_0 : i32, i32
  }
  func.func @transform_6(%arg0: i32) -> (i32, i32) {
    %c0_i32 = arith.constant 0 : i32
    %c0_i32_0 = arith.constant 0 : i32
    %c0_i32_1 = arith.constant 0 : i32
    return %c0_i32, %c0_i32_0 : i32, i32
  }
  func.func @transform_7(%arg0: i32) -> (i32, i32) {
    %c0_i32 = arith.constant 0 : i32
    %c0_i32_0 = arith.constant 0 : i32
    %c0_i32_1 = arith.constant 0 : i32
    return %c0_i32, %c0_i32_0 : i32, i32
  }
  func.func @transform_8(%arg0: i32) -> (i32, i32) {
    %c0_i32 = arith.constant 0 : i32
    %c0_i32_0 = arith.constant 0 : i32
    %c0_i32_1 = arith.constant 0 : i32
    return %c0_i32, %c0_i32_0 : i32, i32
  }
  func.func @transform_9(%arg0: i32) -> (i32, i32) {
    %c0_i32 = arith.constant 0 : i32
    %c0_i32_0 = arith.constant 0 : i32
    %c0_i32_1 = arith.constant 0 : i32
    return %c0_i32, %c0_i32_0 : i32, i32
  }
  func.func @transform_10(%arg0: i32) -> (i32, i32) {
    %c0_i32 = arith.constant 0 : i32
    %c0_i32_0 = arith.constant 0 : i32
    %c0_i32_1 = arith.constant 0 : i32
    return %c0_i32, %c0_i32_0 : i32, i32
  }
  func.func @transform_11(%arg0: i32) -> (i32, i32) {
    %c0_i32 = arith.constant 0 : i32
    %c0_i32_0 = arith.constant 0 : i32
    %c0_i32_1 = arith.constant 0 : i32
    return %c0_i32, %c0_i32_0 : i32, i32
  }
  func.func @transform_12(%arg0: i32) -> (i32, i32) {
    %c0_i32 = arith.constant 0 : i32
    %c0_i32_0 = arith.constant 0 : i32
    %c0_i32_1 = arith.constant 0 : i32
    return %c0_i32, %c0_i32_0 : i32, i32
  }
  func.func @transform_13(%arg0: i32) -> (i32, i32) {
    %c0_i32 = arith.constant 0 : i32
    %c0_i32_0 = arith.constant 0 : i32
    %c0_i32_1 = arith.constant 0 : i32
    return %c0_i32, %c0_i32_0 : i32, i32
  }
  func.func @transform_14(%arg0: i32) -> (i32, i32) {
    %c0_i32 = arith.constant 0 : i32
    %c0_i32_0 = arith.constant 0 : i32
    %c0_i32_1 = arith.constant 0 : i32
    return %c0_i32, %c0_i32_0 : i32, i32
  }
  func.func @transform_15(%arg0: i32) -> (i32, i32) {
    %c0_i32 = arith.constant 0 : i32
    %c0_i32_0 = arith.constant 0 : i32
    %c0_i32_1 = arith.constant 0 : i32
    return %c0_i32, %c0_i32_0 : i32, i32
  }
  func.func @transform_16(%arg0: i32) -> (i32, i32) {
    %c0_i32 = arith.constant 0 : i32
    %c0_i32_0 = arith.constant 0 : i32
    %c0_i32_1 = arith.constant 0 : i32
    return %c0_i32, %c0_i32_0 : i32, i32
  }
  func.func @transform_17(%arg0: i32) -> (i32, i32) {
    %c0_i32 = arith.constant 0 : i32
    %c0_i32_0 = arith.constant 0 : i32
    %c0_i32_1 = arith.constant 0 : i32
    return %c0_i32, %c0_i32_0 : i32, i32
  }
  func.func @transform_18(%arg0: i32) -> (i32, i32, i32) {
    %c0_i32 = arith.constant 0 : i32
    %c0_i32_0 = arith.constant 0 : i32
    %c0_i32_1 = arith.constant 0 : i32
    %c0_i32_2 = arith.constant 0 : i32
    return %c0_i32, %c0_i32_0, %c0_i32_1 : i32, i32, i32
  }
  func.func @transform_19(%arg0: i32) -> (i32, i32, i32) {
    %c0_i32 = arith.constant 0 : i32
    %c0_i32_0 = arith.constant 0 : i32
    %c0_i32_1 = arith.constant 0 : i32
    %c0_i32_2 = arith.constant 0 : i32
    return %c0_i32, %c0_i32_0, %c0_i32_1 : i32, i32, i32
  }
  func.func @transform_20(%arg0: i32) -> (i32, i32, i32) {
    %c0_i32 = arith.constant 0 : i32
    %c0_i32_0 = arith.constant 0 : i32
    %c0_i32_1 = arith.constant 0 : i32
    %c0_i32_2 = arith.constant 0 : i32
    return %c0_i32, %c0_i32_0, %c0_i32_1 : i32, i32, i32
  }
  func.func @transform_21(%arg0: i32) -> (i32, i32, i32) {
    %c0_i32 = arith.constant 0 : i32
    %c0_i32_0 = arith.constant 0 : i32
    %c0_i32_1 = arith.constant 0 : i32
    %c0_i32_2 = arith.constant 0 : i32
    return %c0_i32, %c0_i32_0, %c0_i32_1 : i32, i32, i32
  }
  func.func @transform_22(%arg0: i32) -> (i32, i32) {
    %c0_i32 = arith.constant 0 : i32
    %c0_i32_0 = arith.constant 0 : i32
    %c0_i32_1 = arith.constant 0 : i32
    return %c0_i32, %c0_i32_0 : i32, i32
  }
  func.func @transform_23(%arg0: i32) -> (i32, i32) {
    %c0_i32 = arith.constant 0 : i32
    %c0_i32_0 = arith.constant 0 : i32
    %c0_i32_1 = arith.constant 0 : i32
    return %c0_i32, %c0_i32_0 : i32, i32
  }
  func.func @transform_24(%arg0: i32) -> (i32, i32) {
    %c0_i32 = arith.constant 0 : i32
    %c0_i32_0 = arith.constant 0 : i32
    return %arg0, %c0_i32 : i32, i32
  }
  func.func @transform_25(%arg0: i32) -> (i32, i32) {
    %c0_i32 = arith.constant 0 : i32
    %c0_i32_0 = arith.constant 0 : i32
    return %arg0, %c0_i32 : i32, i32
  }
}

</mosaic_0001>

<llo_original>
// kernel: tpu_custom_call.1
$region0: #{tpu_custom_call.1}
  #allocation0 [shape = 'u32[]', space=smem, size = 0x4, offset = 0x4, fixed_abs, tag = 'smem constant byte address 0x4 - core index']
  #allocation1 [shape = 'u32[72,128]{1,0:T(1,128)}', space=vmem, size = 0x9000, scoped, tag = 'internal scratch']
  #allocation2 [shape = 'f32[128,128]{1,0:T(8,128)}', space=vmem, size = 0x10000, scoped, tag = 'scratch operand']
  %s0 = inlined_call_operand.vmem [shape: s32[128,1], index: 0, kind: input, shape index: {}]
  %s1 = inlined_call_operand.vmem [shape: f32[128,128], index: 1, kind: input, shape index: {}]
  %s2 = inlined_call_operand.hbm [shape: bf16[128,128], index: 2, kind: input, shape index: {}]
  %s3 = inlined_call_operand.hbm [shape: f32[1,128], index: 3, kind: input, shape index: {}]
  %s4 = inlined_call_operand.hbm [shape: bf16[128,128], index: 4, kind: input, shape index: {}]
  %s5 = inlined_call_operand.hbm [shape: f32[1,128], index: 5, kind: input, shape index: {}]
  %s6 = inlined_call_operand.hbm [shape: bf16[128,128], index: 6, kind: input, shape index: {}]
  %s7 = inlined_call_operand.hbm [shape: f32[1,128], index: 7, kind: input, shape index: {}]
  %s8 = inlined_call_operand.hbm [shape: bf16[128,128], index: 8, kind: input, shape index: {}]
  %s9 = inlined_call_operand.hbm [shape: f32[1,128], index: 9, kind: input, shape index: {}]
  %s10 = inlined_call_operand.hbm [shape: f32[1,128], index: 10, kind: input, shape index: {}]
  %s11 = inlined_call_operand.hbm [shape: f32[1,128], index: 11, kind: input, shape index: {}]
  %s12 = inlined_call_operand.hbm [shape: f32[1,128], index: 12, kind: input, shape index: {}]
  %s13 = inlined_call_operand.hbm [shape: f32[1,128], index: 13, kind: input, shape index: {}]
  %s14 = inlined_call_operand.vmem [shape: f32[1,128], index: 14, kind: input, shape index: {}]
  %s15 = inlined_call_operand.vmem [shape: f32[1,128], index: 15, kind: input, shape index: {}]
  %s16 = inlined_call_operand.hbm [shape: f32[128,128], index: 16, kind: input, shape index: {}]
  %s17 = inlined_call_operand.vmem [shape: f32[1,128], index: 17, kind: input, shape index: {}]
  %s18 = inlined_call_operand.hbm [shape: bf16[4,128,256], index: 18, kind: input, shape index: {}]
  %s19 = inlined_call_operand.vmem [shape: f32[4,1,256], index: 19, kind: input, shape index: {}]
  %s20 = inlined_call_operand.hbm [shape: bf16[4,256,128], index: 20, kind: input, shape index: {}]
  %s21 = inlined_call_operand.vmem [shape: f32[4,1,128], index: 21, kind: input, shape index: {}]
  %s22 = inlined_call_operand.hbm [shape: bf16[128,128], index: 22, kind: input, shape index: {}]
  %s23 = inlined_call_operand.vmem [shape: f32[1,128], index: 23, kind: input, shape index: {}]
  %s24 = inlined_call_operand.hbm [shape: f32[128,128], index: 24, kind: output, shape index: {0}]
  %s25 = inlined_call_operand.hbm [shape: f32[128,128], index: 25, kind: output, shape index: {1}]
  %26 = xla_tuple %s24, %s25
  %s27 = sld [smem:[#allocation0]]
  $region178: #{tpu_custom_call.1} parent=0
    _
  %s29 = ssub.s32 1, %s27
  %s30 = scalar_select 0, %s29, %s27
  $region1: #{tpu_custom_call.1} parent=0
    #allocation3 [shape = 'u8[32768]{0}', space=vmem, size = 0x8000, scoped, tag = 'input window, operand 2, single buffered']
    #allocation4 [shape = 's32[1]{0}', space=sflag, size = 0x4, scoped, tag = 'scoped memory for tpu_custom_call.1']
    #allocation5 [shape = 's32[1]{0}', space=sflag, size = 0x4, scoped, tag = 'scoped memory for tpu_custom_call.1']
    #allocation6 [shape = 'u8[512]{0}', space=vmem, size = 0x400, scoped, tag = 'input window, operand 3, single buffered']
    #allocation7 [shape = 's32[1]{0}', space=sflag, size = 0x4, scoped, tag = 'scoped memory for tpu_custom_call.1']
    #allocation8 [shape = 'u8[32768]{0}', space=vmem, size = 0x8000, scoped, tag = 'input window, operand 4, single buffered']
    #allocation9 [shape = 'u8[512]{0}', space=vmem, size = 0x400, scoped, tag = 'input window, operand 5, single buffered']
    #allocation10 [shape = 's32[1]{0}', space=sflag, size = 0x4, scoped, tag = 'scoped memory for tpu_custom_call.1']
    #allocation11 [shape = 'u8[32768]{0}', space=vmem, size = 0x8000, scoped, tag = 'input window, operand 6, single buffered']
    #allocation12 [shape = 'u8[512]{0}', space=vmem, size = 0x400, scoped, tag = 'input window, operand 7, single buffered']
    #allocation13 [shape = 's32[1]{0}', space=sflag, size = 0x4, scoped, tag = 'scoped memory for tpu_custom_call.1']
    #allocation14 [shape = 'u8[32768]{0}', space=vmem, size = 0x8000, scoped, tag = 'input window, operand 8, single buffered']
    #allocation15 [shape = 'u8[512]{0}', space=vmem, size = 0x400, scoped, tag = 'input window, operand 9, single buffered']
    #allocation16 [shape = 's32[1]{0}', space=sflag, size = 0x4, scoped, tag = 'scoped memory for tpu_custom_call.1']
    #allocation17 [shape = 'u8[512]{0}', space=vmem, size = 0x400, scoped, tag = 'input window, operand 10, single buffered']
    #allocation18 [shape = 'u8[512]{0}', space=vmem, size = 0x400, scoped, tag = 'input window, operand 11, single buffered']
    #allocation19 [shape = 's32[1]{0}', space=sflag, size = 0x4, scoped, tag = 'scoped memory for tpu_custom_call.1']
    #allocation20 [shape = 'u8[512]{0}', space=vmem, size = 0x400, scoped, tag = 'input window, operand 12, single buffered']
    #allocation21 [shape = 'u8[512]{0}', space=vmem, size = 0x400, scoped, tag = 'input window, operand 13, single buffered']
    #allocation22 [shape = 's32[1]{0}', space=sflag, size = 0x4, scoped, tag = 'scoped memory for tpu_custom_call.1']
    #allocation23 [shape = 'u8[65536]{0}', space=vmem, size = 0x10000, scoped, tag = 'input window, operand 16, single buffered']
    #allocation24 [shape = 'u8[262144]{0}', space=vmem, size = 0x40000, scoped, tag = 'input window, operand 18, single buffered']
    #allocation25 [shape = 's32[1]{0}', space=sflag, size = 0x4, scoped, tag = 'scoped memory for tpu_custom_call.1']
    #allocation26 [shape = 'u8[262144]{0}', space=vmem, size = 0x40000, scoped, tag = 'input window, operand 20, single buffered']
    #allocation27 [shape = 'u8[32768]{0}', space=vmem, size = 0x8000, scoped, tag = 'input window, operand 22, single buffered']
    #allocation28 [shape = 's32[1]{0}', space=sflag, size = 0x4, scoped, tag = 'scoped memory for tpu_custom_call.1']
    #allocation29 [shape = 'u8[65536]{0}', space=vmem, size = 0x10000, scoped, tag = 'output window, operand 0, single buffered']
    #allocation30 [shape = 'u8[65536]{0}', space=vmem, size = 0x10000, scoped, tag = 'output window, operand 1, single buffered']
    #allocation31 [shape = 's32[1]{0}', space=sflag, size = 0x4, scoped, tag = 'scoped memory for tpu_custom_call.1']
    %31 = vsyncpa [#allocation4], 0
    %32 = vsyncpa [#allocation7], 0
    %33 = vsyncpa [#allocation10], 0
    %34 = vsyncpa [#allocation13], 0
    %35 = vsyncpa [#allocation16], 0
    %36 = vsyncpa [#allocation19], 0
    %37 = vsyncpa [#allocation22], 0
    %38 = vsyncpa [#allocation25], 0
    %39 = vsyncpa [#allocation28], 0
    %40 = vsyncpa [#allocation5], 0
    %41 = vsyncpa [#allocation31], 0
    // Predicated region
    $region2: #{tpu_custom_call.1} parent=1 // pred_check
      _
    $region3: #{tpu_custom_call.1} parent=1 // pred_check_branch
      %43 = sbr.rel (0) target = $region5
    $region4: #{tpu_custom_call.1} parent=1 // pred_region
      _
    $region5: #{tpu_custom_call.1} parent=1 // pred_fallthru
      _
    // Predicated region
    $region6: #{tpu_custom_call.1} parent=1 // pred_check
      _
    $region7: #{tpu_custom_call.1} parent=1 // pred_check_branch
      %45 = sbr.rel (0) target = $region9
    $region8: #{tpu_custom_call.1} parent=1 // pred_region
      _
    $region9: #{tpu_custom_call.1} parent=1 // pred_fallthru
      _
    // Predicated region
    $region10: #{tpu_custom_call.1} parent=1 // pred_check
      _
    $region11: #{tpu_custom_call.1} parent=1 // pred_check_branch
      %47 = sbr.rel (0) target = $region13
    $region12: #{tpu_custom_call.1} parent=1 // pred_region
      %49 = vsyncadd [#allocation4], 0
      %s50 = sshll.u32 %s2, 4
      %s51 = int_to_ptr.hbm [resolvable:$true] %s50
      %s52 = sshll.u32 [#allocation3], 4
      %s53 = int_to_ptr.vmem [resolvable:$true] %s52
      %58 = dma.hbm_to_vmem [thread:$0]  %s51, 1024, %s53, [#allocation4], 64, 64, 4
    $region13: #{tpu_custom_call.1} parent=1 // pred_fallthru
      _
    // Predicated region
    $region14: #{tpu_custom_call.1} parent=1 // pred_check
      _
    $region15: #{tpu_custom_call.1} parent=1 // pred_check_branch
      %60 = sbr.rel (0) target = $region17
    $region16: #{tpu_custom_call.1} parent=1 // pred_region
      %62 = vsyncadd [#allocation7], 0
      %s64 = sshll.u32 %s3, 4
      %s65 = int_to_ptr.hbm [resolvable:$true] %s64
      %s66 = sshll.u32 [#allocation6], 4
      %s67 = int_to_ptr.vmem [resolvable:$true] %s66
      %69 = dma.hbm_to_vmem [thread:$0]  %s65, 16, %s67, [#allocation7]
    $region17: #{tpu_custom_call.1} parent=1 // pred_fallthru
      _
    // Predicated region
    $region18: #{tpu_custom_call.1} parent=1 // pred_check
      _
    $region19: #{tpu_custom_call.1} parent=1 // pred_check_branch
      %71 = sbr.rel (0) target = $region21
    $region20: #{tpu_custom_call.1} parent=1 // pred_region
      %73 = vsyncadd [#allocation7], 0
      %s74 = sshll.u32 %s4, 4
      %s75 = int_to_ptr.hbm [resolvable:$true] %s74
      %s76 = sshll.u32 [#allocation8], 4
      %s77 = int_to_ptr.vmem [resolvable:$true] %s76
      %82 = dma.hbm_to_vmem [thread:$0]  %s75, 1024, %s77, [#allocation7], 64, 64, 4
    $region21: #{tpu_custom_call.1} parent=1 // pred_fallthru
      _
    // Predicated region
    $region22: #{tpu_custom_call.1} parent=1 // pred_check
      _
    $region23: #{tpu_custom_call.1} parent=1 // pred_check_branch
      %84 = sbr.rel (0) target = $region25
    $region24: #{tpu_custom_call.1} parent=1 // pred_region
      %86 = vsyncadd [#allocation10], 0
      %s88 = sshll.u32 %s5, 4
      %s89 = int_to_ptr.hbm [resolvable:$true] %s88
      %s90 = sshll.u32 [#allocation9], 4
      %s91 = int_to_ptr.vmem [resolvable:$true] %s90
      %93 = dma.hbm_to_vmem [thread:$0]  %s89, 16, %s91, [#allocation10]
    $region25: #{tpu_custom_call.1} parent=1 // pred_fallthru
      _
    // Predicated region
    $region26: #{tpu_custom_call.1} parent=1 // pred_check
      _
    $region27: #{tpu_custom_call.1} parent=1 // pred_check_branch
      %95 = sbr.rel (0) target = $region29
    $region28: #{tpu_custom_call.1} parent=1 // pred_region
      %97 = vsyncadd [#allocation10], 0
      %s98 = sshll.u32 %s6, 4
      %s99 = int_to_ptr.hbm [resolvable:$true] %s98
      %s100 = sshll.u32 [#allocation11], 4
      %s101 = int_to_ptr.vmem [resolvable:$true] %s100
      %106 = dma.hbm_to_vmem [thread:$0]  %s99, 1024, %s101, [#allocation10], 64, 64, 4
    $region29: #{tpu_custom_call.1} parent=1 // pred_fallthru
      _
    // Predicated region
    $region30: #{tpu_custom_call.1} parent=1 // pred_check
      _
    $region31: #{tpu_custom_call.1} parent=1 // pred_check_branch
      %108 = sbr.rel (0) target = $region33
    $region32: #{tpu_custom_call.1} parent=1 // pred_region
      %110 = vsyncadd [#allocation13], 0
      %s112 = sshll.u32 %s7, 4
      %s113 = int_to_ptr.hbm [resolvable:$true] %s112
      %s114 = sshll.u32 [#allocation12], 4
      %s115 = int_to_ptr.vmem [resolvable:$true] %s114
      %117 = dma.hbm_to_vmem [thread:$0]  %s113, 16, %s115, [#allocation13]
    $region33: #{tpu_custom_call.1} parent=1 // pred_fallthru
      _
    // Predicated region
    $region34: #{tpu_custom_call.1} parent=1 // pred_check
      _
    $region35: #{tpu_custom_call.1} parent=1 // pred_check_branch
      %119 = sbr.rel (0) target = $region37
    $region36: #{tpu_custom_call.1} parent=1 // pred_region
      %121 = vsyncadd [#allocation13], 0
      %s122 = sshll.u32 %s8, 4
      %s123 = int_to_ptr.hbm [resolvable:$true] %s122
      %s124 = sshll.u32 [#allocation14], 4
      %s125 = int_to_ptr.vmem [resolvable:$true] %s124
      %130 = dma.hbm_to_vmem [thread:$0]  %s123, 1024, %s125, [#allocation13], 64, 64, 4
    $region37: #{tpu_custom_call.1} parent=1 // pred_fallthru
      _
    // Predicated region
    $region38: #{tpu_custom_call.1} parent=1 // pred_check
      _
    $region39: #{tpu_custom_call.1} parent=1 // pred_check_branch
      %132 = sbr.rel (0) target = $region41
    $region40: #{tpu_custom_call.1} parent=1 // pred_region
      %134 = vsyncadd [#allocation16], 0
      %s136 = sshll.u32 %s9, 4
      %s137 = int_to_ptr.hbm [resolvable:$true] %s136
      %s138 = sshll.u32 [#allocation15], 4
      %s139 = int_to_ptr.vmem [resolvable:$true] %s138
      %141 = dma.hbm_to_vmem [thread:$0]  %s137, 16, %s139, [#allocation16]
    $region41: #{tpu_custom_call.1} parent=1 // pred_fallthru
      _
    // Predicated region
    $region42: #{tpu_custom_call.1} parent=1 // pred_check
      _
    $region43: #{tpu_custom_call.1} parent=1 // pred_check_branch
      %143 = sbr.rel (0) target = $region45
    $region44: #{tpu_custom_call.1} parent=1 // pred_region
      %145 = vsyncadd [#allocation16], 0
      %s147 = sshll.u32 %s10, 4
      %s148 = int_to_ptr.hbm [resolvable:$true] %s147
      %s149 = sshll.u32 [#allocation17], 4
      %s150 = int_to_ptr.vmem [resolvable:$true] %s149
      %152 = dma.hbm_to_vmem [thread:$0]  %s148, 16, %s150, [#allocation16]
    $region45: #{tpu_custom_call.1} parent=1 // pred_fallthru
      _
    // Predicated region
    $region46: #{tpu_custom_call.1} parent=1 // pred_check
      _
    $region47: #{tpu_custom_call.1} parent=1 // pred_check_branch
      %154 = sbr.rel (0) target = $region49
    $region48: #{tpu_custom_call.1} parent=1 // pred_region
      %156 = vsyncadd [#allocation19], 0
      %s158 = sshll.u32 %s11, 4
      %s159 = int_to_ptr.hbm [resolvable:$true] %s158
      %s160 = sshll.u32 [#allocation18], 4
      %s161 = int_to_ptr.vmem [resolvable:$true] %s160
      %163 = dma.hbm_to_vmem [thread:$0]  %s159, 16, %s161, [#allocation19]
    $region49: #{tpu_custom_call.1} parent=1 // pred_fallthru
      _
    // Predicated region
    $region50: #{tpu_custom_call.1} parent=1 // pred_check
      _
    $region51: #{tpu_custom_call.1} parent=1 // pred_check_branch
      %165 = sbr.rel (0) target = $region53
    $region52: #{tpu_custom_call.1} parent=1 // pred_region
      %167 = vsyncadd [#allocation19], 0
      %s169 = sshll.u32 %s12, 4
      %s170 = int_to_ptr.hbm [resolvable:$true] %s169
      %s171 = sshll.u32 [#allocation20], 4
      %s172 = int_to_ptr.vmem [resolvable:$true] %s171
      %174 = dma.hbm_to_vmem [thread:$0]  %s170, 16, %s172, [#allocation19]
    $region53: #{tpu_custom_call.1} parent=1 // pred_fallthru
      _
    // Predicated region
    $region54: #{tpu_custom_call.1} parent=1 // pred_check
      _
    $region55: #{tpu_custom_call.1} parent=1 // pred_check_branch
      %176 = sbr.rel (0) target = $region57
    $region56: #{tpu_custom_call.1} parent=1 // pred_region
      %178 = vsyncadd [#allocation22], 0
      %s180 = sshll.u32 %s13, 4
      %s181 = int_to_ptr.hbm [resolvable:$true] %s180
      %s182 = sshll.u32 [#allocation21], 4
      %s183 = int_to_ptr.vmem [resolvable:$true] %s182
      %185 = dma.hbm_to_vmem [thread:$0]  %s181, 16, %s183, [#allocation22]
    $region57: #{tpu_custom_call.1} parent=1 // pred_fallthru
      _
    // Predicated region
    $region58: #{tpu_custom_call.1} parent=1 // pred_check
      _
    $region59: #{tpu_custom_call.1} parent=1 // pred_check_branch
      %187 = sbr.rel (0) target = $region61
    $region60: #{tpu_custom_call.1} parent=1 // pred_region
      _
    $region61: #{tpu_custom_call.1} parent=1 // pred_fallthru
      _
    // Predicated region
    $region62: #{tpu_custom_call.1} parent=1 // pred_check
      _
    $region63: #{tpu_custom_call.1} parent=1 // pred_check_branch
      %189 = sbr.rel (0) target = $region65
    $region64: #{tpu_custom_call.1} parent=1 // pred_region
      _
    $region65: #{tpu_custom_call.1} parent=1 // pred_fallthru
      _
    // Predicated region
    $region66: #{tpu_custom_call.1} parent=1 // pred_check
      _
    $region67: #{tpu_custom_call.1} parent=1 // pred_check_branch
      %191 = sbr.rel (0) target = $region69
    $region68: #{tpu_custom_call.1} parent=1 // pred_region
      %193 = vsyncadd [#allocation22], 0
      %s194 = sshll.u32 %s16, 4
      %s195 = int_to_ptr.hbm [resolvable:$true] %s194
      %s196 = sshll.u32 [#allocation23], 4
      %s197 = int_to_ptr.vmem [resolvable:$true] %s196
      %202 = dma.hbm_to_vmem [thread:$0]  %s195, 2048, %s197, [#allocation22], 128, 128, 8
    $region69: #{tpu_custom_call.1} parent=1 // pred_fallthru
      _
    // Predicated region
    $region70: #{tpu_custom_call.1} parent=1 // pred_check
      _
    $region71: #{tpu_custom_call.1} parent=1 // pred_check_branch
      %204 = sbr.rel (0) target = $region73
    $region72: #{tpu_custom_call.1} parent=1 // pred_region
      _
    $region73: #{tpu_custom_call.1} parent=1 // pred_fallthru
      _
    // Predicated region
    $region74: #{tpu_custom_call.1} parent=1 // pred_check
      _
    $region75: #{tpu_custom_call.1} parent=1 // pred_check_branch
      %206 = sbr.rel (0) target = $region77
    $region76: #{tpu_custom_call.1} parent=1 // pred_region
      %208 = vsyncadd [#allocation25], 0
      %s209 = sshll.u32 %s18, 4
      %s210 = int_to_ptr.hbm [resolvable:$true] %s209
      %s211 = sshll.u32 [#allocation24], 4
      %s212 = int_to_ptr.vmem [resolvable:$true] %s211
      %217 = dma.hbm_to_vmem [thread:$0]  %s210, 8192, %s212, [#allocation25], 128, 128, 8
    $region77: #{tpu_custom_call.1} parent=1 // pred_fallthru
      _
    // Predicated region
    $region78: #{tpu_custom_call.1} parent=1 // pred_check
      _
    $region79: #{tpu_custom_call.1} parent=1 // pred_check_branch
      %219 = sbr.rel (0) target = $region81
    $region80: #{tpu_custom_call.1} parent=1 // pred_region
      _
    $region81: #{tpu_custom_call.1} parent=1 // pred_fallthru
      _
    // Predicated region
    $region82: #{tpu_custom_call.1} parent=1 // pred_check
      _
    $region83: #{tpu_custom_call.1} parent=1 // pred_check_branch
      %221 = sbr.rel (0) target = $region85
    $region84: #{tpu_custom_call.1} parent=1 // pred_region
      %223 = vsyncadd [#allocation25], 0
      %s224 = sshll.u32 %s20, 4
      %s225 = int_to_ptr.hbm [resolvable:$true] %s224
      %s226 = sshll.u32 [#allocation26], 4
      %s227 = int_to_ptr.vmem [resolvable:$true] %s226
      %232 = dma.hbm_to_vmem [thread:$0]  %s225, 8192, %s227, [#allocation25], 64, 64, 4
    $region85: #{tpu_custom_call.1} parent=1 // pred_fallthru
      _
    // Predicated region
    $region86: #{tpu_custom_call.1} parent=1 // pred_check
      _
    $region87: #{tpu_custom_call.1} parent=1 // pred_check_branch
      %234 = sbr.rel (0) target = $region89
    $region88: #{tpu_custom_call.1} parent=1 // pred_region
      _
    $region89: #{tpu_custom_call.1} parent=1 // pred_fallthru
      _
    // Predicated region
    $region90: #{tpu_custom_call.1} parent=1 // pred_check
      _
    $region91: #{tpu_custom_call.1} parent=1 // pred_check_branch
      %236 = sbr.rel (0) target = $region93
    $region92: #{tpu_custom_call.1} parent=1 // pred_region
      %238 = vsyncadd [#allocation28], 0
      %s239 = sshll.u32 %s22, 4
      %s240 = int_to_ptr.hbm [resolvable:$true] %s239
      %s241 = sshll.u32 [#allocation27], 4
      %s242 = int_to_ptr.vmem [resolvable:$true] %s241
      %247 = dma.hbm_to_vmem [thread:$0]  %s240, 1024, %s242, [#allocation28], 64, 64, 4
    $region93: #{tpu_custom_call.1} parent=1 // pred_fallthru
      _
    // Predicated region
    $region94: #{tpu_custom_call.1} parent=1 // pred_check
      _
    $region95: #{tpu_custom_call.1} parent=1 // pred_check_branch
      %249 = sbr.rel (0) target = $region97
    $region96: #{tpu_custom_call.1} parent=1 // pred_region
      _
    $region97: #{tpu_custom_call.1} parent=1 // pred_fallthru
      _
    // Predicated region
    $region98: #{tpu_custom_call.1} parent=1 // pred_check
      _
    $region99: #{tpu_custom_call.1} parent=1 // pred_check_branch
      %251 = sbr.rel (0) target = $region101
    $region100: #{tpu_custom_call.1} parent=1 // pred_region
      %253 = dma.done [#allocation4], 1024
    $region101: #{tpu_custom_call.1} parent=1 // pred_fallthru
      _
    // Predicated region
    $region102: #{tpu_custom_call.1} parent=1 // pred_check
      _
    $region103: #{tpu_custom_call.1} parent=1 // pred_check_branch
      %255 = sbr.rel (0) target = $region105
    $region104: #{tpu_custom_call.1} parent=1 // pred_region
      %257 = dma.done [#allocation7], 16
    $region105: #{tpu_custom_call.1} parent=1 // pred_fallthru
      _
    // Predicated region
    $region106: #{tpu_custom_call.1} parent=1 // pred_check
      _
    $region107: #{tpu_custom_call.1} parent=1 // pred_check_branch
      %259 = sbr.rel (0) target = $region109
    $region108: #{tpu_custom_call.1} parent=1 // pred_region
      %261 = dma.done [#allocation7], 1024
    $region109: #{tpu_custom_call.1} parent=1 // pred_fallthru
      _
    // Predicated region
    $region110: #{tpu_custom_call.1} parent=1 // pred_check
      _
    $region111: #{tpu_custom_call.1} parent=1 // pred_check_branch
      %263 = sbr.rel (0) target = $region113
    $region112: #{tpu_custom_call.1} parent=1 // pred_region
      %265 = dma.done [#allocation10], 16
    $region113: #{tpu_custom_call.1} parent=1 // pred_fallthru
      _
    // Predicated region
    $region114: #{tpu_custom_call.1} parent=1 // pred_check
      _
    $region115: #{tpu_custom_call.1} parent=1 // pred_check_branch
      %267 = sbr.rel (0) target = $region117
    $region116: #{tpu_custom_call.1} parent=1 // pred_region
      %269 = dma.done [#allocation10], 1024
    $region117: #{tpu_custom_call.1} parent=1 // pred_fallthru
      _
    // Predicated region
    $region118: #{tpu_custom_call.1} parent=1 // pred_check
      _
    $region119: #{tpu_custom_call.1} parent=1 // pred_check_branch
      %271 = sbr.rel (0) target = $region121
    $region120: #{tpu_custom_call.1} parent=1 // pred_region
      %273 = dma.done [#allocation13], 16
    $region121: #{tpu_custom_call.1} parent=1 // pred_fallthru
      _
    // Predicated region
    $region122: #{tpu_custom_call.1} parent=1 // pred_check
      _
    $region123: #{tpu_custom_call.1} parent=1 // pred_check_branch
      %275 = sbr.rel (0) target = $region125
    $region124: #{tpu_custom_call.1} parent=1 // pred_region
      %277 = dma.done [#allocation13], 1024
    $region125: #{tpu_custom_call.1} parent=1 // pred_fallthru
      _
    // Predicated region
    $region126: #{tpu_custom_call.1} parent=1 // pred_check
      _
    $region127: #{tpu_custom_call.1} parent=1 // pred_check_branch
      %279 = sbr.rel (0) target = $region129
    $region128: #{tpu_custom_call.1} parent=1 // pred_region
      %281 = dma.done [#allocation16], 16
    $region129: #{tpu_custom_call.1} parent=1 // pred_fallthru
      _
    // Predicated region
    $region130: #{tpu_custom_call.1} parent=1 // pred_check
      _
    $region131: #{tpu_custom_call.1} parent=1 // pred_check_branch
      %283 = sbr.rel (0) target = $region133
    $region132: #{tpu_custom_call.1} parent=1 // pred_region
      %285 = dma.done [#allocation16], 16
    $region133: #{tpu_custom_call.1} parent=1 // pred_fallthru
      _
    // Predicated region
    $region134: #{tpu_custom_call.1} parent=1 // pred_check
      _
    $region135: #{tpu_custom_call.1} parent=1 // pred_check_branch
      %287 = sbr.rel (0) target = $region137
    $region136: #{tpu_custom_call.1} parent=1 // pred_region
      %289 = dma.done [#allocation19], 16
    $region137: #{tpu_custom_call.1} parent=1 // pred_fallthru
      _
    // Predicated region
    $region138: #{tpu_custom_call.1} parent=1 // pred_check
      _
    $region139: #{tpu_custom_call.1} parent=1 // pred_check_branch
      %291 = sbr.rel (0) target = $region141
    $region140: #{tpu_custom_call.1} parent=1 // pred_region
      %293 = dma.done [#allocation19], 16
    $region141: #{tpu_custom_call.1} parent=1 // pred_fallthru
      _
    // Predicated region
    $region142: #{tpu_custom_call.1} parent=1 // pred_check
      _
    $region143: #{tpu_custom_call.1} parent=1 // pred_check_branch
      %295 = sbr.rel (0) target = $region145
    $region144: #{tpu_custom_call.1} parent=1 // pred_region
      %297 = dma.done [#allocation22], 16
    $region145: #{tpu_custom_call.1} parent=1 // pred_fallthru
      _
    // Predicated region
    $region146: #{tpu_custom_call.1} parent=1 // pred_check
      _
    $region147: #{tpu_custom_call.1} parent=1 // pred_check_branch
      %299 = sbr.rel (0) target = $region149
    $region148: #{tpu_custom_call.1} parent=1 // pred_region
      %301 = dma.done [#allocation22], 2048
    $region149: #{tpu_custom_call.1} parent=1 // pred_fallthru
      _
    // Predicated region
    $region150: #{tpu_custom_call.1} parent=1 // pred_check
      _
    $region151: #{tpu_custom_call.1} parent=1 // pred_check_branch
      %303 = sbr.rel (0) target = $region153
    $region152: #{tpu_custom_call.1} parent=1 // pred_region
      %305 = dma.done [#allocation25], 8192
    $region153: #{tpu_custom_call.1} parent=1 // pred_fallthru
      _
    // Predicated region
    $region154: #{tpu_custom_call.1} parent=1 // pred_check
      _
    $region155: #{tpu_custom_call.1} parent=1 // pred_check_branch
      %307 = sbr.rel (0) target = $region157
    $region156: #{tpu_custom_call.1} parent=1 // pred_region
      %309 = dma.done [#allocation25], 8192
    $region157: #{tpu_custom_call.1} parent=1 // pred_fallthru
      _
    // Predicated region
    $region158: #{tpu_custom_call.1} parent=1 // pred_check
      _
    $region159: #{tpu_custom_call.1} parent=1 // pred_check_branch
      %311 = sbr.rel (0) target = $region161
    $region160: #{tpu_custom_call.1} parent=1 // pred_region
      %313 = dma.done [#allocation28], 1024
    $region161: #{tpu_custom_call.1} parent=1 // pred_fallthru
      _
    %v315 = vld [vmem:[%s0] sm:$0xff]
    %v316 = vld [vmem:[%s0 + $0x8] sm:$0xff]
    %v317 = vld [vmem:[%s0 + $0x10] sm:$0xff]
    %v318 = vld [vmem:[%s0 + $0x18] sm:$0xff]
    %v319 = vld [vmem:[%s0 + $0x20] sm:$0xff]
    %v320 = vld [vmem:[%s0 + $0x28] sm:$0xff]
    %v321 = vld [vmem:[%s0 + $0x30] sm:$0xff]
    %v322 = vld [vmem:[%s0 + $0x38] sm:$0xff]
    %v323 = vld [vmem:[%s0 + $0x40] sm:$0xff]
    %v324 = vld [vmem:[%s0 + $0x48] sm:$0xff]
    %v325 = vld [vmem:[%s0 + $0x50] sm:$0xff]
    %v326 = vld [vmem:[%s0 + $0x58] sm:$0xff]
    %v327 = vld [vmem:[%s0 + $0x60] sm:$0xff]
    %v328 = vld [vmem:[%s0 + $0x68] sm:$0xff]
    %v329 = vld [vmem:[%s0 + $0x70] sm:$0xff]
    %v330 = vld [vmem:[%s0 + $0x78] sm:$0xff]
    %v331 = vlaneseq
    %v332 = vand.u32 %v331, 127
    %333 = vset.pattern.permute.xlu0 0
    %334 = vperm.xlu0 %333, %v315
    %v335 = vpop.permute.xlu0 %334
    %336 = vset.pattern.permute.xlu0 0
    %337 = vperm.xlu0 %336, %v316
    %v338 = vpop.permute.xlu0 %337
    %339 = vset.pattern.permute.xlu0 0
    %340 = vperm.xlu0 %339, %v317
    %v341 = vpop.permute.xlu0 %340
    %342 = vset.pattern.permute.xlu0 0
    %343 = vperm.xlu0 %342, %v318
    %v344 = vpop.permute.xlu0 %343
    %345 = vset.pattern.permute.xlu0 0
    %346 = vperm.xlu0 %345, %v319
    %v347 = vpop.permute.xlu0 %346
    %348 = vset.pattern.permute.xlu0 0
    %349 = vperm.xlu0 %348, %v320
    %v350 = vpop.permute.xlu0 %349
    %351 = vset.pattern.permute.xlu0 0
    %352 = vperm.xlu0 %351, %v321
    %v353 = vpop.permute.xlu0 %352
    %354 = vset.pattern.permute.xlu0 0
    %355 = vperm.xlu0 %354, %v322
    %v356 = vpop.permute.xlu0 %355
    %357 = vset.pattern.permute.xlu0 0
    %358 = vperm.xlu0 %357, %v323
    %v359 = vpop.permute.xlu0 %358
    %360 = vset.pattern.permute.xlu0 0
    %361 = vperm.xlu0 %360, %v324
    %v362 = vpop.permute.xlu0 %361
    %363 = vset.pattern.permute.xlu0 0
    %364 = vperm.xlu0 %363, %v325
    %v365 = vpop.permute.xlu0 %364
    %366 = vset.pattern.permute.xlu0 0
    %367 = vperm.xlu0 %366, %v326
    %v368 = vpop.permute.xlu0 %367
    %369 = vset.pattern.permute.xlu0 0
    %370 = vperm.xlu0 %369, %v327
    %v371 = vpop.permute.xlu0 %370
    %372 = vset.pattern.permute.xlu0 0
    %373 = vperm.xlu0 %372, %v328
    %v374 = vpop.permute.xlu0 %373
    %375 = vset.pattern.permute.xlu0 0
    %376 = vperm.xlu0 %375, %v329
    %v377 = vpop.permute.xlu0 %376
    %378 = vset.pattern.permute.xlu0 0
    %379 = vperm.xlu0 %378, %v330
    %v380 = vpop.permute.xlu0 %379
    %vm381 = vcmp.eq.s32.totalorder %v332, %v335
    %vm382 = vcmp.eq.s32.totalorder %v332, %v338
    %vm383 = vcmp.eq.s32.totalorder %v332, %v341
    %vm384 = vcmp.eq.s32.totalorder %v332, %v344
    %vm385 = vcmp.eq.s32.totalorder %v332, %v347
    %vm386 = vcmp.eq.s32.totalorder %v332, %v350
    %vm387 = vcmp.eq.s32.totalorder %v332, %v353
    %vm388 = vcmp.eq.s32.totalorder %v332, %v356
    %vm389 = vcmp.eq.s32.totalorder %v332, %v359
    %vm390 = vcmp.eq.s32.totalorder %v332, %v362
    %vm391 = vcmp.eq.s32.totalorder %v332, %v365
    %vm392 = vcmp.eq.s32.totalorder %v332, %v368
    %vm393 = vcmp.eq.s32.totalorder %v332, %v371
    %vm394 = vcmp.eq.s32.totalorder %v332, %v374
    %vm395 = vcmp.eq.s32.totalorder %v332, %v377
    %vm396 = vcmp.eq.s32.totalorder %v332, %v380
    %v397 = vsel %vm381, 1, 0
    %v398 = vsel %vm382, 1, 0
    %v399 = vsel %vm383, 1, 0
    %v400 = vsel %vm384, 1, 0
    %v401 = vsel %vm385, 1, 0
    %v402 = vsel %vm386, 1, 0
    %v403 = vsel %vm387, 1, 0
    %v404 = vsel %vm388, 1, 0
    %v405 = vsel %vm389, 1, 0
    %v406 = vsel %vm390, 1, 0
    %v407 = vsel %vm391, 1, 0
    %v408 = vsel %vm392, 1, 0
    %v409 = vsel %vm393, 1, 0
    %v410 = vsel %vm394, 1, 0
    %v411 = vsel %vm395, 1, 0
    %v412 = vsel %vm396, 1, 0
    %v413 = vcvt.s32.f32 %v397
    %v414 = vcvt.s32.f32 %v398
    %v415 = vcvt.s32.f32 %v399
    %v416 = vcvt.s32.f32 %v400
    %v417 = vcvt.s32.f32 %v401
    %v418 = vcvt.s32.f32 %v402
    %v419 = vcvt.s32.f32 %v403
    %v420 = vcvt.s32.f32 %v404
    %v421 = vcvt.s32.f32 %v405
    %v422 = vcvt.s32.f32 %v406
    %v423 = vcvt.s32.f32 %v407
    %v424 = vcvt.s32.f32 %v408
    %v425 = vcvt.s32.f32 %v409
    %v426 = vcvt.s32.f32 %v410
    %v427 = vcvt.s32.f32 %v411
    %v428 = vcvt.s32.f32 %v412
    %v429 = vld [vmem:[%s1] sm:$0xff]
    %v430 = vld [vmem:[%s1 + $0x8] sm:$0xff]
    %v431 = vld [vmem:[%s1 + $0x10] sm:$0xff]
    %v432 = vld [vmem:[%s1 + $0x18] sm:$0xff]
    %v433 = vld [vmem:[%s1 + $0x20] sm:$0xff]
    %v434 = vld [vmem:[%s1 + $0x28] sm:$0xff]
    %v435 = vld [vmem:[%s1 + $0x30] sm:$0xff]
    %v436 = vld [vmem:[%s1 + $0x38] sm:$0xff]
    %v437 = vld [vmem:[%s1 + $0x40] sm:$0xff]
    %v438 = vld [vmem:[%s1 + $0x48] sm:$0xff]
    %v439 = vld [vmem:[%s1 + $0x50] sm:$0xff]
    %v440 = vld [vmem:[%s1 + $0x58] sm:$0xff]
    %v441 = vld [vmem:[%s1 + $0x60] sm:$0xff]
    %v442 = vld [vmem:[%s1 + $0x68] sm:$0xff]
    %v443 = vld [vmem:[%s1 + $0x70] sm:$0xff]
    %v444 = vld [vmem:[%s1 + $0x78] sm:$0xff]
    %445 = vmatpush.msra.mxu0 %v444
    %446 = vmatpush.msra.mxu0 %v443
    %447 = vmatpush.msra.mxu0 %v442
    %448 = vmatpush.msra.mxu0 %v441
    %449 = vmatpush.msra.mxu0 %v440
    %450 = vmatpush.msra.mxu0 %v439
    %451 = vmatpush.msra.mxu0 %v438
    %452 = vmatpush.msra.mxu0 %v437
    %453 = vmatpush.msra.mxu0 %v436
    %454 = vmatpush.msra.mxu0 %v435
    %455 = vmatpush.msra.mxu0 %v434
    %456 = vmatpush.msra.mxu0 %v433
    %457 = vmatpush.msra.mxu0 %v432
    %458 = vmatpush.msra.mxu0 %v431
    %459 = vmatpush.msra.mxu0 %v430
    %460 = vmatpush.msra.mxu0 %v429
    %461 = vmatmul.f32.gmra.mxu0 %v413
    %v462 = vpop.f32.mrf.mxu0
    %v463 = vadd.f32 0.0, %v462
    %464 = vmatmul.f32.gmra.mxu0 %v414
    %v465 = vpop.f32.mrf.mxu0
    %v466 = vadd.f32 0.0, %v465
    %467 = vmatmul.f32.gmra.mxu0 %v415
    %v468 = vpop.f32.mrf.mxu0
    %v469 = vadd.f32 0.0, %v468
    %470 = vmatmul.f32.gmra.mxu0 %v416
    %v471 = vpop.f32.mrf.mxu0
    %v472 = vadd.f32 0.0, %v471
    %473 = vmatmul.f32.gmra.mxu0 %v417
    %v474 = vpop.f32.mrf.mxu0
    %v475 = vadd.f32 0.0, %v474
    %476 = vmatmul.f32.gmra.mxu0 %v418
    %v477 = vpop.f32.mrf.mxu0
    %v478 = vadd.f32 0.0, %v477
    %479 = vmatmul.f32.gmra.mxu0 %v419
    %v480 = vpop.f32.mrf.mxu0
    %v481 = vadd.f32 0.0, %v480
    %482 = vmatmul.f32.gmra.mxu0 %v420
    %v483 = vpop.f32.mrf.mxu0
    %v484 = vadd.f32 0.0, %v483
    %485 = vmatmul.f32.gmra.mxu0 %v421
    %v486 = vpop.f32.mrf.mxu0
    %v487 = vadd.f32 0.0, %v486
    %488 = vmatmul.f32.gmra.mxu0 %v422
    %v489 = vpop.f32.mrf.mxu0
    %v490 = vadd.f32 0.0, %v489
    %491 = vmatmul.f32.gmra.mxu0 %v423
    %v492 = vpop.f32.mrf.mxu0
    %v493 = vadd.f32 0.0, %v492
    %494 = vmatmul.f32.gmra.mxu0 %v424
    %v495 = vpop.f32.mrf.mxu0
    %v496 = vadd.f32 0.0, %v495
    %497 = vmatmul.f32.gmra.mxu0 %v425
    %v498 = vpop.f32.mrf.mxu0
    %v499 = vadd.f32 0.0, %v498
    %500 = vmatmul.f32.gmra.mxu0 %v426
    %v501 = vpop.f32.mrf.mxu0
    %v502 = vadd.f32 0.0, %v501
    %503 = vmatmul.f32.gmra.mxu0 %v427
    %v504 = vpop.f32.mrf.mxu0
    %v505 = vadd.f32 0.0, %v504
    %506 = vmatmul.f32.gmra.mxu0 %v428
    %v507 = vpop.f32.mrf.mxu0
    %v508 = vadd.f32 0.0, %v507
    %509 = vdwg.mxu0
    %v510 = vld [vmem:[#allocation17] sm:$0x1]
    %v511 = vld [vmem:[#allocation18] sm:$0x1]
    %512 = vadd.xlane.f32.xlu0 %v463
    %v513 = vpop.xlane.xlu0 %512
    %514 = vadd.xlane.f32.xlu0 %v466
    %v515 = vpop.xlane.xlu0 %514
    %516 = vadd.xlane.f32.xlu0 %v469
    %v517 = vpop.xlane.xlu0 %516
    %518 = vadd.xlane.f32.xlu0 %v472
    %v519 = vpop.xlane.xlu0 %518
    %520 = vadd.xlane.f32.xlu0 %v475
    %v521 = vpop.xlane.xlu0 %520
    %522 = vadd.xlane.f32.xlu0 %v478
    %v523 = vpop.xlane.xlu0 %522
    %524 = vadd.xlane.f32.xlu0 %v481
    %v525 = vpop.xlane.xlu0 %524
    %526 = vadd.xlane.f32.xlu0 %v484
    %v527 = vpop.xlane.xlu0 %526
    %528 = vadd.xlane.f32.xlu0 %v487
    %v529 = vpop.xlane.xlu0 %528
    %530 = vadd.xlane.f32.xlu0 %v490
    %v531 = vpop.xlane.xlu0 %530
    %532 = vadd.xlane.f32.xlu0 %v493
    %v533 = vpop.xlane.xlu0 %532
    %534 = vadd.xlane.f32.xlu0 %v496
    %v535 = vpop.xlane.xlu0 %534
    %536 = vadd.xlane.f32.xlu0 %v499
    %v537 = vpop.xlane.xlu0 %536
    %538 = vadd.xlane.f32.xlu0 %v502
    %v539 = vpop.xlane.xlu0 %538
    %540 = vadd.xlane.f32.xlu0 %v505
    %v541 = vpop.xlane.xlu0 %540
    %542 = vadd.xlane.f32.xlu0 %v508
    %v543 = vpop.xlane.xlu0 %542
    %v544 = vrcp.pop 128.0
    %v545 = vmul.f32 128.0, %v544
    %v546 = vsub.f32 1.0, %v545
    %v547 = vmul.f32 %v544, %v546
    %v548 = vadd.f32 %v544, %v547
    %vm549 = vweird.f32 %v544
    %v550 = vsel %vm549, %v544, %v548
    %v551 = vmul.f32 %v513, %v550
    %v552 = vmul.f32 %v515, %v550
    %v553 = vmul.f32 %v517, %v550
    %v554 = vmul.f32 %v519, %v550
    %v555 = vmul.f32 %v521, %v550
    %v556 = vmul.f32 %v523, %v550
    %v557 = vmul.f32 %v525, %v550
    %v558 = vmul.f32 %v527, %v550
    %v559 = vmul.f32 %v529, %v550
    %v560 = vmul.f32 %v531, %v550
    %v561 = vmul.f32 %v533, %v550
    %v562 = vmul.f32 %v535, %v550
    %v563 = vmul.f32 %v537, %v550
    %v564 = vmul.f32 %v539, %v550
    %v565 = vmul.f32 %v541, %v550
    %v566 = vmul.f32 %v543, %v550
    %v567 = vsub.f32 %v463, %v551
    %v568 = vsub.f32 %v466, %v552
    %v569 = vsub.f32 %v469, %v553
    %v570 = vsub.f32 %v472, %v554
    %v571 = vsub.f32 %v475, %v555
    %v572 = vsub.f32 %v478, %v556
    %v573 = vsub.f32 %v481, %v557
    %v574 = vsub.f32 %v484, %v558
    %v575 = vsub.f32 %v487, %v559
    %v576 = vsub.f32 %v490, %v560
    %v577 = vsub.f32 %v493, %v561
    %v578 = vsub.f32 %v496, %v562
    %v579 = vsub.f32 %v499, %v563
    %v580 = vsub.f32 %v502, %v564
    %v581 = vsub.f32 %v505, %v565
    %v582 = vsub.f32 %v508, %v566
    %v583 = vmul.f32 %v567, %v567
    %v584 = vmul.f32 %v568, %v568
    %v585 = vmul.f32 %v569, %v569
    %v586 = vmul.f32 %v570, %v570
    %v587 = vmul.f32 %v571, %v571
    %v588 = vmul.f32 %v572, %v572
    %v589 = vmul.f32 %v573, %v573
    %v590 = vmul.f32 %v574, %v574
    %v591 = vmul.f32 %v575, %v575
    %v592 = vmul.f32 %v576, %v576
    %v593 = vmul.f32 %v577, %v577
    %v594 = vmul.f32 %v578, %v578
    %v595 = vmul.f32 %v579, %v579
    %v596 = vmul.f32 %v580, %v580
    %v597 = vmul.f32 %v581, %v581
    %v598 = vmul.f32 %v582, %v582
    %599 = vadd.xlane.f32.xlu0 %v583
    %v600 = vpop.xlane.xlu0 %599
    %601 = vadd.xlane.f32.xlu0 %v584
    %v602 = vpop.xlane.xlu0 %601
    %603 = vadd.xlane.f32.xlu0 %v585
    %v604 = vpop.xlane.xlu0 %603
    %605 = vadd.xlane.f32.xlu0 %v586
    %v606 = vpop.xlane.xlu0 %605
    %607 = vadd.xlane.f32.xlu0 %v587
    %v608 = vpop.xlane.xlu0 %607
    %609 = vadd.xlane.f32.xlu0 %v588
    %v610 = vpop.xlane.xlu0 %609
    %611 = vadd.xlane.f32.xlu0 %v589
    %v612 = vpop.xlane.xlu0 %611
    %613 = vadd.xlane.f32.xlu0 %v590
    %v614 = vpop.xlane.xlu0 %613
    %615 = vadd.xlane.f32.xlu0 %v591
    %v616 = vpop.xlane.xlu0 %615
    %617 = vadd.xlane.f32.xlu0 %v592
    %v618 = vpop.xlane.xlu0 %617
    %619 = vadd.xlane.f32.xlu0 %v593
    %v620 = vpop.xlane.xlu0 %619
    %621 = vadd.xlane.f32.xlu0 %v594
    %v622 = vpop.xlane.xlu0 %621
    %623 = vadd.xlane.f32.xlu0 %v595
    %v624 = vpop.xlane.xlu0 %623
    %625 = vadd.xlane.f32.xlu0 %v596
    %v626 = vpop.xlane.xlu0 %625
    %627 = vadd.xlane.f32.xlu0 %v597
    %v628 = vpop.xlane.xlu0 %627
    %629 = vadd.xlane.f32.xlu0 %v598
    %v630 = vpop.xlane.xlu0 %629
    %v631 = vmul.f32 %v600, %v550
    %v632 = vmul.f32 %v602, %v550
    %v633 = vmul.f32 %v604, %v550
    %v634 = vmul.f32 %v606, %v550
    %v635 = vmul.f32 %v608, %v550
    %v636 = vmul.f32 %v610, %v550
    %v637 = vmul.f32 %v612, %v550
    %v638 = vmul.f32 %v614, %v550
    %v639 = vmul.f32 %v616, %v550
    %v640 = vmul.f32 %v618, %v550
    %v641 = vmul.f32 %v620, %v550
    %v642 = vmul.f32 %v622, %v550
    %v643 = vmul.f32 %v624, %v550
    %v644 = vmul.f32 %v626, %v550
    %v645 = vmul.f32 %v628, %v550
    %v646 = vmul.f32 %v630, %v550
    %v647 = vadd.f32 %v631, 1e-05
    %v648 = vadd.f32 %v632, 1e-05
    %v649 = vadd.f32 %v633, 1e-05
    %v650 = vadd.f32 %v634, 1e-05
    %v651 = vadd.f32 %v635, 1e-05
    %v652 = vadd.f32 %v636, 1e-05
    %v653 = vadd.f32 %v637, 1e-05
    %v654 = vadd.f32 %v638, 1e-05
    %v655 = vadd.f32 %v639, 1e-05
    %v656 = vadd.f32 %v640, 1e-05
    %v657 = vadd.f32 %v641, 1e-05
    %v658 = vadd.f32 %v642, 1e-05
    %v659 = vadd.f32 %v643, 1e-05
    %v660 = vadd.f32 %v644, 1e-05
    %v661 = vadd.f32 %v645, 1e-05
    %v662 = vadd.f32 %v646, 1e-05
    %v663 = vrsqrt.pop %v647
    %v664 = vmul.f32 %v663, %v647
    %v665 = vmul.f32 %v664, %v663
    %v666 = vmul.f32 0.5, %v665
    %v667 = vsub.f32 1.5, %v666
    %v668 = vmul.f32 %v663, %v667
    %vm669 = vweird.f32 %v647
    %vm670 = vweird.f32 %v663
    %vm671 = vmor %vm669, %vm670
    %v672 = vsel %vm671, %v663, %v668
    %v673 = vrsqrt.pop %v648
    %v674 = vmul.f32 %v673, %v648
    %v675 = vmul.f32 %v674, %v673
    %v676 = vmul.f32 0.5, %v675
    %v677 = vsub.f32 1.5, %v676
    %v678 = vmul.f32 %v673, %v677
    %vm679 = vweird.f32 %v648
    %vm680 = vweird.f32 %v673
    %vm681 = vmor %vm679, %vm680
    %v682 = vsel %vm681, %v673, %v678
    %v683 = vrsqrt.pop %v649
    %v684 = vmul.f32 %v683, %v649
    %v685 = vmul.f32 %v684, %v683
    %v686 = vmul.f32 0.5, %v685
    %v687 = vsub.f32 1.5, %v686
    %v688 = vmul.f32 %v683, %v687
    %vm689 = vweird.f32 %v649
    %vm690 = vweird.f32 %v683
    %vm691 = vmor %vm689, %vm690
    %v692 = vsel %vm691, %v683, %v688
    %v693 = vrsqrt.pop %v650
    %v694 = vmul.f32 %v693, %v650
    %v695 = vmul.f32 %v694, %v693
    %v696 = vmul.f32 0.5, %v695
    %v697 = vsub.f32 1.5, %v696
    %v698 = vmul.f32 %v693, %v697
    %vm699 = vweird.f32 %v650
    %vm700 = vweird.f32 %v693
    %vm701 = vmor %vm699, %vm700
    %v702 = vsel %vm701, %v693, %v698
    %v703 = vrsqrt.pop %v651
    %v704 = vmul.f32 %v703, %v651
    %v705 = vmul.f32 %v704, %v703
    %v706 = vmul.f32 0.5, %v705
    %v707 = vsub.f32 1.5, %v706
    %v708 = vmul.f32 %v703, %v707
    %vm709 = vweird.f32 %v651
    %vm710 = vweird.f32 %v703
    %vm711 = vmor %vm709, %vm710
    %v712 = vsel %vm711, %v703, %v708
    %v713 = vrsqrt.pop %v652
    %v714 = vmul.f32 %v713, %v652
    %v715 = vmul.f32 %v714, %v713
    %v716 = vmul.f32 0.5, %v715
    %v717 = vsub.f32 1.5, %v716
    %v718 = vmul.f32 %v713, %v717
    %vm719 = vweird.f32 %v652
    %vm720 = vweird.f32 %v713
    %vm721 = vmor %vm719, %vm720
    %v722 = vsel %vm721, %v713, %v718
    %v723 = vrsqrt.pop %v653
    %v724 = vmul.f32 %v723, %v653
    %v725 = vmul.f32 %v724, %v723
    %v726 = vmul.f32 0.5, %v725
    %v727 = vsub.f32 1.5, %v726
    %v728 = vmul.f32 %v723, %v727
    %vm729 = vweird.f32 %v653
    %vm730 = vweird.f32 %v723
    %vm731 = vmor %vm729, %vm730
    %v732 = vsel %vm731, %v723, %v728
    %v733 = vrsqrt.pop %v654
    %v734 = vmul.f32 %v733, %v654
    %v735 = vmul.f32 %v734, %v733
    %v736 = vmul.f32 0.5, %v735
    %v737 = vsub.f32 1.5, %v736
    %v738 = vmul.f32 %v733, %v737
    %vm739 = vweird.f32 %v654
    %vm740 = vweird.f32 %v733
    %vm741 = vmor %vm739, %vm740
    %v742 = vsel %vm741, %v733, %v738
    %v743 = vrsqrt.pop %v655
    %v744 = vmul.f32 %v743, %v655
    %v745 = vmul.f32 %v744, %v743
    %v746 = vmul.f32 0.5, %v745
    %v747 = vsub.f32 1.5, %v746
    %v748 = vmul.f32 %v743, %v747
    %vm749 = vweird.f32 %v655
    %vm750 = vweird.f32 %v743
    %vm751 = vmor %vm749, %vm750
    %v752 = vsel %vm751, %v743, %v748
    %v753 = vrsqrt.pop %v656
    %v754 = vmul.f32 %v753, %v656
    %v755 = vmul.f32 %v754, %v753
    %v756 = vmul.f32 0.5, %v755
    %v757 = vsub.f32 1.5, %v756
    %v758 = vmul.f32 %v753, %v757
    %vm759 = vweird.f32 %v656
    %vm760 = vweird.f32 %v753
    %vm761 = vmor %vm759, %vm760
    %v762 = vsel %vm761, %v753, %v758
    %v763 = vrsqrt.pop %v657
    %v764 = vmul.f32 %v763, %v657
    %v765 = vmul.f32 %v764, %v763
    %v766 = vmul.f32 0.5, %v765
    %v767 = vsub.f32 1.5, %v766
    %v768 = vmul.f32 %v763, %v767
    %vm769 = vweird.f32 %v657
    %vm770 = vweird.f32 %v763
    %vm771 = vmor %vm769, %vm770
    %v772 = vsel %vm771, %v763, %v768
    %v773 = vrsqrt.pop %v658
    %v774 = vmul.f32 %v773, %v658
    %v775 = vmul.f32 %v774, %v773
    %v776 = vmul.f32 0.5, %v775
    %v777 = vsub.f32 1.5, %v776
    %v778 = vmul.f32 %v773, %v777
    %vm779 = vweird.f32 %v658
    %vm780 = vweird.f32 %v773
    %vm781 = vmor %vm779, %vm780
    %v782 = vsel %vm781, %v773, %v778
    %v783 = vrsqrt.pop %v659
    %v784 = vmul.f32 %v783, %v659
    %v785 = vmul.f32 %v784, %v783
    %v786 = vmul.f32 0.5, %v785
    %v787 = vsub.f32 1.5, %v786
    %v788 = vmul.f32 %v783, %v787
    %vm789 = vweird.f32 %v659
    %vm790 = vweird.f32 %v783
    %vm791 = vmor %vm789, %vm790
    %v792 = vsel %vm791, %v783, %v788
    %v793 = vrsqrt.pop %v660
    %v794 = vmul.f32 %v793, %v660
    %v795 = vmul.f32 %v794, %v793
    %v796 = vmul.f32 0.5, %v795
    %v797 = vsub.f32 1.5, %v796
    %v798 = vmul.f32 %v793, %v797
    %vm799 = vweird.f32 %v660
    %vm800 = vweird.f32 %v793
    %vm801 = vmor %vm799, %vm800
    %v802 = vsel %vm801, %v793, %v798
    %v803 = vrsqrt.pop %v661
    %v804 = vmul.f32 %v803, %v661
    %v805 = vmul.f32 %v804, %v803
    %v806 = vmul.f32 0.5, %v805
    %v807 = vsub.f32 1.5, %v806
    %v808 = vmul.f32 %v803, %v807
    %vm809 = vweird.f32 %v661
    %vm810 = vweird.f32 %v803
    %vm811 = vmor %vm809, %vm810
    %v812 = vsel %vm811, %v803, %v808
    %v813 = vrsqrt.pop %v662
    %v814 = vmul.f32 %v813, %v662
    %v815 = vmul.f32 %v814, %v813
    %v816 = vmul.f32 0.5, %v815
    %v817 = vsub.f32 1.5, %v816
    %v818 = vmul.f32 %v813, %v817
    %vm819 = vweird.f32 %v662
    %vm820 = vweird.f32 %v813
    %vm821 = vmor %vm819, %vm820
    %v822 = vsel %vm821, %v813, %v818
    %v823 = vmul.f32 %v567, %v672
    %v824 = vmul.f32 %v568, %v682
    %v825 = vmul.f32 %v569, %v692
    %v826 = vmul.f32 %v570, %v702
    %v827 = vmul.f32 %v571, %v712
    %v828 = vmul.f32 %v572, %v722
    %v829 = vmul.f32 %v573, %v732
    %v830 = vmul.f32 %v574, %v742
    %v831 = vmul.f32 %v575, %v752
    %v832 = vmul.f32 %v576, %v762
    %v833 = vmul.f32 %v577, %v772
    %v834 = vmul.f32 %v578, %v782
    %v835 = vmul.f32 %v579, %v792
    %v836 = vmul.f32 %v580, %v802
    %v837 = vmul.f32 %v581, %v812
    %v838 = vmul.f32 %v582, %v822
    %v840 = vperm.slane %v510, 0
    %v842 = vmul.f32 %v823, %v840
    %v843 = vmul.f32 %v824, %v840
    %v844 = vmul.f32 %v825, %v840
    %v845 = vmul.f32 %v826, %v840
    %v846 = vmul.f32 %v827, %v840
    %v847 = vmul.f32 %v828, %v840
    %v848 = vmul.f32 %v829, %v840
    %v849 = vmul.f32 %v830, %v840
    %v850 = vmul.f32 %v831, %v840
    %v851 = vmul.f32 %v832, %v840
    %v852 = vmul.f32 %v833, %v840
    %v853 = vmul.f32 %v834, %v840
    %v854 = vmul.f32 %v835, %v840
    %v855 = vmul.f32 %v836, %v840
    %v856 = vmul.f32 %v837, %v840
    %v857 = vmul.f32 %v838, %v840
    %v859 = vperm.slane %v511, 0
    %v861 = vadd.f32 %v842, %v859
    %v862 = vadd.f32 %v843, %v859
    %v863 = vadd.f32 %v844, %v859
    %v864 = vadd.f32 %v845, %v859
    %v865 = vadd.f32 %v846, %v859
    %v866 = vadd.f32 %v847, %v859
    %v867 = vadd.f32 %v848, %v859
    %v868 = vadd.f32 %v849, %v859
    %v869 = vadd.f32 %v850, %v859
    %v870 = vadd.f32 %v851, %v859
    %v871 = vadd.f32 %v852, %v859
    %v872 = vadd.f32 %v853, %v859
    %v873 = vadd.f32 %v854, %v859
    %v874 = vadd.f32 %v855, %v859
    %v875 = vadd.f32 %v856, %v859
    %v876 = vadd.f32 %v857, %v859
    %v877 = vpack.c.bf16 %v862, %v861
    %v878 = vpack.c.bf16 %v864, %v863
    %v879 = vpack.c.bf16 %v866, %v865
    %v880 = vpack.c.bf16 %v868, %v867
    %v881 = vpack.c.bf16 %v870, %v869
    %v882 = vpack.c.bf16 %v872, %v871
    %v883 = vpack.c.bf16 %v874, %v873
    %v884 = vpack.c.bf16 %v876, %v875
    %v885 = vld [vmem:[#allocation3] sm:$0xf]
    %v886 = vld [vmem:[#allocation3 + $0x4] sm:$0xf]
    %v887 = vld [vmem:[#allocation3 + $0x8] sm:$0xf]
    %v888 = vld [vmem:[#allocation3 + $0xc] sm:$0xf]
    %v889 = vld [vmem:[#allocation3 + $0x10] sm:$0xf]
    %v890 = vld [vmem:[#allocation3 + $0x14] sm:$0xf]
    %v891 = vld [vmem:[#allocation3 + $0x18] sm:$0xf]
    %v892 = vld [vmem:[#allocation3 + $0x1c] sm:$0xf]
    %v893 = vld [vmem:[#allocation3 + $0x20] sm:$0xf]
    %v894 = vld [vmem:[#allocation3 + $0x24] sm:$0xf]
    %v895 = vld [vmem:[#allocation3 + $0x28] sm:$0xf]
    %v896 = vld [vmem:[#allocation3 + $0x2c] sm:$0xf]
    %v897 = vld [vmem:[#allocation3 + $0x30] sm:$0xf]
    %v898 = vld [vmem:[#allocation3 + $0x34] sm:$0xf]
    %v899 = vld [vmem:[#allocation3 + $0x38] sm:$0xf]
    %v900 = vld [vmem:[#allocation3 + $0x3c] sm:$0xf]
    %v901 = vld [vmem:[#allocation6] sm:$0x1]
    %v903 = vperm.slane %v901, 0
    %v921 = vunpack.c.l.b16 %v885
    %v922 = vunpack.c.l.b16 %v886
    %v923 = vunpack.c.l.b16 %v887
    %v924 = vunpack.c.l.b16 %v888
    %v925 = vunpack.c.l.b16 %v889
    %v926 = vunpack.c.l.b16 %v890
    %v927 = vunpack.c.l.b16 %v891
    %v928 = vunpack.c.l.b16 %v892
    %v929 = vunpack.c.l.b16 %v893
    %v930 = vunpack.c.l.b16 %v894
    %v931 = vunpack.c.l.b16 %v895
    %v932 = vunpack.c.l.b16 %v896
    %v933 = vunpack.c.l.b16 %v897
    %v934 = vunpack.c.l.b16 %v898
    %v935 = vunpack.c.l.b16 %v899
    %v936 = vunpack.c.l.b16 %v900
    %v937 = vpack.c.b16 %v922, %v921
    %v938 = vpack.c.b16 %v924, %v923
    %v939 = vpack.c.b16 %v926, %v925
    %v940 = vpack.c.b16 %v928, %v927
    %v941 = vpack.c.b16 %v930, %v929
    %v942 = vpack.c.b16 %v932, %v931
    %v943 = vpack.c.b16 %v934, %v933
    %v944 = vpack.c.b16 %v936, %v935
    %953 = vmatpush.bf16.msra.mxu0 %v944
    %954 = vmatpush.bf16.msra.mxu0 %v943
    %955 = vmatpush.bf16.msra.mxu0 %v942
    %956 = vmatpush.bf16.msra.mxu0 %v941
    %957 = vmatpush.bf16.msra.mxu0 %v940
    %958 = vmatpush.bf16.msra.mxu0 %v939
    %959 = vmatpush.bf16.msra.mxu0 %v938
    %960 = vmatpush.bf16.msra.mxu0 %v937
    %961 = vmatmul.bf16.gmra.mxu0 %v877
    %v962 = vpop.f32.mrf.mxu0
    %v963 = vadd.f32 %v903, %v962
    %v964 = vpop.f32.mrf.mxu0
    %v965 = vadd.f32 %v903, %v964
    %966 = vmatmul.bf16.gmra.mxu0 %v878
    %v967 = vpop.f32.mrf.mxu0
    %v968 = vadd.f32 %v903, %v967
    %v969 = vpop.f32.mrf.mxu0
    %v970 = vadd.f32 %v903, %v969
    %971 = vmatmul.bf16.gmra.mxu0 %v879
    %v972 = vpop.f32.mrf.mxu0
    %v973 = vadd.f32 %v903, %v972
    %v974 = vpop.f32.mrf.mxu0
    %v975 = vadd.f32 %v903, %v974
    %976 = vmatmul.bf16.gmra.mxu0 %v880
    %v977 = vpop.f32.mrf.mxu0
    %v978 = vadd.f32 %v903, %v977
    %v979 = vpop.f32.mrf.mxu0
    %v980 = vadd.f32 %v903, %v979
    %981 = vmatmul.bf16.gmra.mxu0 %v881
    %v982 = vpop.f32.mrf.mxu0
    %v983 = vadd.f32 %v903, %v982
    %v984 = vpop.f32.mrf.mxu0
    %v985 = vadd.f32 %v903, %v984
    %986 = vmatmul.bf16.gmra.mxu0 %v882
    %v987 = vpop.f32.mrf.mxu0
    %v988 = vadd.f32 %v903, %v987
    %v989 = vpop.f32.mrf.mxu0
    %v990 = vadd.f32 %v903, %v989
    %991 = vmatmul.bf16.gmra.mxu0 %v883
    %v992 = vpop.f32.mrf.mxu0
    %v993 = vadd.f32 %v903, %v992
    %v994 = vpop.f32.mrf.mxu0
    %v995 = vadd.f32 %v903, %v994
    %996 = vmatmul.bf16.gmra.mxu0 %v884
    %v997 = vpop.f32.mrf.mxu0
    %v998 = vadd.f32 %v903, %v997
    %v999 = vpop.f32.mrf.mxu0
    %v1000 = vadd.f32 %v903, %v999
    %1001 = vdwg.mxu0
    %v1002 = vpack.c.bf16 %v963, %v963
    %v1003 = vpack.c.bf16 %v965, %v965
    %v1004 = vpack.c.bf16 %v968, %v968
    %v1005 = vpack.c.bf16 %v970, %v970
    %v1006 = vpack.c.bf16 %v973, %v973
    %v1007 = vpack.c.bf16 %v975, %v975
    %v1008 = vpack.c.bf16 %v978, %v978
    %v1009 = vpack.c.bf16 %v980, %v980
    %v1010 = vpack.c.bf16 %v983, %v983
    %v1011 = vpack.c.bf16 %v985, %v985
    %v1012 = vpack.c.bf16 %v988, %v988
    %v1013 = vpack.c.bf16 %v990, %v990
    %v1014 = vpack.c.bf16 %v993, %v993
    %v1015 = vpack.c.bf16 %v995, %v995
    %v1016 = vpack.c.bf16 %v998, %v998
    %v1017 = vpack.c.bf16 %v1000, %v1000
    %v1018 = vld [vmem:[#allocation8] sm:$0xf]
    %v1019 = vld [vmem:[#allocation8 + $0x4] sm:$0xf]
    %v1020 = vld [vmem:[#allocation8 + $0x8] sm:$0xf]
    %v1021 = vld [vmem:[#allocation8 + $0xc] sm:$0xf]
    %v1022 = vld [vmem:[#allocation8 + $0x10] sm:$0xf]
    %v1023 = vld [vmem:[#allocation8 + $0x14] sm:$0xf]
    %v1024 = vld [vmem:[#allocation8 + $0x18] sm:$0xf]
    %v1025 = vld [vmem:[#allocation8 + $0x1c] sm:$0xf]
    %v1026 = vld [vmem:[#allocation8 + $0x20] sm:$0xf]
    %v1027 = vld [vmem:[#allocation8 + $0x24] sm:$0xf]
    %v1028 = vld [vmem:[#allocation8 + $0x28] sm:$0xf]
    %v1029 = vld [vmem:[#allocation8 + $0x2c] sm:$0xf]
    %v1030 = vld [vmem:[#allocation8 + $0x30] sm:$0xf]
    %v1031 = vld [vmem:[#allocation8 + $0x34] sm:$0xf]
    %v1032 = vld [vmem:[#allocation8 + $0x38] sm:$0xf]
    %v1033 = vld [vmem:[#allocation8 + $0x3c] sm:$0xf]
    %v1034 = vld [vmem:[#allocation9] sm:$0x1]
    %v1036 = vperm.slane %v1034, 0
    %v1054 = vunpack.c.l.b16 %v1018
    %v1055 = vunpack.c.l.b16 %v1019
    %v1056 = vunpack.c.l.b16 %v1020
    %v1057 = vunpack.c.l.b16 %v1021
    %v1058 = vunpack.c.l.b16 %v1022
    %v1059 = vunpack.c.l.b16 %v1023
    %v1060 = vunpack.c.l.b16 %v1024
    %v1061 = vunpack.c.l.b16 %v1025
    %v1062 = vunpack.c.l.b16 %v1026
    %v1063 = vunpack.c.l.b16 %v1027
    %v1064 = vunpack.c.l.b16 %v1028
    %v1065 = vunpack.c.l.b16 %v1029
    %v1066 = vunpack.c.l.b16 %v1030
    %v1067 = vunpack.c.l.b16 %v1031
    %v1068 = vunpack.c.l.b16 %v1032
    %v1069 = vunpack.c.l.b16 %v1033
    %v1070 = vpack.c.b16 %v1055, %v1054
    %v1071 = vpack.c.b16 %v1057, %v1056
    %v1072 = vpack.c.b16 %v1059, %v1058
    %v1073 = vpack.c.b16 %v1061, %v1060
    %v1074 = vpack.c.b16 %v1063, %v1062
    %v1075 = vpack.c.b16 %v1065, %v1064
    %v1076 = vpack.c.b16 %v1067, %v1066
    %v1077 = vpack.c.b16 %v1069, %v1068
    %1086 = vmatpush.bf16.msra.mxu0 %v1077
    %1087 = vmatpush.bf16.msra.mxu0 %v1076
    %1088 = vmatpush.bf16.msra.mxu0 %v1075
    %1089 = vmatpush.bf16.msra.mxu0 %v1074
    %1090 = vmatpush.bf16.msra.mxu0 %v1073
    %1091 = vmatpush.bf16.msra.mxu0 %v1072
    %1092 = vmatpush.bf16.msra.mxu0 %v1071
    %1093 = vmatpush.bf16.msra.mxu0 %v1070
    %1094 = vmatmul.bf16.gmra.mxu0 %v877
    %v1095 = vpop.f32.mrf.mxu0
    %v1096 = vadd.f32 %v1036, %v1095
    %v1097 = vpop.f32.mrf.mxu0
    %v1098 = vadd.f32 %v1036, %v1097
    %1099 = vmatmul.bf16.gmra.mxu0 %v878
    %v1100 = vpop.f32.mrf.mxu0
    %v1101 = vadd.f32 %v1036, %v1100
    %v1102 = vpop.f32.mrf.mxu0
    %v1103 = vadd.f32 %v1036, %v1102
    %1104 = vmatmul.bf16.gmra.mxu0 %v879
    %v1105 = vpop.f32.mrf.mxu0
    %v1106 = vadd.f32 %v1036, %v1105
    %v1107 = vpop.f32.mrf.mxu0
    %v1108 = vadd.f32 %v1036, %v1107
    %1109 = vmatmul.bf16.gmra.mxu0 %v880
    %v1110 = vpop.f32.mrf.mxu0
    %v1111 = vadd.f32 %v1036, %v1110
    %v1112 = vpop.f32.mrf.mxu0
    %v1113 = vadd.f32 %v1036, %v1112
    %1114 = vmatmul.bf16.gmra.mxu0 %v881
    %v1115 = vpop.f32.mrf.mxu0
    %v1116 = vadd.f32 %v1036, %v1115
    %v1117 = vpop.f32.mrf.mxu0
    %v1118 = vadd.f32 %v1036, %v1117
    %1119 = vmatmul.bf16.gmra.mxu0 %v882
    %v1120 = vpop.f32.mrf.mxu0
    %v1121 = vadd.f32 %v1036, %v1120
    %v1122 = vpop.f32.mrf.mxu0
    %v1123 = vadd.f32 %v1036, %v1122
    %1124 = vmatmul.bf16.gmra.mxu0 %v883
    %v1125 = vpop.f32.mrf.mxu0
    %v1126 = vadd.f32 %v1036, %v1125
    %v1127 = vpop.f32.mrf.mxu0
    %v1128 = vadd.f32 %v1036, %v1127
    %1129 = vmatmul.bf16.gmra.mxu0 %v884
    %v1130 = vpop.f32.mrf.mxu0
    %v1131 = vadd.f32 %v1036, %v1130
    %v1132 = vpop.f32.mrf.mxu0
    %v1133 = vadd.f32 %v1036, %v1132
    %1134 = vdwg.mxu0
    %v1135 = vpack.c.bf16 %v1096, %v1096
    %v1136 = vpack.c.bf16 %v1098, %v1098
    %v1137 = vpack.c.bf16 %v1101, %v1101
    %v1138 = vpack.c.bf16 %v1103, %v1103
    %v1139 = vpack.c.bf16 %v1106, %v1106
    %v1140 = vpack.c.bf16 %v1108, %v1108
    %v1141 = vpack.c.bf16 %v1111, %v1111
    %v1142 = vpack.c.bf16 %v1113, %v1113
    %v1143 = vpack.c.bf16 %v1116, %v1116
    %v1144 = vpack.c.bf16 %v1118, %v1118
    %v1145 = vpack.c.bf16 %v1121, %v1121
    %v1146 = vpack.c.bf16 %v1123, %v1123
    %v1147 = vpack.c.bf16 %v1126, %v1126
    %v1148 = vpack.c.bf16 %v1128, %v1128
    %v1149 = vpack.c.bf16 %v1131, %v1131
    %v1150 = vpack.c.bf16 %v1133, %v1133
    %v1151 = vld [vmem:[#allocation11] sm:$0xf]
    %v1152 = vld [vmem:[#allocation11 + $0x4] sm:$0xf]
    %v1153 = vld [vmem:[#allocation11 + $0x8] sm:$0xf]
    %v1154 = vld [vmem:[#allocation11 + $0xc] sm:$0xf]
    %v1155 = vld [vmem:[#allocation11 + $0x10] sm:$0xf]
    %v1156 = vld [vmem:[#allocation11 + $0x14] sm:$0xf]
    %v1157 = vld [vmem:[#allocation11 + $0x18] sm:$0xf]
    %v1158 = vld [vmem:[#allocation11 + $0x1c] sm:$0xf]
    %v1159 = vld [vmem:[#allocation11 + $0x20] sm:$0xf]
    %v1160 = vld [vmem:[#allocation11 + $0x24] sm:$0xf]
    %v1161 = vld [vmem:[#allocation11 + $0x28] sm:$0xf]
    %v1162 = vld [vmem:[#allocation11 + $0x2c] sm:$0xf]
    %v1163 = vld [vmem:[#allocation11 + $0x30] sm:$0xf]
    %v1164 = vld [vmem:[#allocation11 + $0x34] sm:$0xf]
    %v1165 = vld [vmem:[#allocation11 + $0x38] sm:$0xf]
    %v1166 = vld [vmem:[#allocation11 + $0x3c] sm:$0xf]
    %v1167 = vld [vmem:[#allocation12] sm:$0x1]
    %v1169 = vperm.slane %v1167, 0
    %v1187 = vunpack.c.l.b16 %v1151
    %v1188 = vunpack.c.l.b16 %v1152
    %v1189 = vunpack.c.l.b16 %v1153
    %v1190 = vunpack.c.l.b16 %v1154
    %v1191 = vunpack.c.l.b16 %v1155
    %v1192 = vunpack.c.l.b16 %v1156
    %v1193 = vunpack.c.l.b16 %v1157
    %v1194 = vunpack.c.l.b16 %v1158
    %v1195 = vunpack.c.l.b16 %v1159
    %v1196 = vunpack.c.l.b16 %v1160
    %v1197 = vunpack.c.l.b16 %v1161
    %v1198 = vunpack.c.l.b16 %v1162
    %v1199 = vunpack.c.l.b16 %v1163
    %v1200 = vunpack.c.l.b16 %v1164
    %v1201 = vunpack.c.l.b16 %v1165
    %v1202 = vunpack.c.l.b16 %v1166
    %v1203 = vpack.c.b16 %v1188, %v1187
    %v1204 = vpack.c.b16 %v1190, %v1189
    %v1205 = vpack.c.b16 %v1192, %v1191
    %v1206 = vpack.c.b16 %v1194, %v1193
    %v1207 = vpack.c.b16 %v1196, %v1195
    %v1208 = vpack.c.b16 %v1198, %v1197
    %v1209 = vpack.c.b16 %v1200, %v1199
    %v1210 = vpack.c.b16 %v1202, %v1201
    %1219 = vmatpush.bf16.msra.mxu0 %v1210
    %1220 = vmatpush.bf16.msra.mxu0 %v1209
    %1221 = vmatpush.bf16.msra.mxu0 %v1208
    %1222 = vmatpush.bf16.msra.mxu0 %v1207
    %1223 = vmatpush.bf16.msra.mxu0 %v1206
    %1224 = vmatpush.bf16.msra.mxu0 %v1205
    %1225 = vmatpush.bf16.msra.mxu0 %v1204
    %1226 = vmatpush.bf16.msra.mxu0 %v1203
    %1227 = vmatmul.bf16.gmra.mxu0 %v877
    %v1228 = vpop.f32.mrf.mxu0
    %v1229 = vadd.f32 %v1169, %v1228
    %v1230 = vpop.f32.mrf.mxu0
    %v1231 = vadd.f32 %v1169, %v1230
    %1232 = vmatmul.bf16.gmra.mxu0 %v878
    %v1233 = vpop.f32.mrf.mxu0
    %v1234 = vadd.f32 %v1169, %v1233
    %v1235 = vpop.f32.mrf.mxu0
    %v1236 = vadd.f32 %v1169, %v1235
    %1237 = vmatmul.bf16.gmra.mxu0 %v879
    %v1238 = vpop.f32.mrf.mxu0
    %v1239 = vadd.f32 %v1169, %v1238
    %v1240 = vpop.f32.mrf.mxu0
    %v1241 = vadd.f32 %v1169, %v1240
    %1242 = vmatmul.bf16.gmra.mxu0 %v880
    %v1243 = vpop.f32.mrf.mxu0
    %v1244 = vadd.f32 %v1169, %v1243
    %v1245 = vpop.f32.mrf.mxu0
    %v1246 = vadd.f32 %v1169, %v1245
    %1247 = vmatmul.bf16.gmra.mxu0 %v881
    %v1248 = vpop.f32.mrf.mxu0
    %v1249 = vadd.f32 %v1169, %v1248
    %v1250 = vpop.f32.mrf.mxu0
    %v1251 = vadd.f32 %v1169, %v1250
    %1252 = vmatmul.bf16.gmra.mxu0 %v882
    %v1253 = vpop.f32.mrf.mxu0
    %v1254 = vadd.f32 %v1169, %v1253
    %v1255 = vpop.f32.mrf.mxu0
    %v1256 = vadd.f32 %v1169, %v1255
    %1257 = vmatmul.bf16.gmra.mxu0 %v883
    %v1258 = vpop.f32.mrf.mxu0
    %v1259 = vadd.f32 %v1169, %v1258
    %v1260 = vpop.f32.mrf.mxu0
    %v1261 = vadd.f32 %v1169, %v1260
    %1262 = vmatmul.bf16.gmra.mxu0 %v884
    %v1263 = vpop.f32.mrf.mxu0
    %v1264 = vadd.f32 %v1169, %v1263
    %v1265 = vpop.f32.mrf.mxu0
    %v1266 = vadd.f32 %v1169, %v1265
    %1267 = vdwg.mxu0
    %v1268 = vpack.c.bf16 %v1229, %v1229
    %v1269 = vpack.c.bf16 %v1231, %v1231
    %v1270 = vpack.c.bf16 %v1234, %v1234
    %v1271 = vpack.c.bf16 %v1236, %v1236
    %v1272 = vpack.c.bf16 %v1239, %v1239
    %v1273 = vpack.c.bf16 %v1241, %v1241
    %v1274 = vpack.c.bf16 %v1244, %v1244
    %v1275 = vpack.c.bf16 %v1246, %v1246
    %v1276 = vpack.c.bf16 %v1249, %v1249
    %v1277 = vpack.c.bf16 %v1251, %v1251
    %v1278 = vpack.c.bf16 %v1254, %v1254
    %v1279 = vpack.c.bf16 %v1256, %v1256
    %v1280 = vpack.c.bf16 %v1259, %v1259
    %v1281 = vpack.c.bf16 %v1261, %v1261
    %v1282 = vpack.c.bf16 %v1264, %v1264
    %v1283 = vpack.c.bf16 %v1266, %v1266
    %v1284 = vlaneseq
    %v1285 = vshrl.u32 %v1284, 7
    %v1286 = vadd.s32 %v1285, 8
    %vm1287 = vcmp.le.s32.totalorder %v332, %v1285
    %vm1288 = vcmp.le.s32.totalorder %v332, %v1286
    %v1291 = vunpack.c.l.b16 %v1002
    %v1292 = vunpack.c.l.b16 %v1003
    %v1293 = vpack.c.b16 %v1292, %v1291
    %v1296 = vunpack.c.l.b16 %v1135
    %v1297 = vunpack.c.l.b16 %v1136
    %v1298 = vpack.c.b16 %v1297, %v1296
    %vm1299 = vcmask 261120
    %v1301 = vsel %vm1299, %v1293, 0
    %v1304 = vsel %vm1299, %v1298, 0
    %1306 = vmatpush.bf16.xpose.msra.mxu0 0
    %1307 = vmatpush.bf16.xpose.msra.mxu0 0
    %1308 = vmatpush.bf16.xpose.msra.mxu0 0
    %1309 = vmatpush.bf16.xpose.msra.mxu0 0
    %1310 = vmatpush.bf16.xpose.msra.mxu0 0
    %1311 = vmatpush.bf16.xpose.msra.mxu0 0
    %1312 = vmatpush.bf16.xpose.msra.mxu0 0
    %1313 = vmatpush.bf16.xpose.msra.mxu0 %v1304
    %1314 = vmatmul.bf16.gmra.mxu0 %v1301
    %v1315 = vpop.f32.mrf.mxu0
    %v1316 = vadd.f32 0.0, %v1315
    %v1317 = vpop.f32.mrf.mxu0
    %v1318 = vadd.f32 0.0, %v1317
    %1319 = vdwg.mxu0
    %v1322 = vunpack.c.l.b16 %v1004
    %v1323 = vunpack.c.l.b16 %v1005
    %v1324 = vpack.c.b16 %v1323, %v1322
    %v1327 = vunpack.c.l.b16 %v1137
    %v1328 = vunpack.c.l.b16 %v1138
    %v1329 = vpack.c.b16 %v1328, %v1327
    %v1331 = vsel %vm1299, %v1324, 0
    %v1334 = vsel %vm1299, %v1329, 0
    %1336 = vmatpush.bf16.xpose.msra.mxu0 0
    %1337 = vmatpush.bf16.xpose.msra.mxu0 0
    %1338 = vmatpush.bf16.xpose.msra.mxu0 0
    %1339 = vmatpush.bf16.xpose.msra.mxu0 0
    %1340 = vmatpush.bf16.xpose.msra.mxu0 0
    %1341 = vmatpush.bf16.xpose.msra.mxu0 0
    %1342 = vmatpush.bf16.xpose.msra.mxu0 0
    %1343 = vmatpush.bf16.xpose.msra.mxu0 %v1334
    %1344 = vmatmul.bf16.gmra.mxu0 %v1331
    %v1345 = vpop.f32.mrf.mxu0
    %v1346 = vadd.f32 0.0, %v1345
    %v1347 = vpop.f32.mrf.mxu0
    %v1348 = vadd.f32 0.0, %v1347
    %1349 = vdwg.mxu0
    %v1352 = vunpack.c.l.b16 %v1006
    %v1353 = vunpack.c.l.b16 %v1007
    %v1354 = vpack.c.b16 %v1353, %v1352
    %v1357 = vunpack.c.l.b16 %v1139
    %v1358 = vunpack.c.l.b16 %v1140
    %v1359 = vpack.c.b16 %v1358, %v1357
    %v1361 = vsel %vm1299, %v1354, 0
    %v1364 = vsel %vm1299, %v1359, 0
    %1366 = vmatpush.bf16.xpose.msra.mxu0 0
    %1367 = vmatpush.bf16.xpose.msra.mxu0 0
    %1368 = vmatpush.bf16.xpose.msra.mxu0 0
    %1369 = vmatpush.bf16.xpose.msra.mxu0 0
    %1370 = vmatpush.bf16.xpose.msra.mxu0 0
    %1371 = vmatpush.bf16.xpose.msra.mxu0 0
    %1372 = vmatpush.bf16.xpose.msra.mxu0 0
    %1373 = vmatpush.bf16.xpose.msra.mxu0 %v1364
    %1374 = vmatmul.bf16.gmra.mxu0 %v1361
    %v1375 = vpop.f32.mrf.mxu0
    %v1376 = vadd.f32 0.0, %v1375
    %v1377 = vpop.f32.mrf.mxu0
    %v1378 = vadd.f32 0.0, %v1377
    %1379 = vdwg.mxu0
    %v1382 = vunpack.c.l.b16 %v1008
    %v1383 = vunpack.c.l.b16 %v1009
    %v1384 = vpack.c.b16 %v1383, %v1382
    %v1387 = vunpack.c.l.b16 %v1141
    %v1388 = vunpack.c.l.b16 %v1142
    %v1389 = vpack.c.b16 %v1388, %v1387
    %v1391 = vsel %vm1299, %v1384, 0
    %v1394 = vsel %vm1299, %v1389, 0
    %1396 = vmatpush.bf16.xpose.msra.mxu0 0
    %1397 = vmatpush.bf16.xpose.msra.mxu0 0
    %1398 = vmatpush.bf16.xpose.msra.mxu0 0
    %1399 = vmatpush.bf16.xpose.msra.mxu0 0
    %1400 = vmatpush.bf16.xpose.msra.mxu0 0
    %1401 = vmatpush.bf16.xpose.msra.mxu0 0
    %1402 = vmatpush.bf16.xpose.msra.mxu0 0
    %1403 = vmatpush.bf16.xpose.msra.mxu0 %v1394
    %1404 = vmatmul.bf16.gmra.mxu0 %v1391
    %v1405 = vpop.f32.mrf.mxu0
    %v1406 = vadd.f32 0.0, %v1405
    %v1407 = vpop.f32.mrf.mxu0
    %v1408 = vadd.f32 0.0, %v1407
    %1409 = vdwg.mxu0
    %v1412 = vunpack.c.l.b16 %v1010
    %v1413 = vunpack.c.l.b16 %v1011
    %v1414 = vpack.c.b16 %v1413, %v1412
    %v1417 = vunpack.c.l.b16 %v1143
    %v1418 = vunpack.c.l.b16 %v1144
    %v1419 = vpack.c.b16 %v1418, %v1417
    %v1421 = vsel %vm1299, %v1414, 0
    %v1424 = vsel %vm1299, %v1419, 0
    %1426 = vmatpush.bf16.xpose.msra.mxu0 0
    %1427 = vmatpush.bf16.xpose.msra.mxu0 0
    %1428 = vmatpush.bf16.xpose.msra.mxu0 0
    %1429 = vmatpush.bf16.xpose.msra.mxu0 0
    %1430 = vmatpush.bf16.xpose.msra.mxu0 0
    %1431 = vmatpush.bf16.xpose.msra.mxu0 0
    %1432 = vmatpush.bf16.xpose.msra.mxu0 0
    %1433 = vmatpush.bf16.xpose.msra.mxu0 %v1424
    %1434 = vmatmul.bf16.gmra.mxu0 %v1421
    %v1435 = vpop.f32.mrf.mxu0
    %v1436 = vadd.f32 0.0, %v1435
    %v1437 = vpop.f32.mrf.mxu0
    %v1438 = vadd.f32 0.0, %v1437
    %1439 = vdwg.mxu0
    %v1442 = vunpack.c.l.b16 %v1012
    %v1443 = vunpack.c.l.b16 %v1013
    %v1444 = vpack.c.b16 %v1443, %v1442
    %v1447 = vunpack.c.l.b16 %v1145
    %v1448 = vunpack.c.l.b16 %v1146
    %v1449 = vpack.c.b16 %v1448, %v1447
    %v1451 = vsel %vm1299, %v1444, 0
    %v1454 = vsel %vm1299, %v1449, 0
    %1456 = vmatpush.bf16.xpose.msra.mxu0 0
    %1457 = vmatpush.bf16.xpose.msra.mxu0 0
    %1458 = vmatpush.bf16.xpose.msra.mxu0 0
    %1459 = vmatpush.bf16.xpose.msra.mxu0 0
    %1460 = vmatpush.bf16.xpose.msra.mxu0 0
    %1461 = vmatpush.bf16.xpose.msra.mxu0 0
    %1462 = vmatpush.bf16.xpose.msra.mxu0 0
    %1463 = vmatpush.bf16.xpose.msra.mxu0 %v1454
    %1464 = vmatmul.bf16.gmra.mxu0 %v1451
    %v1465 = vpop.f32.mrf.mxu0
    %v1466 = vadd.f32 0.0, %v1465
    %v1467 = vpop.f32.mrf.mxu0
    %v1468 = vadd.f32 0.0, %v1467
    %1469 = vdwg.mxu0
    %v1472 = vunpack.c.l.b16 %v1014
    %v1473 = vunpack.c.l.b16 %v1015
    %v1474 = vpack.c.b16 %v1473, %v1472
    %v1477 = vunpack.c.l.b16 %v1147
    %v1478 = vunpack.c.l.b16 %v1148
    %v1479 = vpack.c.b16 %v1478, %v1477
    %v1481 = vsel %vm1299, %v1474, 0
    %v1484 = vsel %vm1299, %v1479, 0
    %1486 = vmatpush.bf16.xpose.msra.mxu0 0
    %1487 = vmatpush.bf16.xpose.msra.mxu0 0
    %1488 = vmatpush.bf16.xpose.msra.mxu0 0
    %1489 = vmatpush.bf16.xpose.msra.mxu0 0
    %1490 = vmatpush.bf16.xpose.msra.mxu0 0
    %1491 = vmatpush.bf16.xpose.msra.mxu0 0
    %1492 = vmatpush.bf16.xpose.msra.mxu0 0
    %1493 = vmatpush.bf16.xpose.msra.mxu0 %v1484
    %1494 = vmatmul.bf16.gmra.mxu0 %v1481
    %v1495 = vpop.f32.mrf.mxu0
    %v1496 = vadd.f32 0.0, %v1495
    %v1497 = vpop.f32.mrf.mxu0
    %v1498 = vadd.f32 0.0, %v1497
    %1499 = vdwg.mxu0
    %v1502 = vunpack.c.l.b16 %v1016
    %v1503 = vunpack.c.l.b16 %v1017
    %v1504 = vpack.c.b16 %v1503, %v1502
    %v1507 = vunpack.c.l.b16 %v1149
    %v1508 = vunpack.c.l.b16 %v1150
    %v1509 = vpack.c.b16 %v1508, %v1507
    %v1511 = vsel %vm1299, %v1504, 0
    %v1514 = vsel %vm1299, %v1509, 0
    %1516 = vmatpush.bf16.xpose.msra.mxu0 0
    %1517 = vmatpush.bf16.xpose.msra.mxu0 0
    %1518 = vmatpush.bf16.xpose.msra.mxu0 0
    %1519 = vmatpush.bf16.xpose.msra.mxu0 0
    %1520 = vmatpush.bf16.xpose.msra.mxu0 0
    %1521 = vmatpush.bf16.xpose.msra.mxu0 0
    %1522 = vmatpush.bf16.xpose.msra.mxu0 0
    %1523 = vmatpush.bf16.xpose.msra.mxu0 %v1514
    %1524 = vmatmul.bf16.gmra.mxu0 %v1511
    %v1525 = vpop.f32.mrf.mxu0
    %v1526 = vadd.f32 0.0, %v1525
    %v1527 = vpop.f32.mrf.mxu0
    %v1528 = vadd.f32 0.0, %v1527
    %1529 = vdwg.mxu0
    %v1530 = vmul.f32 %v1316, 0.17677669
    %v1531 = vmul.f32 %v1318, 0.17677669
    %v1532 = vmul.f32 %v1346, 0.17677669
    %v1533 = vmul.f32 %v1348, 0.17677669
    %v1534 = vmul.f32 %v1376, 0.17677669
    %v1535 = vmul.f32 %v1378, 0.17677669
    %v1536 = vmul.f32 %v1406, 0.17677669
    %v1537 = vmul.f32 %v1408, 0.17677669
    %v1538 = vmul.f32 %v1436, 0.17677669
    %v1539 = vmul.f32 %v1438, 0.17677669
    %v1540 = vmul.f32 %v1466, 0.17677669
    %v1541 = vmul.f32 %v1468, 0.17677669
    %v1542 = vmul.f32 %v1496, 0.17677669
    %v1543 = vmul.f32 %v1498, 0.17677669
    %v1544 = vmul.f32 %v1526, 0.17677669
    %v1545 = vmul.f32 %v1528, 0.17677669
    %v1546 = vsel %vm1287, 1, 0
    %v1547 = vsel %vm1288, 1, 0
    %vm1548 = vcmp.eq.s32.totalorder %v1546, 1
    %vm1549 = vcmp.eq.s32.totalorder %v1547, 1
    %v1550 = vsel %vm1548, %v1530, -1e+30
    %v1551 = vsel %vm1549, %v1531, -1e+30
    %v1552 = vsel %vm1548, %v1532, -1e+30
    %v1553 = vsel %vm1549, %v1533, -1e+30
    %v1554 = vsel %vm1548, %v1534, -1e+30
    %v1555 = vsel %vm1549, %v1535, -1e+30
    %v1556 = vsel %vm1548, %v1536, -1e+30
    %v1557 = vsel %vm1549, %v1537, -1e+30
    %v1558 = vsel %vm1548, %v1538, -1e+30
    %v1559 = vsel %vm1549, %v1539, -1e+30
    %v1560 = vsel %vm1548, %v1540, -1e+30
    %v1561 = vsel %vm1549, %v1541, -1e+30
    %v1562 = vsel %vm1548, %v1542, -1e+30
    %v1563 = vsel %vm1549, %v1543, -1e+30
    %v1564 = vsel %vm1548, %v1544, -1e+30
    %v1565 = vsel %vm1549, %v1545, -1e+30
    %vm1566 = vcmask 130048
    %v1567 = vsel %vm1566, %v1550, -inf
    %1568 = vmax.xlane.f32.xlu0 %v1567
    %v1569 = vpop.xlane.xlu0 %1568
    %v1570 = vsel %vm1566, %v1551, -inf
    %1571 = vmax.xlane.f32.xlu0 %v1570
    %v1572 = vpop.xlane.xlu0 %1571
    %v1573 = vsel %vm1566, %v1552, -inf
    %1574 = vmax.xlane.f32.xlu0 %v1573
    %v1575 = vpop.xlane.xlu0 %1574
    %v1576 = vsel %vm1566, %v1553, -inf
    %1577 = vmax.xlane.f32.xlu0 %v1576
    %v1578 = vpop.xlane.xlu0 %1577
    %v1579 = vsel %vm1566, %v1554, -inf
    %1580 = vmax.xlane.f32.xlu0 %v1579
    %v1581 = vpop.xlane.xlu0 %1580
    %v1582 = vsel %vm1566, %v1555, -inf
    %1583 = vmax.xlane.f32.xlu0 %v1582
    %v1584 = vpop.xlane.xlu0 %1583
    %v1585 = vsel %vm1566, %v1556, -inf
    %1586 = vmax.xlane.f32.xlu0 %v1585
    %v1587 = vpop.xlane.xlu0 %1586
    %v1588 = vsel %vm1566, %v1557, -inf
    %1589 = vmax.xlane.f32.xlu0 %v1588
    %v1590 = vpop.xlane.xlu0 %1589
    %v1591 = vsel %vm1566, %v1558, -inf
    %1592 = vmax.xlane.f32.xlu0 %v1591
    %v1593 = vpop.xlane.xlu0 %1592
    %v1594 = vsel %vm1566, %v1559, -inf
    %1595 = vmax.xlane.f32.xlu0 %v1594
    %v1596 = vpop.xlane.xlu0 %1595
    %v1597 = vsel %vm1566, %v1560, -inf
    %1598 = vmax.xlane.f32.xlu0 %v1597
    %v1599 = vpop.xlane.xlu0 %1598
    %v1600 = vsel %vm1566, %v1561, -inf
    %1601 = vmax.xlane.f32.xlu0 %v1600
    %v1602 = vpop.xlane.xlu0 %1601
    %v1603 = vsel %vm1566, %v1562, -inf
    %1604 = vmax.xlane.f32.xlu0 %v1603
    %v1605 = vpop.xlane.xlu0 %1604
    %v1606 = vsel %vm1566, %v1563, -inf
    %1607 = vmax.xlane.f32.xlu0 %v1606
    %v1608 = vpop.xlane.xlu0 %1607
    %v1609 = vsel %vm1566, %v1564, -inf
    %1610 = vmax.xlane.f32.xlu0 %v1609
    %v1611 = vpop.xlane.xlu0 %1610
    %v1612 = vsel %vm1566, %v1565, -inf
    %1613 = vmax.xlane.f32.xlu0 %v1612
    %v1614 = vpop.xlane.xlu0 %1613
    %v1615 = vsub.f32 %v1550, %v1569
    %v1616 = vsub.f32 %v1551, %v1572
    %v1617 = vsub.f32 %v1552, %v1575
    %v1618 = vsub.f32 %v1553, %v1578
    %v1619 = vsub.f32 %v1554, %v1581
    %v1620 = vsub.f32 %v1555, %v1584
    %v1621 = vsub.f32 %v1556, %v1587
    %v1622 = vsub.f32 %v1557, %v1590
    %v1623 = vsub.f32 %v1558, %v1593
    %v1624 = vsub.f32 %v1559, %v1596
    %v1625 = vsub.f32 %v1560, %v1599
    %v1626 = vsub.f32 %v1561, %v1602
    %v1627 = vsub.f32 %v1562, %v1605
    %v1628 = vsub.f32 %v1563, %v1608
    %v1629 = vsub.f32 %v1564, %v1611
    %v1630 = vsub.f32 %v1565, %v1614
    %v1631 = vmul.f32 %v1615, 1.442695
    %v1632 = vpow.pop %v1631
    %v1633 = vmul.f32 %v1616, 1.442695
    %v1634 = vpow.pop %v1633
    %v1635 = vmul.f32 %v1617, 1.442695
    %v1636 = vpow.pop %v1635
    %v1637 = vmul.f32 %v1618, 1.442695
    %v1638 = vpow.pop %v1637
    %v1639 = vmul.f32 %v1619, 1.442695
    %v1640 = vpow.pop %v1639
    %v1641 = vmul.f32 %v1620, 1.442695
    %v1642 = vpow.pop %v1641
    %v1643 = vmul.f32 %v1621, 1.442695
    %v1644 = vpow.pop %v1643
    %v1645 = vmul.f32 %v1622, 1.442695
    %v1646 = vpow.pop %v1645
    %v1647 = vmul.f32 %v1623, 1.442695
    %v1648 = vpow.pop %v1647
    %v1649 = vmul.f32 %v1624, 1.442695
    %v1650 = vpow.pop %v1649
    %v1651 = vmul.f32 %v1625, 1.442695
    %v1652 = vpow.pop %v1651
    %v1653 = vmul.f32 %v1626, 1.442695
    %v1654 = vpow.pop %v1653
    %v1655 = vmul.f32 %v1627, 1.442695
    %v1656 = vpow.pop %v1655
    %v1657 = vmul.f32 %v1628, 1.442695
    %v1658 = vpow.pop %v1657
    %v1659 = vmul.f32 %v1629, 1.442695
    %v1660 = vpow.pop %v1659
    %v1661 = vmul.f32 %v1630, 1.442695
    %v1662 = vpow.pop %v1661
    %v1663 = vsel %vm1566, %v1632, 0.0
    %1664 = vadd.xlane.f32.xlu0 %v1663
    %v1665 = vpop.xlane.xlu0 %1664
    %v1666 = vsel %vm1566, %v1634, 0.0
    %1667 = vadd.xlane.f32.xlu0 %v1666
    %v1668 = vpop.xlane.xlu0 %1667
    %v1669 = vsel %vm1566, %v1636, 0.0
    %1670 = vadd.xlane.f32.xlu0 %v1669
    %v1671 = vpop.xlane.xlu0 %1670
    %v1672 = vsel %vm1566, %v1638, 0.0
    %1673 = vadd.xlane.f32.xlu0 %v1672
    %v1674 = vpop.xlane.xlu0 %1673
    %v1675 = vsel %vm1566, %v1640, 0.0
    %1676 = vadd.xlane.f32.xlu0 %v1675
    %v1677 = vpop.xlane.xlu0 %1676
    %v1678 = vsel %vm1566, %v1642, 0.0
    %1679 = vadd.xlane.f32.xlu0 %v1678
    %v1680 = vpop.xlane.xlu0 %1679
    %v1681 = vsel %vm1566, %v1644, 0.0
    %1682 = vadd.xlane.f32.xlu0 %v1681
    %v1683 = vpop.xlane.xlu0 %1682
    %v1684 = vsel %vm1566, %v1646, 0.0
    %1685 = vadd.xlane.f32.xlu0 %v1684
    %v1686 = vpop.xlane.xlu0 %1685
    %v1687 = vsel %vm1566, %v1648, 0.0
    %1688 = vadd.xlane.f32.xlu0 %v1687
    %v1689 = vpop.xlane.xlu0 %1688
    %v1690 = vsel %vm1566, %v1650, 0.0
    %1691 = vadd.xlane.f32.xlu0 %v1690
    %v1692 = vpop.xlane.xlu0 %1691
    %v1693 = vsel %vm1566, %v1652, 0.0
    %1694 = vadd.xlane.f32.xlu0 %v1693
    %v1695 = vpop.xlane.xlu0 %1694
    %v1696 = vsel %vm1566, %v1654, 0.0
    %1697 = vadd.xlane.f32.xlu0 %v1696
    %v1698 = vpop.xlane.xlu0 %1697
    %v1699 = vsel %vm1566, %v1656, 0.0
    %1700 = vadd.xlane.f32.xlu0 %v1699
    %v1701 = vpop.xlane.xlu0 %1700
    %v1702 = vsel %vm1566, %v1658, 0.0
    %1703 = vadd.xlane.f32.xlu0 %v1702
    %v1704 = vpop.xlane.xlu0 %1703
    %v1705 = vsel %vm1566, %v1660, 0.0
    %1706 = vadd.xlane.f32.xlu0 %v1705
    %v1707 = vpop.xlane.xlu0 %1706
    %v1708 = vsel %vm1566, %v1662, 0.0
    %1709 = vadd.xlane.f32.xlu0 %v1708
    %v1710 = vpop.xlane.xlu0 %1709
    %v1711 = vrcp.pop %v1665
    %v1712 = vrcp.pop %v1668
    %v1713 = vrcp.pop %v1671
    %v1714 = vrcp.pop %v1674
    %v1715 = vrcp.pop %v1677
    %v1716 = vrcp.pop %v1680
    %v1717 = vrcp.pop %v1683
    %v1718 = vrcp.pop %v1686
    %v1719 = vrcp.pop %v1689
    %v1720 = vrcp.pop %v1692
    %v1721 = vrcp.pop %v1695
    %v1722 = vrcp.pop %v1698
    %v1723 = vrcp.pop %v1701
    %v1724 = vrcp.pop %v1704
    %v1725 = vrcp.pop %v1707
    %v1726 = vrcp.pop %v1710
    %v1727 = vmul.f32 %v1632, %v1711
    %v1728 = vmul.f32 %v1634, %v1712
    %v1729 = vmul.f32 %v1636, %v1713
    %v1730 = vmul.f32 %v1638, %v1714
    %v1731 = vmul.f32 %v1640, %v1715
    %v1732 = vmul.f32 %v1642, %v1716
    %v1733 = vmul.f32 %v1644, %v1717
    %v1734 = vmul.f32 %v1646, %v1718
    %v1735 = vmul.f32 %v1648, %v1719
    %v1736 = vmul.f32 %v1650, %v1720
    %v1737 = vmul.f32 %v1652, %v1721
    %v1738 = vmul.f32 %v1654, %v1722
    %v1739 = vmul.f32 %v1656, %v1723
    %v1740 = vmul.f32 %v1658, %v1724
    %v1741 = vmul.f32 %v1660, %v1725
    %v1742 = vmul.f32 %v1662, %v1726
    %v1743 = vpack.c.bf16 %v1727, %v1727
    %v1744 = vpack.c.bf16 %v1728, %v1728
    %v1745 = vpack.c.bf16 %v1729, %v1729
    %v1746 = vpack.c.bf16 %v1730, %v1730
    %v1747 = vpack.c.bf16 %v1731, %v1731
    %v1748 = vpack.c.bf16 %v1732, %v1732
    %v1749 = vpack.c.bf16 %v1733, %v1733
    %v1750 = vpack.c.bf16 %v1734, %v1734
    %v1751 = vpack.c.bf16 %v1735, %v1735
    %v1752 = vpack.c.bf16 %v1736, %v1736
    %v1753 = vpack.c.bf16 %v1737, %v1737
    %v1754 = vpack.c.bf16 %v1738, %v1738
    %v1755 = vpack.c.bf16 %v1739, %v1739
    %v1756 = vpack.c.bf16 %v1740, %v1740
    %v1757 = vpack.c.bf16 %v1741, %v1741
    %v1758 = vpack.c.bf16 %v1742, %v1742
    %v1761 = vunpack.c.l.b16 %v1743
    %v1762 = vunpack.c.l.b16 %v1744
    %v1763 = vpack.c.b16 %v1762, %v1761
    %v1766 = vunpack.c.l.b16 %v1268
    %v1767 = vunpack.c.l.b16 %v1269
    %v1768 = vpack.c.b16 %v1767, %v1766
    %v1771 = vsel %vm1566, %v1763, 0
    %1773 = vmatpush.bf16.msra.mxu0 0
    %1774 = vmatpush.bf16.msra.mxu0 0
    %1775 = vmatpush.bf16.msra.mxu0 0
    %1776 = vmatpush.bf16.msra.mxu0 0
    %1777 = vmatpush.bf16.msra.mxu0 0
    %1778 = vmatpush.bf16.msra.mxu0 0
    %1779 = vmatpush.bf16.msra.mxu0 0
    %1780 = vmatpush.bf16.msra.mxu0 %v1768
    %1781 = vmatmul.bf16.gmra.mxu0 %v1771
    %v1782 = vpop.f32.mrf.mxu0
    %v1783 = vadd.f32 0.0, %v1782
    %v1784 = vpop.f32.mrf.mxu0
    %v1785 = vadd.f32 0.0, %v1784
    %1786 = vdwg.mxu0
    %v1789 = vunpack.c.l.b16 %v1745
    %v1790 = vunpack.c.l.b16 %v1746
    %v1791 = vpack.c.b16 %v1790, %v1789
    %v1794 = vunpack.c.l.b16 %v1270
    %v1795 = vunpack.c.l.b16 %v1271
    %v1796 = vpack.c.b16 %v1795, %v1794
    %v1799 = vsel %vm1566, %v1791, 0
    %1801 = vmatpush.bf16.msra.mxu0 0
    %1802 = vmatpush.bf16.msra.mxu0 0
    %1803 = vmatpush.bf16.msra.mxu0 0
    %1804 = vmatpush.bf16.msra.mxu0 0
    %1805 = vmatpush.bf16.msra.mxu0 0
    %1806 = vmatpush.bf16.msra.mxu0 0
    %1807 = vmatpush.bf16.msra.mxu0 0
    %1808 = vmatpush.bf16.msra.mxu0 %v1796
    %1809 = vmatmul.bf16.gmra.mxu0 %v1799
    %v1810 = vpop.f32.mrf.mxu0
    %v1811 = vadd.f32 0.0, %v1810
    %v1812 = vpop.f32.mrf.mxu0
    %v1813 = vadd.f32 0.0, %v1812
    %1814 = vdwg.mxu0
    %v1817 = vunpack.c.l.b16 %v1747
    %v1818 = vunpack.c.l.b16 %v1748
    %v1819 = vpack.c.b16 %v1818, %v1817
    %v1822 = vunpack.c.l.b16 %v1272
    %v1823 = vunpack.c.l.b16 %v1273
    %v1824 = vpack.c.b16 %v1823, %v1822
    %v1827 = vsel %vm1566, %v1819, 0
    %1829 = vmatpush.bf16.msra.mxu0 0
    %1830 = vmatpush.bf16.msra.mxu0 0
    %1831 = vmatpush.bf16.msra.mxu0 0
    %1832 = vmatpush.bf16.msra.mxu0 0
    %1833 = vmatpush.bf16.msra.mxu0 0
    %1834 = vmatpush.bf16.msra.mxu0 0
    %1835 = vmatpush.bf16.msra.mxu0 0
    %1836 = vmatpush.bf16.msra.mxu0 %v1824
    %1837 = vmatmul.bf16.gmra.mxu0 %v1827
    %v1838 = vpop.f32.mrf.mxu0
    %v1839 = vadd.f32 0.0, %v1838
    %v1840 = vpop.f32.mrf.mxu0
    %v1841 = vadd.f32 0.0, %v1840
    %1842 = vdwg.mxu0
    %v1845 = vunpack.c.l.b16 %v1749
    %v1846 = vunpack.c.l.b16 %v1750
    %v1847 = vpack.c.b16 %v1846, %v1845
    %v1850 = vunpack.c.l.b16 %v1274
    %v1851 = vunpack.c.l.b16 %v1275
    %v1852 = vpack.c.b16 %v1851, %v1850
    %v1855 = vsel %vm1566, %v1847, 0
    %1857 = vmatpush.bf16.msra.mxu0 0
    %1858 = vmatpush.bf16.msra.mxu0 0
    %1859 = vmatpush.bf16.msra.mxu0 0
    %1860 = vmatpush.bf16.msra.mxu0 0
    %1861 = vmatpush.bf16.msra.mxu0 0
    %1862 = vmatpush.bf16.msra.mxu0 0
    %1863 = vmatpush.bf16.msra.mxu0 0
    %1864 = vmatpush.bf16.msra.mxu0 %v1852
    %1865 = vmatmul.bf16.gmra.mxu0 %v1855
    %v1866 = vpop.f32.mrf.mxu0
    %v1867 = vadd.f32 0.0, %v1866
    %v1868 = vpop.f32.mrf.mxu0
    %v1869 = vadd.f32 0.0, %v1868
    %1870 = vdwg.mxu0
    %v1873 = vunpack.c.l.b16 %v1751
    %v1874 = vunpack.c.l.b16 %v1752
    %v1875 = vpack.c.b16 %v1874, %v1873
    %v1878 = vunpack.c.l.b16 %v1276
    %v1879 = vunpack.c.l.b16 %v1277
    %v1880 = vpack.c.b16 %v1879, %v1878
    %v1883 = vsel %vm1566, %v1875, 0
    %1885 = vmatpush.bf16.msra.mxu0 0
    %1886 = vmatpush.bf16.msra.mxu0 0
    %1887 = vmatpush.bf16.msra.mxu0 0
    %1888 = vmatpush.bf16.msra.mxu0 0
    %1889 = vmatpush.bf16.msra.mxu0 0
    %1890 = vmatpush.bf16.msra.mxu0 0
    %1891 = vmatpush.bf16.msra.mxu0 0
    %1892 = vmatpush.bf16.msra.mxu0 %v1880
    %1893 = vmatmul.bf16.gmra.mxu0 %v1883
    %v1894 = vpop.f32.mrf.mxu0
    %v1895 = vadd.f32 0.0, %v1894
    %v1896 = vpop.f32.mrf.mxu0
    %v1897 = vadd.f32 0.0, %v1896
    %1898 = vdwg.mxu0
    %v1901 = vunpack.c.l.b16 %v1753
    %v1902 = vunpack.c.l.b16 %v1754
    %v1903 = vpack.c.b16 %v1902, %v1901
    %v1906 = vunpack.c.l.b16 %v1278
    %v1907 = vunpack.c.l.b16 %v1279
    %v1908 = vpack.c.b16 %v1907, %v1906
    %v1911 = vsel %vm1566, %v1903, 0
    %1913 = vmatpush.bf16.msra.mxu0 0
    %1914 = vmatpush.bf16.msra.mxu0 0
    %1915 = vmatpush.bf16.msra.mxu0 0
    %1916 = vmatpush.bf16.msra.mxu0 0
    %1917 = vmatpush.bf16.msra.mxu0 0
    %1918 = vmatpush.bf16.msra.mxu0 0
    %1919 = vmatpush.bf16.msra.mxu0 0
    %1920 = vmatpush.bf16.msra.mxu0 %v1908
    %1921 = vmatmul.bf16.gmra.mxu0 %v1911
    %v1922 = vpop.f32.mrf.mxu0
    %v1923 = vadd.f32 0.0, %v1922
    %v1924 = vpop.f32.mrf.mxu0
    %v1925 = vadd.f32 0.0, %v1924
    %1926 = vdwg.mxu0
    %v1929 = vunpack.c.l.b16 %v1755
    %v1930 = vunpack.c.l.b16 %v1756
    %v1931 = vpack.c.b16 %v1930, %v1929
    %v1934 = vunpack.c.l.b16 %v1280
    %v1935 = vunpack.c.l.b16 %v1281
    %v1936 = vpack.c.b16 %v1935, %v1934
    %v1939 = vsel %vm1566, %v1931, 0
    %1941 = vmatpush.bf16.msra.mxu0 0
    %1942 = vmatpush.bf16.msra.mxu0 0
    %1943 = vmatpush.bf16.msra.mxu0 0
    %1944 = vmatpush.bf16.msra.mxu0 0
    %1945 = vmatpush.bf16.msra.mxu0 0
    %1946 = vmatpush.bf16.msra.mxu0 0
    %1947 = vmatpush.bf16.msra.mxu0 0
    %1948 = vmatpush.bf16.msra.mxu0 %v1936
    %1949 = vmatmul.bf16.gmra.mxu0 %v1939
    %v1950 = vpop.f32.mrf.mxu0
    %v1951 = vadd.f32 0.0, %v1950
    %v1952 = vpop.f32.mrf.mxu0
    %v1953 = vadd.f32 0.0, %v1952
    %1954 = vdwg.mxu0
    %v1957 = vunpack.c.l.b16 %v1757
    %v1958 = vunpack.c.l.b16 %v1758
    %v1959 = vpack.c.b16 %v1958, %v1957
    %v1962 = vunpack.c.l.b16 %v1282
    %v1963 = vunpack.c.l.b16 %v1283
    %v1964 = vpack.c.b16 %v1963, %v1962
    %v1967 = vsel %vm1566, %v1959, 0
    %1969 = vmatpush.bf16.msra.mxu0 0
    %1970 = vmatpush.bf16.msra.mxu0 0
    %1971 = vmatpush.bf16.msra.mxu0 0
    %1972 = vmatpush.bf16.msra.mxu0 0
    %1973 = vmatpush.bf16.msra.mxu0 0
    %1974 = vmatpush.bf16.msra.mxu0 0
    %1975 = vmatpush.bf16.msra.mxu0 0
    %1976 = vmatpush.bf16.msra.mxu0 %v1964
    %1977 = vmatmul.bf16.gmra.mxu0 %v1967
    %v1978 = vpop.f32.mrf.mxu0
    %v1979 = vadd.f32 0.0, %v1978
    %v1980 = vpop.f32.mrf.mxu0
    %v1981 = vadd.f32 0.0, %v1980
    %1982 = vdwg.mxu0
    %1983 = vst.msk [vmem:[#allocation2] sm:$0xff] %vm1299, %v1783
    %1984 = vst.msk [vmem:[#allocation2 + $0x8] sm:$0xff] %vm1299, %v1785
    %1985 = vst.msk [vmem:[#allocation2 + $0x10] sm:$0xff] %vm1299, %v1811
    %1986 = vst.msk [vmem:[#allocation2 + $0x18] sm:$0xff] %vm1299, %v1813
    %1987 = vst.msk [vmem:[#allocation2 + $0x20] sm:$0xff] %vm1299, %v1839
    %1988 = vst.msk [vmem:[#allocation2 + $0x28] sm:$0xff] %vm1299, %v1841
    %1989 = vst.msk [vmem:[#allocation2 + $0x30] sm:$0xff] %vm1299, %v1867
    %1990 = vst.msk [vmem:[#allocation2 + $0x38] sm:$0xff] %vm1299, %v1869
    %1991 = vst.msk [vmem:[#allocation2 + $0x40] sm:$0xff] %vm1299, %v1895
    %1992 = vst.msk [vmem:[#allocation2 + $0x48] sm:$0xff] %vm1299, %v1897
    %1993 = vst.msk [vmem:[#allocation2 + $0x50] sm:$0xff] %vm1299, %v1923
    %1994 = vst.msk [vmem:[#allocation2 + $0x58] sm:$0xff] %vm1299, %v1925
    %1995 = vst.msk [vmem:[#allocation2 + $0x60] sm:$0xff] %vm1299, %v1951
    %1996 = vst.msk [vmem:[#allocation2 + $0x68] sm:$0xff] %vm1299, %v1953
    %1997 = vst.msk [vmem:[#allocation2 + $0x70] sm:$0xff] %vm1299, %v1979
    %1998 = vst.msk [vmem:[#allocation2 + $0x78] sm:$0xff] %vm1299, %v1981
    %1999 = vrot.lane.b32.xlu0 %v1293, 96
    %v2000 = vpop.permute.xlu0 %1999
    %2001 = vrot.lane.b32.xlu0 %v1298, 96
    %v2002 = vpop.permute.xlu0 %2001
    %v2004 = vsel %vm1299, %v2000, 0
    %v2007 = vsel %vm1299, %v2002, 0
    %2009 = vmatpush.bf16.xpose.msra.mxu0 0
    %2010 = vmatpush.bf16.xpose.msra.mxu0 0
    %2011 = vmatpush.bf16.xpose.msra.mxu0 0
    %2012 = vmatpush.bf16.xpose.msra.mxu0 0
    %2013 = vmatpush.bf16.xpose.msra.mxu0 0
    %2014 = vmatpush.bf16.xpose.msra.mxu0 0
    %2015 = vmatpush.bf16.xpose.msra.mxu0 0
    %2016 = vmatpush.bf16.xpose.msra.mxu0 %v2007
    %2017 = vmatmul.bf16.gmra.mxu0 %v2004
    %v2018 = vpop.f32.mrf.mxu0
    %v2019 = vadd.f32 0.0, %v2018
    %v2020 = vpop.f32.mrf.mxu0
    %v2021 = vadd.f32 0.0, %v2020
    %2022 = vdwg.mxu0
    %2023 = vrot.lane.b32.xlu0 %v1324, 96
    %v2024 = vpop.permute.xlu0 %2023
    %2025 = vrot.lane.b32.xlu0 %v1329, 96
    %v2026 = vpop.permute.xlu0 %2025
    %v2028 = vsel %vm1299, %v2024, 0
    %v2031 = vsel %vm1299, %v2026, 0
    %2033 = vmatpush.bf16.xpose.msra.mxu0 0
    %2034 = vmatpush.bf16.xpose.msra.mxu0 0
    %2035 = vmatpush.bf16.xpose.msra.mxu0 0
    %2036 = vmatpush.bf16.xpose.msra.mxu0 0
    %2037 = vmatpush.bf16.xpose.msra.mxu0 0
    %2038 = vmatpush.bf16.xpose.msra.mxu0 0
    %2039 = vmatpush.bf16.xpose.msra.mxu0 0
    %2040 = vmatpush.bf16.xpose.msra.mxu0 %v2031
    %2041 = vmatmul.bf16.gmra.mxu0 %v2028
    %v2042 = vpop.f32.mrf.mxu0
    %v2043 = vadd.f32 0.0, %v2042
    %v2044 = vpop.f32.mrf.mxu0
    %v2045 = vadd.f32 0.0, %v2044
    %2046 = vdwg.mxu0
    %2047 = vrot.lane.b32.xlu0 %v1354, 96
    %v2048 = vpop.permute.xlu0 %2047
    %2049 = vrot.lane.b32.xlu0 %v1359, 96
    %v2050 = vpop.permute.xlu0 %2049
    %v2052 = vsel %vm1299, %v2048, 0
    %v2055 = vsel %vm1299, %v2050, 0
    %2057 = vmatpush.bf16.xpose.msra.mxu0 0
    %2058 = vmatpush.bf16.xpose.msra.mxu0 0
    %2059 = vmatpush.bf16.xpose.msra.mxu0 0
    %2060 = vmatpush.bf16.xpose.msra.mxu0 0
    %2061 = vmatpush.bf16.xpose.msra.mxu0 0
    %2062 = vmatpush.bf16.xpose.msra.mxu0 0
    %2063 = vmatpush.bf16.xpose.msra.mxu0 0
    %2064 = vmatpush.bf16.xpose.msra.mxu0 %v2055
    %2065 = vmatmul.bf16.gmra.mxu0 %v2052
    %v2066 = vpop.f32.mrf.mxu0
    %v2067 = vadd.f32 0.0, %v2066
    %v2068 = vpop.f32.mrf.mxu0
    %v2069 = vadd.f32 0.0, %v2068
    %2070 = vdwg.mxu0
    %2071 = vrot.lane.b32.xlu0 %v1384, 96
    %v2072 = vpop.permute.xlu0 %2071
    %2073 = vrot.lane.b32.xlu0 %v1389, 96
    %v2074 = vpop.permute.xlu0 %2073
    %v2076 = vsel %vm1299, %v2072, 0
    %v2079 = vsel %vm1299, %v2074, 0
    %2081 = vmatpush.bf16.xpose.msra.mxu0 0
    %2082 = vmatpush.bf16.xpose.msra.mxu0 0
    %2083 = vmatpush.bf16.xpose.msra.mxu0 0
    %2084 = vmatpush.bf16.xpose.msra.mxu0 0
    %2085 = vmatpush.bf16.xpose.msra.mxu0 0
    %2086 = vmatpush.bf16.xpose.msra.mxu0 0
    %2087 = vmatpush.bf16.xpose.msra.mxu0 0
    %2088 = vmatpush.bf16.xpose.msra.mxu0 %v2079
    %2089 = vmatmul.bf16.gmra.mxu0 %v2076
    %v2090 = vpop.f32.mrf.mxu0
    %v2091 = vadd.f32 0.0, %v2090
    %v2092 = vpop.f32.mrf.mxu0
    %v2093 = vadd.f32 0.0, %v2092
    %2094 = vdwg.mxu0
    %2095 = vrot.lane.b32.xlu0 %v1414, 96
    %v2096 = vpop.permute.xlu0 %2095
    %2097 = vrot.lane.b32.xlu0 %v1419, 96
    %v2098 = vpop.permute.xlu0 %2097
    %v2100 = vsel %vm1299, %v2096, 0
    %v2103 = vsel %vm1299, %v2098, 0
    %2105 = vmatpush.bf16.xpose.msra.mxu0 0
    %2106 = vmatpush.bf16.xpose.msra.mxu0 0
    %2107 = vmatpush.bf16.xpose.msra.mxu0 0
    %2108 = vmatpush.bf16.xpose.msra.mxu0 0
    %2109 = vmatpush.bf16.xpose.msra.mxu0 0
    %2110 = vmatpush.bf16.xpose.msra.mxu0 0
    %2111 = vmatpush.bf16.xpose.msra.mxu0 0
    %2112 = vmatpush.bf16.xpose.msra.mxu0 %v2103
    %2113 = vmatmul.bf16.gmra.mxu0 %v2100
    %v2114 = vpop.f32.mrf.mxu0
    %v2115 = vadd.f32 0.0, %v2114
    %v2116 = vpop.f32.mrf.mxu0
    %v2117 = vadd.f32 0.0, %v2116
    %2118 = vdwg.mxu0
    %2119 = vrot.lane.b32.xlu0 %v1444, 96
    %v2120 = vpop.permute.xlu0 %2119
    %2121 = vrot.lane.b32.xlu0 %v1449, 96
    %v2122 = vpop.permute.xlu0 %2121
    %v2124 = vsel %vm1299, %v2120, 0
    %v2127 = vsel %vm1299, %v2122, 0
    %2129 = vmatpush.bf16.xpose.msra.mxu0 0
    %2130 = vmatpush.bf16.xpose.msra.mxu0 0
    %2131 = vmatpush.bf16.xpose.msra.mxu0 0
    %2132 = vmatpush.bf16.xpose.msra.mxu0 0
    %2133 = vmatpush.bf16.xpose.msra.mxu0 0
    %2134 = vmatpush.bf16.xpose.msra.mxu0 0
    %2135 = vmatpush.bf16.xpose.msra.mxu0 0
    %2136 = vmatpush.bf16.xpose.msra.mxu0 %v2127
    %2137 = vmatmul.bf16.gmra.mxu0 %v2124
    %v2138 = vpop.f32.mrf.mxu0
    %v2139 = vadd.f32 0.0, %v2138
    %v2140 = vpop.f32.mrf.mxu0
    %v2141 = vadd.f32 0.0, %v2140
    %2142 = vdwg.mxu0
    %2143 = vrot.lane.b32.xlu0 %v1474, 96
    %v2144 = vpop.permute.xlu0 %2143
    %2145 = vrot.lane.b32.xlu0 %v1479, 96
    %v2146 = vpop.permute.xlu0 %2145
    %v2148 = vsel %vm1299, %v2144, 0
    %v2151 = vsel %vm1299, %v2146, 0
    %2153 = vmatpush.bf16.xpose.msra.mxu0 0
    %2154 = vmatpush.bf16.xpose.msra.mxu0 0
    %2155 = vmatpush.bf16.xpose.msra.mxu0 0
    %2156 = vmatpush.bf16.xpose.msra.mxu0 0
    %2157 = vmatpush.bf16.xpose.msra.mxu0 0
    %2158 = vmatpush.bf16.xpose.msra.mxu0 0
    %2159 = vmatpush.bf16.xpose.msra.mxu0 0
    %2160 = vmatpush.bf16.xpose.msra.mxu0 %v2151
    %2161 = vmatmul.bf16.gmra.mxu0 %v2148
    %v2162 = vpop.f32.mrf.mxu0
    %v2163 = vadd.f32 0.0, %v2162
    %v2164 = vpop.f32.mrf.mxu0
    %v2165 = vadd.f32 0.0, %v2164
    %2166 = vdwg.mxu0
    %2167 = vrot.lane.b32.xlu0 %v1504, 96
    %v2168 = vpop.permute.xlu0 %2167
    %2169 = vrot.lane.b32.xlu0 %v1509, 96
    %v2170 = vpop.permute.xlu0 %2169
    %v2172 = vsel %vm1299, %v2168, 0
    %v2175 = vsel %vm1299, %v2170, 0
    %2177 = vmatpush.bf16.xpose.msra.mxu0 0
    %2178 = vmatpush.bf16.xpose.msra.mxu0 0
    %2179 = vmatpush.bf16.xpose.msra.mxu0 0
    %2180 = vmatpush.bf16.xpose.msra.mxu0 0
    %2181 = vmatpush.bf16.xpose.msra.mxu0 0
    %2182 = vmatpush.bf16.xpose.msra.mxu0 0
    %2183 = vmatpush.bf16.xpose.msra.mxu0 0
    %2184 = vmatpush.bf16.xpose.msra.mxu0 %v2175
    %2185 = vmatmul.bf16.gmra.mxu0 %v2172
    %v2186 = vpop.f32.mrf.mxu0
    %v2187 = vadd.f32 0.0, %v2186
    %v2188 = vpop.f32.mrf.mxu0
    %v2189 = vadd.f32 0.0, %v2188
    %2190 = vdwg.mxu0
    %v2191 = vmul.f32 %v2019, 0.17677669
    %v2192 = vmul.f32 %v2021, 0.17677669
    %v2193 = vmul.f32 %v2043, 0.17677669
    %v2194 = vmul.f32 %v2045, 0.17677669
    %v2195 = vmul.f32 %v2067, 0.17677669
    %v2196 = vmul.f32 %v2069, 0.17677669
    %v2197 = vmul.f32 %v2091, 0.17677669
    %v2198 = vmul.f32 %v2093, 0.17677669
    %v2199 = vmul.f32 %v2115, 0.17677669
    %v2200 = vmul.f32 %v2117, 0.17677669
    %v2201 = vmul.f32 %v2139, 0.17677669
    %v2202 = vmul.f32 %v2141, 0.17677669
    %v2203 = vmul.f32 %v2163, 0.17677669
    %v2204 = vmul.f32 %v2165, 0.17677669
    %v2205 = vmul.f32 %v2187, 0.17677669
    %v2206 = vmul.f32 %v2189, 0.17677669
    %v2207 = vsel %vm1548, %v2191, -1e+30
    %v2208 = vsel %vm1549, %v2192, -1e+30
    %v2209 = vsel %vm1548, %v2193, -1e+30
    %v2210 = vsel %vm1549, %v2194, -1e+30
    %v2211 = vsel %vm1548, %v2195, -1e+30
    %v2212 = vsel %vm1549, %v2196, -1e+30
    %v2213 = vsel %vm1548, %v2197, -1e+30
    %v2214 = vsel %vm1549, %v2198, -1e+30
    %v2215 = vsel %vm1548, %v2199, -1e+30
    %v2216 = vsel %vm1549, %v2200, -1e+30
    %v2217 = vsel %vm1548, %v2201, -1e+30
    %v2218 = vsel %vm1549, %v2202, -1e+30
    %v2219 = vsel %vm1548, %v2203, -1e+30
    %v2220 = vsel %vm1549, %v2204, -1e+30
    %v2221 = vsel %vm1548, %v2205, -1e+30
    %v2222 = vsel %vm1549, %v2206, -1e+30
    %v2223 = vsel %vm1566, %v2207, -inf
    %2224 = vmax.xlane.f32.xlu0 %v2223
    %v2225 = vpop.xlane.xlu0 %2224
    %v2226 = vsel %vm1566, %v2208, -inf
    %2227 = vmax.xlane.f32.xlu0 %v2226
    %v2228 = vpop.xlane.xlu0 %2227
    %v2229 = vsel %vm1566, %v2209, -inf
    %2230 = vmax.xlane.f32.xlu0 %v2229
    %v2231 = vpop.xlane.xlu0 %2230
    %v2232 = vsel %vm1566, %v2210, -inf
    %2233 = vmax.xlane.f32.xlu0 %v2232
    %v2234 = vpop.xlane.xlu0 %2233
    %v2235 = vsel %vm1566, %v2211, -inf
    %2236 = vmax.xlane.f32.xlu0 %v2235
    %v2237 = vpop.xlane.xlu0 %2236
    %v2238 = vsel %vm1566, %v2212, -inf
    %2239 = vmax.xlane.f32.xlu0 %v2238
    %v2240 = vpop.xlane.xlu0 %2239
    %v2241 = vsel %vm1566, %v2213, -inf
    %2242 = vmax.xlane.f32.xlu0 %v2241
    %v2243 = vpop.xlane.xlu0 %2242
    %v2244 = vsel %vm1566, %v2214, -inf
    %2245 = vmax.xlane.f32.xlu0 %v2244
    %v2246 = vpop.xlane.xlu0 %2245
    %v2247 = vsel %vm1566, %v2215, -inf
    %2248 = vmax.xlane.f32.xlu0 %v2247
    %v2249 = vpop.xlane.xlu0 %2248
    %v2250 = vsel %vm1566, %v2216, -inf
    %2251 = vmax.xlane.f32.xlu0 %v2250
    %v2252 = vpop.xlane.xlu0 %2251
    %v2253 = vsel %vm1566, %v2217, -inf
    %2254 = vmax.xlane.f32.xlu0 %v2253
    %v2255 = vpop.xlane.xlu0 %2254
    %v2256 = vsel %vm1566, %v2218, -inf
    %2257 = vmax.xlane.f32.xlu0 %v2256
    %v2258 = vpop.xlane.xlu0 %2257
    %v2259 = vsel %vm1566, %v2219, -inf
    %2260 = vmax.xlane.f32.xlu0 %v2259
    %v2261 = vpop.xlane.xlu0 %2260
    %v2262 = vsel %vm1566, %v2220, -inf
    %2263 = vmax.xlane.f32.xlu0 %v2262
    %v2264 = vpop.xlane.xlu0 %2263
    %v2265 = vsel %vm1566, %v2221, -inf
    %2266 = vmax.xlane.f32.xlu0 %v2265
    %v2267 = vpop.xlane.xlu0 %2266
    %v2268 = vsel %vm1566, %v2222, -inf
    %2269 = vmax.xlane.f32.xlu0 %v2268
    %v2270 = vpop.xlane.xlu0 %2269
    %v2271 = vsub.f32 %v2207, %v2225
    %v2272 = vsub.f32 %v2208, %v2228
    %v2273 = vsub.f32 %v2209, %v2231
    %v2274 = vsub.f32 %v2210, %v2234
    %v2275 = vsub.f32 %v2211, %v2237
    %v2276 = vsub.f32 %v2212, %v2240
    %v2277 = vsub.f32 %v2213, %v2243
    %v2278 = vsub.f32 %v2214, %v2246
    %v2279 = vsub.f32 %v2215, %v2249
    %v2280 = vsub.f32 %v2216, %v2252
    %v2281 = vsub.f32 %v2217, %v2255
    %v2282 = vsub.f32 %v2218, %v2258
    %v2283 = vsub.f32 %v2219, %v2261
    %v2284 = vsub.f32 %v2220, %v2264
    %v2285 = vsub.f32 %v2221, %v2267
    %v2286 = vsub.f32 %v2222, %v2270
    %v2287 = vmul.f32 %v2271, 1.442695
    %v2288 = vpow.pop %v2287
    %v2289 = vmul.f32 %v2272, 1.442695
    %v2290 = vpow.pop %v2289
    %v2291 = vmul.f32 %v2273, 1.442695
    %v2292 = vpow.pop %v2291
    %v2293 = vmul.f32 %v2274, 1.442695
    %v2294 = vpow.pop %v2293
    %v2295 = vmul.f32 %v2275, 1.442695
    %v2296 = vpow.pop %v2295
    %v2297 = vmul.f32 %v2276, 1.442695
    %v2298 = vpow.pop %v2297
    %v2299 = vmul.f32 %v2277, 1.442695
    %v2300 = vpow.pop %v2299
    %v2301 = vmul.f32 %v2278, 1.442695
    %v2302 = vpow.pop %v2301
    %v2303 = vmul.f32 %v2279, 1.442695
    %v2304 = vpow.pop %v2303
    %v2305 = vmul.f32 %v2280, 1.442695
    %v2306 = vpow.pop %v2305
    %v2307 = vmul.f32 %v2281, 1.442695
    %v2308 = vpow.pop %v2307
    %v2309 = vmul.f32 %v2282, 1.442695
    %v2310 = vpow.pop %v2309
    %v2311 = vmul.f32 %v2283, 1.442695
    %v2312 = vpow.pop %v2311
    %v2313 = vmul.f32 %v2284, 1.442695
    %v2314 = vpow.pop %v2313
    %v2315 = vmul.f32 %v2285, 1.442695
    %v2316 = vpow.pop %v2315
    %v2317 = vmul.f32 %v2286, 1.442695
    %v2318 = vpow.pop %v2317
    %v2319 = vsel %vm1566, %v2288, 0.0
    %2320 = vadd.xlane.f32.xlu0 %v2319
    %v2321 = vpop.xlane.xlu0 %2320
    %v2322 = vsel %vm1566, %v2290, 0.0
    %2323 = vadd.xlane.f32.xlu0 %v2322
    %v2324 = vpop.xlane.xlu0 %2323
    %v2325 = vsel %vm1566, %v2292, 0.0
    %2326 = vadd.xlane.f32.xlu0 %v2325
    %v2327 = vpop.xlane.xlu0 %2326
    %v2328 = vsel %vm1566, %v2294, 0.0
    %2329 = vadd.xlane.f32.xlu0 %v2328
    %v2330 = vpop.xlane.xlu0 %2329
    %v2331 = vsel %vm1566, %v2296, 0.0
    %2332 = vadd.xlane.f32.xlu0 %v2331
    %v2333 = vpop.xlane.xlu0 %2332
    %v2334 = vsel %vm1566, %v2298, 0.0
    %2335 = vadd.xlane.f32.xlu0 %v2334
    %v2336 = vpop.xlane.xlu0 %2335
    %v2337 = vsel %vm1566, %v2300, 0.0
    %2338 = vadd.xlane.f32.xlu0 %v2337
    %v2339 = vpop.xlane.xlu0 %2338
    %v2340 = vsel %vm1566, %v2302, 0.0
    %2341 = vadd.xlane.f32.xlu0 %v2340
    %v2342 = vpop.xlane.xlu0 %2341
    %v2343 = vsel %vm1566, %v2304, 0.0
    %2344 = vadd.xlane.f32.xlu0 %v2343
    %v2345 = vpop.xlane.xlu0 %2344
    %v2346 = vsel %vm1566, %v2306, 0.0
    %2347 = vadd.xlane.f32.xlu0 %v2346
    %v2348 = vpop.xlane.xlu0 %2347
    %v2349 = vsel %vm1566, %v2308, 0.0
    %2350 = vadd.xlane.f32.xlu0 %v2349
    %v2351 = vpop.xlane.xlu0 %2350
    %v2352 = vsel %vm1566, %v2310, 0.0
    %2353 = vadd.xlane.f32.xlu0 %v2352
    %v2354 = vpop.xlane.xlu0 %2353
    %v2355 = vsel %vm1566, %v2312, 0.0
    %2356 = vadd.xlane.f32.xlu0 %v2355
    %v2357 = vpop.xlane.xlu0 %2356
    %v2358 = vsel %vm1566, %v2314, 0.0
    %2359 = vadd.xlane.f32.xlu0 %v2358
    %v2360 = vpop.xlane.xlu0 %2359
    %v2361 = vsel %vm1566, %v2316, 0.0
    %2362 = vadd.xlane.f32.xlu0 %v2361
    %v2363 = vpop.xlane.xlu0 %2362
    %v2364 = vsel %vm1566, %v2318, 0.0
    %2365 = vadd.xlane.f32.xlu0 %v2364
    %v2366 = vpop.xlane.xlu0 %2365
    %v2367 = vrcp.pop %v2321
    %v2368 = vrcp.pop %v2324
    %v2369 = vrcp.pop %v2327
    %v2370 = vrcp.pop %v2330
    %v2371 = vrcp.pop %v2333
    %v2372 = vrcp.pop %v2336
    %v2373 = vrcp.pop %v2339
    %v2374 = vrcp.pop %v2342
    %v2375 = vrcp.pop %v2345
    %v2376 = vrcp.pop %v2348
    %v2377 = vrcp.pop %v2351
    %v2378 = vrcp.pop %v2354
    %v2379 = vrcp.pop %v2357
    %v2380 = vrcp.pop %v2360
    %v2381 = vrcp.pop %v2363
    %v2382 = vrcp.pop %v2366
    %v2383 = vmul.f32 %v2288, %v2367
    %v2384 = vmul.f32 %v2290, %v2368
    %v2385 = vmul.f32 %v2292, %v2369
    %v2386 = vmul.f32 %v2294, %v2370
    %v2387 = vmul.f32 %v2296, %v2371
    %v2388 = vmul.f32 %v2298, %v2372
    %v2389 = vmul.f32 %v2300, %v2373
    %v2390 = vmul.f32 %v2302, %v2374
    %v2391 = vmul.f32 %v2304, %v2375
    %v2392 = vmul.f32 %v2306, %v2376
    %v2393 = vmul.f32 %v2308, %v2377
    %v2394 = vmul.f32 %v2310, %v2378
    %v2395 = vmul.f32 %v2312, %v2379
    %v2396 = vmul.f32 %v2314, %v2380
    %v2397 = vmul.f32 %v2316, %v2381
    %v2398 = vmul.f32 %v2318, %v2382
    %v2399 = vpack.c.bf16 %v2383, %v2383
    %v2400 = vpack.c.bf16 %v2384, %v2384
    %v2401 = vpack.c.bf16 %v2385, %v2385
    %v2402 = vpack.c.bf16 %v2386, %v2386
    %v2403 = vpack.c.bf16 %v2387, %v2387
    %v2404 = vpack.c.bf16 %v2388, %v2388
    %v2405 = vpack.c.bf16 %v2389, %v2389
    %v2406 = vpack.c.bf16 %v2390, %v2390
    %v2407 = vpack.c.bf16 %v2391, %v2391
    %v2408 = vpack.c.bf16 %v2392, %v2392
    %v2409 = vpack.c.bf16 %v2393, %v2393
    %v2410 = vpack.c.bf16 %v2394, %v2394
    %v2411 = vpack.c.bf16 %v2395, %v2395
    %v2412 = vpack.c.bf16 %v2396, %v2396
    %v2413 = vpack.c.bf16 %v2397, %v2397
    %v2414 = vpack.c.bf16 %v2398, %v2398
    %v2417 = vunpack.c.l.b16 %v2399
    %v2418 = vunpack.c.l.b16 %v2400
    %v2419 = vpack.c.b16 %v2418, %v2417
    %2420 = vrot.lane.b32.xlu0 %v1768, 96
    %v2421 = vpop.permute.xlu0 %2420
    %v2424 = vsel %vm1566, %v2419, 0
    %2426 = vmatpush.bf16.msra.mxu0 0
    %2427 = vmatpush.bf16.msra.mxu0 0
    %2428 = vmatpush.bf16.msra.mxu0 0
    %2429 = vmatpush.bf16.msra.mxu0 0
    %2430 = vmatpush.bf16.msra.mxu0 0
    %2431 = vmatpush.bf16.msra.mxu0 0
    %2432 = vmatpush.bf16.msra.mxu0 0
    %2433 = vmatpush.bf16.msra.mxu0 %v2421
    %2434 = vmatmul.bf16.gmra.mxu0 %v2424
    %v2435 = vpop.f32.mrf.mxu0
    %v2436 = vadd.f32 0.0, %v2435
    %v2437 = vpop.f32.mrf.mxu0
    %v2438 = vadd.f32 0.0, %v2437
    %2439 = vdwg.mxu0
    %v2442 = vunpack.c.l.b16 %v2401
    %v2443 = vunpack.c.l.b16 %v2402
    %v2444 = vpack.c.b16 %v2443, %v2442
    %2445 = vrot.lane.b32.xlu0 %v1796, 96
    %v2446 = vpop.permute.xlu0 %2445
    %v2449 = vsel %vm1566, %v2444, 0
    %2451 = vmatpush.bf16.msra.mxu0 0
    %2452 = vmatpush.bf16.msra.mxu0 0
    %2453 = vmatpush.bf16.msra.mxu0 0
    %2454 = vmatpush.bf16.msra.mxu0 0
    %2455 = vmatpush.bf16.msra.mxu0 0
    %2456 = vmatpush.bf16.msra.mxu0 0
    %2457 = vmatpush.bf16.msra.mxu0 0
    %2458 = vmatpush.bf16.msra.mxu0 %v2446
    %2459 = vmatmul.bf16.gmra.mxu0 %v2449
    %v2460 = vpop.f32.mrf.mxu0
    %v2461 = vadd.f32 0.0, %v2460
    %v2462 = vpop.f32.mrf.mxu0
    %v2463 = vadd.f32 0.0, %v2462
    %2464 = vdwg.mxu0
    %v2467 = vunpack.c.l.b16 %v2403
    %v2468 = vunpack.c.l.b16 %v2404
    %v2469 = vpack.c.b16 %v2468, %v2467
    %2470 = vrot.lane.b32.xlu0 %v1824, 96
    %v2471 = vpop.permute.xlu0 %2470
    %v2474 = vsel %vm1566, %v2469, 0
    %2476 = vmatpush.bf16.msra.mxu0 0
    %2477 = vmatpush.bf16.msra.mxu0 0
    %2478 = vmatpush.bf16.msra.mxu0 0
    %2479 = vmatpush.bf16.msra.mxu0 0
    %2480 = vmatpush.bf16.msra.mxu0 0
    %2481 = vmatpush.bf16.msra.mxu0 0
    %2482 = vmatpush.bf16.msra.mxu0 0
    %2483 = vmatpush.bf16.msra.mxu0 %v2471
    %2484 = vmatmul.bf16.gmra.mxu0 %v2474
    %v2485 = vpop.f32.mrf.mxu0
    %v2486 = vadd.f32 0.0, %v2485
    %v2487 = vpop.f32.mrf.mxu0
    %v2488 = vadd.f32 0.0, %v2487
    %2489 = vdwg.mxu0
    %v2492 = vunpack.c.l.b16 %v2405
    %v2493 = vunpack.c.l.b16 %v2406
    %v2494 = vpack.c.b16 %v2493, %v2492
    %2495 = vrot.lane.b32.xlu0 %v1852, 96
    %v2496 = vpop.permute.xlu0 %2495
    %v2499 = vsel %vm1566, %v2494, 0
    %2501 = vmatpush.bf16.msra.mxu0 0
    %2502 = vmatpush.bf16.msra.mxu0 0
    %2503 = vmatpush.bf16.msra.mxu0 0
    %2504 = vmatpush.bf16.msra.mxu0 0
    %2505 = vmatpush.bf16.msra.mxu0 0
    %2506 = vmatpush.bf16.msra.mxu0 0
    %2507 = vmatpush.bf16.msra.mxu0 0
    %2508 = vmatpush.bf16.msra.mxu0 %v2496
    %2509 = vmatmul.bf16.gmra.mxu0 %v2499
    %v2510 = vpop.f32.mrf.mxu0
    %v2511 = vadd.f32 0.0, %v2510
    %v2512 = vpop.f32.mrf.mxu0
    %v2513 = vadd.f32 0.0, %v2512
    %2514 = vdwg.mxu0
    %v2517 = vunpack.c.l.b16 %v2407
    %v2518 = vunpack.c.l.b16 %v2408
    %v2519 = vpack.c.b16 %v2518, %v2517
    %2520 = vrot.lane.b32.xlu0 %v1880, 96
    %v2521 = vpop.permute.xlu0 %2520
    %v2524 = vsel %vm1566, %v2519, 0
    %2526 = vmatpush.bf16.msra.mxu0 0
    %2527 = vmatpush.bf16.msra.mxu0 0
    %2528 = vmatpush.bf16.msra.mxu0 0
    %2529 = vmatpush.bf16.msra.mxu0 0
    %2530 = vmatpush.bf16.msra.mxu0 0
    %2531 = vmatpush.bf16.msra.mxu0 0
    %2532 = vmatpush.bf16.msra.mxu0 0
    %2533 = vmatpush.bf16.msra.mxu0 %v2521
    %2534 = vmatmul.bf16.gmra.mxu0 %v2524
    %v2535 = vpop.f32.mrf.mxu0
    %v2536 = vadd.f32 0.0, %v2535
    %v2537 = vpop.f32.mrf.mxu0
    %v2538 = vadd.f32 0.0, %v2537
    %2539 = vdwg.mxu0
    %v2542 = vunpack.c.l.b16 %v2409
    %v2543 = vunpack.c.l.b16 %v2410
    %v2544 = vpack.c.b16 %v2543, %v2542
    %2545 = vrot.lane.b32.xlu0 %v1908, 96
    %v2546 = vpop.permute.xlu0 %2545
    %v2549 = vsel %vm1566, %v2544, 0
    %2551 = vmatpush.bf16.msra.mxu0 0
    %2552 = vmatpush.bf16.msra.mxu0 0
    %2553 = vmatpush.bf16.msra.mxu0 0
    %2554 = vmatpush.bf16.msra.mxu0 0
    %2555 = vmatpush.bf16.msra.mxu0 0
    %2556 = vmatpush.bf16.msra.mxu0 0
    %2557 = vmatpush.bf16.msra.mxu0 0
    %2558 = vmatpush.bf16.msra.mxu0 %v2546
    %2559 = vmatmul.bf16.gmra.mxu0 %v2549
    %v2560 = vpop.f32.mrf.mxu0
    %v2561 = vadd.f32 0.0, %v2560
    %v2562 = vpop.f32.mrf.mxu0
    %v2563 = vadd.f32 0.0, %v2562
    %2564 = vdwg.mxu0
    %v2567 = vunpack.c.l.b16 %v2411
    %v2568 = vunpack.c.l.b16 %v2412
    %v2569 = vpack.c.b16 %v2568, %v2567
    %2570 = vrot.lane.b32.xlu0 %v1936, 96
    %v2571 = vpop.permute.xlu0 %2570
    %v2574 = vsel %vm1566, %v2569, 0
    %2576 = vmatpush.bf16.msra.mxu0 0
    %2577 = vmatpush.bf16.msra.mxu0 0
    %2578 = vmatpush.bf16.msra.mxu0 0
    %2579 = vmatpush.bf16.msra.mxu0 0
    %2580 = vmatpush.bf16.msra.mxu0 0
    %2581 = vmatpush.bf16.msra.mxu0 0
    %2582 = vmatpush.bf16.msra.mxu0 0
    %2583 = vmatpush.bf16.msra.mxu0 %v2571
    %2584 = vmatmul.bf16.gmra.mxu0 %v2574
    %v2585 = vpop.f32.mrf.mxu0
    %v2586 = vadd.f32 0.0, %v2585
    %v2587 = vpop.f32.mrf.mxu0
    %v2588 = vadd.f32 0.0, %v2587
    %2589 = vdwg.mxu0
    %v2592 = vunpack.c.l.b16 %v2413
    %v2593 = vunpack.c.l.b16 %v2414
    %v2594 = vpack.c.b16 %v2593, %v2592
    %2595 = vrot.lane.b32.xlu0 %v1964, 96
    %v2596 = vpop.permute.xlu0 %2595
    %v2599 = vsel %vm1566, %v2594, 0
    %2601 = vmatpush.bf16.msra.mxu0 0
    %2602 = vmatpush.bf16.msra.mxu0 0
    %2603 = vmatpush.bf16.msra.mxu0 0
    %2604 = vmatpush.bf16.msra.mxu0 0
    %2605 = vmatpush.bf16.msra.mxu0 0
    %2606 = vmatpush.bf16.msra.mxu0 0
    %2607 = vmatpush.bf16.msra.mxu0 0
    %2608 = vmatpush.bf16.msra.mxu0 %v2596
    %2609 = vmatmul.bf16.gmra.mxu0 %v2599
    %v2610 = vpop.f32.mrf.mxu0
    %v2611 = vadd.f32 0.0, %v2610
    %v2612 = vpop.f32.mrf.mxu0
    %v2613 = vadd.f32 0.0, %v2612
    %2614 = vdwg.mxu0
    %2631 = vrot.lane.b32.xlu0 %v2436, 32
    %v2632 = vpop.permute.xlu0 %2631
    %2633 = vrot.lane.b32.xlu0 %v2438, 32
    %v2634 = vpop.permute.xlu0 %2633
    %2635 = vrot.lane.b32.xlu0 %v2461, 32
    %v2636 = vpop.permute.xlu0 %2635
    %2637 = vrot.lane.b32.xlu0 %v2463, 32
    %v2638 = vpop.permute.xlu0 %2637
    %2639 = vrot.lane.b32.xlu0 %v2486, 32
    %v2640 = vpop.permute.xlu0 %2639
    %2641 = vrot.lane.b32.xlu0 %v2488, 32
    %v2642 = vpop.permute.xlu0 %2641
    %2643 = vrot.lane.b32.xlu0 %v2511, 32
    %v2644 = vpop.permute.xlu0 %2643
    %2645 = vrot.lane.b32.xlu0 %v2513, 32
    %v2646 = vpop.permute.xlu0 %2645
    %2647 = vrot.lane.b32.xlu0 %v2536, 32
    %v2648 = vpop.permute.xlu0 %2647
    %2649 = vrot.lane.b32.xlu0 %v2538, 32
    %v2650 = vpop.permute.xlu0 %2649
    %2651 = vrot.lane.b32.xlu0 %v2561, 32
    %v2652 = vpop.permute.xlu0 %2651
    %2653 = vrot.lane.b32.xlu0 %v2563, 32
    %v2654 = vpop.permute.xlu0 %2653
    %2655 = vrot.lane.b32.xlu0 %v2586, 32
    %v2656 = vpop.permute.xlu0 %2655
    %2657 = vrot.lane.b32.xlu0 %v2588, 32
    %v2658 = vpop.permute.xlu0 %2657
    %2659 = vrot.lane.b32.xlu0 %v2611, 32
    %v2660 = vpop.permute.xlu0 %2659
    %2661 = vrot.lane.b32.xlu0 %v2613, 32
    %v2662 = vpop.permute.xlu0 %2661
    %vm2679 = vcmask 523520
    %2680 = vst.msk [vmem:[#allocation2] sm:$0xff] %vm2679, %v2632
    %2681 = vst.msk [vmem:[#allocation2 + $0x8] sm:$0xff] %vm2679, %v2634
    %2682 = vst.msk [vmem:[#allocation2 + $0x10] sm:$0xff] %vm2679, %v2636
    %2683 = vst.msk [vmem:[#allocation2 + $0x18] sm:$0xff] %vm2679, %v2638
    %2684 = vst.msk [vmem:[#allocation2 + $0x20] sm:$0xff] %vm2679, %v2640
    %2685 = vst.msk [vmem:[#allocation2 + $0x28] sm:$0xff] %vm2679, %v2642
    %2686 = vst.msk [vmem:[#allocation2 + $0x30] sm:$0xff] %vm2679, %v2644
    %2687 = vst.msk [vmem:[#allocation2 + $0x38] sm:$0xff] %vm2679, %v2646
    %2688 = vst.msk [vmem:[#allocation2 + $0x40] sm:$0xff] %vm2679, %v2648
    %2689 = vst.msk [vmem:[#allocation2 + $0x48] sm:$0xff] %vm2679, %v2650
    %2690 = vst.msk [vmem:[#allocation2 + $0x50] sm:$0xff] %vm2679, %v2652
    %2691 = vst.msk [vmem:[#allocation2 + $0x58] sm:$0xff] %vm2679, %v2654
    %2692 = vst.msk [vmem:[#allocation2 + $0x60] sm:$0xff] %vm2679, %v2656
    %2693 = vst.msk [vmem:[#allocation2 + $0x68] sm:$0xff] %vm2679, %v2658
    %2694 = vst.msk [vmem:[#allocation2 + $0x70] sm:$0xff] %vm2679, %v2660
    %2695 = vst.msk [vmem:[#allocation2 + $0x78] sm:$0xff] %vm2679, %v2662
    %2696 = vrot.lane.b32.xlu0 %v1293, 64
    %v2697 = vpop.permute.xlu0 %2696
    %2698 = vrot.lane.b32.xlu0 %v1298, 64
    %v2699 = vpop.permute.xlu0 %2698
    %v2701 = vsel %vm1299, %v2697, 0
    %v2704 = vsel %vm1299, %v2699, 0
    %2706 = vmatpush.bf16.xpose.msra.mxu0 0
    %2707 = vmatpush.bf16.xpose.msra.mxu0 0
    %2708 = vmatpush.bf16.xpose.msra.mxu0 0
    %2709 = vmatpush.bf16.xpose.msra.mxu0 0
    %2710 = vmatpush.bf16.xpose.msra.mxu0 0
    %2711 = vmatpush.bf16.xpose.msra.mxu0 0
    %2712 = vmatpush.bf16.xpose.msra.mxu0 0
    %2713 = vmatpush.bf16.xpose.msra.mxu0 %v2704
    %2714 = vmatmul.bf16.gmra.mxu0 %v2701
    %v2715 = vpop.f32.mrf.mxu0
    %v2716 = vadd.f32 0.0, %v2715
    %v2717 = vpop.f32.mrf.mxu0
    %v2718 = vadd.f32 0.0, %v2717
    %2719 = vdwg.mxu0
    %2720 = vrot.lane.b32.xlu0 %v1324, 64
    %v2721 = vpop.permute.xlu0 %2720
    %2722 = vrot.lane.b32.xlu0 %v1329, 64
    %v2723 = vpop.permute.xlu0 %2722
    %v2725 = vsel %vm1299, %v2721, 0
    %v2728 = vsel %vm1299, %v2723, 0
    %2730 = vmatpush.bf16.xpose.msra.mxu0 0
    %2731 = vmatpush.bf16.xpose.msra.mxu0 0
    %2732 = vmatpush.bf16.xpose.msra.mxu0 0
    %2733 = vmatpush.bf16.xpose.msra.mxu0 0
    %2734 = vmatpush.bf16.xpose.msra.mxu0 0
    %2735 = vmatpush.bf16.xpose.msra.mxu0 0
    %2736 = vmatpush.bf16.xpose.msra.mxu0 0
    %2737 = vmatpush.bf16.xpose.msra.mxu0 %v2728
    %2738 = vmatmul.bf16.gmra.mxu0 %v2725
    %v2739 = vpop.f32.mrf.mxu0
    %v2740 = vadd.f32 0.0, %v2739
    %v2741 = vpop.f32.mrf.mxu0
    %v2742 = vadd.f32 0.0, %v2741
    %2743 = vdwg.mxu0
    %2744 = vrot.lane.b32.xlu0 %v1354, 64
    %v2745 = vpop.permute.xlu0 %2744
    %2746 = vrot.lane.b32.xlu0 %v1359, 64
    %v2747 = vpop.permute.xlu0 %2746
    %v2749 = vsel %vm1299, %v2745, 0
    %v2752 = vsel %vm1299, %v2747, 0
    %2754 = vmatpush.bf16.xpose.msra.mxu0 0
    %2755 = vmatpush.bf16.xpose.msra.mxu0 0
    %2756 = vmatpush.bf16.xpose.msra.mxu0 0
    %2757 = vmatpush.bf16.xpose.msra.mxu0 0
    %2758 = vmatpush.bf16.xpose.msra.mxu0 0
    %2759 = vmatpush.bf16.xpose.msra.mxu0 0
    %2760 = vmatpush.bf16.xpose.msra.mxu0 0
    %2761 = vmatpush.bf16.xpose.msra.mxu0 %v2752
    %2762 = vmatmul.bf16.gmra.mxu0 %v2749
    %v2763 = vpop.f32.mrf.mxu0
    %v2764 = vadd.f32 0.0, %v2763
    %v2765 = vpop.f32.mrf.mxu0
    %v2766 = vadd.f32 0.0, %v2765
    %2767 = vdwg.mxu0
    %2768 = vrot.lane.b32.xlu0 %v1384, 64
    %v2769 = vpop.permute.xlu0 %2768
    %2770 = vrot.lane.b32.xlu0 %v1389, 64
    %v2771 = vpop.permute.xlu0 %2770
    %v2773 = vsel %vm1299, %v2769, 0
    %v2776 = vsel %vm1299, %v2771, 0
    %2778 = vmatpush.bf16.xpose.msra.mxu0 0
    %2779 = vmatpush.bf16.xpose.msra.mxu0 0
    %2780 = vmatpush.bf16.xpose.msra.mxu0 0
    %2781 = vmatpush.bf16.xpose.msra.mxu0 0
    %2782 = vmatpush.bf16.xpose.msra.mxu0 0
    %2783 = vmatpush.bf16.xpose.msra.mxu0 0
    %2784 = vmatpush.bf16.xpose.msra.mxu0 0
    %2785 = vmatpush.bf16.xpose.msra.mxu0 %v2776
    %2786 = vmatmul.bf16.gmra.mxu0 %v2773
    %v2787 = vpop.f32.mrf.mxu0
    %v2788 = vadd.f32 0.0, %v2787
    %v2789 = vpop.f32.mrf.mxu0
    %v2790 = vadd.f32 0.0, %v2789
    %2791 = vdwg.mxu0
    %2792 = vrot.lane.b32.xlu0 %v1414, 64
    %v2793 = vpop.permute.xlu0 %2792
    %2794 = vrot.lane.b32.xlu0 %v1419, 64
    %v2795 = vpop.permute.xlu0 %2794
    %v2797 = vsel %vm1299, %v2793, 0
    %v2800 = vsel %vm1299, %v2795, 0
    %2802 = vmatpush.bf16.xpose.msra.mxu0 0
    %2803 = vmatpush.bf16.xpose.msra.mxu0 0
    %2804 = vmatpush.bf16.xpose.msra.mxu0 0
    %2805 = vmatpush.bf16.xpose.msra.mxu0 0
    %2806 = vmatpush.bf16.xpose.msra.mxu0 0
    %2807 = vmatpush.bf16.xpose.msra.mxu0 0
    %2808 = vmatpush.bf16.xpose.msra.mxu0 0
    %2809 = vmatpush.bf16.xpose.msra.mxu0 %v2800
    %2810 = vmatmul.bf16.gmra.mxu0 %v2797
    %v2811 = vpop.f32.mrf.mxu0
    %v2812 = vadd.f32 0.0, %v2811
    %v2813 = vpop.f32.mrf.mxu0
    %v2814 = vadd.f32 0.0, %v2813
    %2815 = vdwg.mxu0
    %2816 = vrot.lane.b32.xlu0 %v1444, 64
    %v2817 = vpop.permute.xlu0 %2816
    %2818 = vrot.lane.b32.xlu0 %v1449, 64
    %v2819 = vpop.permute.xlu0 %2818
    %v2821 = vsel %vm1299, %v2817, 0
    %v2824 = vsel %vm1299, %v2819, 0
    %2826 = vmatpush.bf16.xpose.msra.mxu0 0
    %2827 = vmatpush.bf16.xpose.msra.mxu0 0
    %2828 = vmatpush.bf16.xpose.msra.mxu0 0
    %2829 = vmatpush.bf16.xpose.msra.mxu0 0
    %2830 = vmatpush.bf16.xpose.msra.mxu0 0
    %2831 = vmatpush.bf16.xpose.msra.mxu0 0
    %2832 = vmatpush.bf16.xpose.msra.mxu0 0
    %2833 = vmatpush.bf16.xpose.msra.mxu0 %v2824
    %2834 = vmatmul.bf16.gmra.mxu0 %v2821
    %v2835 = vpop.f32.mrf.mxu0
    %v2836 = vadd.f32 0.0, %v2835
    %v2837 = vpop.f32.mrf.mxu0
    %v2838 = vadd.f32 0.0, %v2837
    %2839 = vdwg.mxu0
    %2840 = vrot.lane.b32.xlu0 %v1474, 64
    %v2841 = vpop.permute.xlu0 %2840
    %2842 = vrot.lane.b32.xlu0 %v1479, 64
    %v2843 = vpop.permute.xlu0 %2842
    %v2845 = vsel %vm1299, %v2841, 0
    %v2848 = vsel %vm1299, %v2843, 0
    %2850 = vmatpush.bf16.xpose.msra.mxu0 0
    %2851 = vmatpush.bf16.xpose.msra.mxu0 0
    %2852 = vmatpush.bf16.xpose.msra.mxu0 0
    %2853 = vmatpush.bf16.xpose.msra.mxu0 0
    %2854 = vmatpush.bf16.xpose.msra.mxu0 0
    %2855 = vmatpush.bf16.xpose.msra.mxu0 0
    %2856 = vmatpush.bf16.xpose.msra.mxu0 0
    %2857 = vmatpush.bf16.xpose.msra.mxu0 %v2848
    %2858 = vmatmul.bf16.gmra.mxu0 %v2845
    %v2859 = vpop.f32.mrf.mxu0
    %v2860 = vadd.f32 0.0, %v2859
    %v2861 = vpop.f32.mrf.mxu0
    %v2862 = vadd.f32 0.0, %v2861
    %2863 = vdwg.mxu0
    %2864 = vrot.lane.b32.xlu0 %v1504, 64
    %v2865 = vpop.permute.xlu0 %2864
    %2866 = vrot.lane.b32.xlu0 %v1509, 64
    %v2867 = vpop.permute.xlu0 %2866
    %v2869 = vsel %vm1299, %v2865, 0
    %v2872 = vsel %vm1299, %v2867, 0
    %2874 = vmatpush.bf16.xpose.msra.mxu0 0
    %2875 = vmatpush.bf16.xpose.msra.mxu0 0
    %2876 = vmatpush.bf16.xpose.msra.mxu0 0
    %2877 = vmatpush.bf16.xpose.msra.mxu0 0
    %2878 = vmatpush.bf16.xpose.msra.mxu0 0
    %2879 = vmatpush.bf16.xpose.msra.mxu0 0
    %2880 = vmatpush.bf16.xpose.msra.mxu0 0
    %2881 = vmatpush.bf16.xpose.msra.mxu0 %v2872
    %2882 = vmatmul.bf16.gmra.mxu0 %v2869
    %v2883 = vpop.f32.mrf.mxu0
    %v2884 = vadd.f32 0.0, %v2883
    %v2885 = vpop.f32.mrf.mxu0
    %v2886 = vadd.f32 0.0, %v2885
    %2887 = vdwg.mxu0
    %v2888 = vmul.f32 %v2716, 0.17677669
    %v2889 = vmul.f32 %v2718, 0.17677669
    %v2890 = vmul.f32 %v2740, 0.17677669
    %v2891 = vmul.f32 %v2742, 0.17677669
    %v2892 = vmul.f32 %v2764, 0.17677669
    %v2893 = vmul.f32 %v2766, 0.17677669
    %v2894 = vmul.f32 %v2788, 0.17677669
    %v2895 = vmul.f32 %v2790, 0.17677669
    %v2896 = vmul.f32 %v2812, 0.17677669
    %v2897 = vmul.f32 %v2814, 0.17677669
    %v2898 = vmul.f32 %v2836, 0.17677669
    %v2899 = vmul.f32 %v2838, 0.17677669
    %v2900 = vmul.f32 %v2860, 0.17677669
    %v2901 = vmul.f32 %v2862, 0.17677669
    %v2902 = vmul.f32 %v2884, 0.17677669
    %v2903 = vmul.f32 %v2886, 0.17677669
    %v2904 = vsel %vm1548, %v2888, -1e+30
    %v2905 = vsel %vm1549, %v2889, -1e+30
    %v2906 = vsel %vm1548, %v2890, -1e+30
    %v2907 = vsel %vm1549, %v2891, -1e+30
    %v2908 = vsel %vm1548, %v2892, -1e+30
    %v2909 = vsel %vm1549, %v2893, -1e+30
    %v2910 = vsel %vm1548, %v2894, -1e+30
    %v2911 = vsel %vm1549, %v2895, -1e+30
    %v2912 = vsel %vm1548, %v2896, -1e+30
    %v2913 = vsel %vm1549, %v2897, -1e+30
    %v2914 = vsel %vm1548, %v2898, -1e+30
    %v2915 = vsel %vm1549, %v2899, -1e+30
    %v2916 = vsel %vm1548, %v2900, -1e+30
    %v2917 = vsel %vm1549, %v2901, -1e+30
    %v2918 = vsel %vm1548, %v2902, -1e+30
    %v2919 = vsel %vm1549, %v2903, -1e+30
    %v2920 = vsel %vm1566, %v2904, -inf
    %2921 = vmax.xlane.f32.xlu0 %v2920
    %v2922 = vpop.xlane.xlu0 %2921
    %v2923 = vsel %vm1566, %v2905, -inf
    %2924 = vmax.xlane.f32.xlu0 %v2923
    %v2925 = vpop.xlane.xlu0 %2924
    %v2926 = vsel %vm1566, %v2906, -inf
    %2927 = vmax.xlane.f32.xlu0 %v2926
    %v2928 = vpop.xlane.xlu0 %2927
    %v2929 = vsel %vm1566, %v2907, -inf
    %2930 = vmax.xlane.f32.xlu0 %v2929
    %v2931 = vpop.xlane.xlu0 %2930
    %v2932 = vsel %vm1566, %v2908, -inf
    %2933 = vmax.xlane.f32.xlu0 %v2932
    %v2934 = vpop.xlane.xlu0 %2933
    %v2935 = vsel %vm1566, %v2909, -inf
    %2936 = vmax.xlane.f32.xlu0 %v2935
    %v2937 = vpop.xlane.xlu0 %2936
    %v2938 = vsel %vm1566, %v2910, -inf
    %2939 = vmax.xlane.f32.xlu0 %v2938
    %v2940 = vpop.xlane.xlu0 %2939
    %v2941 = vsel %vm1566, %v2911, -inf
    %2942 = vmax.xlane.f32.xlu0 %v2941
    %v2943 = vpop.xlane.xlu0 %2942
    %v2944 = vsel %vm1566, %v2912, -inf
    %2945 = vmax.xlane.f32.xlu0 %v2944
    %v2946 = vpop.xlane.xlu0 %2945
    %v2947 = vsel %vm1566, %v2913, -inf
    %2948 = vmax.xlane.f32.xlu0 %v2947
    %v2949 = vpop.xlane.xlu0 %2948
    %v2950 = vsel %vm1566, %v2914, -inf
    %2951 = vmax.xlane.f32.xlu0 %v2950
    %v2952 = vpop.xlane.xlu0 %2951
    %v2953 = vsel %vm1566, %v2915, -inf
    %2954 = vmax.xlane.f32.xlu0 %v2953
    %v2955 = vpop.xlane.xlu0 %2954
    %v2956 = vsel %vm1566, %v2916, -inf
    %2957 = vmax.xlane.f32.xlu0 %v2956
    %v2958 = vpop.xlane.xlu0 %2957
    %v2959 = vsel %vm1566, %v2917, -inf
    %2960 = vmax.xlane.f32.xlu0 %v2959
    %v2961 = vpop.xlane.xlu0 %2960
    %v2962 = vsel %vm1566, %v2918, -inf
    %2963 = vmax.xlane.f32.xlu0 %v2962
    %v2964 = vpop.xlane.xlu0 %2963
    %v2965 = vsel %vm1566, %v2919, -inf
    %2966 = vmax.xlane.f32.xlu0 %v2965
    %v2967 = vpop.xlane.xlu0 %2966
    %v2968 = vsub.f32 %v2904, %v2922
    %v2969 = vsub.f32 %v2905, %v2925
    %v2970 = vsub.f32 %v2906, %v2928
    %v2971 = vsub.f32 %v2907, %v2931
    %v2972 = vsub.f32 %v2908, %v2934
    %v2973 = vsub.f32 %v2909, %v2937
    %v2974 = vsub.f32 %v2910, %v2940
    %v2975 = vsub.f32 %v2911, %v2943
    %v2976 = vsub.f32 %v2912, %v2946
    %v2977 = vsub.f32 %v2913, %v2949
    %v2978 = vsub.f32 %v2914, %v2952
    %v2979 = vsub.f32 %v2915, %v2955
    %v2980 = vsub.f32 %v2916, %v2958
    %v2981 = vsub.f32 %v2917, %v2961
    %v2982 = vsub.f32 %v2918, %v2964
    %v2983 = vsub.f32 %v2919, %v2967
    %v2984 = vmul.f32 %v2968, 1.442695
    %v2985 = vpow.pop %v2984
    %v2986 = vmul.f32 %v2969, 1.442695
    %v2987 = vpow.pop %v2986
    %v2988 = vmul.f32 %v2970, 1.442695
    %v2989 = vpow.pop %v2988
    %v2990 = vmul.f32 %v2971, 1.442695
    %v2991 = vpow.pop %v2990
    %v2992 = vmul.f32 %v2972, 1.442695
    %v2993 = vpow.pop %v2992
    %v2994 = vmul.f32 %v2973, 1.442695
    %v2995 = vpow.pop %v2994
    %v2996 = vmul.f32 %v2974, 1.442695
    %v2997 = vpow.pop %v2996
    %v2998 = vmul.f32 %v2975, 1.442695
    %v2999 = vpow.pop %v2998
    %v3000 = vmul.f32 %v2976, 1.442695
    %v3001 = vpow.pop %v3000
    %v3002 = vmul.f32 %v2977, 1.442695
    %v3003 = vpow.pop %v3002
    %v3004 = vmul.f32 %v2978, 1.442695
    %v3005 = vpow.pop %v3004
    %v3006 = vmul.f32 %v2979, 1.442695
    %v3007 = vpow.pop %v3006
    %v3008 = vmul.f32 %v2980, 1.442695
    %v3009 = vpow.pop %v3008
    %v3010 = vmul.f32 %v2981, 1.442695
    %v3011 = vpow.pop %v3010
    %v3012 = vmul.f32 %v2982, 1.442695
    %v3013 = vpow.pop %v3012
    %v3014 = vmul.f32 %v2983, 1.442695
    %v3015 = vpow.pop %v3014
    %v3016 = vsel %vm1566, %v2985, 0.0
    %3017 = vadd.xlane.f32.xlu0 %v3016
    %v3018 = vpop.xlane.xlu0 %3017
    %v3019 = vsel %vm1566, %v2987, 0.0
    %3020 = vadd.xlane.f32.xlu0 %v3019
    %v3021 = vpop.xlane.xlu0 %3020
    %v3022 = vsel %vm1566, %v2989, 0.0
    %3023 = vadd.xlane.f32.xlu0 %v3022
    %v3024 = vpop.xlane.xlu0 %3023
    %v3025 = vsel %vm1566, %v2991, 0.0
    %3026 = vadd.xlane.f32.xlu0 %v3025
    %v3027 = vpop.xlane.xlu0 %3026
    %v3028 = vsel %vm1566, %v2993, 0.0
    %3029 = vadd.xlane.f32.xlu0 %v3028
    %v3030 = vpop.xlane.xlu0 %3029
    %v3031 = vsel %vm1566, %v2995, 0.0
    %3032 = vadd.xlane.f32.xlu0 %v3031
    %v3033 = vpop.xlane.xlu0 %3032
    %v3034 = vsel %vm1566, %v2997, 0.0
    %3035 = vadd.xlane.f32.xlu0 %v3034
    %v3036 = vpop.xlane.xlu0 %3035
    %v3037 = vsel %vm1566, %v2999, 0.0
    %3038 = vadd.xlane.f32.xlu0 %v3037
    %v3039 = vpop.xlane.xlu0 %3038
    %v3040 = vsel %vm1566, %v3001, 0.0
    %3041 = vadd.xlane.f32.xlu0 %v3040
    %v3042 = vpop.xlane.xlu0 %3041
    %v3043 = vsel %vm1566, %v3003, 0.0
    %3044 = vadd.xlane.f32.xlu0 %v3043
    %v3045 = vpop.xlane.xlu0 %3044
    %v3046 = vsel %vm1566, %v3005, 0.0
    %3047 = vadd.xlane.f32.xlu0 %v3046
    %v3048 = vpop.xlane.xlu0 %3047
    %v3049 = vsel %vm1566, %v3007, 0.0
    %3050 = vadd.xlane.f32.xlu0 %v3049
    %v3051 = vpop.xlane.xlu0 %3050
    %v3052 = vsel %vm1566, %v3009, 0.0
    %3053 = vadd.xlane.f32.xlu0 %v3052
    %v3054 = vpop.xlane.xlu0 %3053
    %v3055 = vsel %vm1566, %v3011, 0.0
    %3056 = vadd.xlane.f32.xlu0 %v3055
    %v3057 = vpop.xlane.xlu0 %3056
    %v3058 = vsel %vm1566, %v3013, 0.0
    %3059 = vadd.xlane.f32.xlu0 %v3058
    %v3060 = vpop.xlane.xlu0 %3059
    %v3061 = vsel %vm1566, %v3015, 0.0
    %3062 = vadd.xlane.f32.xlu0 %v3061
    %v3063 = vpop.xlane.xlu0 %3062
    %v3064 = vrcp.pop %v3018
    %v3065 = vrcp.pop %v3021
    %v3066 = vrcp.pop %v3024
    %v3067 = vrcp.pop %v3027
    %v3068 = vrcp.pop %v3030
    %v3069 = vrcp.pop %v3033
    %v3070 = vrcp.pop %v3036
    %v3071 = vrcp.pop %v3039
    %v3072 = vrcp.pop %v3042
    %v3073 = vrcp.pop %v3045
    %v3074 = vrcp.pop %v3048
    %v3075 = vrcp.pop %v3051
    %v3076 = vrcp.pop %v3054
    %v3077 = vrcp.pop %v3057
    %v3078 = vrcp.pop %v3060
    %v3079 = vrcp.pop %v3063
    %v3080 = vmul.f32 %v2985, %v3064
    %v3081 = vmul.f32 %v2987, %v3065
    %v3082 = vmul.f32 %v2989, %v3066
    %v3083 = vmul.f32 %v2991, %v3067
    %v3084 = vmul.f32 %v2993, %v3068
    %v3085 = vmul.f32 %v2995, %v3069
    %v3086 = vmul.f32 %v2997, %v3070
    %v3087 = vmul.f32 %v2999, %v3071
    %v3088 = vmul.f32 %v3001, %v3072
    %v3089 = vmul.f32 %v3003, %v3073
    %v3090 = vmul.f32 %v3005, %v3074
    %v3091 = vmul.f32 %v3007, %v3075
    %v3092 = vmul.f32 %v3009, %v3076
    %v3093 = vmul.f32 %v3011, %v3077
    %v3094 = vmul.f32 %v3013, %v3078
    %v3095 = vmul.f32 %v3015, %v3079
    %v3096 = vpack.c.bf16 %v3080, %v3080
    %v3097 = vpack.c.bf16 %v3081, %v3081
    %v3098 = vpack.c.bf16 %v3082, %v3082
    %v3099 = vpack.c.bf16 %v3083, %v3083
    %v3100 = vpack.c.bf16 %v3084, %v3084
    %v3101 = vpack.c.bf16 %v3085, %v3085
    %v3102 = vpack.c.bf16 %v3086, %v3086
    %v3103 = vpack.c.bf16 %v3087, %v3087
    %v3104 = vpack.c.bf16 %v3088, %v3088
    %v3105 = vpack.c.bf16 %v3089, %v3089
    %v3106 = vpack.c.bf16 %v3090, %v3090
    %v3107 = vpack.c.bf16 %v3091, %v3091
    %v3108 = vpack.c.bf16 %v3092, %v3092
    %v3109 = vpack.c.bf16 %v3093, %v3093
    %v3110 = vpack.c.bf16 %v3094, %v3094
    %v3111 = vpack.c.bf16 %v3095, %v3095
    %v3114 = vunpack.c.l.b16 %v3096
    %v3115 = vunpack.c.l.b16 %v3097
    %v3116 = vpack.c.b16 %v3115, %v3114
    %3117 = vrot.lane.b32.xlu0 %v1768, 64
    %v3118 = vpop.permute.xlu0 %3117
    %v3121 = vsel %vm1566, %v3116, 0
    %3123 = vmatpush.bf16.msra.mxu0 0
    %3124 = vmatpush.bf16.msra.mxu0 0
    %3125 = vmatpush.bf16.msra.mxu0 0
    %3126 = vmatpush.bf16.msra.mxu0 0
    %3127 = vmatpush.bf16.msra.mxu0 0
    %3128 = vmatpush.bf16.msra.mxu0 0
    %3129 = vmatpush.bf16.msra.mxu0 0
    %3130 = vmatpush.bf16.msra.mxu0 %v3118
    %3131 = vmatmul.bf16.gmra.mxu0 %v3121
    %v3132 = vpop.f32.mrf.mxu0
    %v3133 = vadd.f32 0.0, %v3132
    %v3134 = vpop.f32.mrf.mxu0
    %v3135 = vadd.f32 0.0, %v3134
    %3136 = vdwg.mxu0
    %v3139 = vunpack.c.l.b16 %v3098
    %v3140 = vunpack.c.l.b16 %v3099
    %v3141 = vpack.c.b16 %v3140, %v3139
    %3142 = vrot.lane.b32.xlu0 %v1796, 64
    %v3143 = vpop.permute.xlu0 %3142
    %v3146 = vsel %vm1566, %v3141, 0
    %3148 = vmatpush.bf16.msra.mxu0 0
    %3149 = vmatpush.bf16.msra.mxu0 0
    %3150 = vmatpush.bf16.msra.mxu0 0
    %3151 = vmatpush.bf16.msra.mxu0 0
    %3152 = vmatpush.bf16.msra.mxu0 0
    %3153 = vmatpush.bf16.msra.mxu0 0
    %3154 = vmatpush.bf16.msra.mxu0 0
    %3155 = vmatpush.bf16.msra.mxu0 %v3143
    %3156 = vmatmul.bf16.gmra.mxu0 %v3146
    %v3157 = vpop.f32.mrf.mxu0
    %v3158 = vadd.f32 0.0, %v3157
    %v3159 = vpop.f32.mrf.mxu0
    %v3160 = vadd.f32 0.0, %v3159
    %3161 = vdwg.mxu0
    %v3164 = vunpack.c.l.b16 %v3100
    %v3165 = vunpack.c.l.b16 %v3101
    %v3166 = vpack.c.b16 %v3165, %v3164
    %3167 = vrot.lane.b32.xlu0 %v1824, 64
    %v3168 = vpop.permute.xlu0 %3167
    %v3171 = vsel %vm1566, %v3166, 0
    %3173 = vmatpush.bf16.msra.mxu0 0
    %3174 = vmatpush.bf16.msra.mxu0 0
    %3175 = vmatpush.bf16.msra.mxu0 0
    %3176 = vmatpush.bf16.msra.mxu0 0
    %3177 = vmatpush.bf16.msra.mxu0 0
    %3178 = vmatpush.bf16.msra.mxu0 0
    %3179 = vmatpush.bf16.msra.mxu0 0
    %3180 = vmatpush.bf16.msra.mxu0 %v3168
    %3181 = vmatmul.bf16.gmra.mxu0 %v3171
    %v3182 = vpop.f32.mrf.mxu0
    %v3183 = vadd.f32 0.0, %v3182
    %v3184 = vpop.f32.mrf.mxu0
    %v3185 = vadd.f32 0.0, %v3184
    %3186 = vdwg.mxu0
    %v3189 = vunpack.c.l.b16 %v3102
    %v3190 = vunpack.c.l.b16 %v3103
    %v3191 = vpack.c.b16 %v3190, %v3189
    %3192 = vrot.lane.b32.xlu0 %v1852, 64
    %v3193 = vpop.permute.xlu0 %3192
    %v3196 = vsel %vm1566, %v3191, 0
    %3198 = vmatpush.bf16.msra.mxu0 0
    %3199 = vmatpush.bf16.msra.mxu0 0
    %3200 = vmatpush.bf16.msra.mxu0 0
    %3201 = vmatpush.bf16.msra.mxu0 0
    %3202 = vmatpush.bf16.msra.mxu0 0
    %3203 = vmatpush.bf16.msra.mxu0 0
    %3204 = vmatpush.bf16.msra.mxu0 0
    %3205 = vmatpush.bf16.msra.mxu0 %v3193
    %3206 = vmatmul.bf16.gmra.mxu0 %v3196
    %v3207 = vpop.f32.mrf.mxu0
    %v3208 = vadd.f32 0.0, %v3207
    %v3209 = vpop.f32.mrf.mxu0
    %v3210 = vadd.f32 0.0, %v3209
    %3211 = vdwg.mxu0
    %v3214 = vunpack.c.l.b16 %v3104
    %v3215 = vunpack.c.l.b16 %v3105
    %v3216 = vpack.c.b16 %v3215, %v3214
    %3217 = vrot.lane.b32.xlu0 %v1880, 64
    %v3218 = vpop.permute.xlu0 %3217
    %v3221 = vsel %vm1566, %v3216, 0
    %3223 = vmatpush.bf16.msra.mxu0 0
    %3224 = vmatpush.bf16.msra.mxu0 0
    %3225 = vmatpush.bf16.msra.mxu0 0
    %3226 = vmatpush.bf16.msra.mxu0 0
    %3227 = vmatpush.bf16.msra.mxu0 0
    %3228 = vmatpush.bf16.msra.mxu0 0
    %3229 = vmatpush.bf16.msra.mxu0 0
    %3230 = vmatpush.bf16.msra.mxu0 %v3218
    %3231 = vmatmul.bf16.gmra.mxu0 %v3221
    %v3232 = vpop.f32.mrf.mxu0
    %v3233 = vadd.f32 0.0, %v3232
    %v3234 = vpop.f32.mrf.mxu0
    %v3235 = vadd.f32 0.0, %v3234
    %3236 = vdwg.mxu0
    %v3239 = vunpack.c.l.b16 %v3106
    %v3240 = vunpack.c.l.b16 %v3107
    %v3241 = vpack.c.b16 %v3240, %v3239
    %3242 = vrot.lane.b32.xlu0 %v1908, 64
    %v3243 = vpop.permute.xlu0 %3242
    %v3246 = vsel %vm1566, %v3241, 0
    %3248 = vmatpush.bf16.msra.mxu0 0
    %3249 = vmatpush.bf16.msra.mxu0 0
    %3250 = vmatpush.bf16.msra.mxu0 0
    %3251 = vmatpush.bf16.msra.mxu0 0
    %3252 = vmatpush.bf16.msra.mxu0 0
    %3253 = vmatpush.bf16.msra.mxu0 0
    %3254 = vmatpush.bf16.msra.mxu0 0
    %3255 = vmatpush.bf16.msra.mxu0 %v3243
    %3256 = vmatmul.bf16.gmra.mxu0 %v3246
    %v3257 = vpop.f32.mrf.mxu0
    %v3258 = vadd.f32 0.0, %v3257
    %v3259 = vpop.f32.mrf.mxu0
    %v3260 = vadd.f32 0.0, %v3259
    %3261 = vdwg.mxu0
    %v3264 = vunpack.c.l.b16 %v3108
    %v3265 = vunpack.c.l.b16 %v3109
    %v3266 = vpack.c.b16 %v3265, %v3264
    %3267 = vrot.lane.b32.xlu0 %v1936, 64
    %v3268 = vpop.permute.xlu0 %3267
    %v3271 = vsel %vm1566, %v3266, 0
    %3273 = vmatpush.bf16.msra.mxu0 0
    %3274 = vmatpush.bf16.msra.mxu0 0
    %3275 = vmatpush.bf16.msra.mxu0 0
    %3276 = vmatpush.bf16.msra.mxu0 0
    %3277 = vmatpush.bf16.msra.mxu0 0
    %3278 = vmatpush.bf16.msra.mxu0 0
    %3279 = vmatpush.bf16.msra.mxu0 0
    %3280 = vmatpush.bf16.msra.mxu0 %v3268
    %3281 = vmatmul.bf16.gmra.mxu0 %v3271
    %v3282 = vpop.f32.mrf.mxu0
    %v3283 = vadd.f32 0.0, %v3282
    %v3284 = vpop.f32.mrf.mxu0
    %v3285 = vadd.f32 0.0, %v3284
    %3286 = vdwg.mxu0
    %v3289 = vunpack.c.l.b16 %v3110
    %v3290 = vunpack.c.l.b16 %v3111
    %v3291 = vpack.c.b16 %v3290, %v3289
    %3292 = vrot.lane.b32.xlu0 %v1964, 64
    %v3293 = vpop.permute.xlu0 %3292
    %v3296 = vsel %vm1566, %v3291, 0
    %3298 = vmatpush.bf16.msra.mxu0 0
    %3299 = vmatpush.bf16.msra.mxu0 0
    %3300 = vmatpush.bf16.msra.mxu0 0
    %3301 = vmatpush.bf16.msra.mxu0 0
    %3302 = vmatpush.bf16.msra.mxu0 0
    %3303 = vmatpush.bf16.msra.mxu0 0
    %3304 = vmatpush.bf16.msra.mxu0 0
    %3305 = vmatpush.bf16.msra.mxu0 %v3293
    %3306 = vmatmul.bf16.gmra.mxu0 %v3296
    %v3307 = vpop.f32.mrf.mxu0
    %v3308 = vadd.f32 0.0, %v3307
    %v3309 = vpop.f32.mrf.mxu0
    %v3310 = vadd.f32 0.0, %v3309
    %3311 = vdwg.mxu0
    %3328 = vrot.lane.b32.xlu0 %v3133, 64
    %v3329 = vpop.permute.xlu0 %3328
    %3330 = vrot.lane.b32.xlu0 %v3135, 64
    %v3331 = vpop.permute.xlu0 %3330
    %3332 = vrot.lane.b32.xlu0 %v3158, 64
    %v3333 = vpop.permute.xlu0 %3332
    %3334 = vrot.lane.b32.xlu0 %v3160, 64
    %v3335 = vpop.permute.xlu0 %3334
    %3336 = vrot.lane.b32.xlu0 %v3183, 64
    %v3337 = vpop.permute.xlu0 %3336
    %3338 = vrot.lane.b32.xlu0 %v3185, 64
    %v3339 = vpop.permute.xlu0 %3338
    %3340 = vrot.lane.b32.xlu0 %v3208, 64
    %v3341 = vpop.permute.xlu0 %3340
    %3342 = vrot.lane.b32.xlu0 %v3210, 64
    %v3343 = vpop.permute.xlu0 %3342
    %3344 = vrot.lane.b32.xlu0 %v3233, 64
    %v3345 = vpop.permute.xlu0 %3344
    %3346 = vrot.lane.b32.xlu0 %v3235, 64
    %v3347 = vpop.permute.xlu0 %3346
    %3348 = vrot.lane.b32.xlu0 %v3258, 64
    %v3349 = vpop.permute.xlu0 %3348
    %3350 = vrot.lane.b32.xlu0 %v3260, 64
    %v3351 = vpop.permute.xlu0 %3350
    %3352 = vrot.lane.b32.xlu0 %v3283, 64
    %v3353 = vpop.permute.xlu0 %3352
    %3354 = vrot.lane.b32.xlu0 %v3285, 64
    %v3355 = vpop.permute.xlu0 %3354
    %3356 = vrot.lane.b32.xlu0 %v3308, 64
    %v3357 = vpop.permute.xlu0 %3356
    %3358 = vrot.lane.b32.xlu0 %v3310, 64
    %v3359 = vpop.permute.xlu0 %3358
    %vm3376 = vcmask 785920
    %3377 = vst.msk [vmem:[#allocation2] sm:$0xff] %vm3376, %v3329
    %3378 = vst.msk [vmem:[#allocation2 + $0x8] sm:$0xff] %vm3376, %v3331
    %3379 = vst.msk [vmem:[#allocation2 + $0x10] sm:$0xff] %vm3376, %v3333
    %3380 = vst.msk [vmem:[#allocation2 + $0x18] sm:$0xff] %vm3376, %v3335
    %3381 = vst.msk [vmem:[#allocation2 + $0x20] sm:$0xff] %vm3376, %v3337
    %3382 = vst.msk [vmem:[#allocation2 + $0x28] sm:$0xff] %vm3376, %v3339
    %3383 = vst.msk [vmem:[#allocation2 + $0x30] sm:$0xff] %vm3376, %v3341
    %3384 = vst.msk [vmem:[#allocation2 + $0x38] sm:$0xff] %vm3376, %v3343
    %3385 = vst.msk [vmem:[#allocation2 + $0x40] sm:$0xff] %vm3376, %v3345
    %3386 = vst.msk [vmem:[#allocation2 + $0x48] sm:$0xff] %vm3376, %v3347
    %3387 = vst.msk [vmem:[#allocation2 + $0x50] sm:$0xff] %vm3376, %v3349
    %3388 = vst.msk [vmem:[#allocation2 + $0x58] sm:$0xff] %vm3376, %v3351
    %3389 = vst.msk [vmem:[#allocation2 + $0x60] sm:$0xff] %vm3376, %v3353
    %3390 = vst.msk [vmem:[#allocation2 + $0x68] sm:$0xff] %vm3376, %v3355
    %3391 = vst.msk [vmem:[#allocation2 + $0x70] sm:$0xff] %vm3376, %v3357
    %3392 = vst.msk [vmem:[#allocation2 + $0x78] sm:$0xff] %vm3376, %v3359
    %3393 = vrot.lane.b32.xlu0 %v1293, 32
    %v3394 = vpop.permute.xlu0 %3393
    %3395 = vrot.lane.b32.xlu0 %v1298, 32
    %v3396 = vpop.permute.xlu0 %3395
    %v3398 = vsel %vm1299, %v3394, 0
    %v3401 = vsel %vm1299, %v3396, 0
    %3403 = vmatpush.bf16.xpose.msra.mxu0 0
    %3404 = vmatpush.bf16.xpose.msra.mxu0 0
    %3405 = vmatpush.bf16.xpose.msra.mxu0 0
    %3406 = vmatpush.bf16.xpose.msra.mxu0 0
    %3407 = vmatpush.bf16.xpose.msra.mxu0 0
    %3408 = vmatpush.bf16.xpose.msra.mxu0 0
    %3409 = vmatpush.bf16.xpose.msra.mxu0 0
    %3410 = vmatpush.bf16.xpose.msra.mxu0 %v3401
    %3411 = vmatmul.bf16.gmra.mxu0 %v3398
    %v3412 = vpop.f32.mrf.mxu0
    %v3413 = vadd.f32 0.0, %v3412
    %v3414 = vpop.f32.mrf.mxu0
    %v3415 = vadd.f32 0.0, %v3414
    %3416 = vdwg.mxu0
    %3417 = vrot.lane.b32.xlu0 %v1324, 32
    %v3418 = vpop.permute.xlu0 %3417
    %3419 = vrot.lane.b32.xlu0 %v1329, 32
    %v3420 = vpop.permute.xlu0 %3419
    %v3422 = vsel %vm1299, %v3418, 0
    %v3425 = vsel %vm1299, %v3420, 0
    %3427 = vmatpush.bf16.xpose.msra.mxu0 0
    %3428 = vmatpush.bf16.xpose.msra.mxu0 0
    %3429 = vmatpush.bf16.xpose.msra.mxu0 0
    %3430 = vmatpush.bf16.xpose.msra.mxu0 0
    %3431 = vmatpush.bf16.xpose.msra.mxu0 0
    %3432 = vmatpush.bf16.xpose.msra.mxu0 0
    %3433 = vmatpush.bf16.xpose.msra.mxu0 0
    %3434 = vmatpush.bf16.xpose.msra.mxu0 %v3425
    %3435 = vmatmul.bf16.gmra.mxu0 %v3422
    %v3436 = vpop.f32.mrf.mxu0
    %v3437 = vadd.f32 0.0, %v3436
    %v3438 = vpop.f32.mrf.mxu0
    %v3439 = vadd.f32 0.0, %v3438
    %3440 = vdwg.mxu0
    %3441 = vrot.lane.b32.xlu0 %v1354, 32
    %v3442 = vpop.permute.xlu0 %3441
    %3443 = vrot.lane.b32.xlu0 %v1359, 32
    %v3444 = vpop.permute.xlu0 %3443
    %v3446 = vsel %vm1299, %v3442, 0
    %v3449 = vsel %vm1299, %v3444, 0
    %3451 = vmatpush.bf16.xpose.msra.mxu0 0
    %3452 = vmatpush.bf16.xpose.msra.mxu0 0
    %3453 = vmatpush.bf16.xpose.msra.mxu0 0
    %3454 = vmatpush.bf16.xpose.msra.mxu0 0
    %3455 = vmatpush.bf16.xpose.msra.mxu0 0
    %3456 = vmatpush.bf16.xpose.msra.mxu0 0
    %3457 = vmatpush.bf16.xpose.msra.mxu0 0
    %3458 = vmatpush.bf16.xpose.msra.mxu0 %v3449
    %3459 = vmatmul.bf16.gmra.mxu0 %v3446
    %v3460 = vpop.f32.mrf.mxu0
    %v3461 = vadd.f32 0.0, %v3460
    %v3462 = vpop.f32.mrf.mxu0
    %v3463 = vadd.f32 0.0, %v3462
    %3464 = vdwg.mxu0
    %3465 = vrot.lane.b32.xlu0 %v1384, 32
    %v3466 = vpop.permute.xlu0 %3465
    %3467 = vrot.lane.b32.xlu0 %v1389, 32
    %v3468 = vpop.permute.xlu0 %3467
    %v3470 = vsel %vm1299, %v3466, 0
    %v3473 = vsel %vm1299, %v3468, 0
    %3475 = vmatpush.bf16.xpose.msra.mxu0 0
    %3476 = vmatpush.bf16.xpose.msra.mxu0 0
    %3477 = vmatpush.bf16.xpose.msra.mxu0 0
    %3478 = vmatpush.bf16.xpose.msra.mxu0 0
    %3479 = vmatpush.bf16.xpose.msra.mxu0 0
    %3480 = vmatpush.bf16.xpose.msra.mxu0 0
    %3481 = vmatpush.bf16.xpose.msra.mxu0 0
    %3482 = vmatpush.bf16.xpose.msra.mxu0 %v3473
    %3483 = vmatmul.bf16.gmra.mxu0 %v3470
    %v3484 = vpop.f32.mrf.mxu0
    %v3485 = vadd.f32 0.0, %v3484
    %v3486 = vpop.f32.mrf.mxu0
    %v3487 = vadd.f32 0.0, %v3486
    %3488 = vdwg.mxu0
    %3489 = vrot.lane.b32.xlu0 %v1414, 32
    %v3490 = vpop.permute.xlu0 %3489
    %3491 = vrot.lane.b32.xlu0 %v1419, 32
    %v3492 = vpop.permute.xlu0 %3491
    %v3494 = vsel %vm1299, %v3490, 0
    %v3497 = vsel %vm1299, %v3492, 0
    %3499 = vmatpush.bf16.xpose.msra.mxu0 0
    %3500 = vmatpush.bf16.xpose.msra.mxu0 0
    %3501 = vmatpush.bf16.xpose.msra.mxu0 0
    %3502 = vmatpush.bf16.xpose.msra.mxu0 0
    %3503 = vmatpush.bf16.xpose.msra.mxu0 0
    %3504 = vmatpush.bf16.xpose.msra.mxu0 0
    %3505 = vmatpush.bf16.xpose.msra.mxu0 0
    %3506 = vmatpush.bf16.xpose.msra.mxu0 %v3497
    %3507 = vmatmul.bf16.gmra.mxu0 %v3494
    %v3508 = vpop.f32.mrf.mxu0
    %v3509 = vadd.f32 0.0, %v3508
    %v3510 = vpop.f32.mrf.mxu0
    %v3511 = vadd.f32 0.0, %v3510
    %3512 = vdwg.mxu0
    %3513 = vrot.lane.b32.xlu0 %v1444, 32
    %v3514 = vpop.permute.xlu0 %3513
    %3515 = vrot.lane.b32.xlu0 %v1449, 32
    %v3516 = vpop.permute.xlu0 %3515
    %v3518 = vsel %vm1299, %v3514, 0
    %v3521 = vsel %vm1299, %v3516, 0
    %3523 = vmatpush.bf16.xpose.msra.mxu0 0
    %3524 = vmatpush.bf16.xpose.msra.mxu0 0
    %3525 = vmatpush.bf16.xpose.msra.mxu0 0
    %3526 = vmatpush.bf16.xpose.msra.mxu0 0
    %3527 = vmatpush.bf16.xpose.msra.mxu0 0
    %3528 = vmatpush.bf16.xpose.msra.mxu0 0
    %3529 = vmatpush.bf16.xpose.msra.mxu0 0
    %3530 = vmatpush.bf16.xpose.msra.mxu0 %v3521
    %3531 = vmatmul.bf16.gmra.mxu0 %v3518
    %v3532 = vpop.f32.mrf.mxu0
    %v3533 = vadd.f32 0.0, %v3532
    %v3534 = vpop.f32.mrf.mxu0
    %v3535 = vadd.f32 0.0, %v3534
    %3536 = vdwg.mxu0
    %3537 = vrot.lane.b32.xlu0 %v1474, 32
    %v3538 = vpop.permute.xlu0 %3537
    %3539 = vrot.lane.b32.xlu0 %v1479, 32
    %v3540 = vpop.permute.xlu0 %3539
    %v3542 = vsel %vm1299, %v3538, 0
    %v3545 = vsel %vm1299, %v3540, 0
    %3547 = vmatpush.bf16.xpose.msra.mxu0 0
    %3548 = vmatpush.bf16.xpose.msra.mxu0 0
    %3549 = vmatpush.bf16.xpose.msra.mxu0 0
    %3550 = vmatpush.bf16.xpose.msra.mxu0 0
    %3551 = vmatpush.bf16.xpose.msra.mxu0 0
    %3552 = vmatpush.bf16.xpose.msra.mxu0 0
    %3553 = vmatpush.bf16.xpose.msra.mxu0 0
    %3554 = vmatpush.bf16.xpose.msra.mxu0 %v3545
    %3555 = vmatmul.bf16.gmra.mxu0 %v3542
    %v3556 = vpop.f32.mrf.mxu0
    %v3557 = vadd.f32 0.0, %v3556
    %v3558 = vpop.f32.mrf.mxu0
    %v3559 = vadd.f32 0.0, %v3558
    %3560 = vdwg.mxu0
    %3561 = vrot.lane.b32.xlu0 %v1504, 32
    %v3562 = vpop.permute.xlu0 %3561
    %3563 = vrot.lane.b32.xlu0 %v1509, 32
    %v3564 = vpop.permute.xlu0 %3563
    %v3566 = vsel %vm1299, %v3562, 0
    %v3569 = vsel %vm1299, %v3564, 0
    %3571 = vmatpush.bf16.xpose.msra.mxu0 0
    %3572 = vmatpush.bf16.xpose.msra.mxu0 0
    %3573 = vmatpush.bf16.xpose.msra.mxu0 0
    %3574 = vmatpush.bf16.xpose.msra.mxu0 0
    %3575 = vmatpush.bf16.xpose.msra.mxu0 0
    %3576 = vmatpush.bf16.xpose.msra.mxu0 0
    %3577 = vmatpush.bf16.xpose.msra.mxu0 0
    %3578 = vmatpush.bf16.xpose.msra.mxu0 %v3569
    %3579 = vmatmul.bf16.gmra.mxu0 %v3566
    %v3580 = vpop.f32.mrf.mxu0
    %v3581 = vadd.f32 0.0, %v3580
    %v3582 = vpop.f32.mrf.mxu0
    %v3583 = vadd.f32 0.0, %v3582
    %3584 = vdwg.mxu0
    %v3585 = vmul.f32 %v3413, 0.17677669
    %v3586 = vmul.f32 %v3415, 0.17677669
    %v3587 = vmul.f32 %v3437, 0.17677669
    %v3588 = vmul.f32 %v3439, 0.17677669
    %v3589 = vmul.f32 %v3461, 0.17677669
    %v3590 = vmul.f32 %v3463, 0.17677669
    %v3591 = vmul.f32 %v3485, 0.17677669
    %v3592 = vmul.f32 %v3487, 0.17677669
    %v3593 = vmul.f32 %v3509, 0.17677669
    %v3594 = vmul.f32 %v3511, 0.17677669
    %v3595 = vmul.f32 %v3533, 0.17677669
    %v3596 = vmul.f32 %v3535, 0.17677669
    %v3597 = vmul.f32 %v3557, 0.17677669
    %v3598 = vmul.f32 %v3559, 0.17677669
    %v3599 = vmul.f32 %v3581, 0.17677669
    %v3600 = vmul.f32 %v3583, 0.17677669
    %v3601 = vsel %vm1548, %v3585, -1e+30
    %v3602 = vsel %vm1549, %v3586, -1e+30
    %v3603 = vsel %vm1548, %v3587, -1e+30
    %v3604 = vsel %vm1549, %v3588, -1e+30
    %v3605 = vsel %vm1548, %v3589, -1e+30
    %v3606 = vsel %vm1549, %v3590, -1e+30
    %v3607 = vsel %vm1548, %v3591, -1e+30
    %v3608 = vsel %vm1549, %v3592, -1e+30
    %v3609 = vsel %vm1548, %v3593, -1e+30
    %v3610 = vsel %vm1549, %v3594, -1e+30
    %v3611 = vsel %vm1548, %v3595, -1e+30
    %v3612 = vsel %vm1549, %v3596, -1e+30
    %v3613 = vsel %vm1548, %v3597, -1e+30
    %v3614 = vsel %vm1549, %v3598, -1e+30
    %v3615 = vsel %vm1548, %v3599, -1e+30
    %v3616 = vsel %vm1549, %v3600, -1e+30
    %v3617 = vsel %vm1566, %v3601, -inf
    %3618 = vmax.xlane.f32.xlu0 %v3617
    %v3619 = vpop.xlane.xlu0 %3618
    %v3620 = vsel %vm1566, %v3602, -inf
    %3621 = vmax.xlane.f32.xlu0 %v3620
    %v3622 = vpop.xlane.xlu0 %3621
    %v3623 = vsel %vm1566, %v3603, -inf
    %3624 = vmax.xlane.f32.xlu0 %v3623
    %v3625 = vpop.xlane.xlu0 %3624
    %v3626 = vsel %vm1566, %v3604, -inf
    %3627 = vmax.xlane.f32.xlu0 %v3626
    %v3628 = vpop.xlane.xlu0 %3627
    %v3629 = vsel %vm1566, %v3605, -inf
    %3630 = vmax.xlane.f32.xlu0 %v3629
    %v3631 = vpop.xlane.xlu0 %3630
    %v3632 = vsel %vm1566, %v3606, -inf
    %3633 = vmax.xlane.f32.xlu0 %v3632
    %v3634 = vpop.xlane.xlu0 %3633
    %v3635 = vsel %vm1566, %v3607, -inf
    %3636 = vmax.xlane.f32.xlu0 %v3635
    %v3637 = vpop.xlane.xlu0 %3636
    %v3638 = vsel %vm1566, %v3608, -inf
    %3639 = vmax.xlane.f32.xlu0 %v3638
    %v3640 = vpop.xlane.xlu0 %3639
    %v3641 = vsel %vm1566, %v3609, -inf
    %3642 = vmax.xlane.f32.xlu0 %v3641
    %v3643 = vpop.xlane.xlu0 %3642
    %v3644 = vsel %vm1566, %v3610, -inf
    %3645 = vmax.xlane.f32.xlu0 %v3644
    %v3646 = vpop.xlane.xlu0 %3645
    %v3647 = vsel %vm1566, %v3611, -inf
    %3648 = vmax.xlane.f32.xlu0 %v3647
    %v3649 = vpop.xlane.xlu0 %3648
    %v3650 = vsel %vm1566, %v3612, -inf
    %3651 = vmax.xlane.f32.xlu0 %v3650
    %v3652 = vpop.xlane.xlu0 %3651
    %v3653 = vsel %vm1566, %v3613, -inf
    %3654 = vmax.xlane.f32.xlu0 %v3653
    %v3655 = vpop.xlane.xlu0 %3654
    %v3656 = vsel %vm1566, %v3614, -inf
    %3657 = vmax.xlane.f32.xlu0 %v3656
    %v3658 = vpop.xlane.xlu0 %3657
    %v3659 = vsel %vm1566, %v3615, -inf
    %3660 = vmax.xlane.f32.xlu0 %v3659
    %v3661 = vpop.xlane.xlu0 %3660
    %v3662 = vsel %vm1566, %v3616, -inf
    %3663 = vmax.xlane.f32.xlu0 %v3662
    %v3664 = vpop.xlane.xlu0 %3663
    %v3665 = vsub.f32 %v3601, %v3619
    %v3666 = vsub.f32 %v3602, %v3622
    %v3667 = vsub.f32 %v3603, %v3625
    %v3668 = vsub.f32 %v3604, %v3628
    %v3669 = vsub.f32 %v3605, %v3631
    %v3670 = vsub.f32 %v3606, %v3634
    %v3671 = vsub.f32 %v3607, %v3637
    %v3672 = vsub.f32 %v3608, %v3640
    %v3673 = vsub.f32 %v3609, %v3643
    %v3674 = vsub.f32 %v3610, %v3646
    %v3675 = vsub.f32 %v3611, %v3649
    %v3676 = vsub.f32 %v3612, %v3652
    %v3677 = vsub.f32 %v3613, %v3655
    %v3678 = vsub.f32 %v3614, %v3658
    %v3679 = vsub.f32 %v3615, %v3661
    %v3680 = vsub.f32 %v3616, %v3664
    %v3681 = vmul.f32 %v3665, 1.442695
    %v3682 = vpow.pop %v3681
    %v3683 = vmul.f32 %v3666, 1.442695
    %v3684 = vpow.pop %v3683
    %v3685 = vmul.f32 %v3667, 1.442695
    %v3686 = vpow.pop %v3685
    %v3687 = vmul.f32 %v3668, 1.442695
    %v3688 = vpow.pop %v3687
    %v3689 = vmul.f32 %v3669, 1.442695
    %v3690 = vpow.pop %v3689
    %v3691 = vmul.f32 %v3670, 1.442695
    %v3692 = vpow.pop %v3691
    %v3693 = vmul.f32 %v3671, 1.442695
    %v3694 = vpow.pop %v3693
    %v3695 = vmul.f32 %v3672, 1.442695
    %v3696 = vpow.pop %v3695
    %v3697 = vmul.f32 %v3673, 1.442695
    %v3698 = vpow.pop %v3697
    %v3699 = vmul.f32 %v3674, 1.442695
    %v3700 = vpow.pop %v3699
    %v3701 = vmul.f32 %v3675, 1.442695
    %v3702 = vpow.pop %v3701
    %v3703 = vmul.f32 %v3676, 1.442695
    %v3704 = vpow.pop %v3703
    %v3705 = vmul.f32 %v3677, 1.442695
    %v3706 = vpow.pop %v3705
    %v3707 = vmul.f32 %v3678, 1.442695
    %v3708 = vpow.pop %v3707
    %v3709 = vmul.f32 %v3679, 1.442695
    %v3710 = vpow.pop %v3709
    %v3711 = vmul.f32 %v3680, 1.442695
    %v3712 = vpow.pop %v3711
    %v3713 = vsel %vm1566, %v3682, 0.0
    %3714 = vadd.xlane.f32.xlu0 %v3713
    %v3715 = vpop.xlane.xlu0 %3714
    %v3716 = vsel %vm1566, %v3684, 0.0
    %3717 = vadd.xlane.f32.xlu0 %v3716
    %v3718 = vpop.xlane.xlu0 %3717
    %v3719 = vsel %vm1566, %v3686, 0.0
    %3720 = vadd.xlane.f32.xlu0 %v3719
    %v3721 = vpop.xlane.xlu0 %3720
    %v3722 = vsel %vm1566, %v3688, 0.0
    %3723 = vadd.xlane.f32.xlu0 %v3722
    %v3724 = vpop.xlane.xlu0 %3723
    %v3725 = vsel %vm1566, %v3690, 0.0
    %3726 = vadd.xlane.f32.xlu0 %v3725
    %v3727 = vpop.xlane.xlu0 %3726
    %v3728 = vsel %vm1566, %v3692, 0.0
    %3729 = vadd.xlane.f32.xlu0 %v3728
    %v3730 = vpop.xlane.xlu0 %3729
    %v3731 = vsel %vm1566, %v3694, 0.0
    %3732 = vadd.xlane.f32.xlu0 %v3731
    %v3733 = vpop.xlane.xlu0 %3732
    %v3734 = vsel %vm1566, %v3696, 0.0
    %3735 = vadd.xlane.f32.xlu0 %v3734
    %v3736 = vpop.xlane.xlu0 %3735
    %v3737 = vsel %vm1566, %v3698, 0.0
    %3738 = vadd.xlane.f32.xlu0 %v3737
    %v3739 = vpop.xlane.xlu0 %3738
    %v3740 = vsel %vm1566, %v3700, 0.0
    %3741 = vadd.xlane.f32.xlu0 %v3740
    %v3742 = vpop.xlane.xlu0 %3741
    %v3743 = vsel %vm1566, %v3702, 0.0
    %3744 = vadd.xlane.f32.xlu0 %v3743
    %v3745 = vpop.xlane.xlu0 %3744
    %v3746 = vsel %vm1566, %v3704, 0.0
    %3747 = vadd.xlane.f32.xlu0 %v3746
    %v3748 = vpop.xlane.xlu0 %3747
    %v3749 = vsel %vm1566, %v3706, 0.0
    %3750 = vadd.xlane.f32.xlu0 %v3749
    %v3751 = vpop.xlane.xlu0 %3750
    %v3752 = vsel %vm1566, %v3708, 0.0
    %3753 = vadd.xlane.f32.xlu0 %v3752
    %v3754 = vpop.xlane.xlu0 %3753
    %v3755 = vsel %vm1566, %v3710, 0.0
    %3756 = vadd.xlane.f32.xlu0 %v3755
    %v3757 = vpop.xlane.xlu0 %3756
    %v3758 = vsel %vm1566, %v3712, 0.0
    %3759 = vadd.xlane.f32.xlu0 %v3758
    %v3760 = vpop.xlane.xlu0 %3759
    %v3761 = vrcp.pop %v3715
    %v3762 = vrcp.pop %v3718
    %v3763 = vrcp.pop %v3721
    %v3764 = vrcp.pop %v3724
    %v3765 = vrcp.pop %v3727
    %v3766 = vrcp.pop %v3730
    %v3767 = vrcp.pop %v3733
    %v3768 = vrcp.pop %v3736
    %v3769 = vrcp.pop %v3739
    %v3770 = vrcp.pop %v3742
    %v3771 = vrcp.pop %v3745
    %v3772 = vrcp.pop %v3748
    %v3773 = vrcp.pop %v3751
    %v3774 = vrcp.pop %v3754
    %v3775 = vrcp.pop %v3757
    %v3776 = vrcp.pop %v3760
    %v3777 = vmul.f32 %v3682, %v3761
    %v3778 = vmul.f32 %v3684, %v3762
    %v3779 = vmul.f32 %v3686, %v3763
    %v3780 = vmul.f32 %v3688, %v3764
    %v3781 = vmul.f32 %v3690, %v3765
    %v3782 = vmul.f32 %v3692, %v3766
    %v3783 = vmul.f32 %v3694, %v3767
    %v3784 = vmul.f32 %v3696, %v3768
    %v3785 = vmul.f32 %v3698, %v3769
    %v3786 = vmul.f32 %v3700, %v3770
    %v3787 = vmul.f32 %v3702, %v3771
    %v3788 = vmul.f32 %v3704, %v3772
    %v3789 = vmul.f32 %v3706, %v3773
    %v3790 = vmul.f32 %v3708, %v3774
    %v3791 = vmul.f32 %v3710, %v3775
    %v3792 = vmul.f32 %v3712, %v3776
    %v3793 = vpack.c.bf16 %v3777, %v3777
    %v3794 = vpack.c.bf16 %v3778, %v3778
    %v3795 = vpack.c.bf16 %v3779, %v3779
    %v3796 = vpack.c.bf16 %v3780, %v3780
    %v3797 = vpack.c.bf16 %v3781, %v3781
    %v3798 = vpack.c.bf16 %v3782, %v3782
    %v3799 = vpack.c.bf16 %v3783, %v3783
    %v3800 = vpack.c.bf16 %v3784, %v3784
    %v3801 = vpack.c.bf16 %v3785, %v3785
    %v3802 = vpack.c.bf16 %v3786, %v3786
    %v3803 = vpack.c.bf16 %v3787, %v3787
    %v3804 = vpack.c.bf16 %v3788, %v3788
    %v3805 = vpack.c.bf16 %v3789, %v3789
    %v3806 = vpack.c.bf16 %v3790, %v3790
    %v3807 = vpack.c.bf16 %v3791, %v3791
    %v3808 = vpack.c.bf16 %v3792, %v3792
    %v3811 = vunpack.c.l.b16 %v3793
    %v3812 = vunpack.c.l.b16 %v3794
    %v3813 = vpack.c.b16 %v3812, %v3811
    %3814 = vrot.lane.b32.xlu0 %v1768, 32
    %v3815 = vpop.permute.xlu0 %3814
    %v3818 = vsel %vm1566, %v3813, 0
    %3820 = vmatpush.bf16.msra.mxu0 0
    %3821 = vmatpush.bf16.msra.mxu0 0
    %3822 = vmatpush.bf16.msra.mxu0 0
    %3823 = vmatpush.bf16.msra.mxu0 0
    %3824 = vmatpush.bf16.msra.mxu0 0
    %3825 = vmatpush.bf16.msra.mxu0 0
    %3826 = vmatpush.bf16.msra.mxu0 0
    %3827 = vmatpush.bf16.msra.mxu0 %v3815
    %3828 = vmatmul.bf16.gmra.mxu0 %v3818
    %v3829 = vpop.f32.mrf.mxu0
    %v3830 = vadd.f32 0.0, %v3829
    %v3831 = vpop.f32.mrf.mxu0
    %v3832 = vadd.f32 0.0, %v3831
    %3833 = vdwg.mxu0
    %v3836 = vunpack.c.l.b16 %v3795
    %v3837 = vunpack.c.l.b16 %v3796
    %v3838 = vpack.c.b16 %v3837, %v3836
    %3839 = vrot.lane.b32.xlu0 %v1796, 32
    %v3840 = vpop.permute.xlu0 %3839
    %v3843 = vsel %vm1566, %v3838, 0
    %3845 = vmatpush.bf16.msra.mxu0 0
    %3846 = vmatpush.bf16.msra.mxu0 0
    %3847 = vmatpush.bf16.msra.mxu0 0
    %3848 = vmatpush.bf16.msra.mxu0 0
    %3849 = vmatpush.bf16.msra.mxu0 0
    %3850 = vmatpush.bf16.msra.mxu0 0
    %3851 = vmatpush.bf16.msra.mxu0 0
    %3852 = vmatpush.bf16.msra.mxu0 %v3840
    %3853 = vmatmul.bf16.gmra.mxu0 %v3843
    %v3854 = vpop.f32.mrf.mxu0
    %v3855 = vadd.f32 0.0, %v3854
    %v3856 = vpop.f32.mrf.mxu0
    %v3857 = vadd.f32 0.0, %v3856
    %3858 = vdwg.mxu0
    %v3861 = vunpack.c.l.b16 %v3797
    %v3862 = vunpack.c.l.b16 %v3798
    %v3863 = vpack.c.b16 %v3862, %v3861
    %3864 = vrot.lane.b32.xlu0 %v1824, 32
    %v3865 = vpop.permute.xlu0 %3864
    %v3868 = vsel %vm1566, %v3863, 0
    %3870 = vmatpush.bf16.msra.mxu0 0
    %3871 = vmatpush.bf16.msra.mxu0 0
    %3872 = vmatpush.bf16.msra.mxu0 0
    %3873 = vmatpush.bf16.msra.mxu0 0
    %3874 = vmatpush.bf16.msra.mxu0 0
    %3875 = vmatpush.bf16.msra.mxu0 0
    %3876 = vmatpush.bf16.msra.mxu0 0
    %3877 = vmatpush.bf16.msra.mxu0 %v3865
    %3878 = vmatmul.bf16.gmra.mxu0 %v3868
    %v3879 = vpop.f32.mrf.mxu0
    %v3880 = vadd.f32 0.0, %v3879
    %v3881 = vpop.f32.mrf.mxu0
    %v3882 = vadd.f32 0.0, %v3881
    %3883 = vdwg.mxu0
    %v3886 = vunpack.c.l.b16 %v3799
    %v3887 = vunpack.c.l.b16 %v3800
    %v3888 = vpack.c.b16 %v3887, %v3886
    %3889 = vrot.lane.b32.xlu0 %v1852, 32
    %v3890 = vpop.permute.xlu0 %3889
    %v3893 = vsel %vm1566, %v3888, 0
    %3895 = vmatpush.bf16.msra.mxu0 0
    %3896 = vmatpush.bf16.msra.mxu0 0
    %3897 = vmatpush.bf16.msra.mxu0 0
    %3898 = vmatpush.bf16.msra.mxu0 0
    %3899 = vmatpush.bf16.msra.mxu0 0
    %3900 = vmatpush.bf16.msra.mxu0 0
    %3901 = vmatpush.bf16.msra.mxu0 0
    %3902 = vmatpush.bf16.msra.mxu0 %v3890
    %3903 = vmatmul.bf16.gmra.mxu0 %v3893
    %v3904 = vpop.f32.mrf.mxu0
    %v3905 = vadd.f32 0.0, %v3904
    %v3906 = vpop.f32.mrf.mxu0
    %v3907 = vadd.f32 0.0, %v3906
    %3908 = vdwg.mxu0
    %v3911 = vunpack.c.l.b16 %v3801
    %v3912 = vunpack.c.l.b16 %v3802
    %v3913 = vpack.c.b16 %v3912, %v3911
    %3914 = vrot.lane.b32.xlu0 %v1880, 32
    %v3915 = vpop.permute.xlu0 %3914
    %v3918 = vsel %vm1566, %v3913, 0
    %3920 = vmatpush.bf16.msra.mxu0 0
    %3921 = vmatpush.bf16.msra.mxu0 0
    %3922 = vmatpush.bf16.msra.mxu0 0
    %3923 = vmatpush.bf16.msra.mxu0 0
    %3924 = vmatpush.bf16.msra.mxu0 0
    %3925 = vmatpush.bf16.msra.mxu0 0
    %3926 = vmatpush.bf16.msra.mxu0 0
    %3927 = vmatpush.bf16.msra.mxu0 %v3915
    %3928 = vmatmul.bf16.gmra.mxu0 %v3918
    %v3929 = vpop.f32.mrf.mxu0
    %v3930 = vadd.f32 0.0, %v3929
    %v3931 = vpop.f32.mrf.mxu0
    %v3932 = vadd.f32 0.0, %v3931
    %3933 = vdwg.mxu0
    %v3936 = vunpack.c.l.b16 %v3803
    %v3937 = vunpack.c.l.b16 %v3804
    %v3938 = vpack.c.b16 %v3937, %v3936
    %3939 = vrot.lane.b32.xlu0 %v1908, 32
    %v3940 = vpop.permute.xlu0 %3939
    %v3943 = vsel %vm1566, %v3938, 0
    %3945 = vmatpush.bf16.msra.mxu0 0
    %3946 = vmatpush.bf16.msra.mxu0 0
    %3947 = vmatpush.bf16.msra.mxu0 0
    %3948 = vmatpush.bf16.msra.mxu0 0
    %3949 = vmatpush.bf16.msra.mxu0 0
    %3950 = vmatpush.bf16.msra.mxu0 0
    %3951 = vmatpush.bf16.msra.mxu0 0
    %3952 = vmatpush.bf16.msra.mxu0 %v3940
    %3953 = vmatmul.bf16.gmra.mxu0 %v3943
    %v3954 = vpop.f32.mrf.mxu0
    %v3955 = vadd.f32 0.0, %v3954
    %v3956 = vpop.f32.mrf.mxu0
    %v3957 = vadd.f32 0.0, %v3956
    %3958 = vdwg.mxu0
    %v3961 = vunpack.c.l.b16 %v3805
    %v3962 = vunpack.c.l.b16 %v3806
    %v3963 = vpack.c.b16 %v3962, %v3961
    %3964 = vrot.lane.b32.xlu0 %v1936, 32
    %v3965 = vpop.permute.xlu0 %3964
    %v3968 = vsel %vm1566, %v3963, 0
    %3970 = vmatpush.bf16.msra.mxu0 0
    %3971 = vmatpush.bf16.msra.mxu0 0
    %3972 = vmatpush.bf16.msra.mxu0 0
    %3973 = vmatpush.bf16.msra.mxu0 0
    %3974 = vmatpush.bf16.msra.mxu0 0
    %3975 = vmatpush.bf16.msra.mxu0 0
    %3976 = vmatpush.bf16.msra.mxu0 0
    %3977 = vmatpush.bf16.msra.mxu0 %v3965
    %3978 = vmatmul.bf16.gmra.mxu0 %v3968
    %v3979 = vpop.f32.mrf.mxu0
    %v3980 = vadd.f32 0.0, %v3979
    %v3981 = vpop.f32.mrf.mxu0
    %v3982 = vadd.f32 0.0, %v3981
    %3983 = vdwg.mxu0
    %v3986 = vunpack.c.l.b16 %v3807
    %v3987 = vunpack.c.l.b16 %v3808
    %v3988 = vpack.c.b16 %v3987, %v3986
    %3989 = vrot.lane.b32.xlu0 %v1964, 32
    %v3990 = vpop.permute.xlu0 %3989
    %v3993 = vsel %vm1566, %v3988, 0
    %3995 = vmatpush.bf16.msra.mxu0 0
    %3996 = vmatpush.bf16.msra.mxu0 0
    %3997 = vmatpush.bf16.msra.mxu0 0
    %3998 = vmatpush.bf16.msra.mxu0 0
    %3999 = vmatpush.bf16.msra.mxu0 0
    %4000 = vmatpush.bf16.msra.mxu0 0
    %4001 = vmatpush.bf16.msra.mxu0 0
    %4002 = vmatpush.bf16.msra.mxu0 %v3990
    %4003 = vmatmul.bf16.gmra.mxu0 %v3993
    %v4004 = vpop.f32.mrf.mxu0
    %v4005 = vadd.f32 0.0, %v4004
    %v4006 = vpop.f32.mrf.mxu0
    %v4007 = vadd.f32 0.0, %v4006
    %4008 = vdwg.mxu0
    %4025 = vrot.lane.b32.xlu0 %v3830, 96
    %v4026 = vpop.permute.xlu0 %4025
    %4027 = vrot.lane.b32.xlu0 %v3832, 96
    %v4028 = vpop.permute.xlu0 %4027
    %4029 = vrot.lane.b32.xlu0 %v3855, 96
    %v4030 = vpop.permute.xlu0 %4029
    %4031 = vrot.lane.b32.xlu0 %v3857, 96
    %v4032 = vpop.permute.xlu0 %4031
    %4033 = vrot.lane.b32.xlu0 %v3880, 96
    %v4034 = vpop.permute.xlu0 %4033
    %4035 = vrot.lane.b32.xlu0 %v3882, 96
    %v4036 = vpop.permute.xlu0 %4035
    %4037 = vrot.lane.b32.xlu0 %v3905, 96
    %v4038 = vpop.permute.xlu0 %4037
    %4039 = vrot.lane.b32.xlu0 %v3907, 96
    %v4040 = vpop.permute.xlu0 %4039
    %4041 = vrot.lane.b32.xlu0 %v3930, 96
    %v4042 = vpop.permute.xlu0 %4041
    %4043 = vrot.lane.b32.xlu0 %v3932, 96
    %v4044 = vpop.permute.xlu0 %4043
    %4045 = vrot.lane.b32.xlu0 %v3955, 96
    %v4046 = vpop.permute.xlu0 %4045
    %4047 = vrot.lane.b32.xlu0 %v3957, 96
    %v4048 = vpop.permute.xlu0 %4047
    %4049 = vrot.lane.b32.xlu0 %v3980, 96
    %v4050 = vpop.permute.xlu0 %4049
    %4051 = vrot.lane.b32.xlu0 %v3982, 96
    %v4052 = vpop.permute.xlu0 %4051
    %4053 = vrot.lane.b32.xlu0 %v4005, 96
    %v4054 = vpop.permute.xlu0 %4053
    %4055 = vrot.lane.b32.xlu0 %v4007, 96
    %v4056 = vpop.permute.xlu0 %4055
    %vm4073 = vcmask 1048320
    %4074 = vst.msk [vmem:[#allocation2] sm:$0xff] %vm4073, %v4026
    %4075 = vst.msk [vmem:[#allocation2 + $0x8] sm:$0xff] %vm4073, %v4028
    %4076 = vst.msk [vmem:[#allocation2 + $0x10] sm:$0xff] %vm4073, %v4030
    %4077 = vst.msk [vmem:[#allocation2 + $0x18] sm:$0xff] %vm4073, %v4032
    %4078 = vst.msk [vmem:[#allocation2 + $0x20] sm:$0xff] %vm4073, %v4034
    %4079 = vst.msk [vmem:[#allocation2 + $0x28] sm:$0xff] %vm4073, %v4036
    %4080 = vst.msk [vmem:[#allocation2 + $0x30] sm:$0xff] %vm4073, %v4038
    %4081 = vst.msk [vmem:[#allocation2 + $0x38] sm:$0xff] %vm4073, %v4040
    %4082 = vst.msk [vmem:[#allocation2 + $0x40] sm:$0xff] %vm4073, %v4042
    %4083 = vst.msk [vmem:[#allocation2 + $0x48] sm:$0xff] %vm4073, %v4044
    %4084 = vst.msk [vmem:[#allocation2 + $0x50] sm:$0xff] %vm4073, %v4046
    %4085 = vst.msk [vmem:[#allocation2 + $0x58] sm:$0xff] %vm4073, %v4048
    %4086 = vst.msk [vmem:[#allocation2 + $0x60] sm:$0xff] %vm4073, %v4050
    %4087 = vst.msk [vmem:[#allocation2 + $0x68] sm:$0xff] %vm4073, %v4052
    %4088 = vst.msk [vmem:[#allocation2 + $0x70] sm:$0xff] %vm4073, %v4054
    %4089 = vst.msk [vmem:[#allocation2 + $0x78] sm:$0xff] %vm4073, %v4056
    %v4090 = vld [vmem:[#allocation2] sm:$0xff]
    %v4091 = vld [vmem:[#allocation2 + $0x8] sm:$0xff]
    %v4092 = vld [vmem:[#allocation2 + $0x10] sm:$0xff]
    %v4093 = vld [vmem:[#allocation2 + $0x18] sm:$0xff]
    %v4094 = vld [vmem:[#allocation2 + $0x20] sm:$0xff]
    %v4095 = vld [vmem:[#allocation2 + $0x28] sm:$0xff]
    %v4096 = vld [vmem:[#allocation2 + $0x30] sm:$0xff]
    %v4097 = vld [vmem:[#allocation2 + $0x38] sm:$0xff]
    %v4098 = vld [vmem:[#allocation2 + $0x40] sm:$0xff]
    %v4099 = vld [vmem:[#allocation2 + $0x48] sm:$0xff]
    %v4100 = vld [vmem:[#allocation2 + $0x50] sm:$0xff]
    %v4101 = vld [vmem:[#allocation2 + $0x58] sm:$0xff]
    %v4102 = vld [vmem:[#allocation2 + $0x60] sm:$0xff]
    %v4103 = vld [vmem:[#allocation2 + $0x68] sm:$0xff]
    %v4104 = vld [vmem:[#allocation2 + $0x70] sm:$0xff]
    %v4105 = vld [vmem:[#allocation2 + $0x78] sm:$0xff]
    %v4106 = vpack.c.bf16 %v4091, %v4090
    %v4107 = vpack.c.bf16 %v4093, %v4092
    %v4108 = vpack.c.bf16 %v4095, %v4094
    %v4109 = vpack.c.bf16 %v4097, %v4096
    %v4110 = vpack.c.bf16 %v4099, %v4098
    %v4111 = vpack.c.bf16 %v4101, %v4100
    %v4112 = vpack.c.bf16 %v4103, %v4102
    %v4113 = vpack.c.bf16 %v4105, %v4104
    %v4114 = vld [vmem:[#allocation14] sm:$0xf]
    %v4115 = vld [vmem:[#allocation14 + $0x4] sm:$0xf]
    %v4116 = vld [vmem:[#allocation14 + $0x8] sm:$0xf]
    %v4117 = vld [vmem:[#allocation14 + $0xc] sm:$0xf]
    %v4118 = vld [vmem:[#allocation14 + $0x10] sm:$0xf]
    %v4119 = vld [vmem:[#allocation14 + $0x14] sm:$0xf]
    %v4120 = vld [vmem:[#allocation14 + $0x18] sm:$0xf]
    %v4121 = vld [vmem:[#allocation14 + $0x1c] sm:$0xf]
    %v4122 = vld [vmem:[#allocation14 + $0x20] sm:$0xf]
    %v4123 = vld [vmem:[#allocation14 + $0x24] sm:$0xf]
    %v4124 = vld [vmem:[#allocation14 + $0x28] sm:$0xf]
    %v4125 = vld [vmem:[#allocation14 + $0x2c] sm:$0xf]
    %v4126 = vld [vmem:[#allocation14 + $0x30] sm:$0xf]
    %v4127 = vld [vmem:[#allocation14 + $0x34] sm:$0xf]
    %v4128 = vld [vmem:[#allocation14 + $0x38] sm:$0xf]
    %v4129 = vld [vmem:[#allocation14 + $0x3c] sm:$0xf]
    %v4146 = vunpack.c.l.b16 %v4114
    %v4147 = vunpack.c.l.b16 %v4115
    %v4148 = vunpack.c.l.b16 %v4116
    %v4149 = vunpack.c.l.b16 %v4117
    %v4150 = vunpack.c.l.b16 %v4118
    %v4151 = vunpack.c.l.b16 %v4119
    %v4152 = vunpack.c.l.b16 %v4120
    %v4153 = vunpack.c.l.b16 %v4121
    %v4154 = vunpack.c.l.b16 %v4122
    %v4155 = vunpack.c.l.b16 %v4123
    %v4156 = vunpack.c.l.b16 %v4124
    %v4157 = vunpack.c.l.b16 %v4125
    %v4158 = vunpack.c.l.b16 %v4126
    %v4159 = vunpack.c.l.b16 %v4127
    %v4160 = vunpack.c.l.b16 %v4128
    %v4161 = vunpack.c.l.b16 %v4129
    %v4162 = vpack.c.b16 %v4147, %v4146
    %v4163 = vpack.c.b16 %v4149, %v4148
    %v4164 = vpack.c.b16 %v4151, %v4150
    %v4165 = vpack.c.b16 %v4153, %v4152
    %v4166 = vpack.c.b16 %v4155, %v4154
    %v4167 = vpack.c.b16 %v4157, %v4156
    %v4168 = vpack.c.b16 %v4159, %v4158
    %v4169 = vpack.c.b16 %v4161, %v4160
    %4178 = vmatpush.bf16.msra.mxu0 %v4169
    %4179 = vmatpush.bf16.msra.mxu0 %v4168
    %4180 = vmatpush.bf16.msra.mxu0 %v4167
    %4181 = vmatpush.bf16.msra.mxu0 %v4166
    %4182 = vmatpush.bf16.msra.mxu0 %v4165
    %4183 = vmatpush.bf16.msra.mxu0 %v4164
    %4184 = vmatpush.bf16.msra.mxu0 %v4163
    %4185 = vmatpush.bf16.msra.mxu0 %v4162
    %4186 = vmatmul.bf16.gmra.mxu0 %v4106
    %v4187 = vpop.f32.mrf.mxu0
    %v4188 = vadd.f32 0.0, %v4187
    %v4189 = vpop.f32.mrf.mxu0
    %v4190 = vadd.f32 0.0, %v4189
    %4191 = vmatmul.bf16.gmra.mxu0 %v4107
    %v4192 = vpop.f32.mrf.mxu0
    %v4193 = vadd.f32 0.0, %v4192
    %v4194 = vpop.f32.mrf.mxu0
    %v4195 = vadd.f32 0.0, %v4194
    %4196 = vmatmul.bf16.gmra.mxu0 %v4108
    %v4197 = vpop.f32.mrf.mxu0
    %v4198 = vadd.f32 0.0, %v4197
    %v4199 = vpop.f32.mrf.mxu0
    %v4200 = vadd.f32 0.0, %v4199
    %4201 = vmatmul.bf16.gmra.mxu0 %v4109
    %v4202 = vpop.f32.mrf.mxu0
    %v4203 = vadd.f32 0.0, %v4202
    %v4204 = vpop.f32.mrf.mxu0
    %v4205 = vadd.f32 0.0, %v4204
    %4206 = vmatmul.bf16.gmra.mxu0 %v4110
    %v4207 = vpop.f32.mrf.mxu0
    %v4208 = vadd.f32 0.0, %v4207
    %v4209 = vpop.f32.mrf.mxu0
    %v4210 = vadd.f32 0.0, %v4209
    %4211 = vmatmul.bf16.gmra.mxu0 %v4111
    %v4212 = vpop.f32.mrf.mxu0
    %v4213 = vadd.f32 0.0, %v4212
    %v4214 = vpop.f32.mrf.mxu0
    %v4215 = vadd.f32 0.0, %v4214
    %4216 = vmatmul.bf16.gmra.mxu0 %v4112
    %v4217 = vpop.f32.mrf.mxu0
    %v4218 = vadd.f32 0.0, %v4217
    %v4219 = vpop.f32.mrf.mxu0
    %v4220 = vadd.f32 0.0, %v4219
    %4221 = vmatmul.bf16.gmra.mxu0 %v4113
    %v4222 = vpop.f32.mrf.mxu0
    %v4223 = vadd.f32 0.0, %v4222
    %v4224 = vpop.f32.mrf.mxu0
    %v4225 = vadd.f32 0.0, %v4224
    %4226 = vdwg.mxu0
    %v4227 = vadd.f32 %v463, %v4188
    %v4228 = vadd.f32 %v466, %v4190
    %v4229 = vadd.f32 %v469, %v4193
    %v4230 = vadd.f32 %v472, %v4195
    %v4231 = vadd.f32 %v475, %v4198
    %v4232 = vadd.f32 %v478, %v4200
    %v4233 = vadd.f32 %v481, %v4203
    %v4234 = vadd.f32 %v484, %v4205
    %v4235 = vadd.f32 %v487, %v4208
    %v4236 = vadd.f32 %v490, %v4210
    %v4237 = vadd.f32 %v493, %v4213
    %v4238 = vadd.f32 %v496, %v4215
    %v4239 = vadd.f32 %v499, %v4218
    %v4240 = vadd.f32 %v502, %v4220
    %v4241 = vadd.f32 %v505, %v4223
    %v4242 = vadd.f32 %v508, %v4225
    %v4243 = vld [vmem:[#allocation15] sm:$0x1]
    %v4245 = vperm.slane %v4243, 0
    %v4247 = vadd.f32 %v4227, %v4245
    %v4248 = vadd.f32 %v4228, %v4245
    %v4249 = vadd.f32 %v4229, %v4245
    %v4250 = vadd.f32 %v4230, %v4245
    %v4251 = vadd.f32 %v4231, %v4245
    %v4252 = vadd.f32 %v4232, %v4245
    %v4253 = vadd.f32 %v4233, %v4245
    %v4254 = vadd.f32 %v4234, %v4245
    %v4255 = vadd.f32 %v4235, %v4245
    %v4256 = vadd.f32 %v4236, %v4245
    %v4257 = vadd.f32 %v4237, %v4245
    %v4258 = vadd.f32 %v4238, %v4245
    %v4259 = vadd.f32 %v4239, %v4245
    %v4260 = vadd.f32 %v4240, %v4245
    %v4261 = vadd.f32 %v4241, %v4245
    %v4262 = vadd.f32 %v4242, %v4245
    %v4263 = vld [vmem:[#allocation20] sm:$0x1]
    %v4264 = vld [vmem:[#allocation21] sm:$0x1]
    %4265 = vadd.xlane.f32.xlu0 %v4247
    %v4266 = vpop.xlane.xlu0 %4265
    %4267 = vadd.xlane.f32.xlu0 %v4248
    %v4268 = vpop.xlane.xlu0 %4267
    %4269 = vadd.xlane.f32.xlu0 %v4249
    %v4270 = vpop.xlane.xlu0 %4269
    %4271 = vadd.xlane.f32.xlu0 %v4250
    %v4272 = vpop.xlane.xlu0 %4271
    %4273 = vadd.xlane.f32.xlu0 %v4251
    %v4274 = vpop.xlane.xlu0 %4273
    %4275 = vadd.xlane.f32.xlu0 %v4252
    %v4276 = vpop.xlane.xlu0 %4275
    %4277 = vadd.xlane.f32.xlu0 %v4253
    %v4278 = vpop.xlane.xlu0 %4277
    %4279 = vadd.xlane.f32.xlu0 %v4254
    %v4280 = vpop.xlane.xlu0 %4279
    %4281 = vadd.xlane.f32.xlu0 %v4255
    %v4282 = vpop.xlane.xlu0 %4281
    %4283 = vadd.xlane.f32.xlu0 %v4256
    %v4284 = vpop.xlane.xlu0 %4283
    %4285 = vadd.xlane.f32.xlu0 %v4257
    %v4286 = vpop.xlane.xlu0 %4285
    %4287 = vadd.xlane.f32.xlu0 %v4258
    %v4288 = vpop.xlane.xlu0 %4287
    %4289 = vadd.xlane.f32.xlu0 %v4259
    %v4290 = vpop.xlane.xlu0 %4289
    %4291 = vadd.xlane.f32.xlu0 %v4260
    %v4292 = vpop.xlane.xlu0 %4291
    %4293 = vadd.xlane.f32.xlu0 %v4261
    %v4294 = vpop.xlane.xlu0 %4293
    %4295 = vadd.xlane.f32.xlu0 %v4262
    %v4296 = vpop.xlane.xlu0 %4295
    %v4297 = vmul.f32 %v4266, %v550
    %v4298 = vmul.f32 %v4268, %v550
    %v4299 = vmul.f32 %v4270, %v550
    %v4300 = vmul.f32 %v4272, %v550
    %v4301 = vmul.f32 %v4274, %v550
    %v4302 = vmul.f32 %v4276, %v550
    %v4303 = vmul.f32 %v4278, %v550
    %v4304 = vmul.f32 %v4280, %v550
    %v4305 = vmul.f32 %v4282, %v550
    %v4306 = vmul.f32 %v4284, %v550
    %v4307 = vmul.f32 %v4286, %v550
    %v4308 = vmul.f32 %v4288, %v550
    %v4309 = vmul.f32 %v4290, %v550
    %v4310 = vmul.f32 %v4292, %v550
    %v4311 = vmul.f32 %v4294, %v550
    %v4312 = vmul.f32 %v4296, %v550
    %v4313 = vsub.f32 %v4247, %v4297
    %v4314 = vsub.f32 %v4248, %v4298
    %v4315 = vsub.f32 %v4249, %v4299
    %v4316 = vsub.f32 %v4250, %v4300
    %v4317 = vsub.f32 %v4251, %v4301
    %v4318 = vsub.f32 %v4252, %v4302
    %v4319 = vsub.f32 %v4253, %v4303
    %v4320 = vsub.f32 %v4254, %v4304
    %v4321 = vsub.f32 %v4255, %v4305
    %v4322 = vsub.f32 %v4256, %v4306
    %v4323 = vsub.f32 %v4257, %v4307
    %v4324 = vsub.f32 %v4258, %v4308
    %v4325 = vsub.f32 %v4259, %v4309
    %v4326 = vsub.f32 %v4260, %v4310
    %v4327 = vsub.f32 %v4261, %v4311
    %v4328 = vsub.f32 %v4262, %v4312
    %v4329 = vmul.f32 %v4313, %v4313
    %v4330 = vmul.f32 %v4314, %v4314
    %v4331 = vmul.f32 %v4315, %v4315
    %v4332 = vmul.f32 %v4316, %v4316
    %v4333 = vmul.f32 %v4317, %v4317
    %v4334 = vmul.f32 %v4318, %v4318
    %v4335 = vmul.f32 %v4319, %v4319
    %v4336 = vmul.f32 %v4320, %v4320
    %v4337 = vmul.f32 %v4321, %v4321
    %v4338 = vmul.f32 %v4322, %v4322
    %v4339 = vmul.f32 %v4323, %v4323
    %v4340 = vmul.f32 %v4324, %v4324
    %v4341 = vmul.f32 %v4325, %v4325
    %v4342 = vmul.f32 %v4326, %v4326
    %v4343 = vmul.f32 %v4327, %v4327
    %v4344 = vmul.f32 %v4328, %v4328
    %4345 = vadd.xlane.f32.xlu0 %v4329
    %v4346 = vpop.xlane.xlu0 %4345
    %4347 = vadd.xlane.f32.xlu0 %v4330
    %v4348 = vpop.xlane.xlu0 %4347
    %4349 = vadd.xlane.f32.xlu0 %v4331
    %v4350 = vpop.xlane.xlu0 %4349
    %4351 = vadd.xlane.f32.xlu0 %v4332
    %v4352 = vpop.xlane.xlu0 %4351
    %4353 = vadd.xlane.f32.xlu0 %v4333
    %v4354 = vpop.xlane.xlu0 %4353
    %4355 = vadd.xlane.f32.xlu0 %v4334
    %v4356 = vpop.xlane.xlu0 %4355
    %4357 = vadd.xlane.f32.xlu0 %v4335
    %v4358 = vpop.xlane.xlu0 %4357
    %4359 = vadd.xlane.f32.xlu0 %v4336
    %v4360 = vpop.xlane.xlu0 %4359
    %4361 = vadd.xlane.f32.xlu0 %v4337
    %v4362 = vpop.xlane.xlu0 %4361
    %4363 = vadd.xlane.f32.xlu0 %v4338
    %v4364 = vpop.xlane.xlu0 %4363
    %4365 = vadd.xlane.f32.xlu0 %v4339
    %v4366 = vpop.xlane.xlu0 %4365
    %4367 = vadd.xlane.f32.xlu0 %v4340
    %v4368 = vpop.xlane.xlu0 %4367
    %4369 = vadd.xlane.f32.xlu0 %v4341
    %v4370 = vpop.xlane.xlu0 %4369
    %4371 = vadd.xlane.f32.xlu0 %v4342
    %v4372 = vpop.xlane.xlu0 %4371
    %4373 = vadd.xlane.f32.xlu0 %v4343
    %v4374 = vpop.xlane.xlu0 %4373
    %4375 = vadd.xlane.f32.xlu0 %v4344
    %v4376 = vpop.xlane.xlu0 %4375
    %v4377 = vmul.f32 %v4346, %v550
    %v4378 = vmul.f32 %v4348, %v550
    %v4379 = vmul.f32 %v4350, %v550
    %v4380 = vmul.f32 %v4352, %v550
    %v4381 = vmul.f32 %v4354, %v550
    %v4382 = vmul.f32 %v4356, %v550
    %v4383 = vmul.f32 %v4358, %v550
    %v4384 = vmul.f32 %v4360, %v550
    %v4385 = vmul.f32 %v4362, %v550
    %v4386 = vmul.f32 %v4364, %v550
    %v4387 = vmul.f32 %v4366, %v550
    %v4388 = vmul.f32 %v4368, %v550
    %v4389 = vmul.f32 %v4370, %v550
    %v4390 = vmul.f32 %v4372, %v550
    %v4391 = vmul.f32 %v4374, %v550
    %v4392 = vmul.f32 %v4376, %v550
    %v4393 = vadd.f32 %v4377, 1e-05
    %v4394 = vadd.f32 %v4378, 1e-05
    %v4395 = vadd.f32 %v4379, 1e-05
    %v4396 = vadd.f32 %v4380, 1e-05
    %v4397 = vadd.f32 %v4381, 1e-05
    %v4398 = vadd.f32 %v4382, 1e-05
    %v4399 = vadd.f32 %v4383, 1e-05
    %v4400 = vadd.f32 %v4384, 1e-05
    %v4401 = vadd.f32 %v4385, 1e-05
    %v4402 = vadd.f32 %v4386, 1e-05
    %v4403 = vadd.f32 %v4387, 1e-05
    %v4404 = vadd.f32 %v4388, 1e-05
    %v4405 = vadd.f32 %v4389, 1e-05
    %v4406 = vadd.f32 %v4390, 1e-05
    %v4407 = vadd.f32 %v4391, 1e-05
    %v4408 = vadd.f32 %v4392, 1e-05
    %v4409 = vrsqrt.pop %v4393
    %v4410 = vmul.f32 %v4409, %v4393
    %v4411 = vmul.f32 %v4410, %v4409
    %v4412 = vmul.f32 0.5, %v4411
    %v4413 = vsub.f32 1.5, %v4412
    %v4414 = vmul.f32 %v4409, %v4413
    %vm4415 = vweird.f32 %v4393
    %vm4416 = vweird.f32 %v4409
    %vm4417 = vmor %vm4415, %vm4416
    %v4418 = vsel %vm4417, %v4409, %v4414
    %v4419 = vrsqrt.pop %v4394
    %v4420 = vmul.f32 %v4419, %v4394
    %v4421 = vmul.f32 %v4420, %v4419
    %v4422 = vmul.f32 0.5, %v4421
    %v4423 = vsub.f32 1.5, %v4422
    %v4424 = vmul.f32 %v4419, %v4423
    %vm4425 = vweird.f32 %v4394
    %vm4426 = vweird.f32 %v4419
    %vm4427 = vmor %vm4425, %vm4426
    %v4428 = vsel %vm4427, %v4419, %v4424
    %v4429 = vrsqrt.pop %v4395
    %v4430 = vmul.f32 %v4429, %v4395
    %v4431 = vmul.f32 %v4430, %v4429
    %v4432 = vmul.f32 0.5, %v4431
    %v4433 = vsub.f32 1.5, %v4432
    %v4434 = vmul.f32 %v4429, %v4433
    %vm4435 = vweird.f32 %v4395
    %vm4436 = vweird.f32 %v4429
    %vm4437 = vmor %vm4435, %vm4436
    %v4438 = vsel %vm4437, %v4429, %v4434
    %v4439 = vrsqrt.pop %v4396
    %v4440 = vmul.f32 %v4439, %v4396
    %v4441 = vmul.f32 %v4440, %v4439
    %v4442 = vmul.f32 0.5, %v4441
    %v4443 = vsub.f32 1.5, %v4442
    %v4444 = vmul.f32 %v4439, %v4443
    %vm4445 = vweird.f32 %v4396
    %vm4446 = vweird.f32 %v4439
    %vm4447 = vmor %vm4445, %vm4446
    %v4448 = vsel %vm4447, %v4439, %v4444
    %v4449 = vrsqrt.pop %v4397
    %v4450 = vmul.f32 %v4449, %v4397
    %v4451 = vmul.f32 %v4450, %v4449
    %v4452 = vmul.f32 0.5, %v4451
    %v4453 = vsub.f32 1.5, %v4452
    %v4454 = vmul.f32 %v4449, %v4453
    %vm4455 = vweird.f32 %v4397
    %vm4456 = vweird.f32 %v4449
    %vm4457 = vmor %vm4455, %vm4456
    %v4458 = vsel %vm4457, %v4449, %v4454
    %v4459 = vrsqrt.pop %v4398
    %v4460 = vmul.f32 %v4459, %v4398
    %v4461 = vmul.f32 %v4460, %v4459
    %v4462 = vmul.f32 0.5, %v4461
    %v4463 = vsub.f32 1.5, %v4462
    %v4464 = vmul.f32 %v4459, %v4463
    %vm4465 = vweird.f32 %v4398
    %vm4466 = vweird.f32 %v4459
    %vm4467 = vmor %vm4465, %vm4466
    %v4468 = vsel %vm4467, %v4459, %v4464
    %v4469 = vrsqrt.pop %v4399
    %v4470 = vmul.f32 %v4469, %v4399
    %v4471 = vmul.f32 %v4470, %v4469
    %v4472 = vmul.f32 0.5, %v4471
    %v4473 = vsub.f32 1.5, %v4472
    %v4474 = vmul.f32 %v4469, %v4473
    %vm4475 = vweird.f32 %v4399
    %vm4476 = vweird.f32 %v4469
    %vm4477 = vmor %vm4475, %vm4476
    %v4478 = vsel %vm4477, %v4469, %v4474
    %v4479 = vrsqrt.pop %v4400
    %v4480 = vmul.f32 %v4479, %v4400
    %v4481 = vmul.f32 %v4480, %v4479
    %v4482 = vmul.f32 0.5, %v4481
    %v4483 = vsub.f32 1.5, %v4482
    %v4484 = vmul.f32 %v4479, %v4483
    %vm4485 = vweird.f32 %v4400
    %vm4486 = vweird.f32 %v4479
    %vm4487 = vmor %vm4485, %vm4486
    %v4488 = vsel %vm4487, %v4479, %v4484
    %v4489 = vrsqrt.pop %v4401
    %v4490 = vmul.f32 %v4489, %v4401
    %v4491 = vmul.f32 %v4490, %v4489
    %v4492 = vmul.f32 0.5, %v4491
    %v4493 = vsub.f32 1.5, %v4492
    %v4494 = vmul.f32 %v4489, %v4493
    %vm4495 = vweird.f32 %v4401
    %vm4496 = vweird.f32 %v4489
    %vm4497 = vmor %vm4495, %vm4496
    %v4498 = vsel %vm4497, %v4489, %v4494
    %v4499 = vrsqrt.pop %v4402
    %v4500 = vmul.f32 %v4499, %v4402
    %v4501 = vmul.f32 %v4500, %v4499
    %v4502 = vmul.f32 0.5, %v4501
    %v4503 = vsub.f32 1.5, %v4502
    %v4504 = vmul.f32 %v4499, %v4503
    %vm4505 = vweird.f32 %v4402
    %vm4506 = vweird.f32 %v4499
    %vm4507 = vmor %vm4505, %vm4506
    %v4508 = vsel %vm4507, %v4499, %v4504
    %v4509 = vrsqrt.pop %v4403
    %v4510 = vmul.f32 %v4509, %v4403
    %v4511 = vmul.f32 %v4510, %v4509
    %v4512 = vmul.f32 0.5, %v4511
    %v4513 = vsub.f32 1.5, %v4512
    %v4514 = vmul.f32 %v4509, %v4513
    %vm4515 = vweird.f32 %v4403
    %vm4516 = vweird.f32 %v4509
    %vm4517 = vmor %vm4515, %vm4516
    %v4518 = vsel %vm4517, %v4509, %v4514
    %v4519 = vrsqrt.pop %v4404
    %v4520 = vmul.f32 %v4519, %v4404
    %v4521 = vmul.f32 %v4520, %v4519
    %v4522 = vmul.f32 0.5, %v4521
    %v4523 = vsub.f32 1.5, %v4522
    %v4524 = vmul.f32 %v4519, %v4523
    %vm4525 = vweird.f32 %v4404
    %vm4526 = vweird.f32 %v4519
    %vm4527 = vmor %vm4525, %vm4526
    %v4528 = vsel %vm4527, %v4519, %v4524
    %v4529 = vrsqrt.pop %v4405
    %v4530 = vmul.f32 %v4529, %v4405
    %v4531 = vmul.f32 %v4530, %v4529
    %v4532 = vmul.f32 0.5, %v4531
    %v4533 = vsub.f32 1.5, %v4532
    %v4534 = vmul.f32 %v4529, %v4533
    %vm4535 = vweird.f32 %v4405
    %vm4536 = vweird.f32 %v4529
    %vm4537 = vmor %vm4535, %vm4536
    %v4538 = vsel %vm4537, %v4529, %v4534
    %v4539 = vrsqrt.pop %v4406
    %v4540 = vmul.f32 %v4539, %v4406
    %v4541 = vmul.f32 %v4540, %v4539
    %v4542 = vmul.f32 0.5, %v4541
    %v4543 = vsub.f32 1.5, %v4542
    %v4544 = vmul.f32 %v4539, %v4543
    %vm4545 = vweird.f32 %v4406
    %vm4546 = vweird.f32 %v4539
    %vm4547 = vmor %vm4545, %vm4546
    %v4548 = vsel %vm4547, %v4539, %v4544
    %v4549 = vrsqrt.pop %v4407
    %v4550 = vmul.f32 %v4549, %v4407
    %v4551 = vmul.f32 %v4550, %v4549
    %v4552 = vmul.f32 0.5, %v4551
    %v4553 = vsub.f32 1.5, %v4552
    %v4554 = vmul.f32 %v4549, %v4553
    %vm4555 = vweird.f32 %v4407
    %vm4556 = vweird.f32 %v4549
    %vm4557 = vmor %vm4555, %vm4556
    %v4558 = vsel %vm4557, %v4549, %v4554
    %v4559 = vrsqrt.pop %v4408
    %v4560 = vmul.f32 %v4559, %v4408
    %v4561 = vmul.f32 %v4560, %v4559
    %v4562 = vmul.f32 0.5, %v4561
    %v4563 = vsub.f32 1.5, %v4562
    %v4564 = vmul.f32 %v4559, %v4563
    %vm4565 = vweird.f32 %v4408
    %vm4566 = vweird.f32 %v4559
    %vm4567 = vmor %vm4565, %vm4566
    %v4568 = vsel %vm4567, %v4559, %v4564
    %v4569 = vmul.f32 %v4313, %v4418
    %v4570 = vmul.f32 %v4314, %v4428
    %v4571 = vmul.f32 %v4315, %v4438
    %v4572 = vmul.f32 %v4316, %v4448
    %v4573 = vmul.f32 %v4317, %v4458
    %v4574 = vmul.f32 %v4318, %v4468
    %v4575 = vmul.f32 %v4319, %v4478
    %v4576 = vmul.f32 %v4320, %v4488
    %v4577 = vmul.f32 %v4321, %v4498
    %v4578 = vmul.f32 %v4322, %v4508
    %v4579 = vmul.f32 %v4323, %v4518
    %v4580 = vmul.f32 %v4324, %v4528
    %v4581 = vmul.f32 %v4325, %v4538
    %v4582 = vmul.f32 %v4326, %v4548
    %v4583 = vmul.f32 %v4327, %v4558
    %v4584 = vmul.f32 %v4328, %v4568
    %v4586 = vperm.slane %v4263, 0
    %v4588 = vmul.f32 %v4569, %v4586
    %v4589 = vmul.f32 %v4570, %v4586
    %v4590 = vmul.f32 %v4571, %v4586
    %v4591 = vmul.f32 %v4572, %v4586
    %v4592 = vmul.f32 %v4573, %v4586
    %v4593 = vmul.f32 %v4574, %v4586
    %v4594 = vmul.f32 %v4575, %v4586
    %v4595 = vmul.f32 %v4576, %v4586
    %v4596 = vmul.f32 %v4577, %v4586
    %v4597 = vmul.f32 %v4578, %v4586
    %v4598 = vmul.f32 %v4579, %v4586
    %v4599 = vmul.f32 %v4580, %v4586
    %v4600 = vmul.f32 %v4581, %v4586
    %v4601 = vmul.f32 %v4582, %v4586
    %v4602 = vmul.f32 %v4583, %v4586
    %v4603 = vmul.f32 %v4584, %v4586
    %v4605 = vperm.slane %v4264, 0
    %v4607 = vadd.f32 %v4588, %v4605
    %v4608 = vadd.f32 %v4589, %v4605
    %v4609 = vadd.f32 %v4590, %v4605
    %v4610 = vadd.f32 %v4591, %v4605
    %v4611 = vadd.f32 %v4592, %v4605
    %v4612 = vadd.f32 %v4593, %v4605
    %v4613 = vadd.f32 %v4594, %v4605
    %v4614 = vadd.f32 %v4595, %v4605
    %v4615 = vadd.f32 %v4596, %v4605
    %v4616 = vadd.f32 %v4597, %v4605
    %v4617 = vadd.f32 %v4598, %v4605
    %v4618 = vadd.f32 %v4599, %v4605
    %v4619 = vadd.f32 %v4600, %v4605
    %v4620 = vadd.f32 %v4601, %v4605
    %v4621 = vadd.f32 %v4602, %v4605
    %v4622 = vadd.f32 %v4603, %v4605
    %v4623 = vld [vmem:[#allocation23] sm:$0xff]
    %v4624 = vld [vmem:[#allocation23 + $0x8] sm:$0xff]
    %v4625 = vld [vmem:[#allocation23 + $0x10] sm:$0xff]
    %v4626 = vld [vmem:[#allocation23 + $0x18] sm:$0xff]
    %v4627 = vld [vmem:[#allocation23 + $0x20] sm:$0xff]
    %v4628 = vld [vmem:[#allocation23 + $0x28] sm:$0xff]
    %v4629 = vld [vmem:[#allocation23 + $0x30] sm:$0xff]
    %v4630 = vld [vmem:[#allocation23 + $0x38] sm:$0xff]
    %v4631 = vld [vmem:[#allocation23 + $0x40] sm:$0xff]
    %v4632 = vld [vmem:[#allocation23 + $0x48] sm:$0xff]
    %v4633 = vld [vmem:[#allocation23 + $0x50] sm:$0xff]
    %v4634 = vld [vmem:[#allocation23 + $0x58] sm:$0xff]
    %v4635 = vld [vmem:[#allocation23 + $0x60] sm:$0xff]
    %v4636 = vld [vmem:[#allocation23 + $0x68] sm:$0xff]
    %v4637 = vld [vmem:[#allocation23 + $0x70] sm:$0xff]
    %v4638 = vld [vmem:[#allocation23 + $0x78] sm:$0xff]
    %v4639 = vld [vmem:[%s17] sm:$0x1]
    %v4641 = vperm.slane %v4639, 0
    %4643 = vmatpush.msra.mxu0 %v4638
    %4644 = vmatpush.msra.mxu0 %v4637
    %4645 = vmatpush.msra.mxu0 %v4636
    %4646 = vmatpush.msra.mxu0 %v4635
    %4647 = vmatpush.msra.mxu0 %v4634
    %4648 = vmatpush.msra.mxu0 %v4633
    %4649 = vmatpush.msra.mxu0 %v4632
    %4650 = vmatpush.msra.mxu0 %v4631
    %4651 = vmatpush.msra.mxu0 %v4630
    %4652 = vmatpush.msra.mxu0 %v4629
    %4653 = vmatpush.msra.mxu0 %v4628
    %4654 = vmatpush.msra.mxu0 %v4627
    %4655 = vmatpush.msra.mxu0 %v4626
    %4656 = vmatpush.msra.mxu0 %v4625
    %4657 = vmatpush.msra.mxu0 %v4624
    %4658 = vmatpush.msra.mxu0 %v4623
    %4659 = vmatmul.f32.gmra.mxu0 %v4607
    %v4660 = vpop.f32.mrf.mxu0
    %v4661 = vadd.f32 %v4641, %v4660
    %4662 = vmatmul.f32.gmra.mxu0 %v4608
    %v4663 = vpop.f32.mrf.mxu0
    %v4664 = vadd.f32 %v4641, %v4663
    %4665 = vmatmul.f32.gmra.mxu0 %v4609
    %v4666 = vpop.f32.mrf.mxu0
    %v4667 = vadd.f32 %v4641, %v4666
    %4668 = vmatmul.f32.gmra.mxu0 %v4610
    %v4669 = vpop.f32.mrf.mxu0
    %v4670 = vadd.f32 %v4641, %v4669
    %4671 = vmatmul.f32.gmra.mxu0 %v4611
    %v4672 = vpop.f32.mrf.mxu0
    %v4673 = vadd.f32 %v4641, %v4672
    %4674 = vmatmul.f32.gmra.mxu0 %v4612
    %v4675 = vpop.f32.mrf.mxu0
    %v4676 = vadd.f32 %v4641, %v4675
    %4677 = vmatmul.f32.gmra.mxu0 %v4613
    %v4678 = vpop.f32.mrf.mxu0
    %v4679 = vadd.f32 %v4641, %v4678
    %4680 = vmatmul.f32.gmra.mxu0 %v4614
    %v4681 = vpop.f32.mrf.mxu0
    %v4682 = vadd.f32 %v4641, %v4681
    %4683 = vmatmul.f32.gmra.mxu0 %v4615
    %v4684 = vpop.f32.mrf.mxu0
    %v4685 = vadd.f32 %v4641, %v4684
    %4686 = vmatmul.f32.gmra.mxu0 %v4616
    %v4687 = vpop.f32.mrf.mxu0
    %v4688 = vadd.f32 %v4641, %v4687
    %4689 = vmatmul.f32.gmra.mxu0 %v4617
    %v4690 = vpop.f32.mrf.mxu0
    %v4691 = vadd.f32 %v4641, %v4690
    %4692 = vmatmul.f32.gmra.mxu0 %v4618
    %v4693 = vpop.f32.mrf.mxu0
    %v4694 = vadd.f32 %v4641, %v4693
    %4695 = vmatmul.f32.gmra.mxu0 %v4619
    %v4696 = vpop.f32.mrf.mxu0
    %v4697 = vadd.f32 %v4641, %v4696
    %4698 = vmatmul.f32.gmra.mxu0 %v4620
    %v4699 = vpop.f32.mrf.mxu0
    %v4700 = vadd.f32 %v4641, %v4699
    %4701 = vmatmul.f32.gmra.mxu0 %v4621
    %v4702 = vpop.f32.mrf.mxu0
    %v4703 = vadd.f32 %v4641, %v4702
    %4704 = vmatmul.f32.gmra.mxu0 %v4622
    %v4705 = vpop.f32.mrf.mxu0
    %v4706 = vadd.f32 %v4641, %v4705
    %4707 = vdwg.mxu0
    %4708 = vmax.xlane.f32.xlu0 %v4661
    %v4709 = vpop.xlane.xlu0 %4708
    %4710 = vmax.xlane.f32.xlu0 %v4664
    %v4711 = vpop.xlane.xlu0 %4710
    %4712 = vmax.xlane.f32.xlu0 %v4667
    %v4713 = vpop.xlane.xlu0 %4712
    %4714 = vmax.xlane.f32.xlu0 %v4670
    %v4715 = vpop.xlane.xlu0 %4714
    %4716 = vmax.xlane.f32.xlu0 %v4673
    %v4717 = vpop.xlane.xlu0 %4716
    %4718 = vmax.xlane.f32.xlu0 %v4676
    %v4719 = vpop.xlane.xlu0 %4718
    %4720 = vmax.xlane.f32.xlu0 %v4679
    %v4721 = vpop.xlane.xlu0 %4720
    %4722 = vmax.xlane.f32.xlu0 %v4682
    %v4723 = vpop.xlane.xlu0 %4722
    %4724 = vmax.xlane.f32.xlu0 %v4685
    %v4725 = vpop.xlane.xlu0 %4724
    %4726 = vmax.xlane.f32.xlu0 %v4688
    %v4727 = vpop.xlane.xlu0 %4726
    %4728 = vmax.xlane.f32.xlu0 %v4691
    %v4729 = vpop.xlane.xlu0 %4728
    %4730 = vmax.xlane.f32.xlu0 %v4694
    %v4731 = vpop.xlane.xlu0 %4730
    %4732 = vmax.xlane.f32.xlu0 %v4697
    %v4733 = vpop.xlane.xlu0 %4732
    %4734 = vmax.xlane.f32.xlu0 %v4700
    %v4735 = vpop.xlane.xlu0 %4734
    %4736 = vmax.xlane.f32.xlu0 %v4703
    %v4737 = vpop.xlane.xlu0 %4736
    %4738 = vmax.xlane.f32.xlu0 %v4706
    %v4739 = vpop.xlane.xlu0 %4738
    %v4740 = vsub.f32 %v4661, %v4709
    %v4741 = vsub.f32 %v4664, %v4711
    %v4742 = vsub.f32 %v4667, %v4713
    %v4743 = vsub.f32 %v4670, %v4715
    %v4744 = vsub.f32 %v4673, %v4717
    %v4745 = vsub.f32 %v4676, %v4719
    %v4746 = vsub.f32 %v4679, %v4721
    %v4747 = vsub.f32 %v4682, %v4723
    %v4748 = vsub.f32 %v4685, %v4725
    %v4749 = vsub.f32 %v4688, %v4727
    %v4750 = vsub.f32 %v4691, %v4729
    %v4751 = vsub.f32 %v4694, %v4731
    %v4752 = vsub.f32 %v4697, %v4733
    %v4753 = vsub.f32 %v4700, %v4735
    %v4754 = vsub.f32 %v4703, %v4737
    %v4755 = vsub.f32 %v4706, %v4739
    %v4756 = vmul.f32 %v4740, 1.442695
    %v4757 = vpow.pop %v4756
    %v4758 = vmul.f32 %v4741, 1.442695
    %v4759 = vpow.pop %v4758
    %v4760 = vmul.f32 %v4742, 1.442695
    %v4761 = vpow.pop %v4760
    %v4762 = vmul.f32 %v4743, 1.442695
    %v4763 = vpow.pop %v4762
    %v4764 = vmul.f32 %v4744, 1.442695
    %v4765 = vpow.pop %v4764
    %v4766 = vmul.f32 %v4745, 1.442695
    %v4767 = vpow.pop %v4766
    %v4768 = vmul.f32 %v4746, 1.442695
    %v4769 = vpow.pop %v4768
    %v4770 = vmul.f32 %v4747, 1.442695
    %v4771 = vpow.pop %v4770
    %v4772 = vmul.f32 %v4748, 1.442695
    %v4773 = vpow.pop %v4772
    %v4774 = vmul.f32 %v4749, 1.442695
    %v4775 = vpow.pop %v4774
    %v4776 = vmul.f32 %v4750, 1.442695
    %v4777 = vpow.pop %v4776
    %v4778 = vmul.f32 %v4751, 1.442695
    %v4779 = vpow.pop %v4778
    %v4780 = vmul.f32 %v4752, 1.442695
    %v4781 = vpow.pop %v4780
    %v4782 = vmul.f32 %v4753, 1.442695
    %v4783 = vpow.pop %v4782
    %v4784 = vmul.f32 %v4754, 1.442695
    %v4785 = vpow.pop %v4784
    %v4786 = vmul.f32 %v4755, 1.442695
    %v4787 = vpow.pop %v4786
    %4788 = vadd.xlane.f32.xlu0 %v4757
    %v4789 = vpop.xlane.xlu0 %4788
    %4790 = vadd.xlane.f32.xlu0 %v4759
    %v4791 = vpop.xlane.xlu0 %4790
    %4792 = vadd.xlane.f32.xlu0 %v4761
    %v4793 = vpop.xlane.xlu0 %4792
    %4794 = vadd.xlane.f32.xlu0 %v4763
    %v4795 = vpop.xlane.xlu0 %4794
    %4796 = vadd.xlane.f32.xlu0 %v4765
    %v4797 = vpop.xlane.xlu0 %4796
    %4798 = vadd.xlane.f32.xlu0 %v4767
    %v4799 = vpop.xlane.xlu0 %4798
    %4800 = vadd.xlane.f32.xlu0 %v4769
    %v4801 = vpop.xlane.xlu0 %4800
    %4802 = vadd.xlane.f32.xlu0 %v4771
    %v4803 = vpop.xlane.xlu0 %4802
    %4804 = vadd.xlane.f32.xlu0 %v4773
    %v4805 = vpop.xlane.xlu0 %4804
    %4806 = vadd.xlane.f32.xlu0 %v4775
    %v4807 = vpop.xlane.xlu0 %4806
    %4808 = vadd.xlane.f32.xlu0 %v4777
    %v4809 = vpop.xlane.xlu0 %4808
    %4810 = vadd.xlane.f32.xlu0 %v4779
    %v4811 = vpop.xlane.xlu0 %4810
    %4812 = vadd.xlane.f32.xlu0 %v4781
    %v4813 = vpop.xlane.xlu0 %4812
    %4814 = vadd.xlane.f32.xlu0 %v4783
    %v4815 = vpop.xlane.xlu0 %4814
    %4816 = vadd.xlane.f32.xlu0 %v4785
    %v4817 = vpop.xlane.xlu0 %4816
    %4818 = vadd.xlane.f32.xlu0 %v4787
    %v4819 = vpop.xlane.xlu0 %4818
    %v4820 = vrcp.pop %v4789
    %v4821 = vrcp.pop %v4791
    %v4822 = vrcp.pop %v4793
    %v4823 = vrcp.pop %v4795
    %v4824 = vrcp.pop %v4797
    %v4825 = vrcp.pop %v4799
    %v4826 = vrcp.pop %v4801
    %v4827 = vrcp.pop %v4803
    %v4828 = vrcp.pop %v4805
    %v4829 = vrcp.pop %v4807
    %v4830 = vrcp.pop %v4809
    %v4831 = vrcp.pop %v4811
    %v4832 = vrcp.pop %v4813
    %v4833 = vrcp.pop %v4815
    %v4834 = vrcp.pop %v4817
    %v4835 = vrcp.pop %v4819
    %v4836 = vmul.f32 %v4757, %v4820
    %v4837 = vmul.f32 %v4759, %v4821
    %v4838 = vmul.f32 %v4761, %v4822
    %v4839 = vmul.f32 %v4763, %v4823
    %v4840 = vmul.f32 %v4765, %v4824
    %v4841 = vmul.f32 %v4767, %v4825
    %v4842 = vmul.f32 %v4769, %v4826
    %v4843 = vmul.f32 %v4771, %v4827
    %v4844 = vmul.f32 %v4773, %v4828
    %v4845 = vmul.f32 %v4775, %v4829
    %v4846 = vmul.f32 %v4777, %v4830
    %v4847 = vmul.f32 %v4779, %v4831
    %v4848 = vmul.f32 %v4781, %v4832
    %v4849 = vmul.f32 %v4783, %v4833
    %v4850 = vmul.f32 %v4785, %v4834
    %v4851 = vmul.f32 %v4787, %v4835
    %4852 = vmax.xlane.f32.xlu0 %v4836
    %v4853 = vpop.xlane.xlu0 %4852
    %4854 = vmax.xlane.f32.xlu0 %v4837
    %v4855 = vpop.xlane.xlu0 %4854
    %4856 = vmax.xlane.f32.xlu0 %v4838
    %v4857 = vpop.xlane.xlu0 %4856
    %4858 = vmax.xlane.f32.xlu0 %v4839
    %v4859 = vpop.xlane.xlu0 %4858
    %4860 = vmax.xlane.f32.xlu0 %v4840
    %v4861 = vpop.xlane.xlu0 %4860
    %4862 = vmax.xlane.f32.xlu0 %v4841
    %v4863 = vpop.xlane.xlu0 %4862
    %4864 = vmax.xlane.f32.xlu0 %v4842
    %v4865 = vpop.xlane.xlu0 %4864
    %4866 = vmax.xlane.f32.xlu0 %v4843
    %v4867 = vpop.xlane.xlu0 %4866
    %4868 = vmax.xlane.f32.xlu0 %v4844
    %v4869 = vpop.xlane.xlu0 %4868
    %4870 = vmax.xlane.f32.xlu0 %v4845
    %v4871 = vpop.xlane.xlu0 %4870
    %4872 = vmax.xlane.f32.xlu0 %v4846
    %v4873 = vpop.xlane.xlu0 %4872
    %4874 = vmax.xlane.f32.xlu0 %v4847
    %v4875 = vpop.xlane.xlu0 %4874
    %4876 = vmax.xlane.f32.xlu0 %v4848
    %v4877 = vpop.xlane.xlu0 %4876
    %4878 = vmax.xlane.f32.xlu0 %v4849
    %v4879 = vpop.xlane.xlu0 %4878
    %4880 = vmax.xlane.f32.xlu0 %v4850
    %v4881 = vpop.xlane.xlu0 %4880
    %4882 = vmax.xlane.f32.xlu0 %v4851
    %v4883 = vpop.xlane.xlu0 %4882
    %vm4884 = vcmp.ge.f32.partialorder %v4836, %v4853
    %vm4885 = vcmp.ge.f32.partialorder %v4837, %v4855
    %vm4886 = vcmp.ge.f32.partialorder %v4838, %v4857
    %vm4887 = vcmp.ge.f32.partialorder %v4839, %v4859
    %vm4888 = vcmp.ge.f32.partialorder %v4840, %v4861
    %vm4889 = vcmp.ge.f32.partialorder %v4841, %v4863
    %vm4890 = vcmp.ge.f32.partialorder %v4842, %v4865
    %vm4891 = vcmp.ge.f32.partialorder %v4843, %v4867
    %vm4892 = vcmp.ge.f32.partialorder %v4844, %v4869
    %vm4893 = vcmp.ge.f32.partialorder %v4845, %v4871
    %vm4894 = vcmp.ge.f32.partialorder %v4846, %v4873
    %vm4895 = vcmp.ge.f32.partialorder %v4847, %v4875
    %vm4896 = vcmp.ge.f32.partialorder %v4848, %v4877
    %vm4897 = vcmp.ge.f32.partialorder %v4849, %v4879
    %vm4898 = vcmp.ge.f32.partialorder %v4850, %v4881
    %vm4899 = vcmp.ge.f32.partialorder %v4851, %v4883
    %v4900 = vsel %vm4884, %v332, 128
    %v4901 = vsel %vm4885, %v332, 128
    %v4902 = vsel %vm4886, %v332, 128
    %v4903 = vsel %vm4887, %v332, 128
    %v4904 = vsel %vm4888, %v332, 128
    %v4905 = vsel %vm4889, %v332, 128
    %v4906 = vsel %vm4890, %v332, 128
    %v4907 = vsel %vm4891, %v332, 128
    %v4908 = vsel %vm4892, %v332, 128
    %v4909 = vsel %vm4893, %v332, 128
    %v4910 = vsel %vm4894, %v332, 128
    %v4911 = vsel %vm4895, %v332, 128
    %v4912 = vsel %vm4896, %v332, 128
    %v4913 = vsel %vm4897, %v332, 128
    %v4914 = vsel %vm4898, %v332, 128
    %v4915 = vsel %vm4899, %v332, 128
    %v4916 = vand.u32 %v4900, 65535
    %v4917 = vshra.s32 %v4900, 16
    %v4918 = vcvt.s32.f32 %v4916
    %v4919 = vcvt.s32.f32 %v4917
    %4920 = vmin.xlane.f32.xlu0 %v4919
    %v4921 = vpop.xlane.xlu0 %4920
    %vm4922 = vcmp.eq.f32.partialorder %v4919, %v4921
    %v4923 = vsel %vm4922, %v4918, inf
    %4924 = vmin.xlane.f32.xlu0 %v4923
    %v4925 = vpop.xlane.xlu0 %4924
    %v4926 = vcvt.f32.s32 %v4925
    %v4927 = vcvt.f32.s32 %v4921
    %v4928 = vshll.u32 %v4927, 16
    %v4929 = vadd.s32 %v4928, %v4926
    %v4930 = vand.u32 %v4901, 65535
    %v4931 = vshra.s32 %v4901, 16
    %v4932 = vcvt.s32.f32 %v4930
    %v4933 = vcvt.s32.f32 %v4931
    %4934 = vmin.xlane.f32.xlu0 %v4933
    %v4935 = vpop.xlane.xlu0 %4934
    %vm4936 = vcmp.eq.f32.partialorder %v4933, %v4935
    %v4937 = vsel %vm4936, %v4932, inf
    %4938 = vmin.xlane.f32.xlu0 %v4937
    %v4939 = vpop.xlane.xlu0 %4938
    %v4940 = vcvt.f32.s32 %v4939
    %v4941 = vcvt.f32.s32 %v4935
    %v4942 = vshll.u32 %v4941, 16
    %v4943 = vadd.s32 %v4942, %v4940
    %v4944 = vand.u32 %v4902, 65535
    %v4945 = vshra.s32 %v4902, 16
    %v4946 = vcvt.s32.f32 %v4944
    %v4947 = vcvt.s32.f32 %v4945
    %4948 = vmin.xlane.f32.xlu0 %v4947
    %v4949 = vpop.xlane.xlu0 %4948
    %vm4950 = vcmp.eq.f32.partialorder %v4947, %v4949
    %v4951 = vsel %vm4950, %v4946, inf
    %4952 = vmin.xlane.f32.xlu0 %v4951
    %v4953 = vpop.xlane.xlu0 %4952
    %v4954 = vcvt.f32.s32 %v4953
    %v4955 = vcvt.f32.s32 %v4949
    %v4956 = vshll.u32 %v4955, 16
    %v4957 = vadd.s32 %v4956, %v4954
    %v4958 = vand.u32 %v4903, 65535
    %v4959 = vshra.s32 %v4903, 16
    %v4960 = vcvt.s32.f32 %v4958
    %v4961 = vcvt.s32.f32 %v4959
    %4962 = vmin.xlane.f32.xlu0 %v4961
    %v4963 = vpop.xlane.xlu0 %4962
    %vm4964 = vcmp.eq.f32.partialorder %v4961, %v4963
    %v4965 = vsel %vm4964, %v4960, inf
    %4966 = vmin.xlane.f32.xlu0 %v4965
    %v4967 = vpop.xlane.xlu0 %4966
    %v4968 = vcvt.f32.s32 %v4967
    %v4969 = vcvt.f32.s32 %v4963
    %v4970 = vshll.u32 %v4969, 16
    %v4971 = vadd.s32 %v4970, %v4968
    %v4972 = vand.u32 %v4904, 65535
    %v4973 = vshra.s32 %v4904, 16
    %v4974 = vcvt.s32.f32 %v4972
    %v4975 = vcvt.s32.f32 %v4973
    %4976 = vmin.xlane.f32.xlu0 %v4975
    %v4977 = vpop.xlane.xlu0 %4976
    %vm4978 = vcmp.eq.f32.partialorder %v4975, %v4977
    %v4979 = vsel %vm4978, %v4974, inf
    %4980 = vmin.xlane.f32.xlu0 %v4979
    %v4981 = vpop.xlane.xlu0 %4980
    %v4982 = vcvt.f32.s32 %v4981
    %v4983 = vcvt.f32.s32 %v4977
    %v4984 = vshll.u32 %v4983, 16
    %v4985 = vadd.s32 %v4984, %v4982
    %v4986 = vand.u32 %v4905, 65535
    %v4987 = vshra.s32 %v4905, 16
    %v4988 = vcvt.s32.f32 %v4986
    %v4989 = vcvt.s32.f32 %v4987
    %4990 = vmin.xlane.f32.xlu0 %v4989
    %v4991 = vpop.xlane.xlu0 %4990
    %vm4992 = vcmp.eq.f32.partialorder %v4989, %v4991
    %v4993 = vsel %vm4992, %v4988, inf
    %4994 = vmin.xlane.f32.xlu0 %v4993
    %v4995 = vpop.xlane.xlu0 %4994
    %v4996 = vcvt.f32.s32 %v4995
    %v4997 = vcvt.f32.s32 %v4991
    %v4998 = vshll.u32 %v4997, 16
    %v4999 = vadd.s32 %v4998, %v4996
    %v5000 = vand.u32 %v4906, 65535
    %v5001 = vshra.s32 %v4906, 16
    %v5002 = vcvt.s32.f32 %v5000
    %v5003 = vcvt.s32.f32 %v5001
    %5004 = vmin.xlane.f32.xlu0 %v5003
    %v5005 = vpop.xlane.xlu0 %5004
    %vm5006 = vcmp.eq.f32.partialorder %v5003, %v5005
    %v5007 = vsel %vm5006, %v5002, inf
    %5008 = vmin.xlane.f32.xlu0 %v5007
    %v5009 = vpop.xlane.xlu0 %5008
    %v5010 = vcvt.f32.s32 %v5009
    %v5011 = vcvt.f32.s32 %v5005
    %v5012 = vshll.u32 %v5011, 16
    %v5013 = vadd.s32 %v5012, %v5010
    %v5014 = vand.u32 %v4907, 65535
    %v5015 = vshra.s32 %v4907, 16
    %v5016 = vcvt.s32.f32 %v5014
    %v5017 = vcvt.s32.f32 %v5015
    %5018 = vmin.xlane.f32.xlu0 %v5017
    %v5019 = vpop.xlane.xlu0 %5018
    %vm5020 = vcmp.eq.f32.partialorder %v5017, %v5019
    %v5021 = vsel %vm5020, %v5016, inf
    %5022 = vmin.xlane.f32.xlu0 %v5021
    %v5023 = vpop.xlane.xlu0 %5022
    %v5024 = vcvt.f32.s32 %v5023
    %v5025 = vcvt.f32.s32 %v5019
    %v5026 = vshll.u32 %v5025, 16
    %v5027 = vadd.s32 %v5026, %v5024
    %v5028 = vand.u32 %v4908, 65535
    %v5029 = vshra.s32 %v4908, 16
    %v5030 = vcvt.s32.f32 %v5028
    %v5031 = vcvt.s32.f32 %v5029
    %5032 = vmin.xlane.f32.xlu0 %v5031
    %v5033 = vpop.xlane.xlu0 %5032
    %vm5034 = vcmp.eq.f32.partialorder %v5031, %v5033
    %v5035 = vsel %vm5034, %v5030, inf
    %5036 = vmin.xlane.f32.xlu0 %v5035
    %v5037 = vpop.xlane.xlu0 %5036
    %v5038 = vcvt.f32.s32 %v5037
    %v5039 = vcvt.f32.s32 %v5033
    %v5040 = vshll.u32 %v5039, 16
    %v5041 = vadd.s32 %v5040, %v5038
    %v5042 = vand.u32 %v4909, 65535
    %v5043 = vshra.s32 %v4909, 16
    %v5044 = vcvt.s32.f32 %v5042
    %v5045 = vcvt.s32.f32 %v5043
    %5046 = vmin.xlane.f32.xlu0 %v5045
    %v5047 = vpop.xlane.xlu0 %5046
    %vm5048 = vcmp.eq.f32.partialorder %v5045, %v5047
    %v5049 = vsel %vm5048, %v5044, inf
    %5050 = vmin.xlane.f32.xlu0 %v5049
    %v5051 = vpop.xlane.xlu0 %5050
    %v5052 = vcvt.f32.s32 %v5051
    %v5053 = vcvt.f32.s32 %v5047
    %v5054 = vshll.u32 %v5053, 16
    %v5055 = vadd.s32 %v5054, %v5052
    %v5056 = vand.u32 %v4910, 65535
    %v5057 = vshra.s32 %v4910, 16
    %v5058 = vcvt.s32.f32 %v5056
    %v5059 = vcvt.s32.f32 %v5057
    %5060 = vmin.xlane.f32.xlu0 %v5059
    %v5061 = vpop.xlane.xlu0 %5060
    %vm5062 = vcmp.eq.f32.partialorder %v5059, %v5061
    %v5063 = vsel %vm5062, %v5058, inf
    %5064 = vmin.xlane.f32.xlu0 %v5063
    %v5065 = vpop.xlane.xlu0 %5064
    %v5066 = vcvt.f32.s32 %v5065
    %v5067 = vcvt.f32.s32 %v5061
    %v5068 = vshll.u32 %v5067, 16
    %v5069 = vadd.s32 %v5068, %v5066
    %v5070 = vand.u32 %v4911, 65535
    %v5071 = vshra.s32 %v4911, 16
    %v5072 = vcvt.s32.f32 %v5070
    %v5073 = vcvt.s32.f32 %v5071
    %5074 = vmin.xlane.f32.xlu0 %v5073
    %v5075 = vpop.xlane.xlu0 %5074
    %vm5076 = vcmp.eq.f32.partialorder %v5073, %v5075
    %v5077 = vsel %vm5076, %v5072, inf
    %5078 = vmin.xlane.f32.xlu0 %v5077
    %v5079 = vpop.xlane.xlu0 %5078
    %v5080 = vcvt.f32.s32 %v5079
    %v5081 = vcvt.f32.s32 %v5075
    %v5082 = vshll.u32 %v5081, 16
    %v5083 = vadd.s32 %v5082, %v5080
    %v5084 = vand.u32 %v4912, 65535
    %v5085 = vshra.s32 %v4912, 16
    %v5086 = vcvt.s32.f32 %v5084
    %v5087 = vcvt.s32.f32 %v5085
    %5088 = vmin.xlane.f32.xlu0 %v5087
    %v5089 = vpop.xlane.xlu0 %5088
    %vm5090 = vcmp.eq.f32.partialorder %v5087, %v5089
    %v5091 = vsel %vm5090, %v5086, inf
    %5092 = vmin.xlane.f32.xlu0 %v5091
    %v5093 = vpop.xlane.xlu0 %5092
    %v5094 = vcvt.f32.s32 %v5093
    %v5095 = vcvt.f32.s32 %v5089
    %v5096 = vshll.u32 %v5095, 16
    %v5097 = vadd.s32 %v5096, %v5094
    %v5098 = vand.u32 %v4913, 65535
    %v5099 = vshra.s32 %v4913, 16
    %v5100 = vcvt.s32.f32 %v5098
    %v5101 = vcvt.s32.f32 %v5099
    %5102 = vmin.xlane.f32.xlu0 %v5101
    %v5103 = vpop.xlane.xlu0 %5102
    %vm5104 = vcmp.eq.f32.partialorder %v5101, %v5103
    %v5105 = vsel %vm5104, %v5100, inf
    %5106 = vmin.xlane.f32.xlu0 %v5105
    %v5107 = vpop.xlane.xlu0 %5106
    %v5108 = vcvt.f32.s32 %v5107
    %v5109 = vcvt.f32.s32 %v5103
    %v5110 = vshll.u32 %v5109, 16
    %v5111 = vadd.s32 %v5110, %v5108
    %v5112 = vand.u32 %v4914, 65535
    %v5113 = vshra.s32 %v4914, 16
    %v5114 = vcvt.s32.f32 %v5112
    %v5115 = vcvt.s32.f32 %v5113
    %5116 = vmin.xlane.f32.xlu0 %v5115
    %v5117 = vpop.xlane.xlu0 %5116
    %vm5118 = vcmp.eq.f32.partialorder %v5115, %v5117
    %v5119 = vsel %vm5118, %v5114, inf
    %5120 = vmin.xlane.f32.xlu0 %v5119
    %v5121 = vpop.xlane.xlu0 %5120
    %v5122 = vcvt.f32.s32 %v5121
    %v5123 = vcvt.f32.s32 %v5117
    %v5124 = vshll.u32 %v5123, 16
    %v5125 = vadd.s32 %v5124, %v5122
    %v5126 = vand.u32 %v4915, 65535
    %v5127 = vshra.s32 %v4915, 16
    %v5128 = vcvt.s32.f32 %v5126
    %v5129 = vcvt.s32.f32 %v5127
    %5130 = vmin.xlane.f32.xlu0 %v5129
    %v5131 = vpop.xlane.xlu0 %5130
    %vm5132 = vcmp.eq.f32.partialorder %v5129, %v5131
    %v5133 = vsel %vm5132, %v5128, inf
    %5134 = vmin.xlane.f32.xlu0 %v5133
    %v5135 = vpop.xlane.xlu0 %5134
    %v5136 = vcvt.f32.s32 %v5135
    %v5137 = vcvt.f32.s32 %v5131
    %v5138 = vshll.u32 %v5137, 16
    %v5139 = vadd.s32 %v5138, %v5136
    %vm5140 = vcmp.eq.s32.totalorder %v332, %v4929
    %vm5141 = vcmp.eq.s32.totalorder %v332, %v4943
    %vm5142 = vcmp.eq.s32.totalorder %v332, %v4957
    %vm5143 = vcmp.eq.s32.totalorder %v332, %v4971
    %vm5144 = vcmp.eq.s32.totalorder %v332, %v4985
    %vm5145 = vcmp.eq.s32.totalorder %v332, %v4999
    %vm5146 = vcmp.eq.s32.totalorder %v332, %v5013
    %vm5147 = vcmp.eq.s32.totalorder %v332, %v5027
    %vm5148 = vcmp.eq.s32.totalorder %v332, %v5041
    %vm5149 = vcmp.eq.s32.totalorder %v332, %v5055
    %vm5150 = vcmp.eq.s32.totalorder %v332, %v5069
    %vm5151 = vcmp.eq.s32.totalorder %v332, %v5083
    %vm5152 = vcmp.eq.s32.totalorder %v332, %v5097
    %vm5153 = vcmp.eq.s32.totalorder %v332, %v5111
    %vm5154 = vcmp.eq.s32.totalorder %v332, %v5125
    %vm5155 = vcmp.eq.s32.totalorder %v332, %v5139
    %v5156 = vsel %vm5140, 1, 0
    %v5157 = vsel %vm5141, 1, 0
    %v5158 = vsel %vm5142, 1, 0
    %v5159 = vsel %vm5143, 1, 0
    %v5160 = vsel %vm5144, 1, 0
    %v5161 = vsel %vm5145, 1, 0
    %v5162 = vsel %vm5146, 1, 0
    %v5163 = vsel %vm5147, 1, 0
    %v5164 = vsel %vm5148, 1, 0
    %v5165 = vsel %vm5149, 1, 0
    %v5166 = vsel %vm5150, 1, 0
    %v5167 = vsel %vm5151, 1, 0
    %v5168 = vsel %vm5152, 1, 0
    %v5169 = vsel %vm5153, 1, 0
    %v5170 = vsel %vm5154, 1, 0
    %v5171 = vsel %vm5155, 1, 0
    %v5172 = vcvt.s32.f32 %v5156
    %v5173 = vcvt.s32.f32 %v5157
    %v5174 = vcvt.s32.f32 %v5158
    %v5175 = vcvt.s32.f32 %v5159
    %v5176 = vcvt.s32.f32 %v5160
    %v5177 = vcvt.s32.f32 %v5161
    %v5178 = vcvt.s32.f32 %v5162
    %v5179 = vcvt.s32.f32 %v5163
    %v5180 = vcvt.s32.f32 %v5164
    %v5181 = vcvt.s32.f32 %v5165
    %v5182 = vcvt.s32.f32 %v5166
    %v5183 = vcvt.s32.f32 %v5167
    %v5184 = vcvt.s32.f32 %v5168
    %v5185 = vcvt.s32.f32 %v5169
    %v5186 = vcvt.s32.f32 %v5170
    %v5187 = vcvt.s32.f32 %v5171
    %v5188 = vpack.c.bf16 %v4608, %v4607
    %v5189 = vpack.c.bf16 %v4610, %v4609
    %v5190 = vpack.c.bf16 %v4612, %v4611
    %v5191 = vpack.c.bf16 %v4614, %v4613
    %v5192 = vpack.c.bf16 %v4616, %v4615
    %v5193 = vpack.c.bf16 %v4618, %v4617
    %v5194 = vpack.c.bf16 %v4620, %v4619
    %v5195 = vpack.c.bf16 %v4622, %v4621
    %v5196 = vld [vmem:[#allocation24] sm:$0xff]
    %v5197 = vld [vmem:[#allocation24 + $0x8] sm:$0xff]
    %v5198 = vld [vmem:[#allocation24 + $0x10] sm:$0xff]
    %v5199 = vld [vmem:[#allocation24 + $0x18] sm:$0xff]
    %v5200 = vld [vmem:[#allocation24 + $0x20] sm:$0xff]
    %v5201 = vld [vmem:[#allocation24 + $0x28] sm:$0xff]
    %v5202 = vld [vmem:[#allocation24 + $0x30] sm:$0xff]
    %v5203 = vld [vmem:[#allocation24 + $0x38] sm:$0xff]
    %v5204 = vld [vmem:[#allocation24 + $0x40] sm:$0xff]
    %v5205 = vld [vmem:[#allocation24 + $0x48] sm:$0xff]
    %v5206 = vld [vmem:[#allocation24 + $0x50] sm:$0xff]
    %v5207 = vld [vmem:[#allocation24 + $0x58] sm:$0xff]
    %v5208 = vld [vmem:[#allocation24 + $0x60] sm:$0xff]
    %v5209 = vld [vmem:[#allocation24 + $0x68] sm:$0xff]
    %v5210 = vld [vmem:[#allocation24 + $0x70] sm:$0xff]
    %v5211 = vld [vmem:[#allocation24 + $0x78] sm:$0xff]
    %v5212 = vld [vmem:[%s19] sm:$0x3]
    %v5214 = vperm.slane %v5212, 0
    %v5215 = vperm.slane %v5212, 1
    %v5234 = vunpack.c.l.b16 %v5196
    %v5235 = vunpack.c.h.b16 %v5196
    %v5236 = vunpack.c.l.b16 %v5197
    %v5237 = vunpack.c.h.b16 %v5197
    %v5238 = vunpack.c.l.b16 %v5198
    %v5239 = vunpack.c.h.b16 %v5198
    %v5240 = vunpack.c.l.b16 %v5199
    %v5241 = vunpack.c.h.b16 %v5199
    %v5242 = vunpack.c.l.b16 %v5200
    %v5243 = vunpack.c.h.b16 %v5200
    %v5244 = vunpack.c.l.b16 %v5201
    %v5245 = vunpack.c.h.b16 %v5201
    %v5246 = vunpack.c.l.b16 %v5202
    %v5247 = vunpack.c.h.b16 %v5202
    %v5248 = vunpack.c.l.b16 %v5203
    %v5249 = vunpack.c.h.b16 %v5203
    %v5250 = vunpack.c.l.b16 %v5204
    %v5251 = vunpack.c.h.b16 %v5204
    %v5252 = vunpack.c.l.b16 %v5205
    %v5253 = vunpack.c.h.b16 %v5205
    %v5254 = vunpack.c.l.b16 %v5206
    %v5255 = vunpack.c.h.b16 %v5206
    %v5256 = vunpack.c.l.b16 %v5207
    %v5257 = vunpack.c.h.b16 %v5207
    %v5258 = vunpack.c.l.b16 %v5208
    %v5259 = vunpack.c.h.b16 %v5208
    %v5260 = vunpack.c.l.b16 %v5209
    %v5261 = vunpack.c.h.b16 %v5209
    %v5262 = vunpack.c.l.b16 %v5210
    %v5263 = vunpack.c.h.b16 %v5210
    %v5264 = vunpack.c.l.b16 %v5211
    %v5265 = vunpack.c.h.b16 %v5211
    %v5266 = vpack.c.b16 %v5236, %v5234
    %v5267 = vpack.c.b16 %v5237, %v5235
    %v5268 = vpack.c.b16 %v5240, %v5238
    %v5269 = vpack.c.b16 %v5241, %v5239
    %v5270 = vpack.c.b16 %v5244, %v5242
    %v5271 = vpack.c.b16 %v5245, %v5243
    %v5272 = vpack.c.b16 %v5248, %v5246
    %v5273 = vpack.c.b16 %v5249, %v5247
    %v5274 = vpack.c.b16 %v5252, %v5250
    %v5275 = vpack.c.b16 %v5253, %v5251
    %v5276 = vpack.c.b16 %v5256, %v5254
    %v5277 = vpack.c.b16 %v5257, %v5255
    %v5278 = vpack.c.b16 %v5260, %v5258
    %v5279 = vpack.c.b16 %v5261, %v5259
    %v5280 = vpack.c.b16 %v5264, %v5262
    %v5281 = vpack.c.b16 %v5265, %v5263
    %5298 = vmatpush.bf16.msra.mxu0 %v5280
    %5299 = vmatpush.bf16.msra.mxu0 %v5278
    %5300 = vmatpush.bf16.msra.mxu0 %v5276
    %5301 = vmatpush.bf16.msra.mxu0 %v5274
    %5302 = vmatpush.bf16.msra.mxu0 %v5272
    %5303 = vmatpush.bf16.msra.mxu0 %v5270
    %5304 = vmatpush.bf16.msra.mxu0 %v5268
    %5305 = vmatpush.bf16.msra.mxu0 %v5266
    %5306 = vmatmul.bf16.gmra.mxu0 %v5188
    %v5307 = vpop.f32.mrf.mxu0
    %v5308 = vadd.f32 %v5214, %v5307
    %v5309 = vpop.f32.mrf.mxu0
    %v5310 = vadd.f32 %v5214, %v5309
    %5311 = vmatmul.bf16.gmra.mxu0 %v5189
    %v5312 = vpop.f32.mrf.mxu0
    %v5313 = vadd.f32 %v5214, %v5312
    %v5314 = vpop.f32.mrf.mxu0
    %v5315 = vadd.f32 %v5214, %v5314
    %5316 = vmatmul.bf16.gmra.mxu0 %v5190
    %v5317 = vpop.f32.mrf.mxu0
    %v5318 = vadd.f32 %v5214, %v5317
    %v5319 = vpop.f32.mrf.mxu0
    %v5320 = vadd.f32 %v5214, %v5319
    %5321 = vmatmul.bf16.gmra.mxu0 %v5191
    %v5322 = vpop.f32.mrf.mxu0
    %v5323 = vadd.f32 %v5214, %v5322
    %v5324 = vpop.f32.mrf.mxu0
    %v5325 = vadd.f32 %v5214, %v5324
    %5326 = vmatmul.bf16.gmra.mxu0 %v5192
    %v5327 = vpop.f32.mrf.mxu0
    %v5328 = vadd.f32 %v5214, %v5327
    %v5329 = vpop.f32.mrf.mxu0
    %v5330 = vadd.f32 %v5214, %v5329
    %5331 = vmatmul.bf16.gmra.mxu0 %v5193
    %v5332 = vpop.f32.mrf.mxu0
    %v5333 = vadd.f32 %v5214, %v5332
    %v5334 = vpop.f32.mrf.mxu0
    %v5335 = vadd.f32 %v5214, %v5334
    %5336 = vmatmul.bf16.gmra.mxu0 %v5194
    %v5337 = vpop.f32.mrf.mxu0
    %v5338 = vadd.f32 %v5214, %v5337
    %v5339 = vpop.f32.mrf.mxu0
    %v5340 = vadd.f32 %v5214, %v5339
    %5341 = vmatmul.bf16.gmra.mxu0 %v5195
    %v5342 = vpop.f32.mrf.mxu0
    %v5343 = vadd.f32 %v5214, %v5342
    %v5344 = vpop.f32.mrf.mxu0
    %v5345 = vadd.f32 %v5214, %v5344
    %5346 = vdwg.mxu0
    %5347 = vmatpush.bf16.msra.mxu0 %v5281
    %5348 = vmatpush.bf16.msra.mxu0 %v5279
    %5349 = vmatpush.bf16.msra.mxu0 %v5277
    %5350 = vmatpush.bf16.msra.mxu0 %v5275
    %5351 = vmatpush.bf16.msra.mxu0 %v5273
    %5352 = vmatpush.bf16.msra.mxu0 %v5271
    %5353 = vmatpush.bf16.msra.mxu0 %v5269
    %5354 = vmatpush.bf16.msra.mxu0 %v5267
    %5355 = vmatmul.bf16.gmra.mxu0 %v5188
    %v5356 = vpop.f32.mrf.mxu0
    %v5357 = vadd.f32 %v5215, %v5356
    %v5358 = vpop.f32.mrf.mxu0
    %v5359 = vadd.f32 %v5215, %v5358
    %5360 = vmatmul.bf16.gmra.mxu0 %v5189
    %v5361 = vpop.f32.mrf.mxu0
    %v5362 = vadd.f32 %v5215, %v5361
    %v5363 = vpop.f32.mrf.mxu0
    %v5364 = vadd.f32 %v5215, %v5363
    %5365 = vmatmul.bf16.gmra.mxu0 %v5190
    %v5366 = vpop.f32.mrf.mxu0
    %v5367 = vadd.f32 %v5215, %v5366
    %v5368 = vpop.f32.mrf.mxu0
    %v5369 = vadd.f32 %v5215, %v5368
    %5370 = vmatmul.bf16.gmra.mxu0 %v5191
    %v5371 = vpop.f32.mrf.mxu0
    %v5372 = vadd.f32 %v5215, %v5371
    %v5373 = vpop.f32.mrf.mxu0
    %v5374 = vadd.f32 %v5215, %v5373
    %5375 = vmatmul.bf16.gmra.mxu0 %v5192
    %v5376 = vpop.f32.mrf.mxu0
    %v5377 = vadd.f32 %v5215, %v5376
    %v5378 = vpop.f32.mrf.mxu0
    %v5379 = vadd.f32 %v5215, %v5378
    %5380 = vmatmul.bf16.gmra.mxu0 %v5193
    %v5381 = vpop.f32.mrf.mxu0
    %v5382 = vadd.f32 %v5215, %v5381
    %v5383 = vpop.f32.mrf.mxu0
    %v5384 = vadd.f32 %v5215, %v5383
    %5385 = vmatmul.bf16.gmra.mxu0 %v5194
    %v5386 = vpop.f32.mrf.mxu0
    %v5387 = vadd.f32 %v5215, %v5386
    %v5388 = vpop.f32.mrf.mxu0
    %v5389 = vadd.f32 %v5215, %v5388
    %5390 = vmatmul.bf16.gmra.mxu0 %v5195
    %v5391 = vpop.f32.mrf.mxu0
    %v5392 = vadd.f32 %v5215, %v5391
    %v5393 = vpop.f32.mrf.mxu0
    %v5394 = vadd.f32 %v5215, %v5393
    %5395 = vdwg.mxu0
    %v5396 = vmax.f32 %v5308, 0.0
    %v5397 = vmax.f32 %v5357, 0.0
    %v5398 = vmax.f32 %v5310, 0.0
    %v5399 = vmax.f32 %v5359, 0.0
    %v5400 = vmax.f32 %v5313, 0.0
    %v5401 = vmax.f32 %v5362, 0.0
    %v5402 = vmax.f32 %v5315, 0.0
    %v5403 = vmax.f32 %v5364, 0.0
    %v5404 = vmax.f32 %v5318, 0.0
    %v5405 = vmax.f32 %v5367, 0.0
    %v5406 = vmax.f32 %v5320, 0.0
    %v5407 = vmax.f32 %v5369, 0.0
    %v5408 = vmax.f32 %v5323, 0.0
    %v5409 = vmax.f32 %v5372, 0.0
    %v5410 = vmax.f32 %v5325, 0.0
    %v5411 = vmax.f32 %v5374, 0.0
    %v5412 = vmax.f32 %v5328, 0.0
    %v5413 = vmax.f32 %v5377, 0.0
    %v5414 = vmax.f32 %v5330, 0.0
    %v5415 = vmax.f32 %v5379, 0.0
    %v5416 = vmax.f32 %v5333, 0.0
    %v5417 = vmax.f32 %v5382, 0.0
    %v5418 = vmax.f32 %v5335, 0.0
    %v5419 = vmax.f32 %v5384, 0.0
    %v5420 = vmax.f32 %v5338, 0.0
    %v5421 = vmax.f32 %v5387, 0.0
    %v5422 = vmax.f32 %v5340, 0.0
    %v5423 = vmax.f32 %v5389, 0.0
    %v5424 = vmax.f32 %v5343, 0.0
    %v5425 = vmax.f32 %v5392, 0.0
    %v5426 = vmax.f32 %v5345, 0.0
    %v5427 = vmax.f32 %v5394, 0.0
    %v5428 = vpack.c.bf16 %v5398, %v5396
    %v5429 = vpack.c.bf16 %v5399, %v5397
    %v5430 = vpack.c.bf16 %v5402, %v5400
    %v5431 = vpack.c.bf16 %v5403, %v5401
    %v5432 = vpack.c.bf16 %v5406, %v5404
    %v5433 = vpack.c.bf16 %v5407, %v5405
    %v5434 = vpack.c.bf16 %v5410, %v5408
    %v5435 = vpack.c.bf16 %v5411, %v5409
    %v5436 = vpack.c.bf16 %v5414, %v5412
    %v5437 = vpack.c.bf16 %v5415, %v5413
    %v5438 = vpack.c.bf16 %v5418, %v5416
    %v5439 = vpack.c.bf16 %v5419, %v5417
    %v5440 = vpack.c.bf16 %v5422, %v5420
    %v5441 = vpack.c.bf16 %v5423, %v5421
    %v5442 = vpack.c.bf16 %v5426, %v5424
    %v5443 = vpack.c.bf16 %v5427, %v5425
    %v5444 = vld [vmem:[#allocation26] sm:$0xf]
    %v5445 = vld [vmem:[#allocation26 + $0x4] sm:$0xf]
    %v5446 = vld [vmem:[#allocation26 + $0x8] sm:$0xf]
    %v5447 = vld [vmem:[#allocation26 + $0xc] sm:$0xf]
    %v5448 = vld [vmem:[#allocation26 + $0x10] sm:$0xf]
    %v5449 = vld [vmem:[#allocation26 + $0x14] sm:$0xf]
    %v5450 = vld [vmem:[#allocation26 + $0x18] sm:$0xf]
    %v5451 = vld [vmem:[#allocation26 + $0x1c] sm:$0xf]
    %v5452 = vld [vmem:[#allocation26 + $0x20] sm:$0xf]
    %v5453 = vld [vmem:[#allocation26 + $0x24] sm:$0xf]
    %v5454 = vld [vmem:[#allocation26 + $0x28] sm:$0xf]
    %v5455 = vld [vmem:[#allocation26 + $0x2c] sm:$0xf]
    %v5456 = vld [vmem:[#allocation26 + $0x30] sm:$0xf]
    %v5457 = vld [vmem:[#allocation26 + $0x34] sm:$0xf]
    %v5458 = vld [vmem:[#allocation26 + $0x38] sm:$0xf]
    %v5459 = vld [vmem:[#allocation26 + $0x3c] sm:$0xf]
    %v5460 = vld [vmem:[#allocation26 + $0x40] sm:$0xf]
    %v5461 = vld [vmem:[#allocation26 + $0x44] sm:$0xf]
    %v5462 = vld [vmem:[#allocation26 + $0x48] sm:$0xf]
    %v5463 = vld [vmem:[#allocation26 + $0x4c] sm:$0xf]
    %v5464 = vld [vmem:[#allocation26 + $0x50] sm:$0xf]
    %v5465 = vld [vmem:[#allocation26 + $0x54] sm:$0xf]
    %v5466 = vld [vmem:[#allocation26 + $0x58] sm:$0xf]
    %v5467 = vld [vmem:[#allocation26 + $0x5c] sm:$0xf]
    %v5468 = vld [vmem:[#allocation26 + $0x60] sm:$0xf]
    %v5469 = vld [vmem:[#allocation26 + $0x64] sm:$0xf]
    %v5470 = vld [vmem:[#allocation26 + $0x68] sm:$0xf]
    %v5471 = vld [vmem:[#allocation26 + $0x6c] sm:$0xf]
    %v5472 = vld [vmem:[#allocation26 + $0x70] sm:$0xf]
    %v5473 = vld [vmem:[#allocation26 + $0x74] sm:$0xf]
    %v5474 = vld [vmem:[#allocation26 + $0x78] sm:$0xf]
    %v5475 = vld [vmem:[#allocation26 + $0x7c] sm:$0xf]
    %v5476 = vld [vmem:[%s21] sm:$0x1]
    %v5478 = vperm.slane %v5476, 0
    %v5512 = vunpack.c.l.b16 %v5444
    %v5513 = vunpack.c.l.b16 %v5445
    %v5514 = vunpack.c.l.b16 %v5446
    %v5515 = vunpack.c.l.b16 %v5447
    %v5516 = vunpack.c.l.b16 %v5448
    %v5517 = vunpack.c.l.b16 %v5449
    %v5518 = vunpack.c.l.b16 %v5450
    %v5519 = vunpack.c.l.b16 %v5451
    %v5520 = vunpack.c.l.b16 %v5452
    %v5521 = vunpack.c.l.b16 %v5453
    %v5522 = vunpack.c.l.b16 %v5454
    %v5523 = vunpack.c.l.b16 %v5455
    %v5524 = vunpack.c.l.b16 %v5456
    %v5525 = vunpack.c.l.b16 %v5457
    %v5526 = vunpack.c.l.b16 %v5458
    %v5527 = vunpack.c.l.b16 %v5459
    %v5528 = vunpack.c.l.b16 %v5460
    %v5529 = vunpack.c.l.b16 %v5461
    %v5530 = vunpack.c.l.b16 %v5462
    %v5531 = vunpack.c.l.b16 %v5463
    %v5532 = vunpack.c.l.b16 %v5464
    %v5533 = vunpack.c.l.b16 %v5465
    %v5534 = vunpack.c.l.b16 %v5466
    %v5535 = vunpack.c.l.b16 %v5467
    %v5536 = vunpack.c.l.b16 %v5468
    %v5537 = vunpack.c.l.b16 %v5469
    %v5538 = vunpack.c.l.b16 %v5470
    %v5539 = vunpack.c.l.b16 %v5471
    %v5540 = vunpack.c.l.b16 %v5472
    %v5541 = vunpack.c.l.b16 %v5473
    %v5542 = vunpack.c.l.b16 %v5474
    %v5543 = vunpack.c.l.b16 %v5475
    %v5544 = vpack.c.b16 %v5513, %v5512
    %v5545 = vpack.c.b16 %v5515, %v5514
    %v5546 = vpack.c.b16 %v5517, %v5516
    %v5547 = vpack.c.b16 %v5519, %v5518
    %v5548 = vpack.c.b16 %v5521, %v5520
    %v5549 = vpack.c.b16 %v5523, %v5522
    %v5550 = vpack.c.b16 %v5525, %v5524
    %v5551 = vpack.c.b16 %v5527, %v5526
    %v5552 = vpack.c.b16 %v5529, %v5528
    %v5553 = vpack.c.b16 %v5531, %v5530
    %v5554 = vpack.c.b16 %v5533, %v5532
    %v5555 = vpack.c.b16 %v5535, %v5534
    %v5556 = vpack.c.b16 %v5537, %v5536
    %v5557 = vpack.c.b16 %v5539, %v5538
    %v5558 = vpack.c.b16 %v5541, %v5540
    %v5559 = vpack.c.b16 %v5543, %v5542
    %5576 = vmatpush.bf16.msra.mxu0 %v5551
    %5577 = vmatpush.bf16.msra.mxu0 %v5550
    %5578 = vmatpush.bf16.msra.mxu0 %v5549
    %5579 = vmatpush.bf16.msra.mxu0 %v5548
    %5580 = vmatpush.bf16.msra.mxu0 %v5547
    %5581 = vmatpush.bf16.msra.mxu0 %v5546
    %5582 = vmatpush.bf16.msra.mxu0 %v5545
    %5583 = vmatpush.bf16.msra.mxu0 %v5544
    %5584 = vmatmul.bf16.gmra.mxu0 %v5428
    %v5585 = vpop.f32.mrf.mxu0
    %v5586 = vadd.f32 %v5478, %v5585
    %v5587 = vpop.f32.mrf.mxu0
    %v5588 = vadd.f32 %v5478, %v5587
    %5589 = vmatmul.bf16.gmra.mxu0 %v5430
    %v5590 = vpop.f32.mrf.mxu0
    %v5591 = vadd.f32 %v5478, %v5590
    %v5592 = vpop.f32.mrf.mxu0
    %v5593 = vadd.f32 %v5478, %v5592
    %5594 = vmatmul.bf16.gmra.mxu0 %v5432
    %v5595 = vpop.f32.mrf.mxu0
    %v5596 = vadd.f32 %v5478, %v5595
    %v5597 = vpop.f32.mrf.mxu0
    %v5598 = vadd.f32 %v5478, %v5597
    %5599 = vmatmul.bf16.gmra.mxu0 %v5434
    %v5600 = vpop.f32.mrf.mxu0
    %v5601 = vadd.f32 %v5478, %v5600
    %v5602 = vpop.f32.mrf.mxu0
    %v5603 = vadd.f32 %v5478, %v5602
    %5604 = vmatmul.bf16.gmra.mxu0 %v5436
    %v5605 = vpop.f32.mrf.mxu0
    %v5606 = vadd.f32 %v5478, %v5605
    %v5607 = vpop.f32.mrf.mxu0
    %v5608 = vadd.f32 %v5478, %v5607
    %5609 = vmatmul.bf16.gmra.mxu0 %v5438
    %v5610 = vpop.f32.mrf.mxu0
    %v5611 = vadd.f32 %v5478, %v5610
    %v5612 = vpop.f32.mrf.mxu0
    %v5613 = vadd.f32 %v5478, %v5612
    %5614 = vmatmul.bf16.gmra.mxu0 %v5440
    %v5615 = vpop.f32.mrf.mxu0
    %v5616 = vadd.f32 %v5478, %v5615
    %v5617 = vpop.f32.mrf.mxu0
    %v5618 = vadd.f32 %v5478, %v5617
    %5619 = vmatmul.bf16.gmra.mxu0 %v5442
    %v5620 = vpop.f32.mrf.mxu0
    %v5621 = vadd.f32 %v5478, %v5620
    %v5622 = vpop.f32.mrf.mxu0
    %v5623 = vadd.f32 %v5478, %v5622
    %5624 = vdwg.mxu0
    %5625 = vmatpush.bf16.msra.mxu0 %v5559
    %5626 = vmatpush.bf16.msra.mxu0 %v5558
    %5627 = vmatpush.bf16.msra.mxu0 %v5557
    %5628 = vmatpush.bf16.msra.mxu0 %v5556
    %5629 = vmatpush.bf16.msra.mxu0 %v5555
    %5630 = vmatpush.bf16.msra.mxu0 %v5554
    %5631 = vmatpush.bf16.msra.mxu0 %v5553
    %5632 = vmatpush.bf16.msra.mxu0 %v5552
    %5633 = vmatmul.bf16.gmra.mxu0 %v5429
    %v5634 = vpop.f32.mrf.mxu0
    %v5635 = vadd.f32 %v5586, %v5634
    %v5636 = vpop.f32.mrf.mxu0
    %v5637 = vadd.f32 %v5588, %v5636
    %5638 = vmatmul.bf16.gmra.mxu0 %v5431
    %v5639 = vpop.f32.mrf.mxu0
    %v5640 = vadd.f32 %v5591, %v5639
    %v5641 = vpop.f32.mrf.mxu0
    %v5642 = vadd.f32 %v5593, %v5641
    %5643 = vmatmul.bf16.gmra.mxu0 %v5433
    %v5644 = vpop.f32.mrf.mxu0
    %v5645 = vadd.f32 %v5596, %v5644
    %v5646 = vpop.f32.mrf.mxu0
    %v5647 = vadd.f32 %v5598, %v5646
    %5648 = vmatmul.bf16.gmra.mxu0 %v5435
    %v5649 = vpop.f32.mrf.mxu0
    %v5650 = vadd.f32 %v5601, %v5649
    %v5651 = vpop.f32.mrf.mxu0
    %v5652 = vadd.f32 %v5603, %v5651
    %5653 = vmatmul.bf16.gmra.mxu0 %v5437
    %v5654 = vpop.f32.mrf.mxu0
    %v5655 = vadd.f32 %v5606, %v5654
    %v5656 = vpop.f32.mrf.mxu0
    %v5657 = vadd.f32 %v5608, %v5656
    %5658 = vmatmul.bf16.gmra.mxu0 %v5439
    %v5659 = vpop.f32.mrf.mxu0
    %v5660 = vadd.f32 %v5611, %v5659
    %v5661 = vpop.f32.mrf.mxu0
    %v5662 = vadd.f32 %v5613, %v5661
    %5663 = vmatmul.bf16.gmra.mxu0 %v5441
    %v5664 = vpop.f32.mrf.mxu0
    %v5665 = vadd.f32 %v5616, %v5664
    %v5666 = vpop.f32.mrf.mxu0
    %v5667 = vadd.f32 %v5618, %v5666
    %5668 = vmatmul.bf16.gmra.mxu0 %v5443
    %v5669 = vpop.f32.mrf.mxu0
    %v5670 = vadd.f32 %v5621, %v5669
    %v5671 = vpop.f32.mrf.mxu0
    %v5672 = vadd.f32 %v5623, %v5671
    %5673 = vdwg.mxu0
    %5675 = vset.pattern.permute.xlu0 0
    %5676 = vperm.xlu0 %5675, %v5172
    %v5677 = vpop.permute.xlu0 %5676
    %5680 = vset.pattern.permute.xlu0 0
    %5681 = vperm.xlu0 %5680, %v5173
    %v5682 = vpop.permute.xlu0 %5681
    %5685 = vset.pattern.permute.xlu0 0
    %5686 = vperm.xlu0 %5685, %v5174
    %v5687 = vpop.permute.xlu0 %5686
    %5690 = vset.pattern.permute.xlu0 0
    %5691 = vperm.xlu0 %5690, %v5175
    %v5692 = vpop.permute.xlu0 %5691
    %5695 = vset.pattern.permute.xlu0 0
    %5696 = vperm.xlu0 %5695, %v5176
    %v5697 = vpop.permute.xlu0 %5696
    %5700 = vset.pattern.permute.xlu0 0
    %5701 = vperm.xlu0 %5700, %v5177
    %v5702 = vpop.permute.xlu0 %5701
    %5705 = vset.pattern.permute.xlu0 0
    %5706 = vperm.xlu0 %5705, %v5178
    %v5707 = vpop.permute.xlu0 %5706
    %5710 = vset.pattern.permute.xlu0 0
    %5711 = vperm.xlu0 %5710, %v5179
    %v5712 = vpop.permute.xlu0 %5711
    %5715 = vset.pattern.permute.xlu0 0
    %5716 = vperm.xlu0 %5715, %v5180
    %v5717 = vpop.permute.xlu0 %5716
    %5720 = vset.pattern.permute.xlu0 0
    %5721 = vperm.xlu0 %5720, %v5181
    %v5722 = vpop.permute.xlu0 %5721
    %5725 = vset.pattern.permute.xlu0 0
    %5726 = vperm.xlu0 %5725, %v5182
    %v5727 = vpop.permute.xlu0 %5726
    %5730 = vset.pattern.permute.xlu0 0
    %5731 = vperm.xlu0 %5730, %v5183
    %v5732 = vpop.permute.xlu0 %5731
    %5735 = vset.pattern.permute.xlu0 0
    %5736 = vperm.xlu0 %5735, %v5184
    %v5737 = vpop.permute.xlu0 %5736
    %5740 = vset.pattern.permute.xlu0 0
    %5741 = vperm.xlu0 %5740, %v5185
    %v5742 = vpop.permute.xlu0 %5741
    %5745 = vset.pattern.permute.xlu0 0
    %5746 = vperm.xlu0 %5745, %v5186
    %v5747 = vpop.permute.xlu0 %5746
    %5750 = vset.pattern.permute.xlu0 0
    %5751 = vperm.xlu0 %5750, %v5187
    %v5752 = vpop.permute.xlu0 %5751
    %v5754 = vmul.f32 %v5677, %v5635
    %v5755 = vmul.f32 %v5682, %v5637
    %v5756 = vmul.f32 %v5687, %v5640
    %v5757 = vmul.f32 %v5692, %v5642
    %v5758 = vmul.f32 %v5697, %v5645
    %v5759 = vmul.f32 %v5702, %v5647
    %v5760 = vmul.f32 %v5707, %v5650
    %v5761 = vmul.f32 %v5712, %v5652
    %v5762 = vmul.f32 %v5717, %v5655
    %v5763 = vmul.f32 %v5722, %v5657
    %v5764 = vmul.f32 %v5727, %v5660
    %v5765 = vmul.f32 %v5732, %v5662
    %v5766 = vmul.f32 %v5737, %v5665
    %v5767 = vmul.f32 %v5742, %v5667
    %v5768 = vmul.f32 %v5747, %v5670
    %v5769 = vmul.f32 %v5752, %v5672
    %v5770 = vadd.f32 %v5754, 0.0
    %v5771 = vadd.f32 %v5755, 0.0
    %v5772 = vadd.f32 %v5756, 0.0
    %v5773 = vadd.f32 %v5757, 0.0
    %v5774 = vadd.f32 %v5758, 0.0
    %v5775 = vadd.f32 %v5759, 0.0
    %v5776 = vadd.f32 %v5760, 0.0
    %v5777 = vadd.f32 %v5761, 0.0
    %v5778 = vadd.f32 %v5762, 0.0
    %v5779 = vadd.f32 %v5763, 0.0
    %v5780 = vadd.f32 %v5764, 0.0
    %v5781 = vadd.f32 %v5765, 0.0
    %v5782 = vadd.f32 %v5766, 0.0
    %v5783 = vadd.f32 %v5767, 0.0
    %v5784 = vadd.f32 %v5768, 0.0
    %v5785 = vadd.f32 %v5769, 0.0
    %s5786 = scalar_lea.vmem [#allocation24], 128
    %v5787 = vld [vmem:[%s5786] sm:$0xff]
    %v5788 = vld [vmem:[%s5786 + $0x8] sm:$0xff]
    %v5789 = vld [vmem:[%s5786 + $0x10] sm:$0xff]
    %v5790 = vld [vmem:[%s5786 + $0x18] sm:$0xff]
    %v5791 = vld [vmem:[%s5786 + $0x20] sm:$0xff]
    %v5792 = vld [vmem:[%s5786 + $0x28] sm:$0xff]
    %v5793 = vld [vmem:[%s5786 + $0x30] sm:$0xff]
    %v5794 = vld [vmem:[%s5786 + $0x38] sm:$0xff]
    %v5795 = vld [vmem:[%s5786 + $0x40] sm:$0xff]
    %v5796 = vld [vmem:[%s5786 + $0x48] sm:$0xff]
    %v5797 = vld [vmem:[%s5786 + $0x50] sm:$0xff]
    %v5798 = vld [vmem:[%s5786 + $0x58] sm:$0xff]
    %v5799 = vld [vmem:[%s5786 + $0x60] sm:$0xff]
    %v5800 = vld [vmem:[%s5786 + $0x68] sm:$0xff]
    %v5801 = vld [vmem:[%s5786 + $0x70] sm:$0xff]
    %v5802 = vld [vmem:[%s5786 + $0x78] sm:$0xff]
    %s5803 = scalar_lea.vmem %s19, 2
    %v5804 = vld [vmem:[%s5803] sm:$0x3]
    %v5806 = vperm.slane %v5804, 0
    %v5807 = vperm.slane %v5804, 1
    %v5826 = vunpack.c.l.b16 %v5787
    %v5827 = vunpack.c.h.b16 %v5787
    %v5828 = vunpack.c.l.b16 %v5788
    %v5829 = vunpack.c.h.b16 %v5788
    %v5830 = vunpack.c.l.b16 %v5789
    %v5831 = vunpack.c.h.b16 %v5789
    %v5832 = vunpack.c.l.b16 %v5790
    %v5833 = vunpack.c.h.b16 %v5790
    %v5834 = vunpack.c.l.b16 %v5791
    %v5835 = vunpack.c.h.b16 %v5791
    %v5836 = vunpack.c.l.b16 %v5792
    %v5837 = vunpack.c.h.b16 %v5792
    %v5838 = vunpack.c.l.b16 %v5793
    %v5839 = vunpack.c.h.b16 %v5793
    %v5840 = vunpack.c.l.b16 %v5794
    %v5841 = vunpack.c.h.b16 %v5794
    %v5842 = vunpack.c.l.b16 %v5795
    %v5843 = vunpack.c.h.b16 %v5795
    %v5844 = vunpack.c.l.b16 %v5796
    %v5845 = vunpack.c.h.b16 %v5796
    %v5846 = vunpack.c.l.b16 %v5797
    %v5847 = vunpack.c.h.b16 %v5797
    %v5848 = vunpack.c.l.b16 %v5798
    %v5849 = vunpack.c.h.b16 %v5798
    %v5850 = vunpack.c.l.b16 %v5799
    %v5851 = vunpack.c.h.b16 %v5799
    %v5852 = vunpack.c.l.b16 %v5800
    %v5853 = vunpack.c.h.b16 %v5800
    %v5854 = vunpack.c.l.b16 %v5801
    %v5855 = vunpack.c.h.b16 %v5801
    %v5856 = vunpack.c.l.b16 %v5802
    %v5857 = vunpack.c.h.b16 %v5802
    %v5858 = vpack.c.b16 %v5828, %v5826
    %v5859 = vpack.c.b16 %v5829, %v5827
    %v5860 = vpack.c.b16 %v5832, %v5830
    %v5861 = vpack.c.b16 %v5833, %v5831
    %v5862 = vpack.c.b16 %v5836, %v5834
    %v5863 = vpack.c.b16 %v5837, %v5835
    %v5864 = vpack.c.b16 %v5840, %v5838
    %v5865 = vpack.c.b16 %v5841, %v5839
    %v5866 = vpack.c.b16 %v5844, %v5842
    %v5867 = vpack.c.b16 %v5845, %v5843
    %v5868 = vpack.c.b16 %v5848, %v5846
    %v5869 = vpack.c.b16 %v5849, %v5847
    %v5870 = vpack.c.b16 %v5852, %v5850
    %v5871 = vpack.c.b16 %v5853, %v5851
    %v5872 = vpack.c.b16 %v5856, %v5854
    %v5873 = vpack.c.b16 %v5857, %v5855
    %5890 = vmatpush.bf16.msra.mxu0 %v5872
    %5891 = vmatpush.bf16.msra.mxu0 %v5870
    %5892 = vmatpush.bf16.msra.mxu0 %v5868
    %5893 = vmatpush.bf16.msra.mxu0 %v5866
    %5894 = vmatpush.bf16.msra.mxu0 %v5864
    %5895 = vmatpush.bf16.msra.mxu0 %v5862
    %5896 = vmatpush.bf16.msra.mxu0 %v5860
    %5897 = vmatpush.bf16.msra.mxu0 %v5858
    %5898 = vmatmul.bf16.gmra.mxu0 %v5188
    %v5899 = vpop.f32.mrf.mxu0
    %v5900 = vadd.f32 %v5806, %v5899
    %v5901 = vpop.f32.mrf.mxu0
    %v5902 = vadd.f32 %v5806, %v5901
    %5903 = vmatmul.bf16.gmra.mxu0 %v5189
    %v5904 = vpop.f32.mrf.mxu0
    %v5905 = vadd.f32 %v5806, %v5904
    %v5906 = vpop.f32.mrf.mxu0
    %v5907 = vadd.f32 %v5806, %v5906
    %5908 = vmatmul.bf16.gmra.mxu0 %v5190
    %v5909 = vpop.f32.mrf.mxu0
    %v5910 = vadd.f32 %v5806, %v5909
    %v5911 = vpop.f32.mrf.mxu0
    %v5912 = vadd.f32 %v5806, %v5911
    %5913 = vmatmul.bf16.gmra.mxu0 %v5191
    %v5914 = vpop.f32.mrf.mxu0
    %v5915 = vadd.f32 %v5806, %v5914
    %v5916 = vpop.f32.mrf.mxu0
    %v5917 = vadd.f32 %v5806, %v5916
    %5918 = vmatmul.bf16.gmra.mxu0 %v5192
    %v5919 = vpop.f32.mrf.mxu0
    %v5920 = vadd.f32 %v5806, %v5919
    %v5921 = vpop.f32.mrf.mxu0
    %v5922 = vadd.f32 %v5806, %v5921
    %5923 = vmatmul.bf16.gmra.mxu0 %v5193
    %v5924 = vpop.f32.mrf.mxu0
    %v5925 = vadd.f32 %v5806, %v5924
    %v5926 = vpop.f32.mrf.mxu0
    %v5927 = vadd.f32 %v5806, %v5926
    %5928 = vmatmul.bf16.gmra.mxu0 %v5194
    %v5929 = vpop.f32.mrf.mxu0
    %v5930 = vadd.f32 %v5806, %v5929
    %v5931 = vpop.f32.mrf.mxu0
    %v5932 = vadd.f32 %v5806, %v5931
    %5933 = vmatmul.bf16.gmra.mxu0 %v5195
    %v5934 = vpop.f32.mrf.mxu0
    %v5935 = vadd.f32 %v5806, %v5934
    %v5936 = vpop.f32.mrf.mxu0
    %v5937 = vadd.f32 %v5806, %v5936
    %5938 = vdwg.mxu0
    %5939 = vmatpush.bf16.msra.mxu0 %v5873
    %5940 = vmatpush.bf16.msra.mxu0 %v5871
    %5941 = vmatpush.bf16.msra.mxu0 %v5869
    %5942 = vmatpush.bf16.msra.mxu0 %v5867
    %5943 = vmatpush.bf16.msra.mxu0 %v5865
    %5944 = vmatpush.bf16.msra.mxu0 %v5863
    %5945 = vmatpush.bf16.msra.mxu0 %v5861
    %5946 = vmatpush.bf16.msra.mxu0 %v5859
    %5947 = vmatmul.bf16.gmra.mxu0 %v5188
    %v5948 = vpop.f32.mrf.mxu0
    %v5949 = vadd.f32 %v5807, %v5948
    %v5950 = vpop.f32.mrf.mxu0
    %v5951 = vadd.f32 %v5807, %v5950
    %5952 = vmatmul.bf16.gmra.mxu0 %v5189
    %v5953 = vpop.f32.mrf.mxu0
    %v5954 = vadd.f32 %v5807, %v5953
    %v5955 = vpop.f32.mrf.mxu0
    %v5956 = vadd.f32 %v5807, %v5955
    %5957 = vmatmul.bf16.gmra.mxu0 %v5190
    %v5958 = vpop.f32.mrf.mxu0
    %v5959 = vadd.f32 %v5807, %v5958
    %v5960 = vpop.f32.mrf.mxu0
    %v5961 = vadd.f32 %v5807, %v5960
    %5962 = vmatmul.bf16.gmra.mxu0 %v5191
    %v5963 = vpop.f32.mrf.mxu0
    %v5964 = vadd.f32 %v5807, %v5963
    %v5965 = vpop.f32.mrf.mxu0
    %v5966 = vadd.f32 %v5807, %v5965
    %5967 = vmatmul.bf16.gmra.mxu0 %v5192
    %v5968 = vpop.f32.mrf.mxu0
    %v5969 = vadd.f32 %v5807, %v5968
    %v5970 = vpop.f32.mrf.mxu0
    %v5971 = vadd.f32 %v5807, %v5970
    %5972 = vmatmul.bf16.gmra.mxu0 %v5193
    %v5973 = vpop.f32.mrf.mxu0
    %v5974 = vadd.f32 %v5807, %v5973
    %v5975 = vpop.f32.mrf.mxu0
    %v5976 = vadd.f32 %v5807, %v5975
    %5977 = vmatmul.bf16.gmra.mxu0 %v5194
    %v5978 = vpop.f32.mrf.mxu0
    %v5979 = vadd.f32 %v5807, %v5978
    %v5980 = vpop.f32.mrf.mxu0
    %v5981 = vadd.f32 %v5807, %v5980
    %5982 = vmatmul.bf16.gmra.mxu0 %v5195
    %v5983 = vpop.f32.mrf.mxu0
    %v5984 = vadd.f32 %v5807, %v5983
    %v5985 = vpop.f32.mrf.mxu0
    %v5986 = vadd.f32 %v5807, %v5985
    %5987 = vdwg.mxu0
    %v5988 = vmax.f32 %v5900, 0.0
    %v5989 = vmax.f32 %v5949, 0.0
    %v5990 = vmax.f32 %v5902, 0.0
    %v5991 = vmax.f32 %v5951, 0.0
    %v5992 = vmax.f32 %v5905, 0.0
    %v5993 = vmax.f32 %v5954, 0.0
    %v5994 = vmax.f32 %v5907, 0.0
    %v5995 = vmax.f32 %v5956, 0.0
    %v5996 = vmax.f32 %v5910, 0.0
    %v5997 = vmax.f32 %v5959, 0.0
    %v5998 = vmax.f32 %v5912, 0.0
    %v5999 = vmax.f32 %v5961, 0.0
    %v6000 = vmax.f32 %v5915, 0.0
    %v6001 = vmax.f32 %v5964, 0.0
    %v6002 = vmax.f32 %v5917, 0.0
    %v6003 = vmax.f32 %v5966, 0.0
    %v6004 = vmax.f32 %v5920, 0.0
    %v6005 = vmax.f32 %v5969, 0.0
    %v6006 = vmax.f32 %v5922, 0.0
    %v6007 = vmax.f32 %v5971, 0.0
    %v6008 = vmax.f32 %v5925, 0.0
    %v6009 = vmax.f32 %v5974, 0.0
    %v6010 = vmax.f32 %v5927, 0.0
    %v6011 = vmax.f32 %v5976, 0.0
    %v6012 = vmax.f32 %v5930, 0.0
    %v6013 = vmax.f32 %v5979, 0.0
    %v6014 = vmax.f32 %v5932, 0.0
    %v6015 = vmax.f32 %v5981, 0.0
    %v6016 = vmax.f32 %v5935, 0.0
    %v6017 = vmax.f32 %v5984, 0.0
    %v6018 = vmax.f32 %v5937, 0.0
    %v6019 = vmax.f32 %v5986, 0.0
    %v6020 = vpack.c.bf16 %v5990, %v5988
    %v6021 = vpack.c.bf16 %v5991, %v5989
    %v6022 = vpack.c.bf16 %v5994, %v5992
    %v6023 = vpack.c.bf16 %v5995, %v5993
    %v6024 = vpack.c.bf16 %v5998, %v5996
    %v6025 = vpack.c.bf16 %v5999, %v5997
    %v6026 = vpack.c.bf16 %v6002, %v6000
    %v6027 = vpack.c.bf16 %v6003, %v6001
    %v6028 = vpack.c.bf16 %v6006, %v6004
    %v6029 = vpack.c.bf16 %v6007, %v6005
    %v6030 = vpack.c.bf16 %v6010, %v6008
    %v6031 = vpack.c.bf16 %v6011, %v6009
    %v6032 = vpack.c.bf16 %v6014, %v6012
    %v6033 = vpack.c.bf16 %v6015, %v6013
    %v6034 = vpack.c.bf16 %v6018, %v6016
    %v6035 = vpack.c.bf16 %v6019, %v6017
    %s6036 = scalar_lea.vmem [#allocation26], 128
    %v6037 = vld [vmem:[%s6036] sm:$0xf]
    %v6038 = vld [vmem:[%s6036 + $0x4] sm:$0xf]
    %v6039 = vld [vmem:[%s6036 + $0x8] sm:$0xf]
    %v6040 = vld [vmem:[%s6036 + $0xc] sm:$0xf]
    %v6041 = vld [vmem:[%s6036 + $0x10] sm:$0xf]
    %v6042 = vld [vmem:[%s6036 + $0x14] sm:$0xf]
    %v6043 = vld [vmem:[%s6036 + $0x18] sm:$0xf]
    %v6044 = vld [vmem:[%s6036 + $0x1c] sm:$0xf]
    %v6045 = vld [vmem:[%s6036 + $0x20] sm:$0xf]
    %v6046 = vld [vmem:[%s6036 + $0x24] sm:$0xf]
    %v6047 = vld [vmem:[%s6036 + $0x28] sm:$0xf]
    %v6048 = vld [vmem:[%s6036 + $0x2c] sm:$0xf]
    %v6049 = vld [vmem:[%s6036 + $0x30] sm:$0xf]
    %v6050 = vld [vmem:[%s6036 + $0x34] sm:$0xf]
    %v6051 = vld [vmem:[%s6036 + $0x38] sm:$0xf]
    %v6052 = vld [vmem:[%s6036 + $0x3c] sm:$0xf]
    %v6053 = vld [vmem:[%s6036 + $0x40] sm:$0xf]
    %v6054 = vld [vmem:[%s6036 + $0x44] sm:$0xf]
    %v6055 = vld [vmem:[%s6036 + $0x48] sm:$0xf]
    %v6056 = vld [vmem:[%s6036 + $0x4c] sm:$0xf]
    %v6057 = vld [vmem:[%s6036 + $0x50] sm:$0xf]
    %v6058 = vld [vmem:[%s6036 + $0x54] sm:$0xf]
    %v6059 = vld [vmem:[%s6036 + $0x58] sm:$0xf]
    %v6060 = vld [vmem:[%s6036 + $0x5c] sm:$0xf]
    %v6061 = vld [vmem:[%s6036 + $0x60] sm:$0xf]
    %v6062 = vld [vmem:[%s6036 + $0x64] sm:$0xf]
    %v6063 = vld [vmem:[%s6036 + $0x68] sm:$0xf]
    %v6064 = vld [vmem:[%s6036 + $0x6c] sm:$0xf]
    %v6065 = vld [vmem:[%s6036 + $0x70] sm:$0xf]
    %v6066 = vld [vmem:[%s6036 + $0x74] sm:$0xf]
    %v6067 = vld [vmem:[%s6036 + $0x78] sm:$0xf]
    %v6068 = vld [vmem:[%s6036 + $0x7c] sm:$0xf]
    %s6069 = scalar_lea.vmem %s21, 1
    %v6070 = vld [vmem:[%s6069] sm:$0x1]
    %v6072 = vperm.slane %v6070, 0
    %v6106 = vunpack.c.l.b16 %v6037
    %v6107 = vunpack.c.l.b16 %v6038
    %v6108 = vunpack.c.l.b16 %v6039
    %v6109 = vunpack.c.l.b16 %v6040
    %v6110 = vunpack.c.l.b16 %v6041
    %v6111 = vunpack.c.l.b16 %v6042
    %v6112 = vunpack.c.l.b16 %v6043
    %v6113 = vunpack.c.l.b16 %v6044
    %v6114 = vunpack.c.l.b16 %v6045
    %v6115 = vunpack.c.l.b16 %v6046
    %v6116 = vunpack.c.l.b16 %v6047
    %v6117 = vunpack.c.l.b16 %v6048
    %v6118 = vunpack.c.l.b16 %v6049
    %v6119 = vunpack.c.l.b16 %v6050
    %v6120 = vunpack.c.l.b16 %v6051
    %v6121 = vunpack.c.l.b16 %v6052
    %v6122 = vunpack.c.l.b16 %v6053
    %v6123 = vunpack.c.l.b16 %v6054
    %v6124 = vunpack.c.l.b16 %v6055
    %v6125 = vunpack.c.l.b16 %v6056
    %v6126 = vunpack.c.l.b16 %v6057
    %v6127 = vunpack.c.l.b16 %v6058
    %v6128 = vunpack.c.l.b16 %v6059
    %v6129 = vunpack.c.l.b16 %v6060
    %v6130 = vunpack.c.l.b16 %v6061
    %v6131 = vunpack.c.l.b16 %v6062
    %v6132 = vunpack.c.l.b16 %v6063
    %v6133 = vunpack.c.l.b16 %v6064
    %v6134 = vunpack.c.l.b16 %v6065
    %v6135 = vunpack.c.l.b16 %v6066
    %v6136 = vunpack.c.l.b16 %v6067
    %v6137 = vunpack.c.l.b16 %v6068
    %v6138 = vpack.c.b16 %v6107, %v6106
    %v6139 = vpack.c.b16 %v6109, %v6108
    %v6140 = vpack.c.b16 %v6111, %v6110
    %v6141 = vpack.c.b16 %v6113, %v6112
    %v6142 = vpack.c.b16 %v6115, %v6114
    %v6143 = vpack.c.b16 %v6117, %v6116
    %v6144 = vpack.c.b16 %v6119, %v6118
    %v6145 = vpack.c.b16 %v6121, %v6120
    %v6146 = vpack.c.b16 %v6123, %v6122
    %v6147 = vpack.c.b16 %v6125, %v6124
    %v6148 = vpack.c.b16 %v6127, %v6126
    %v6149 = vpack.c.b16 %v6129, %v6128
    %v6150 = vpack.c.b16 %v6131, %v6130
    %v6151 = vpack.c.b16 %v6133, %v6132
    %v6152 = vpack.c.b16 %v6135, %v6134
    %v6153 = vpack.c.b16 %v6137, %v6136
    %6170 = vmatpush.bf16.msra.mxu0 %v6145
    %6171 = vmatpush.bf16.msra.mxu0 %v6144
    %6172 = vmatpush.bf16.msra.mxu0 %v6143
    %6173 = vmatpush.bf16.msra.mxu0 %v6142
    %6174 = vmatpush.bf16.msra.mxu0 %v6141
    %6175 = vmatpush.bf16.msra.mxu0 %v6140
    %6176 = vmatpush.bf16.msra.mxu0 %v6139
    %6177 = vmatpush.bf16.msra.mxu0 %v6138
    %6178 = vmatmul.bf16.gmra.mxu0 %v6020
    %v6179 = vpop.f32.mrf.mxu0
    %v6180 = vadd.f32 %v6072, %v6179
    %v6181 = vpop.f32.mrf.mxu0
    %v6182 = vadd.f32 %v6072, %v6181
    %6183 = vmatmul.bf16.gmra.mxu0 %v6022
    %v6184 = vpop.f32.mrf.mxu0
    %v6185 = vadd.f32 %v6072, %v6184
    %v6186 = vpop.f32.mrf.mxu0
    %v6187 = vadd.f32 %v6072, %v6186
    %6188 = vmatmul.bf16.gmra.mxu0 %v6024
    %v6189 = vpop.f32.mrf.mxu0
    %v6190 = vadd.f32 %v6072, %v6189
    %v6191 = vpop.f32.mrf.mxu0
    %v6192 = vadd.f32 %v6072, %v6191
    %6193 = vmatmul.bf16.gmra.mxu0 %v6026
    %v6194 = vpop.f32.mrf.mxu0
    %v6195 = vadd.f32 %v6072, %v6194
    %v6196 = vpop.f32.mrf.mxu0
    %v6197 = vadd.f32 %v6072, %v6196
    %6198 = vmatmul.bf16.gmra.mxu0 %v6028
    %v6199 = vpop.f32.mrf.mxu0
    %v6200 = vadd.f32 %v6072, %v6199
    %v6201 = vpop.f32.mrf.mxu0
    %v6202 = vadd.f32 %v6072, %v6201
    %6203 = vmatmul.bf16.gmra.mxu0 %v6030
    %v6204 = vpop.f32.mrf.mxu0
    %v6205 = vadd.f32 %v6072, %v6204
    %v6206 = vpop.f32.mrf.mxu0
    %v6207 = vadd.f32 %v6072, %v6206
    %6208 = vmatmul.bf16.gmra.mxu0 %v6032
    %v6209 = vpop.f32.mrf.mxu0
    %v6210 = vadd.f32 %v6072, %v6209
    %v6211 = vpop.f32.mrf.mxu0
    %v6212 = vadd.f32 %v6072, %v6211
    %6213 = vmatmul.bf16.gmra.mxu0 %v6034
    %v6214 = vpop.f32.mrf.mxu0
    %v6215 = vadd.f32 %v6072, %v6214
    %v6216 = vpop.f32.mrf.mxu0
    %v6217 = vadd.f32 %v6072, %v6216
    %6218 = vdwg.mxu0
    %6219 = vmatpush.bf16.msra.mxu0 %v6153
    %6220 = vmatpush.bf16.msra.mxu0 %v6152
    %6221 = vmatpush.bf16.msra.mxu0 %v6151
    %6222 = vmatpush.bf16.msra.mxu0 %v6150
    %6223 = vmatpush.bf16.msra.mxu0 %v6149
    %6224 = vmatpush.bf16.msra.mxu0 %v6148
    %6225 = vmatpush.bf16.msra.mxu0 %v6147
    %6226 = vmatpush.bf16.msra.mxu0 %v6146
    %6227 = vmatmul.bf16.gmra.mxu0 %v6021
    %v6228 = vpop.f32.mrf.mxu0
    %v6229 = vadd.f32 %v6180, %v6228
    %v6230 = vpop.f32.mrf.mxu0
    %v6231 = vadd.f32 %v6182, %v6230
    %6232 = vmatmul.bf16.gmra.mxu0 %v6023
    %v6233 = vpop.f32.mrf.mxu0
    %v6234 = vadd.f32 %v6185, %v6233
    %v6235 = vpop.f32.mrf.mxu0
    %v6236 = vadd.f32 %v6187, %v6235
    %6237 = vmatmul.bf16.gmra.mxu0 %v6025
    %v6238 = vpop.f32.mrf.mxu0
    %v6239 = vadd.f32 %v6190, %v6238
    %v6240 = vpop.f32.mrf.mxu0
    %v6241 = vadd.f32 %v6192, %v6240
    %6242 = vmatmul.bf16.gmra.mxu0 %v6027
    %v6243 = vpop.f32.mrf.mxu0
    %v6244 = vadd.f32 %v6195, %v6243
    %v6245 = vpop.f32.mrf.mxu0
    %v6246 = vadd.f32 %v6197, %v6245
    %6247 = vmatmul.bf16.gmra.mxu0 %v6029
    %v6248 = vpop.f32.mrf.mxu0
    %v6249 = vadd.f32 %v6200, %v6248
    %v6250 = vpop.f32.mrf.mxu0
    %v6251 = vadd.f32 %v6202, %v6250
    %6252 = vmatmul.bf16.gmra.mxu0 %v6031
    %v6253 = vpop.f32.mrf.mxu0
    %v6254 = vadd.f32 %v6205, %v6253
    %v6255 = vpop.f32.mrf.mxu0
    %v6256 = vadd.f32 %v6207, %v6255
    %6257 = vmatmul.bf16.gmra.mxu0 %v6033
    %v6258 = vpop.f32.mrf.mxu0
    %v6259 = vadd.f32 %v6210, %v6258
    %v6260 = vpop.f32.mrf.mxu0
    %v6261 = vadd.f32 %v6212, %v6260
    %6262 = vmatmul.bf16.gmra.mxu0 %v6035
    %v6263 = vpop.f32.mrf.mxu0
    %v6264 = vadd.f32 %v6215, %v6263
    %v6265 = vpop.f32.mrf.mxu0
    %v6266 = vadd.f32 %v6217, %v6265
    %6267 = vdwg.mxu0
    %6268 = vset.pattern.permute.xlu0 1
    %6269 = vperm.xlu0 %6268, %v5172
    %v6270 = vpop.permute.xlu0 %6269
    %6272 = vset.pattern.permute.xlu0 1
    %6273 = vperm.xlu0 %6272, %v5173
    %v6274 = vpop.permute.xlu0 %6273
    %6276 = vset.pattern.permute.xlu0 1
    %6277 = vperm.xlu0 %6276, %v5174
    %v6278 = vpop.permute.xlu0 %6277
    %6280 = vset.pattern.permute.xlu0 1
    %6281 = vperm.xlu0 %6280, %v5175
    %v6282 = vpop.permute.xlu0 %6281
    %6284 = vset.pattern.permute.xlu0 1
    %6285 = vperm.xlu0 %6284, %v5176
    %v6286 = vpop.permute.xlu0 %6285
    %6288 = vset.pattern.permute.xlu0 1
    %6289 = vperm.xlu0 %6288, %v5177
    %v6290 = vpop.permute.xlu0 %6289
    %6292 = vset.pattern.permute.xlu0 1
    %6293 = vperm.xlu0 %6292, %v5178
    %v6294 = vpop.permute.xlu0 %6293
    %6296 = vset.pattern.permute.xlu0 1
    %6297 = vperm.xlu0 %6296, %v5179
    %v6298 = vpop.permute.xlu0 %6297
    %6300 = vset.pattern.permute.xlu0 1
    %6301 = vperm.xlu0 %6300, %v5180
    %v6302 = vpop.permute.xlu0 %6301
    %6304 = vset.pattern.permute.xlu0 1
    %6305 = vperm.xlu0 %6304, %v5181
    %v6306 = vpop.permute.xlu0 %6305
    %6308 = vset.pattern.permute.xlu0 1
    %6309 = vperm.xlu0 %6308, %v5182
    %v6310 = vpop.permute.xlu0 %6309
    %6312 = vset.pattern.permute.xlu0 1
    %6313 = vperm.xlu0 %6312, %v5183
    %v6314 = vpop.permute.xlu0 %6313
    %6316 = vset.pattern.permute.xlu0 1
    %6317 = vperm.xlu0 %6316, %v5184
    %v6318 = vpop.permute.xlu0 %6317
    %6320 = vset.pattern.permute.xlu0 1
    %6321 = vperm.xlu0 %6320, %v5185
    %v6322 = vpop.permute.xlu0 %6321
    %6324 = vset.pattern.permute.xlu0 1
    %6325 = vperm.xlu0 %6324, %v5186
    %v6326 = vpop.permute.xlu0 %6325
    %6328 = vset.pattern.permute.xlu0 1
    %6329 = vperm.xlu0 %6328, %v5187
    %v6330 = vpop.permute.xlu0 %6329
    %v6332 = vmul.f32 %v6270, %v6229
    %v6333 = vmul.f32 %v6274, %v6231
    %v6334 = vmul.f32 %v6278, %v6234
    %v6335 = vmul.f32 %v6282, %v6236
    %v6336 = vmul.f32 %v6286, %v6239
    %v6337 = vmul.f32 %v6290, %v6241
    %v6338 = vmul.f32 %v6294, %v6244
    %v6339 = vmul.f32 %v6298, %v6246
    %v6340 = vmul.f32 %v6302, %v6249
    %v6341 = vmul.f32 %v6306, %v6251
    %v6342 = vmul.f32 %v6310, %v6254
    %v6343 = vmul.f32 %v6314, %v6256
    %v6344 = vmul.f32 %v6318, %v6259
    %v6345 = vmul.f32 %v6322, %v6261
    %v6346 = vmul.f32 %v6326, %v6264
    %v6347 = vmul.f32 %v6330, %v6266
    %v6348 = vadd.f32 %v5770, %v6332
    %v6349 = vadd.f32 %v5771, %v6333
    %v6350 = vadd.f32 %v5772, %v6334
    %v6351 = vadd.f32 %v5773, %v6335
    %v6352 = vadd.f32 %v5774, %v6336
    %v6353 = vadd.f32 %v5775, %v6337
    %v6354 = vadd.f32 %v5776, %v6338
    %v6355 = vadd.f32 %v5777, %v6339
    %v6356 = vadd.f32 %v5778, %v6340
    %v6357 = vadd.f32 %v5779, %v6341
    %v6358 = vadd.f32 %v5780, %v6342
    %v6359 = vadd.f32 %v5781, %v6343
    %v6360 = vadd.f32 %v5782, %v6344
    %v6361 = vadd.f32 %v5783, %v6345
    %v6362 = vadd.f32 %v5784, %v6346
    %v6363 = vadd.f32 %v5785, %v6347
    %s6364 = scalar_lea.vmem [#allocation24], 256
    %v6365 = vld [vmem:[%s6364] sm:$0xff]
    %v6366 = vld [vmem:[%s6364 + $0x8] sm:$0xff]
    %v6367 = vld [vmem:[%s6364 + $0x10] sm:$0xff]
    %v6368 = vld [vmem:[%s6364 + $0x18] sm:$0xff]
    %v6369 = vld [vmem:[%s6364 + $0x20] sm:$0xff]
    %v6370 = vld [vmem:[%s6364 + $0x28] sm:$0xff]
    %v6371 = vld [vmem:[%s6364 + $0x30] sm:$0xff]
    %v6372 = vld [vmem:[%s6364 + $0x38] sm:$0xff]
    %v6373 = vld [vmem:[%s6364 + $0x40] sm:$0xff]
    %v6374 = vld [vmem:[%s6364 + $0x48] sm:$0xff]
    %v6375 = vld [vmem:[%s6364 + $0x50] sm:$0xff]
    %v6376 = vld [vmem:[%s6364 + $0x58] sm:$0xff]
    %v6377 = vld [vmem:[%s6364 + $0x60] sm:$0xff]
    %v6378 = vld [vmem:[%s6364 + $0x68] sm:$0xff]
    %v6379 = vld [vmem:[%s6364 + $0x70] sm:$0xff]
    %v6380 = vld [vmem:[%s6364 + $0x78] sm:$0xff]
    %s6381 = scalar_lea.vmem %s19, 4
    %v6382 = vld [vmem:[%s6381] sm:$0x3]
    %v6384 = vperm.slane %v6382, 0
    %v6385 = vperm.slane %v6382, 1
    %v6404 = vunpack.c.l.b16 %v6365
    %v6405 = vunpack.c.h.b16 %v6365
    %v6406 = vunpack.c.l.b16 %v6366
    %v6407 = vunpack.c.h.b16 %v6366
    %v6408 = vunpack.c.l.b16 %v6367
    %v6409 = vunpack.c.h.b16 %v6367
    %v6410 = vunpack.c.l.b16 %v6368
    %v6411 = vunpack.c.h.b16 %v6368
    %v6412 = vunpack.c.l.b16 %v6369
    %v6413 = vunpack.c.h.b16 %v6369
    %v6414 = vunpack.c.l.b16 %v6370
    %v6415 = vunpack.c.h.b16 %v6370
    %v6416 = vunpack.c.l.b16 %v6371
    %v6417 = vunpack.c.h.b16 %v6371
    %v6418 = vunpack.c.l.b16 %v6372
    %v6419 = vunpack.c.h.b16 %v6372
    %v6420 = vunpack.c.l.b16 %v6373
    %v6421 = vunpack.c.h.b16 %v6373
    %v6422 = vunpack.c.l.b16 %v6374
    %v6423 = vunpack.c.h.b16 %v6374
    %v6424 = vunpack.c.l.b16 %v6375
    %v6425 = vunpack.c.h.b16 %v6375
    %v6426 = vunpack.c.l.b16 %v6376
    %v6427 = vunpack.c.h.b16 %v6376
    %v6428 = vunpack.c.l.b16 %v6377
    %v6429 = vunpack.c.h.b16 %v6377
    %v6430 = vunpack.c.l.b16 %v6378
    %v6431 = vunpack.c.h.b16 %v6378
    %v6432 = vunpack.c.l.b16 %v6379
    %v6433 = vunpack.c.h.b16 %v6379
    %v6434 = vunpack.c.l.b16 %v6380
    %v6435 = vunpack.c.h.b16 %v6380
    %v6436 = vpack.c.b16 %v6406, %v6404
    %v6437 = vpack.c.b16 %v6407, %v6405
    %v6438 = vpack.c.b16 %v6410, %v6408
    %v6439 = vpack.c.b16 %v6411, %v6409
    %v6440 = vpack.c.b16 %v6414, %v6412
    %v6441 = vpack.c.b16 %v6415, %v6413
    %v6442 = vpack.c.b16 %v6418, %v6416
    %v6443 = vpack.c.b16 %v6419, %v6417
    %v6444 = vpack.c.b16 %v6422, %v6420
    %v6445 = vpack.c.b16 %v6423, %v6421
    %v6446 = vpack.c.b16 %v6426, %v6424
    %v6447 = vpack.c.b16 %v6427, %v6425
    %v6448 = vpack.c.b16 %v6430, %v6428
    %v6449 = vpack.c.b16 %v6431, %v6429
    %v6450 = vpack.c.b16 %v6434, %v6432
    %v6451 = vpack.c.b16 %v6435, %v6433
    %6468 = vmatpush.bf16.msra.mxu0 %v6450
    %6469 = vmatpush.bf16.msra.mxu0 %v6448
    %6470 = vmatpush.bf16.msra.mxu0 %v6446
    %6471 = vmatpush.bf16.msra.mxu0 %v6444
    %6472 = vmatpush.bf16.msra.mxu0 %v6442
    %6473 = vmatpush.bf16.msra.mxu0 %v6440
    %6474 = vmatpush.bf16.msra.mxu0 %v6438
    %6475 = vmatpush.bf16.msra.mxu0 %v6436
    %6476 = vmatmul.bf16.gmra.mxu0 %v5188
    %v6477 = vpop.f32.mrf.mxu0
    %v6478 = vadd.f32 %v6384, %v6477
    %v6479 = vpop.f32.mrf.mxu0
    %v6480 = vadd.f32 %v6384, %v6479
    %6481 = vmatmul.bf16.gmra.mxu0 %v5189
    %v6482 = vpop.f32.mrf.mxu0
    %v6483 = vadd.f32 %v6384, %v6482
    %v6484 = vpop.f32.mrf.mxu0
    %v6485 = vadd.f32 %v6384, %v6484
    %6486 = vmatmul.bf16.gmra.mxu0 %v5190
    %v6487 = vpop.f32.mrf.mxu0
    %v6488 = vadd.f32 %v6384, %v6487
    %v6489 = vpop.f32.mrf.mxu0
    %v6490 = vadd.f32 %v6384, %v6489
    %6491 = vmatmul.bf16.gmra.mxu0 %v5191
    %v6492 = vpop.f32.mrf.mxu0
    %v6493 = vadd.f32 %v6384, %v6492
    %v6494 = vpop.f32.mrf.mxu0
    %v6495 = vadd.f32 %v6384, %v6494
    %6496 = vmatmul.bf16.gmra.mxu0 %v5192
    %v6497 = vpop.f32.mrf.mxu0
    %v6498 = vadd.f32 %v6384, %v6497
    %v6499 = vpop.f32.mrf.mxu0
    %v6500 = vadd.f32 %v6384, %v6499
    %6501 = vmatmul.bf16.gmra.mxu0 %v5193
    %v6502 = vpop.f32.mrf.mxu0
    %v6503 = vadd.f32 %v6384, %v6502
    %v6504 = vpop.f32.mrf.mxu0
    %v6505 = vadd.f32 %v6384, %v6504
    %6506 = vmatmul.bf16.gmra.mxu0 %v5194
    %v6507 = vpop.f32.mrf.mxu0
    %v6508 = vadd.f32 %v6384, %v6507
    %v6509 = vpop.f32.mrf.mxu0
    %v6510 = vadd.f32 %v6384, %v6509
    %6511 = vmatmul.bf16.gmra.mxu0 %v5195
    %v6512 = vpop.f32.mrf.mxu0
    %v6513 = vadd.f32 %v6384, %v6512
    %v6514 = vpop.f32.mrf.mxu0
    %v6515 = vadd.f32 %v6384, %v6514
    %6516 = vdwg.mxu0
    %6517 = vmatpush.bf16.msra.mxu0 %v6451
    %6518 = vmatpush.bf16.msra.mxu0 %v6449
    %6519 = vmatpush.bf16.msra.mxu0 %v6447
    %6520 = vmatpush.bf16.msra.mxu0 %v6445
    %6521 = vmatpush.bf16.msra.mxu0 %v6443
    %6522 = vmatpush.bf16.msra.mxu0 %v6441
    %6523 = vmatpush.bf16.msra.mxu0 %v6439
    %6524 = vmatpush.bf16.msra.mxu0 %v6437
    %6525 = vmatmul.bf16.gmra.mxu0 %v5188
    %v6526 = vpop.f32.mrf.mxu0
    %v6527 = vadd.f32 %v6385, %v6526
    %v6528 = vpop.f32.mrf.mxu0
    %v6529 = vadd.f32 %v6385, %v6528
    %6530 = vmatmul.bf16.gmra.mxu0 %v5189
    %v6531 = vpop.f32.mrf.mxu0
    %v6532 = vadd.f32 %v6385, %v6531
    %v6533 = vpop.f32.mrf.mxu0
    %v6534 = vadd.f32 %v6385, %v6533
    %6535 = vmatmul.bf16.gmra.mxu0 %v5190
    %v6536 = vpop.f32.mrf.mxu0
    %v6537 = vadd.f32 %v6385, %v6536
    %v6538 = vpop.f32.mrf.mxu0
    %v6539 = vadd.f32 %v6385, %v6538
    %6540 = vmatmul.bf16.gmra.mxu0 %v5191
    %v6541 = vpop.f32.mrf.mxu0
    %v6542 = vadd.f32 %v6385, %v6541
    %v6543 = vpop.f32.mrf.mxu0
    %v6544 = vadd.f32 %v6385, %v6543
    %6545 = vmatmul.bf16.gmra.mxu0 %v5192
    %v6546 = vpop.f32.mrf.mxu0
    %v6547 = vadd.f32 %v6385, %v6546
    %v6548 = vpop.f32.mrf.mxu0
    %v6549 = vadd.f32 %v6385, %v6548
    %6550 = vmatmul.bf16.gmra.mxu0 %v5193
    %v6551 = vpop.f32.mrf.mxu0
    %v6552 = vadd.f32 %v6385, %v6551
    %v6553 = vpop.f32.mrf.mxu0
    %v6554 = vadd.f32 %v6385, %v6553
    %6555 = vmatmul.bf16.gmra.mxu0 %v5194
    %v6556 = vpop.f32.mrf.mxu0
    %v6557 = vadd.f32 %v6385, %v6556
    %v6558 = vpop.f32.mrf.mxu0
    %v6559 = vadd.f32 %v6385, %v6558
    %6560 = vmatmul.bf16.gmra.mxu0 %v5195
    %v6561 = vpop.f32.mrf.mxu0
    %v6562 = vadd.f32 %v6385, %v6561
    %v6563 = vpop.f32.mrf.mxu0
    %v6564 = vadd.f32 %v6385, %v6563
    %6565 = vdwg.mxu0
    %v6566 = vmax.f32 %v6478, 0.0
    %v6567 = vmax.f32 %v6527, 0.0
    %v6568 = vmax.f32 %v6480, 0.0
    %v6569 = vmax.f32 %v6529, 0.0
    %v6570 = vmax.f32 %v6483, 0.0
    %v6571 = vmax.f32 %v6532, 0.0
    %v6572 = vmax.f32 %v6485, 0.0
    %v6573 = vmax.f32 %v6534, 0.0
    %v6574 = vmax.f32 %v6488, 0.0
    %v6575 = vmax.f32 %v6537, 0.0
    %v6576 = vmax.f32 %v6490, 0.0
    %v6577 = vmax.f32 %v6539, 0.0
    %v6578 = vmax.f32 %v6493, 0.0
    %v6579 = vmax.f32 %v6542, 0.0
    %v6580 = vmax.f32 %v6495, 0.0
    %v6581 = vmax.f32 %v6544, 0.0
    %v6582 = vmax.f32 %v6498, 0.0
    %v6583 = vmax.f32 %v6547, 0.0
    %v6584 = vmax.f32 %v6500, 0.0
    %v6585 = vmax.f32 %v6549, 0.0
    %v6586 = vmax.f32 %v6503, 0.0
    %v6587 = vmax.f32 %v6552, 0.0
    %v6588 = vmax.f32 %v6505, 0.0
    %v6589 = vmax.f32 %v6554, 0.0
    %v6590 = vmax.f32 %v6508, 0.0
    %v6591 = vmax.f32 %v6557, 0.0
    %v6592 = vmax.f32 %v6510, 0.0
    %v6593 = vmax.f32 %v6559, 0.0
    %v6594 = vmax.f32 %v6513, 0.0
    %v6595 = vmax.f32 %v6562, 0.0
    %v6596 = vmax.f32 %v6515, 0.0
    %v6597 = vmax.f32 %v6564, 0.0
    %v6598 = vpack.c.bf16 %v6568, %v6566
    %v6599 = vpack.c.bf16 %v6569, %v6567
    %v6600 = vpack.c.bf16 %v6572, %v6570
    %v6601 = vpack.c.bf16 %v6573, %v6571
    %v6602 = vpack.c.bf16 %v6576, %v6574
    %v6603 = vpack.c.bf16 %v6577, %v6575
    %v6604 = vpack.c.bf16 %v6580, %v6578
    %v6605 = vpack.c.bf16 %v6581, %v6579
    %v6606 = vpack.c.bf16 %v6584, %v6582
    %v6607 = vpack.c.bf16 %v6585, %v6583
    %v6608 = vpack.c.bf16 %v6588, %v6586
    %v6609 = vpack.c.bf16 %v6589, %v6587
    %v6610 = vpack.c.bf16 %v6592, %v6590
    %v6611 = vpack.c.bf16 %v6593, %v6591
    %v6612 = vpack.c.bf16 %v6596, %v6594
    %v6613 = vpack.c.bf16 %v6597, %v6595
    %s6614 = scalar_lea.vmem [#allocation26], 256
    %v6615 = vld [vmem:[%s6614] sm:$0xf]
    %v6616 = vld [vmem:[%s6614 + $0x4] sm:$0xf]
    %v6617 = vld [vmem:[%s6614 + $0x8] sm:$0xf]
    %v6618 = vld [vmem:[%s6614 + $0xc] sm:$0xf]
    %v6619 = vld [vmem:[%s6614 + $0x10] sm:$0xf]
    %v6620 = vld [vmem:[%s6614 + $0x14] sm:$0xf]
    %v6621 = vld [vmem:[%s6614 + $0x18] sm:$0xf]
    %v6622 = vld [vmem:[%s6614 + $0x1c] sm:$0xf]
    %v6623 = vld [vmem:[%s6614 + $0x20] sm:$0xf]
    %v6624 = vld [vmem:[%s6614 + $0x24] sm:$0xf]
    %v6625 = vld [vmem:[%s6614 + $0x28] sm:$0xf]
    %v6626 = vld [vmem:[%s6614 + $0x2c] sm:$0xf]
    %v6627 = vld [vmem:[%s6614 + $0x30] sm:$0xf]
    %v6628 = vld [vmem:[%s6614 + $0x34] sm:$0xf]
    %v6629 = vld [vmem:[%s6614 + $0x38] sm:$0xf]
    %v6630 = vld [vmem:[%s6614 + $0x3c] sm:$0xf]
    %v6631 = vld [vmem:[%s6614 + $0x40] sm:$0xf]
    %v6632 = vld [vmem:[%s6614 + $0x44] sm:$0xf]
    %v6633 = vld [vmem:[%s6614 + $0x48] sm:$0xf]
    %v6634 = vld [vmem:[%s6614 + $0x4c] sm:$0xf]
    %v6635 = vld [vmem:[%s6614 + $0x50] sm:$0xf]
    %v6636 = vld [vmem:[%s6614 + $0x54] sm:$0xf]
    %v6637 = vld [vmem:[%s6614 + $0x58] sm:$0xf]
    %v6638 = vld [vmem:[%s6614 + $0x5c] sm:$0xf]
    %v6639 = vld [vmem:[%s6614 + $0x60] sm:$0xf]
    %v6640 = vld [vmem:[%s6614 + $0x64] sm:$0xf]
    %v6641 = vld [vmem:[%s6614 + $0x68] sm:$0xf]
    %v6642 = vld [vmem:[%s6614 + $0x6c] sm:$0xf]
    %v6643 = vld [vmem:[%s6614 + $0x70] sm:$0xf]
    %v6644 = vld [vmem:[%s6614 + $0x74] sm:$0xf]
    %v6645 = vld [vmem:[%s6614 + $0x78] sm:$0xf]
    %v6646 = vld [vmem:[%s6614 + $0x7c] sm:$0xf]
    %s6647 = scalar_lea.vmem %s21, 2
    %v6648 = vld [vmem:[%s6647] sm:$0x1]
    %v6650 = vperm.slane %v6648, 0
    %v6684 = vunpack.c.l.b16 %v6615
    %v6685 = vunpack.c.l.b16 %v6616
    %v6686 = vunpack.c.l.b16 %v6617
    %v6687 = vunpack.c.l.b16 %v6618
    %v6688 = vunpack.c.l.b16 %v6619
    %v6689 = vunpack.c.l.b16 %v6620
    %v6690 = vunpack.c.l.b16 %v6621
    %v6691 = vunpack.c.l.b16 %v6622
    %v6692 = vunpack.c.l.b16 %v6623
    %v6693 = vunpack.c.l.b16 %v6624
    %v6694 = vunpack.c.l.b16 %v6625
    %v6695 = vunpack.c.l.b16 %v6626
    %v6696 = vunpack.c.l.b16 %v6627
    %v6697 = vunpack.c.l.b16 %v6628
    %v6698 = vunpack.c.l.b16 %v6629
    %v6699 = vunpack.c.l.b16 %v6630
    %v6700 = vunpack.c.l.b16 %v6631
    %v6701 = vunpack.c.l.b16 %v6632
    %v6702 = vunpack.c.l.b16 %v6633
    %v6703 = vunpack.c.l.b16 %v6634
    %v6704 = vunpack.c.l.b16 %v6635
    %v6705 = vunpack.c.l.b16 %v6636
    %v6706 = vunpack.c.l.b16 %v6637
    %v6707 = vunpack.c.l.b16 %v6638
    %v6708 = vunpack.c.l.b16 %v6639
    %v6709 = vunpack.c.l.b16 %v6640
    %v6710 = vunpack.c.l.b16 %v6641
    %v6711 = vunpack.c.l.b16 %v6642
    %v6712 = vunpack.c.l.b16 %v6643
    %v6713 = vunpack.c.l.b16 %v6644
    %v6714 = vunpack.c.l.b16 %v6645
    %v6715 = vunpack.c.l.b16 %v6646
    %v6716 = vpack.c.b16 %v6685, %v6684
    %v6717 = vpack.c.b16 %v6687, %v6686
    %v6718 = vpack.c.b16 %v6689, %v6688
    %v6719 = vpack.c.b16 %v6691, %v6690
    %v6720 = vpack.c.b16 %v6693, %v6692
    %v6721 = vpack.c.b16 %v6695, %v6694
    %v6722 = vpack.c.b16 %v6697, %v6696
    %v6723 = vpack.c.b16 %v6699, %v6698
    %v6724 = vpack.c.b16 %v6701, %v6700
    %v6725 = vpack.c.b16 %v6703, %v6702
    %v6726 = vpack.c.b16 %v6705, %v6704
    %v6727 = vpack.c.b16 %v6707, %v6706
    %v6728 = vpack.c.b16 %v6709, %v6708
    %v6729 = vpack.c.b16 %v6711, %v6710
    %v6730 = vpack.c.b16 %v6713, %v6712
    %v6731 = vpack.c.b16 %v6715, %v6714
    %6748 = vmatpush.bf16.msra.mxu0 %v6723
    %6749 = vmatpush.bf16.msra.mxu0 %v6722
    %6750 = vmatpush.bf16.msra.mxu0 %v6721
    %6751 = vmatpush.bf16.msra.mxu0 %v6720
    %6752 = vmatpush.bf16.msra.mxu0 %v6719
    %6753 = vmatpush.bf16.msra.mxu0 %v6718
    %6754 = vmatpush.bf16.msra.mxu0 %v6717
    %6755 = vmatpush.bf16.msra.mxu0 %v6716
    %6756 = vmatmul.bf16.gmra.mxu0 %v6598
    %v6757 = vpop.f32.mrf.mxu0
    %v6758 = vadd.f32 %v6650, %v6757
    %v6759 = vpop.f32.mrf.mxu0
    %v6760 = vadd.f32 %v6650, %v6759
    %6761 = vmatmul.bf16.gmra.mxu0 %v6600
    %v6762 = vpop.f32.mrf.mxu0
    %v6763 = vadd.f32 %v6650, %v6762
    %v6764 = vpop.f32.mrf.mxu0
    %v6765 = vadd.f32 %v6650, %v6764
    %6766 = vmatmul.bf16.gmra.mxu0 %v6602
    %v6767 = vpop.f32.mrf.mxu0
    %v6768 = vadd.f32 %v6650, %v6767
    %v6769 = vpop.f32.mrf.mxu0
    %v6770 = vadd.f32 %v6650, %v6769
    %6771 = vmatmul.bf16.gmra.mxu0 %v6604
    %v6772 = vpop.f32.mrf.mxu0
    %v6773 = vadd.f32 %v6650, %v6772
    %v6774 = vpop.f32.mrf.mxu0
    %v6775 = vadd.f32 %v6650, %v6774
    %6776 = vmatmul.bf16.gmra.mxu0 %v6606
    %v6777 = vpop.f32.mrf.mxu0
    %v6778 = vadd.f32 %v6650, %v6777
    %v6779 = vpop.f32.mrf.mxu0
    %v6780 = vadd.f32 %v6650, %v6779
    %6781 = vmatmul.bf16.gmra.mxu0 %v6608
    %v6782 = vpop.f32.mrf.mxu0
    %v6783 = vadd.f32 %v6650, %v6782
    %v6784 = vpop.f32.mrf.mxu0
    %v6785 = vadd.f32 %v6650, %v6784
    %6786 = vmatmul.bf16.gmra.mxu0 %v6610
    %v6787 = vpop.f32.mrf.mxu0
    %v6788 = vadd.f32 %v6650, %v6787
    %v6789 = vpop.f32.mrf.mxu0
    %v6790 = vadd.f32 %v6650, %v6789
    %6791 = vmatmul.bf16.gmra.mxu0 %v6612
    %v6792 = vpop.f32.mrf.mxu0
    %v6793 = vadd.f32 %v6650, %v6792
    %v6794 = vpop.f32.mrf.mxu0
    %v6795 = vadd.f32 %v6650, %v6794
    %6796 = vdwg.mxu0
    %6797 = vmatpush.bf16.msra.mxu0 %v6731
    %6798 = vmatpush.bf16.msra.mxu0 %v6730
    %6799 = vmatpush.bf16.msra.mxu0 %v6729
    %6800 = vmatpush.bf16.msra.mxu0 %v6728
    %6801 = vmatpush.bf16.msra.mxu0 %v6727
    %6802 = vmatpush.bf16.msra.mxu0 %v6726
    %6803 = vmatpush.bf16.msra.mxu0 %v6725
    %6804 = vmatpush.bf16.msra.mxu0 %v6724
    %6805 = vmatmul.bf16.gmra.mxu0 %v6599
    %v6806 = vpop.f32.mrf.mxu0
    %v6807 = vadd.f32 %v6758, %v6806
    %v6808 = vpop.f32.mrf.mxu0
    %v6809 = vadd.f32 %v6760, %v6808
    %6810 = vmatmul.bf16.gmra.mxu0 %v6601
    %v6811 = vpop.f32.mrf.mxu0
    %v6812 = vadd.f32 %v6763, %v6811
    %v6813 = vpop.f32.mrf.mxu0
    %v6814 = vadd.f32 %v6765, %v6813
    %6815 = vmatmul.bf16.gmra.mxu0 %v6603
    %v6816 = vpop.f32.mrf.mxu0
    %v6817 = vadd.f32 %v6768, %v6816
    %v6818 = vpop.f32.mrf.mxu0
    %v6819 = vadd.f32 %v6770, %v6818
    %6820 = vmatmul.bf16.gmra.mxu0 %v6605
    %v6821 = vpop.f32.mrf.mxu0
    %v6822 = vadd.f32 %v6773, %v6821
    %v6823 = vpop.f32.mrf.mxu0
    %v6824 = vadd.f32 %v6775, %v6823
    %6825 = vmatmul.bf16.gmra.mxu0 %v6607
    %v6826 = vpop.f32.mrf.mxu0
    %v6827 = vadd.f32 %v6778, %v6826
    %v6828 = vpop.f32.mrf.mxu0
    %v6829 = vadd.f32 %v6780, %v6828
    %6830 = vmatmul.bf16.gmra.mxu0 %v6609
    %v6831 = vpop.f32.mrf.mxu0
    %v6832 = vadd.f32 %v6783, %v6831
    %v6833 = vpop.f32.mrf.mxu0
    %v6834 = vadd.f32 %v6785, %v6833
    %6835 = vmatmul.bf16.gmra.mxu0 %v6611
    %v6836 = vpop.f32.mrf.mxu0
    %v6837 = vadd.f32 %v6788, %v6836
    %v6838 = vpop.f32.mrf.mxu0
    %v6839 = vadd.f32 %v6790, %v6838
    %6840 = vmatmul.bf16.gmra.mxu0 %v6613
    %v6841 = vpop.f32.mrf.mxu0
    %v6842 = vadd.f32 %v6793, %v6841
    %v6843 = vpop.f32.mrf.mxu0
    %v6844 = vadd.f32 %v6795, %v6843
    %6845 = vdwg.mxu0
    %6846 = vset.pattern.permute.xlu0 2
    %6847 = vperm.xlu0 %6846, %v5172
    %v6848 = vpop.permute.xlu0 %6847
    %6850 = vset.pattern.permute.xlu0 2
    %6851 = vperm.xlu0 %6850, %v5173
    %v6852 = vpop.permute.xlu0 %6851
    %6854 = vset.pattern.permute.xlu0 2
    %6855 = vperm.xlu0 %6854, %v5174
    %v6856 = vpop.permute.xlu0 %6855
    %6858 = vset.pattern.permute.xlu0 2
    %6859 = vperm.xlu0 %6858, %v5175
    %v6860 = vpop.permute.xlu0 %6859
    %6862 = vset.pattern.permute.xlu0 2
    %6863 = vperm.xlu0 %6862, %v5176
    %v6864 = vpop.permute.xlu0 %6863
    %6866 = vset.pattern.permute.xlu0 2
    %6867 = vperm.xlu0 %6866, %v5177
    %v6868 = vpop.permute.xlu0 %6867
    %6870 = vset.pattern.permute.xlu0 2
    %6871 = vperm.xlu0 %6870, %v5178
    %v6872 = vpop.permute.xlu0 %6871
    %6874 = vset.pattern.permute.xlu0 2
    %6875 = vperm.xlu0 %6874, %v5179
    %v6876 = vpop.permute.xlu0 %6875
    %6878 = vset.pattern.permute.xlu0 2
    %6879 = vperm.xlu0 %6878, %v5180
    %v6880 = vpop.permute.xlu0 %6879
    %6882 = vset.pattern.permute.xlu0 2
    %6883 = vperm.xlu0 %6882, %v5181
    %v6884 = vpop.permute.xlu0 %6883
    %6886 = vset.pattern.permute.xlu0 2
    %6887 = vperm.xlu0 %6886, %v5182
    %v6888 = vpop.permute.xlu0 %6887
    %6890 = vset.pattern.permute.xlu0 2
    %6891 = vperm.xlu0 %6890, %v5183
    %v6892 = vpop.permute.xlu0 %6891
    %6894 = vset.pattern.permute.xlu0 2
    %6895 = vperm.xlu0 %6894, %v5184
    %v6896 = vpop.permute.xlu0 %6895
    %6898 = vset.pattern.permute.xlu0 2
    %6899 = vperm.xlu0 %6898, %v5185
    %v6900 = vpop.permute.xlu0 %6899
    %6902 = vset.pattern.permute.xlu0 2
    %6903 = vperm.xlu0 %6902, %v5186
    %v6904 = vpop.permute.xlu0 %6903
    %6906 = vset.pattern.permute.xlu0 2
    %6907 = vperm.xlu0 %6906, %v5187
    %v6908 = vpop.permute.xlu0 %6907
    %v6910 = vmul.f32 %v6848, %v6807
    %v6911 = vmul.f32 %v6852, %v6809
    %v6912 = vmul.f32 %v6856, %v6812
    %v6913 = vmul.f32 %v6860, %v6814
    %v6914 = vmul.f32 %v6864, %v6817
    %v6915 = vmul.f32 %v6868, %v6819
    %v6916 = vmul.f32 %v6872, %v6822
    %v6917 = vmul.f32 %v6876, %v6824
    %v6918 = vmul.f32 %v6880, %v6827
    %v6919 = vmul.f32 %v6884, %v6829
    %v6920 = vmul.f32 %v6888, %v6832
    %v6921 = vmul.f32 %v6892, %v6834
    %v6922 = vmul.f32 %v6896, %v6837
    %v6923 = vmul.f32 %v6900, %v6839
    %v6924 = vmul.f32 %v6904, %v6842
    %v6925 = vmul.f32 %v6908, %v6844
    %v6926 = vadd.f32 %v6348, %v6910
    %v6927 = vadd.f32 %v6349, %v6911
    %v6928 = vadd.f32 %v6350, %v6912
    %v6929 = vadd.f32 %v6351, %v6913
    %v6930 = vadd.f32 %v6352, %v6914
    %v6931 = vadd.f32 %v6353, %v6915
    %v6932 = vadd.f32 %v6354, %v6916
    %v6933 = vadd.f32 %v6355, %v6917
    %v6934 = vadd.f32 %v6356, %v6918
    %v6935 = vadd.f32 %v6357, %v6919
    %v6936 = vadd.f32 %v6358, %v6920
    %v6937 = vadd.f32 %v6359, %v6921
    %v6938 = vadd.f32 %v6360, %v6922
    %v6939 = vadd.f32 %v6361, %v6923
    %v6940 = vadd.f32 %v6362, %v6924
    %v6941 = vadd.f32 %v6363, %v6925
    %s6942 = scalar_lea.vmem [#allocation24], 384
    %v6943 = vld [vmem:[%s6942] sm:$0xff]
    %v6944 = vld [vmem:[%s6942 + $0x8] sm:$0xff]
    %v6945 = vld [vmem:[%s6942 + $0x10] sm:$0xff]
    %v6946 = vld [vmem:[%s6942 + $0x18] sm:$0xff]
    %v6947 = vld [vmem:[%s6942 + $0x20] sm:$0xff]
    %v6948 = vld [vmem:[%s6942 + $0x28] sm:$0xff]
    %v6949 = vld [vmem:[%s6942 + $0x30] sm:$0xff]
    %v6950 = vld [vmem:[%s6942 + $0x38] sm:$0xff]
    %v6951 = vld [vmem:[%s6942 + $0x40] sm:$0xff]
    %v6952 = vld [vmem:[%s6942 + $0x48] sm:$0xff]
    %v6953 = vld [vmem:[%s6942 + $0x50] sm:$0xff]
    %v6954 = vld [vmem:[%s6942 + $0x58] sm:$0xff]
    %v6955 = vld [vmem:[%s6942 + $0x60] sm:$0xff]
    %v6956 = vld [vmem:[%s6942 + $0x68] sm:$0xff]
    %v6957 = vld [vmem:[%s6942 + $0x70] sm:$0xff]
    %v6958 = vld [vmem:[%s6942 + $0x78] sm:$0xff]
    %s6959 = scalar_lea.vmem %s19, 6
    %v6960 = vld [vmem:[%s6959] sm:$0x3]
    %v6962 = vperm.slane %v6960, 0
    %v6963 = vperm.slane %v6960, 1
    %v6982 = vunpack.c.l.b16 %v6943
    %v6983 = vunpack.c.h.b16 %v6943
    %v6984 = vunpack.c.l.b16 %v6944
    %v6985 = vunpack.c.h.b16 %v6944
    %v6986 = vunpack.c.l.b16 %v6945
    %v6987 = vunpack.c.h.b16 %v6945
    %v6988 = vunpack.c.l.b16 %v6946
    %v6989 = vunpack.c.h.b16 %v6946
    %v6990 = vunpack.c.l.b16 %v6947
    %v6991 = vunpack.c.h.b16 %v6947
    %v6992 = vunpack.c.l.b16 %v6948
    %v6993 = vunpack.c.h.b16 %v6948
    %v6994 = vunpack.c.l.b16 %v6949
    %v6995 = vunpack.c.h.b16 %v6949
    %v6996 = vunpack.c.l.b16 %v6950
    %v6997 = vunpack.c.h.b16 %v6950
    %v6998 = vunpack.c.l.b16 %v6951
    %v6999 = vunpack.c.h.b16 %v6951
    %v7000 = vunpack.c.l.b16 %v6952
    %v7001 = vunpack.c.h.b16 %v6952
    %v7002 = vunpack.c.l.b16 %v6953
    %v7003 = vunpack.c.h.b16 %v6953
    %v7004 = vunpack.c.l.b16 %v6954
    %v7005 = vunpack.c.h.b16 %v6954
    %v7006 = vunpack.c.l.b16 %v6955
    %v7007 = vunpack.c.h.b16 %v6955
    %v7008 = vunpack.c.l.b16 %v6956
    %v7009 = vunpack.c.h.b16 %v6956
    %v7010 = vunpack.c.l.b16 %v6957
    %v7011 = vunpack.c.h.b16 %v6957
    %v7012 = vunpack.c.l.b16 %v6958
    %v7013 = vunpack.c.h.b16 %v6958
    %v7014 = vpack.c.b16 %v6984, %v6982
    %v7015 = vpack.c.b16 %v6985, %v6983
    %v7016 = vpack.c.b16 %v6988, %v6986
    %v7017 = vpack.c.b16 %v6989, %v6987
    %v7018 = vpack.c.b16 %v6992, %v6990
    %v7019 = vpack.c.b16 %v6993, %v6991
    %v7020 = vpack.c.b16 %v6996, %v6994
    %v7021 = vpack.c.b16 %v6997, %v6995
    %v7022 = vpack.c.b16 %v7000, %v6998
    %v7023 = vpack.c.b16 %v7001, %v6999
    %v7024 = vpack.c.b16 %v7004, %v7002
    %v7025 = vpack.c.b16 %v7005, %v7003
    %v7026 = vpack.c.b16 %v7008, %v7006
    %v7027 = vpack.c.b16 %v7009, %v7007
    %v7028 = vpack.c.b16 %v7012, %v7010
    %v7029 = vpack.c.b16 %v7013, %v7011
    %7046 = vmatpush.bf16.msra.mxu0 %v7028
    %7047 = vmatpush.bf16.msra.mxu0 %v7026
    %7048 = vmatpush.bf16.msra.mxu0 %v7024
    %7049 = vmatpush.bf16.msra.mxu0 %v7022
    %7050 = vmatpush.bf16.msra.mxu0 %v7020
    %7051 = vmatpush.bf16.msra.mxu0 %v7018
    %7052 = vmatpush.bf16.msra.mxu0 %v7016
    %7053 = vmatpush.bf16.msra.mxu0 %v7014
    %7054 = vmatmul.bf16.gmra.mxu0 %v5188
    %v7055 = vpop.f32.mrf.mxu0
    %v7056 = vadd.f32 %v6962, %v7055
    %v7057 = vpop.f32.mrf.mxu0
    %v7058 = vadd.f32 %v6962, %v7057
    %7059 = vmatmul.bf16.gmra.mxu0 %v5189
    %v7060 = vpop.f32.mrf.mxu0
    %v7061 = vadd.f32 %v6962, %v7060
    %v7062 = vpop.f32.mrf.mxu0
    %v7063 = vadd.f32 %v6962, %v7062
    %7064 = vmatmul.bf16.gmra.mxu0 %v5190
    %v7065 = vpop.f32.mrf.mxu0
    %v7066 = vadd.f32 %v6962, %v7065
    %v7067 = vpop.f32.mrf.mxu0
    %v7068 = vadd.f32 %v6962, %v7067
    %7069 = vmatmul.bf16.gmra.mxu0 %v5191
    %v7070 = vpop.f32.mrf.mxu0
    %v7071 = vadd.f32 %v6962, %v7070
    %v7072 = vpop.f32.mrf.mxu0
    %v7073 = vadd.f32 %v6962, %v7072
    %7074 = vmatmul.bf16.gmra.mxu0 %v5192
    %v7075 = vpop.f32.mrf.mxu0
    %v7076 = vadd.f32 %v6962, %v7075
    %v7077 = vpop.f32.mrf.mxu0
    %v7078 = vadd.f32 %v6962, %v7077
    %7079 = vmatmul.bf16.gmra.mxu0 %v5193
    %v7080 = vpop.f32.mrf.mxu0
    %v7081 = vadd.f32 %v6962, %v7080
    %v7082 = vpop.f32.mrf.mxu0
    %v7083 = vadd.f32 %v6962, %v7082
    %7084 = vmatmul.bf16.gmra.mxu0 %v5194
    %v7085 = vpop.f32.mrf.mxu0
    %v7086 = vadd.f32 %v6962, %v7085
    %v7087 = vpop.f32.mrf.mxu0
    %v7088 = vadd.f32 %v6962, %v7087
    %7089 = vmatmul.bf16.gmra.mxu0 %v5195
    %v7090 = vpop.f32.mrf.mxu0
    %v7091 = vadd.f32 %v6962, %v7090
    %v7092 = vpop.f32.mrf.mxu0
    %v7093 = vadd.f32 %v6962, %v7092
    %7094 = vdwg.mxu0
    %7095 = vmatpush.bf16.msra.mxu0 %v7029
    %7096 = vmatpush.bf16.msra.mxu0 %v7027
    %7097 = vmatpush.bf16.msra.mxu0 %v7025
    %7098 = vmatpush.bf16.msra.mxu0 %v7023
    %7099 = vmatpush.bf16.msra.mxu0 %v7021
    %7100 = vmatpush.bf16.msra.mxu0 %v7019
    %7101 = vmatpush.bf16.msra.mxu0 %v7017
    %7102 = vmatpush.bf16.msra.mxu0 %v7015
    %7103 = vmatmul.bf16.gmra.mxu0 %v5188
    %v7104 = vpop.f32.mrf.mxu0
    %v7105 = vadd.f32 %v6963, %v7104
    %v7106 = vpop.f32.mrf.mxu0
    %v7107 = vadd.f32 %v6963, %v7106
    %7108 = vmatmul.bf16.gmra.mxu0 %v5189
    %v7109 = vpop.f32.mrf.mxu0
    %v7110 = vadd.f32 %v6963, %v7109
    %v7111 = vpop.f32.mrf.mxu0
    %v7112 = vadd.f32 %v6963, %v7111
    %7113 = vmatmul.bf16.gmra.mxu0 %v5190
    %v7114 = vpop.f32.mrf.mxu0
    %v7115 = vadd.f32 %v6963, %v7114
    %v7116 = vpop.f32.mrf.mxu0
    %v7117 = vadd.f32 %v6963, %v7116
    %7118 = vmatmul.bf16.gmra.mxu0 %v5191
    %v7119 = vpop.f32.mrf.mxu0
    %v7120 = vadd.f32 %v6963, %v7119
    %v7121 = vpop.f32.mrf.mxu0
    %v7122 = vadd.f32 %v6963, %v7121
    %7123 = vmatmul.bf16.gmra.mxu0 %v5192
    %v7124 = vpop.f32.mrf.mxu0
    %v7125 = vadd.f32 %v6963, %v7124
    %v7126 = vpop.f32.mrf.mxu0
    %v7127 = vadd.f32 %v6963, %v7126
    %7128 = vmatmul.bf16.gmra.mxu0 %v5193
    %v7129 = vpop.f32.mrf.mxu0
    %v7130 = vadd.f32 %v6963, %v7129
    %v7131 = vpop.f32.mrf.mxu0
    %v7132 = vadd.f32 %v6963, %v7131
    %7133 = vmatmul.bf16.gmra.mxu0 %v5194
    %v7134 = vpop.f32.mrf.mxu0
    %v7135 = vadd.f32 %v6963, %v7134
    %v7136 = vpop.f32.mrf.mxu0
    %v7137 = vadd.f32 %v6963, %v7136
    %7138 = vmatmul.bf16.gmra.mxu0 %v5195
    %v7139 = vpop.f32.mrf.mxu0
    %v7140 = vadd.f32 %v6963, %v7139
    %v7141 = vpop.f32.mrf.mxu0
    %v7142 = vadd.f32 %v6963, %v7141
    %7143 = vdwg.mxu0
    %v7144 = vmax.f32 %v7056, 0.0
    %v7145 = vmax.f32 %v7105, 0.0
    %v7146 = vmax.f32 %v7058, 0.0
    %v7147 = vmax.f32 %v7107, 0.0
    %v7148 = vmax.f32 %v7061, 0.0
    %v7149 = vmax.f32 %v7110, 0.0
    %v7150 = vmax.f32 %v7063, 0.0
    %v7151 = vmax.f32 %v7112, 0.0
    %v7152 = vmax.f32 %v7066, 0.0
    %v7153 = vmax.f32 %v7115, 0.0
    %v7154 = vmax.f32 %v7068, 0.0
    %v7155 = vmax.f32 %v7117, 0.0
    %v7156 = vmax.f32 %v7071, 0.0
    %v7157 = vmax.f32 %v7120, 0.0
    %v7158 = vmax.f32 %v7073, 0.0
    %v7159 = vmax.f32 %v7122, 0.0
    %v7160 = vmax.f32 %v7076, 0.0
    %v7161 = vmax.f32 %v7125, 0.0
    %v7162 = vmax.f32 %v7078, 0.0
    %v7163 = vmax.f32 %v7127, 0.0
    %v7164 = vmax.f32 %v7081, 0.0
    %v7165 = vmax.f32 %v7130, 0.0
    %v7166 = vmax.f32 %v7083, 0.0
    %v7167 = vmax.f32 %v7132, 0.0
    %v7168 = vmax.f32 %v7086, 0.0
    %v7169 = vmax.f32 %v7135, 0.0
    %v7170 = vmax.f32 %v7088, 0.0
    %v7171 = vmax.f32 %v7137, 0.0
    %v7172 = vmax.f32 %v7091, 0.0
    %v7173 = vmax.f32 %v7140, 0.0
    %v7174 = vmax.f32 %v7093, 0.0
    %v7175 = vmax.f32 %v7142, 0.0
    %v7176 = vpack.c.bf16 %v7146, %v7144
    %v7177 = vpack.c.bf16 %v7147, %v7145
    %v7178 = vpack.c.bf16 %v7150, %v7148
    %v7179 = vpack.c.bf16 %v7151, %v7149
    %v7180 = vpack.c.bf16 %v7154, %v7152
    %v7181 = vpack.c.bf16 %v7155, %v7153
    %v7182 = vpack.c.bf16 %v7158, %v7156
    %v7183 = vpack.c.bf16 %v7159, %v7157
    %v7184 = vpack.c.bf16 %v7162, %v7160
    %v7185 = vpack.c.bf16 %v7163, %v7161
    %v7186 = vpack.c.bf16 %v7166, %v7164
    %v7187 = vpack.c.bf16 %v7167, %v7165
    %v7188 = vpack.c.bf16 %v7170, %v7168
    %v7189 = vpack.c.bf16 %v7171, %v7169
    %v7190 = vpack.c.bf16 %v7174, %v7172
    %v7191 = vpack.c.bf16 %v7175, %v7173
    %s7192 = scalar_lea.vmem [#allocation26], 384
    %v7193 = vld [vmem:[%s7192] sm:$0xf]
    %v7194 = vld [vmem:[%s7192 + $0x4] sm:$0xf]
    %v7195 = vld [vmem:[%s7192 + $0x8] sm:$0xf]
    %v7196 = vld [vmem:[%s7192 + $0xc] sm:$0xf]
    %v7197 = vld [vmem:[%s7192 + $0x10] sm:$0xf]
    %v7198 = vld [vmem:[%s7192 + $0x14] sm:$0xf]
    %v7199 = vld [vmem:[%s7192 + $0x18] sm:$0xf]
    %v7200 = vld [vmem:[%s7192 + $0x1c] sm:$0xf]
    %v7201 = vld [vmem:[%s7192 + $0x20] sm:$0xf]
    %v7202 = vld [vmem:[%s7192 + $0x24] sm:$0xf]
    %v7203 = vld [vmem:[%s7192 + $0x28] sm:$0xf]
    %v7204 = vld [vmem:[%s7192 + $0x2c] sm:$0xf]
    %v7205 = vld [vmem:[%s7192 + $0x30] sm:$0xf]
    %v7206 = vld [vmem:[%s7192 + $0x34] sm:$0xf]
    %v7207 = vld [vmem:[%s7192 + $0x38] sm:$0xf]
    %v7208 = vld [vmem:[%s7192 + $0x3c] sm:$0xf]
    %v7209 = vld [vmem:[%s7192 + $0x40] sm:$0xf]
    %v7210 = vld [vmem:[%s7192 + $0x44] sm:$0xf]
    %v7211 = vld [vmem:[%s7192 + $0x48] sm:$0xf]
    %v7212 = vld [vmem:[%s7192 + $0x4c] sm:$0xf]
    %v7213 = vld [vmem:[%s7192 + $0x50] sm:$0xf]
    %v7214 = vld [vmem:[%s7192 + $0x54] sm:$0xf]
    %v7215 = vld [vmem:[%s7192 + $0x58] sm:$0xf]
    %v7216 = vld [vmem:[%s7192 + $0x5c] sm:$0xf]
    %v7217 = vld [vmem:[%s7192 + $0x60] sm:$0xf]
    %v7218 = vld [vmem:[%s7192 + $0x64] sm:$0xf]
    %v7219 = vld [vmem:[%s7192 + $0x68] sm:$0xf]
    %v7220 = vld [vmem:[%s7192 + $0x6c] sm:$0xf]
    %v7221 = vld [vmem:[%s7192 + $0x70] sm:$0xf]
    %v7222 = vld [vmem:[%s7192 + $0x74] sm:$0xf]
    %v7223 = vld [vmem:[%s7192 + $0x78] sm:$0xf]
    %v7224 = vld [vmem:[%s7192 + $0x7c] sm:$0xf]
    %s7225 = scalar_lea.vmem %s21, 3
    %v7226 = vld [vmem:[%s7225] sm:$0x1]
    %v7228 = vperm.slane %v7226, 0
    %v7262 = vunpack.c.l.b16 %v7193
    %v7263 = vunpack.c.l.b16 %v7194
    %v7264 = vunpack.c.l.b16 %v7195
    %v7265 = vunpack.c.l.b16 %v7196
    %v7266 = vunpack.c.l.b16 %v7197
    %v7267 = vunpack.c.l.b16 %v7198
    %v7268 = vunpack.c.l.b16 %v7199
    %v7269 = vunpack.c.l.b16 %v7200
    %v7270 = vunpack.c.l.b16 %v7201
    %v7271 = vunpack.c.l.b16 %v7202
    %v7272 = vunpack.c.l.b16 %v7203
    %v7273 = vunpack.c.l.b16 %v7204
    %v7274 = vunpack.c.l.b16 %v7205
    %v7275 = vunpack.c.l.b16 %v7206
    %v7276 = vunpack.c.l.b16 %v7207
    %v7277 = vunpack.c.l.b16 %v7208
    %v7278 = vunpack.c.l.b16 %v7209
    %v7279 = vunpack.c.l.b16 %v7210
    %v7280 = vunpack.c.l.b16 %v7211
    %v7281 = vunpack.c.l.b16 %v7212
    %v7282 = vunpack.c.l.b16 %v7213
    %v7283 = vunpack.c.l.b16 %v7214
    %v7284 = vunpack.c.l.b16 %v7215
    %v7285 = vunpack.c.l.b16 %v7216
    %v7286 = vunpack.c.l.b16 %v7217
    %v7287 = vunpack.c.l.b16 %v7218
    %v7288 = vunpack.c.l.b16 %v7219
    %v7289 = vunpack.c.l.b16 %v7220
    %v7290 = vunpack.c.l.b16 %v7221
    %v7291 = vunpack.c.l.b16 %v7222
    %v7292 = vunpack.c.l.b16 %v7223
    %v7293 = vunpack.c.l.b16 %v7224
    %v7294 = vpack.c.b16 %v7263, %v7262
    %v7295 = vpack.c.b16 %v7265, %v7264
    %v7296 = vpack.c.b16 %v7267, %v7266
    %v7297 = vpack.c.b16 %v7269, %v7268
    %v7298 = vpack.c.b16 %v7271, %v7270
    %v7299 = vpack.c.b16 %v7273, %v7272
    %v7300 = vpack.c.b16 %v7275, %v7274
    %v7301 = vpack.c.b16 %v7277, %v7276
    %v7302 = vpack.c.b16 %v7279, %v7278
    %v7303 = vpack.c.b16 %v7281, %v7280
    %v7304 = vpack.c.b16 %v7283, %v7282
    %v7305 = vpack.c.b16 %v7285, %v7284
    %v7306 = vpack.c.b16 %v7287, %v7286
    %v7307 = vpack.c.b16 %v7289, %v7288
    %v7308 = vpack.c.b16 %v7291, %v7290
    %v7309 = vpack.c.b16 %v7293, %v7292
    %7326 = vmatpush.bf16.msra.mxu0 %v7301
    %7327 = vmatpush.bf16.msra.mxu0 %v7300
    %7328 = vmatpush.bf16.msra.mxu0 %v7299
    %7329 = vmatpush.bf16.msra.mxu0 %v7298
    %7330 = vmatpush.bf16.msra.mxu0 %v7297
    %7331 = vmatpush.bf16.msra.mxu0 %v7296
    %7332 = vmatpush.bf16.msra.mxu0 %v7295
    %7333 = vmatpush.bf16.msra.mxu0 %v7294
    %7334 = vmatmul.bf16.gmra.mxu0 %v7176
    %v7335 = vpop.f32.mrf.mxu0
    %v7336 = vadd.f32 %v7228, %v7335
    %v7337 = vpop.f32.mrf.mxu0
    %v7338 = vadd.f32 %v7228, %v7337
    %7339 = vmatmul.bf16.gmra.mxu0 %v7178
    %v7340 = vpop.f32.mrf.mxu0
    %v7341 = vadd.f32 %v7228, %v7340
    %v7342 = vpop.f32.mrf.mxu0
    %v7343 = vadd.f32 %v7228, %v7342
    %7344 = vmatmul.bf16.gmra.mxu0 %v7180
    %v7345 = vpop.f32.mrf.mxu0
    %v7346 = vadd.f32 %v7228, %v7345
    %v7347 = vpop.f32.mrf.mxu0
    %v7348 = vadd.f32 %v7228, %v7347
    %7349 = vmatmul.bf16.gmra.mxu0 %v7182
    %v7350 = vpop.f32.mrf.mxu0
    %v7351 = vadd.f32 %v7228, %v7350
    %v7352 = vpop.f32.mrf.mxu0
    %v7353 = vadd.f32 %v7228, %v7352
    %7354 = vmatmul.bf16.gmra.mxu0 %v7184
    %v7355 = vpop.f32.mrf.mxu0
    %v7356 = vadd.f32 %v7228, %v7355
    %v7357 = vpop.f32.mrf.mxu0
    %v7358 = vadd.f32 %v7228, %v7357
    %7359 = vmatmul.bf16.gmra.mxu0 %v7186
    %v7360 = vpop.f32.mrf.mxu0
    %v7361 = vadd.f32 %v7228, %v7360
    %v7362 = vpop.f32.mrf.mxu0
    %v7363 = vadd.f32 %v7228, %v7362
    %7364 = vmatmul.bf16.gmra.mxu0 %v7188
    %v7365 = vpop.f32.mrf.mxu0
    %v7366 = vadd.f32 %v7228, %v7365
    %v7367 = vpop.f32.mrf.mxu0
    %v7368 = vadd.f32 %v7228, %v7367
    %7369 = vmatmul.bf16.gmra.mxu0 %v7190
    %v7370 = vpop.f32.mrf.mxu0
    %v7371 = vadd.f32 %v7228, %v7370
    %v7372 = vpop.f32.mrf.mxu0
    %v7373 = vadd.f32 %v7228, %v7372
    %7374 = vdwg.mxu0
    %7375 = vmatpush.bf16.msra.mxu0 %v7309
    %7376 = vmatpush.bf16.msra.mxu0 %v7308
    %7377 = vmatpush.bf16.msra.mxu0 %v7307
    %7378 = vmatpush.bf16.msra.mxu0 %v7306
    %7379 = vmatpush.bf16.msra.mxu0 %v7305
    %7380 = vmatpush.bf16.msra.mxu0 %v7304
    %7381 = vmatpush.bf16.msra.mxu0 %v7303
    %7382 = vmatpush.bf16.msra.mxu0 %v7302
    %7383 = vmatmul.bf16.gmra.mxu0 %v7177
    %v7384 = vpop.f32.mrf.mxu0
    %v7385 = vadd.f32 %v7336, %v7384
    %v7386 = vpop.f32.mrf.mxu0
    %v7387 = vadd.f32 %v7338, %v7386
    %7388 = vmatmul.bf16.gmra.mxu0 %v7179
    %v7389 = vpop.f32.mrf.mxu0
    %v7390 = vadd.f32 %v7341, %v7389
    %v7391 = vpop.f32.mrf.mxu0
    %v7392 = vadd.f32 %v7343, %v7391
    %7393 = vmatmul.bf16.gmra.mxu0 %v7181
    %v7394 = vpop.f32.mrf.mxu0
    %v7395 = vadd.f32 %v7346, %v7394
    %v7396 = vpop.f32.mrf.mxu0
    %v7397 = vadd.f32 %v7348, %v7396
    %7398 = vmatmul.bf16.gmra.mxu0 %v7183
    %v7399 = vpop.f32.mrf.mxu0
    %v7400 = vadd.f32 %v7351, %v7399
    %v7401 = vpop.f32.mrf.mxu0
    %v7402 = vadd.f32 %v7353, %v7401
    %7403 = vmatmul.bf16.gmra.mxu0 %v7185
    %v7404 = vpop.f32.mrf.mxu0
    %v7405 = vadd.f32 %v7356, %v7404
    %v7406 = vpop.f32.mrf.mxu0
    %v7407 = vadd.f32 %v7358, %v7406
    %7408 = vmatmul.bf16.gmra.mxu0 %v7187
    %v7409 = vpop.f32.mrf.mxu0
    %v7410 = vadd.f32 %v7361, %v7409
    %v7411 = vpop.f32.mrf.mxu0
    %v7412 = vadd.f32 %v7363, %v7411
    %7413 = vmatmul.bf16.gmra.mxu0 %v7189
    %v7414 = vpop.f32.mrf.mxu0
    %v7415 = vadd.f32 %v7366, %v7414
    %v7416 = vpop.f32.mrf.mxu0
    %v7417 = vadd.f32 %v7368, %v7416
    %7418 = vmatmul.bf16.gmra.mxu0 %v7191
    %v7419 = vpop.f32.mrf.mxu0
    %v7420 = vadd.f32 %v7371, %v7419
    %v7421 = vpop.f32.mrf.mxu0
    %v7422 = vadd.f32 %v7373, %v7421
    %7423 = vdwg.mxu0
    %7424 = vset.pattern.permute.xlu0 3
    %7425 = vperm.xlu0 %7424, %v5172
    %v7426 = vpop.permute.xlu0 %7425
    %7428 = vset.pattern.permute.xlu0 3
    %7429 = vperm.xlu0 %7428, %v5173
    %v7430 = vpop.permute.xlu0 %7429
    %7432 = vset.pattern.permute.xlu0 3
    %7433 = vperm.xlu0 %7432, %v5174
    %v7434 = vpop.permute.xlu0 %7433
    %7436 = vset.pattern.permute.xlu0 3
    %7437 = vperm.xlu0 %7436, %v5175
    %v7438 = vpop.permute.xlu0 %7437
    %7440 = vset.pattern.permute.xlu0 3
    %7441 = vperm.xlu0 %7440, %v5176
    %v7442 = vpop.permute.xlu0 %7441
    %7444 = vset.pattern.permute.xlu0 3
    %7445 = vperm.xlu0 %7444, %v5177
    %v7446 = vpop.permute.xlu0 %7445
    %7448 = vset.pattern.permute.xlu0 3
    %7449 = vperm.xlu0 %7448, %v5178
    %v7450 = vpop.permute.xlu0 %7449
    %7452 = vset.pattern.permute.xlu0 3
    %7453 = vperm.xlu0 %7452, %v5179
    %v7454 = vpop.permute.xlu0 %7453
    %7456 = vset.pattern.permute.xlu0 3
    %7457 = vperm.xlu0 %7456, %v5180
    %v7458 = vpop.permute.xlu0 %7457
    %7460 = vset.pattern.permute.xlu0 3
    %7461 = vperm.xlu0 %7460, %v5181
    %v7462 = vpop.permute.xlu0 %7461
    %7464 = vset.pattern.permute.xlu0 3
    %7465 = vperm.xlu0 %7464, %v5182
    %v7466 = vpop.permute.xlu0 %7465
    %7468 = vset.pattern.permute.xlu0 3
    %7469 = vperm.xlu0 %7468, %v5183
    %v7470 = vpop.permute.xlu0 %7469
    %7472 = vset.pattern.permute.xlu0 3
    %7473 = vperm.xlu0 %7472, %v5184
    %v7474 = vpop.permute.xlu0 %7473
    %7476 = vset.pattern.permute.xlu0 3
    %7477 = vperm.xlu0 %7476, %v5185
    %v7478 = vpop.permute.xlu0 %7477
    %7480 = vset.pattern.permute.xlu0 3
    %7481 = vperm.xlu0 %7480, %v5186
    %v7482 = vpop.permute.xlu0 %7481
    %7484 = vset.pattern.permute.xlu0 3
    %7485 = vperm.xlu0 %7484, %v5187
    %v7486 = vpop.permute.xlu0 %7485
    %v7488 = vmul.f32 %v7426, %v7385
    %v7489 = vmul.f32 %v7430, %v7387
    %v7490 = vmul.f32 %v7434, %v7390
    %v7491 = vmul.f32 %v7438, %v7392
    %v7492 = vmul.f32 %v7442, %v7395
    %v7493 = vmul.f32 %v7446, %v7397
    %v7494 = vmul.f32 %v7450, %v7400
    %v7495 = vmul.f32 %v7454, %v7402
    %v7496 = vmul.f32 %v7458, %v7405
    %v7497 = vmul.f32 %v7462, %v7407
    %v7498 = vmul.f32 %v7466, %v7410
    %v7499 = vmul.f32 %v7470, %v7412
    %v7500 = vmul.f32 %v7474, %v7415
    %v7501 = vmul.f32 %v7478, %v7417
    %v7502 = vmul.f32 %v7482, %v7420
    %v7503 = vmul.f32 %v7486, %v7422
    %v7504 = vadd.f32 %v6926, %v7488
    %v7505 = vadd.f32 %v6927, %v7489
    %v7506 = vadd.f32 %v6928, %v7490
    %v7507 = vadd.f32 %v6929, %v7491
    %v7508 = vadd.f32 %v6930, %v7492
    %v7509 = vadd.f32 %v6931, %v7493
    %v7510 = vadd.f32 %v6932, %v7494
    %v7511 = vadd.f32 %v6933, %v7495
    %v7512 = vadd.f32 %v6934, %v7496
    %v7513 = vadd.f32 %v6935, %v7497
    %v7514 = vadd.f32 %v6936, %v7498
    %v7515 = vadd.f32 %v6937, %v7499
    %v7516 = vadd.f32 %v6938, %v7500
    %v7517 = vadd.f32 %v6939, %v7501
    %v7518 = vadd.f32 %v6940, %v7502
    %v7519 = vadd.f32 %v6941, %v7503
    %v7520 = vmul.f32 %v7504, %v4853
    %v7521 = vmul.f32 %v7505, %v4855
    %v7522 = vmul.f32 %v7506, %v4857
    %v7523 = vmul.f32 %v7507, %v4859
    %v7524 = vmul.f32 %v7508, %v4861
    %v7525 = vmul.f32 %v7509, %v4863
    %v7526 = vmul.f32 %v7510, %v4865
    %v7527 = vmul.f32 %v7511, %v4867
    %v7528 = vmul.f32 %v7512, %v4869
    %v7529 = vmul.f32 %v7513, %v4871
    %v7530 = vmul.f32 %v7514, %v4873
    %v7531 = vmul.f32 %v7515, %v4875
    %v7532 = vmul.f32 %v7516, %v4877
    %v7533 = vmul.f32 %v7517, %v4879
    %v7534 = vmul.f32 %v7518, %v4881
    %v7535 = vmul.f32 %v7519, %v4883
    %v7536 = vadd.f32 %v4247, %v7520
    %v7537 = vadd.f32 %v4248, %v7521
    %v7538 = vadd.f32 %v4249, %v7522
    %v7539 = vadd.f32 %v4250, %v7523
    %v7540 = vadd.f32 %v4251, %v7524
    %v7541 = vadd.f32 %v4252, %v7525
    %v7542 = vadd.f32 %v4253, %v7526
    %v7543 = vadd.f32 %v4254, %v7527
    %v7544 = vadd.f32 %v4255, %v7528
    %v7545 = vadd.f32 %v4256, %v7529
    %v7546 = vadd.f32 %v4257, %v7530
    %v7547 = vadd.f32 %v4258, %v7531
    %v7548 = vadd.f32 %v4259, %v7532
    %v7549 = vadd.f32 %v4260, %v7533
    %v7550 = vadd.f32 %v4261, %v7534
    %v7551 = vadd.f32 %v4262, %v7535
    %v7552 = vld [vmem:[%s14] sm:$0x1]
    %v7553 = vld [vmem:[%s15] sm:$0x1]
    %7554 = vadd.xlane.f32.xlu0 %v7536
    %v7555 = vpop.xlane.xlu0 %7554
    %7556 = vadd.xlane.f32.xlu0 %v7537
    %v7557 = vpop.xlane.xlu0 %7556
    %7558 = vadd.xlane.f32.xlu0 %v7538
    %v7559 = vpop.xlane.xlu0 %7558
    %7560 = vadd.xlane.f32.xlu0 %v7539
    %v7561 = vpop.xlane.xlu0 %7560
    %7562 = vadd.xlane.f32.xlu0 %v7540
    %v7563 = vpop.xlane.xlu0 %7562
    %7564 = vadd.xlane.f32.xlu0 %v7541
    %v7565 = vpop.xlane.xlu0 %7564
    %7566 = vadd.xlane.f32.xlu0 %v7542
    %v7567 = vpop.xlane.xlu0 %7566
    %7568 = vadd.xlane.f32.xlu0 %v7543
    %v7569 = vpop.xlane.xlu0 %7568
    %7570 = vadd.xlane.f32.xlu0 %v7544
    %v7571 = vpop.xlane.xlu0 %7570
    %7572 = vadd.xlane.f32.xlu0 %v7545
    %v7573 = vpop.xlane.xlu0 %7572
    %7574 = vadd.xlane.f32.xlu0 %v7546
    %v7575 = vpop.xlane.xlu0 %7574
    %7576 = vadd.xlane.f32.xlu0 %v7547
    %v7577 = vpop.xlane.xlu0 %7576
    %7578 = vadd.xlane.f32.xlu0 %v7548
    %v7579 = vpop.xlane.xlu0 %7578
    %7580 = vadd.xlane.f32.xlu0 %v7549
    %v7581 = vpop.xlane.xlu0 %7580
    %7582 = vadd.xlane.f32.xlu0 %v7550
    %v7583 = vpop.xlane.xlu0 %7582
    %7584 = vadd.xlane.f32.xlu0 %v7551
    %v7585 = vpop.xlane.xlu0 %7584
    %v7586 = vmul.f32 %v7555, %v550
    %v7587 = vmul.f32 %v7557, %v550
    %v7588 = vmul.f32 %v7559, %v550
    %v7589 = vmul.f32 %v7561, %v550
    %v7590 = vmul.f32 %v7563, %v550
    %v7591 = vmul.f32 %v7565, %v550
    %v7592 = vmul.f32 %v7567, %v550
    %v7593 = vmul.f32 %v7569, %v550
    %v7594 = vmul.f32 %v7571, %v550
    %v7595 = vmul.f32 %v7573, %v550
    %v7596 = vmul.f32 %v7575, %v550
    %v7597 = vmul.f32 %v7577, %v550
    %v7598 = vmul.f32 %v7579, %v550
    %v7599 = vmul.f32 %v7581, %v550
    %v7600 = vmul.f32 %v7583, %v550
    %v7601 = vmul.f32 %v7585, %v550
    %v7602 = vsub.f32 %v7536, %v7586
    %v7603 = vsub.f32 %v7537, %v7587
    %v7604 = vsub.f32 %v7538, %v7588
    %v7605 = vsub.f32 %v7539, %v7589
    %v7606 = vsub.f32 %v7540, %v7590
    %v7607 = vsub.f32 %v7541, %v7591
    %v7608 = vsub.f32 %v7542, %v7592
    %v7609 = vsub.f32 %v7543, %v7593
    %v7610 = vsub.f32 %v7544, %v7594
    %v7611 = vsub.f32 %v7545, %v7595
    %v7612 = vsub.f32 %v7546, %v7596
    %v7613 = vsub.f32 %v7547, %v7597
    %v7614 = vsub.f32 %v7548, %v7598
    %v7615 = vsub.f32 %v7549, %v7599
    %v7616 = vsub.f32 %v7550, %v7600
    %v7617 = vsub.f32 %v7551, %v7601
    %v7618 = vmul.f32 %v7602, %v7602
    %v7619 = vmul.f32 %v7603, %v7603
    %v7620 = vmul.f32 %v7604, %v7604
    %v7621 = vmul.f32 %v7605, %v7605
    %v7622 = vmul.f32 %v7606, %v7606
    %v7623 = vmul.f32 %v7607, %v7607
    %v7624 = vmul.f32 %v7608, %v7608
    %v7625 = vmul.f32 %v7609, %v7609
    %v7626 = vmul.f32 %v7610, %v7610
    %v7627 = vmul.f32 %v7611, %v7611
    %v7628 = vmul.f32 %v7612, %v7612
    %v7629 = vmul.f32 %v7613, %v7613
    %v7630 = vmul.f32 %v7614, %v7614
    %v7631 = vmul.f32 %v7615, %v7615
    %v7632 = vmul.f32 %v7616, %v7616
    %v7633 = vmul.f32 %v7617, %v7617
    %7634 = vadd.xlane.f32.xlu0 %v7618
    %v7635 = vpop.xlane.xlu0 %7634
    %7636 = vadd.xlane.f32.xlu0 %v7619
    %v7637 = vpop.xlane.xlu0 %7636
    %7638 = vadd.xlane.f32.xlu0 %v7620
    %v7639 = vpop.xlane.xlu0 %7638
    %7640 = vadd.xlane.f32.xlu0 %v7621
    %v7641 = vpop.xlane.xlu0 %7640
    %7642 = vadd.xlane.f32.xlu0 %v7622
    %v7643 = vpop.xlane.xlu0 %7642
    %7644 = vadd.xlane.f32.xlu0 %v7623
    %v7645 = vpop.xlane.xlu0 %7644
    %7646 = vadd.xlane.f32.xlu0 %v7624
    %v7647 = vpop.xlane.xlu0 %7646
    %7648 = vadd.xlane.f32.xlu0 %v7625
    %v7649 = vpop.xlane.xlu0 %7648
    %7650 = vadd.xlane.f32.xlu0 %v7626
    %v7651 = vpop.xlane.xlu0 %7650
    %7652 = vadd.xlane.f32.xlu0 %v7627
    %v7653 = vpop.xlane.xlu0 %7652
    %7654 = vadd.xlane.f32.xlu0 %v7628
    %v7655 = vpop.xlane.xlu0 %7654
    %7656 = vadd.xlane.f32.xlu0 %v7629
    %v7657 = vpop.xlane.xlu0 %7656
    %7658 = vadd.xlane.f32.xlu0 %v7630
    %v7659 = vpop.xlane.xlu0 %7658
    %7660 = vadd.xlane.f32.xlu0 %v7631
    %v7661 = vpop.xlane.xlu0 %7660
    %7662 = vadd.xlane.f32.xlu0 %v7632
    %v7663 = vpop.xlane.xlu0 %7662
    %7664 = vadd.xlane.f32.xlu0 %v7633
    %v7665 = vpop.xlane.xlu0 %7664
    %v7666 = vmul.f32 %v7635, %v550
    %v7667 = vmul.f32 %v7637, %v550
    %v7668 = vmul.f32 %v7639, %v550
    %v7669 = vmul.f32 %v7641, %v550
    %v7670 = vmul.f32 %v7643, %v550
    %v7671 = vmul.f32 %v7645, %v550
    %v7672 = vmul.f32 %v7647, %v550
    %v7673 = vmul.f32 %v7649, %v550
    %v7674 = vmul.f32 %v7651, %v550
    %v7675 = vmul.f32 %v7653, %v550
    %v7676 = vmul.f32 %v7655, %v550
    %v7677 = vmul.f32 %v7657, %v550
    %v7678 = vmul.f32 %v7659, %v550
    %v7679 = vmul.f32 %v7661, %v550
    %v7680 = vmul.f32 %v7663, %v550
    %v7681 = vmul.f32 %v7665, %v550
    %v7682 = vadd.f32 %v7666, 1e-05
    %v7683 = vadd.f32 %v7667, 1e-05
    %v7684 = vadd.f32 %v7668, 1e-05
    %v7685 = vadd.f32 %v7669, 1e-05
    %v7686 = vadd.f32 %v7670, 1e-05
    %v7687 = vadd.f32 %v7671, 1e-05
    %v7688 = vadd.f32 %v7672, 1e-05
    %v7689 = vadd.f32 %v7673, 1e-05
    %v7690 = vadd.f32 %v7674, 1e-05
    %v7691 = vadd.f32 %v7675, 1e-05
    %v7692 = vadd.f32 %v7676, 1e-05
    %v7693 = vadd.f32 %v7677, 1e-05
    %v7694 = vadd.f32 %v7678, 1e-05
    %v7695 = vadd.f32 %v7679, 1e-05
    %v7696 = vadd.f32 %v7680, 1e-05
    %v7697 = vadd.f32 %v7681, 1e-05
    %v7698 = vrsqrt.pop %v7682
    %v7699 = vmul.f32 %v7698, %v7682
    %v7700 = vmul.f32 %v7699, %v7698
    %v7701 = vmul.f32 0.5, %v7700
    %v7702 = vsub.f32 1.5, %v7701
    %v7703 = vmul.f32 %v7698, %v7702
    %vm7704 = vweird.f32 %v7682
    %vm7705 = vweird.f32 %v7698
    %vm7706 = vmor %vm7704, %vm7705
    %v7707 = vsel %vm7706, %v7698, %v7703
    %v7708 = vrsqrt.pop %v7683
    %v7709 = vmul.f32 %v7708, %v7683
    %v7710 = vmul.f32 %v7709, %v7708
    %v7711 = vmul.f32 0.5, %v7710
    %v7712 = vsub.f32 1.5, %v7711
    %v7713 = vmul.f32 %v7708, %v7712
    %vm7714 = vweird.f32 %v7683
    %vm7715 = vweird.f32 %v7708
    %vm7716 = vmor %vm7714, %vm7715
    %v7717 = vsel %vm7716, %v7708, %v7713
    %v7718 = vrsqrt.pop %v7684
    %v7719 = vmul.f32 %v7718, %v7684
    %v7720 = vmul.f32 %v7719, %v7718
    %v7721 = vmul.f32 0.5, %v7720
    %v7722 = vsub.f32 1.5, %v7721
    %v7723 = vmul.f32 %v7718, %v7722
    %vm7724 = vweird.f32 %v7684
    %vm7725 = vweird.f32 %v7718
    %vm7726 = vmor %vm7724, %vm7725
    %v7727 = vsel %vm7726, %v7718, %v7723
    %v7728 = vrsqrt.pop %v7685
    %v7729 = vmul.f32 %v7728, %v7685
    %v7730 = vmul.f32 %v7729, %v7728
    %v7731 = vmul.f32 0.5, %v7730
    %v7732 = vsub.f32 1.5, %v7731
    %v7733 = vmul.f32 %v7728, %v7732
    %vm7734 = vweird.f32 %v7685
    %vm7735 = vweird.f32 %v7728
    %vm7736 = vmor %vm7734, %vm7735
    %v7737 = vsel %vm7736, %v7728, %v7733
    %v7738 = vrsqrt.pop %v7686
    %v7739 = vmul.f32 %v7738, %v7686
    %v7740 = vmul.f32 %v7739, %v7738
    %v7741 = vmul.f32 0.5, %v7740
    %v7742 = vsub.f32 1.5, %v7741
    %v7743 = vmul.f32 %v7738, %v7742
    %vm7744 = vweird.f32 %v7686
    %vm7745 = vweird.f32 %v7738
    %vm7746 = vmor %vm7744, %vm7745
    %v7747 = vsel %vm7746, %v7738, %v7743
    %v7748 = vrsqrt.pop %v7687
    %v7749 = vmul.f32 %v7748, %v7687
    %v7750 = vmul.f32 %v7749, %v7748
    %v7751 = vmul.f32 0.5, %v7750
    %v7752 = vsub.f32 1.5, %v7751
    %v7753 = vmul.f32 %v7748, %v7752
    %vm7754 = vweird.f32 %v7687
    %vm7755 = vweird.f32 %v7748
    %vm7756 = vmor %vm7754, %vm7755
    %v7757 = vsel %vm7756, %v7748, %v7753
    %v7758 = vrsqrt.pop %v7688
    %v7759 = vmul.f32 %v7758, %v7688
    %v7760 = vmul.f32 %v7759, %v7758
    %v7761 = vmul.f32 0.5, %v7760
    %v7762 = vsub.f32 1.5, %v7761
    %v7763 = vmul.f32 %v7758, %v7762
    %vm7764 = vweird.f32 %v7688
    %vm7765 = vweird.f32 %v7758
    %vm7766 = vmor %vm7764, %vm7765
    %v7767 = vsel %vm7766, %v7758, %v7763
    %v7768 = vrsqrt.pop %v7689
    %v7769 = vmul.f32 %v7768, %v7689
    %v7770 = vmul.f32 %v7769, %v7768
    %v7771 = vmul.f32 0.5, %v7770
    %v7772 = vsub.f32 1.5, %v7771
    %v7773 = vmul.f32 %v7768, %v7772
    %vm7774 = vweird.f32 %v7689
    %vm7775 = vweird.f32 %v7768
    %vm7776 = vmor %vm7774, %vm7775
    %v7777 = vsel %vm7776, %v7768, %v7773
    %v7778 = vrsqrt.pop %v7690
    %v7779 = vmul.f32 %v7778, %v7690
    %v7780 = vmul.f32 %v7779, %v7778
    %v7781 = vmul.f32 0.5, %v7780
    %v7782 = vsub.f32 1.5, %v7781
    %v7783 = vmul.f32 %v7778, %v7782
    %vm7784 = vweird.f32 %v7690
    %vm7785 = vweird.f32 %v7778
    %vm7786 = vmor %vm7784, %vm7785
    %v7787 = vsel %vm7786, %v7778, %v7783
    %v7788 = vrsqrt.pop %v7691
    %v7789 = vmul.f32 %v7788, %v7691
    %v7790 = vmul.f32 %v7789, %v7788
    %v7791 = vmul.f32 0.5, %v7790
    %v7792 = vsub.f32 1.5, %v7791
    %v7793 = vmul.f32 %v7788, %v7792
    %vm7794 = vweird.f32 %v7691
    %vm7795 = vweird.f32 %v7788
    %vm7796 = vmor %vm7794, %vm7795
    %v7797 = vsel %vm7796, %v7788, %v7793
    %v7798 = vrsqrt.pop %v7692
    %v7799 = vmul.f32 %v7798, %v7692
    %v7800 = vmul.f32 %v7799, %v7798
    %v7801 = vmul.f32 0.5, %v7800
    %v7802 = vsub.f32 1.5, %v7801
    %v7803 = vmul.f32 %v7798, %v7802
    %vm7804 = vweird.f32 %v7692
    %vm7805 = vweird.f32 %v7798
    %vm7806 = vmor %vm7804, %vm7805
    %v7807 = vsel %vm7806, %v7798, %v7803
    %v7808 = vrsqrt.pop %v7693
    %v7809 = vmul.f32 %v7808, %v7693
    %v7810 = vmul.f32 %v7809, %v7808
    %v7811 = vmul.f32 0.5, %v7810
    %v7812 = vsub.f32 1.5, %v7811
    %v7813 = vmul.f32 %v7808, %v7812
    %vm7814 = vweird.f32 %v7693
    %vm7815 = vweird.f32 %v7808
    %vm7816 = vmor %vm7814, %vm7815
    %v7817 = vsel %vm7816, %v7808, %v7813
    %v7818 = vrsqrt.pop %v7694
    %v7819 = vmul.f32 %v7818, %v7694
    %v7820 = vmul.f32 %v7819, %v7818
    %v7821 = vmul.f32 0.5, %v7820
    %v7822 = vsub.f32 1.5, %v7821
    %v7823 = vmul.f32 %v7818, %v7822
    %vm7824 = vweird.f32 %v7694
    %vm7825 = vweird.f32 %v7818
    %vm7826 = vmor %vm7824, %vm7825
    %v7827 = vsel %vm7826, %v7818, %v7823
    %v7828 = vrsqrt.pop %v7695
    %v7829 = vmul.f32 %v7828, %v7695
    %v7830 = vmul.f32 %v7829, %v7828
    %v7831 = vmul.f32 0.5, %v7830
    %v7832 = vsub.f32 1.5, %v7831
    %v7833 = vmul.f32 %v7828, %v7832
    %vm7834 = vweird.f32 %v7695
    %vm7835 = vweird.f32 %v7828
    %vm7836 = vmor %vm7834, %vm7835
    %v7837 = vsel %vm7836, %v7828, %v7833
    %v7838 = vrsqrt.pop %v7696
    %v7839 = vmul.f32 %v7838, %v7696
    %v7840 = vmul.f32 %v7839, %v7838
    %v7841 = vmul.f32 0.5, %v7840
    %v7842 = vsub.f32 1.5, %v7841
    %v7843 = vmul.f32 %v7838, %v7842
    %vm7844 = vweird.f32 %v7696
    %vm7845 = vweird.f32 %v7838
    %vm7846 = vmor %vm7844, %vm7845
    %v7847 = vsel %vm7846, %v7838, %v7843
    %v7848 = vrsqrt.pop %v7697
    %v7849 = vmul.f32 %v7848, %v7697
    %v7850 = vmul.f32 %v7849, %v7848
    %v7851 = vmul.f32 0.5, %v7850
    %v7852 = vsub.f32 1.5, %v7851
    %v7853 = vmul.f32 %v7848, %v7852
    %vm7854 = vweird.f32 %v7697
    %vm7855 = vweird.f32 %v7848
    %vm7856 = vmor %vm7854, %vm7855
    %v7857 = vsel %vm7856, %v7848, %v7853
    %v7858 = vmul.f32 %v7602, %v7707
    %v7859 = vmul.f32 %v7603, %v7717
    %v7860 = vmul.f32 %v7604, %v7727
    %v7861 = vmul.f32 %v7605, %v7737
    %v7862 = vmul.f32 %v7606, %v7747
    %v7863 = vmul.f32 %v7607, %v7757
    %v7864 = vmul.f32 %v7608, %v7767
    %v7865 = vmul.f32 %v7609, %v7777
    %v7866 = vmul.f32 %v7610, %v7787
    %v7867 = vmul.f32 %v7611, %v7797
    %v7868 = vmul.f32 %v7612, %v7807
    %v7869 = vmul.f32 %v7613, %v7817
    %v7870 = vmul.f32 %v7614, %v7827
    %v7871 = vmul.f32 %v7615, %v7837
    %v7872 = vmul.f32 %v7616, %v7847
    %v7873 = vmul.f32 %v7617, %v7857
    %v7875 = vperm.slane %v7552, 0
    %v7877 = vmul.f32 %v7858, %v7875
    %v7878 = vmul.f32 %v7859, %v7875
    %v7879 = vmul.f32 %v7860, %v7875
    %v7880 = vmul.f32 %v7861, %v7875
    %v7881 = vmul.f32 %v7862, %v7875
    %v7882 = vmul.f32 %v7863, %v7875
    %v7883 = vmul.f32 %v7864, %v7875
    %v7884 = vmul.f32 %v7865, %v7875
    %v7885 = vmul.f32 %v7866, %v7875
    %v7886 = vmul.f32 %v7867, %v7875
    %v7887 = vmul.f32 %v7868, %v7875
    %v7888 = vmul.f32 %v7869, %v7875
    %v7889 = vmul.f32 %v7870, %v7875
    %v7890 = vmul.f32 %v7871, %v7875
    %v7891 = vmul.f32 %v7872, %v7875
    %v7892 = vmul.f32 %v7873, %v7875
    %v7894 = vperm.slane %v7553, 0
    %v7896 = vadd.f32 %v7877, %v7894
    %v7897 = vadd.f32 %v7878, %v7894
    %v7898 = vadd.f32 %v7879, %v7894
    %v7899 = vadd.f32 %v7880, %v7894
    %v7900 = vadd.f32 %v7881, %v7894
    %v7901 = vadd.f32 %v7882, %v7894
    %v7902 = vadd.f32 %v7883, %v7894
    %v7903 = vadd.f32 %v7884, %v7894
    %v7904 = vadd.f32 %v7885, %v7894
    %v7905 = vadd.f32 %v7886, %v7894
    %v7906 = vadd.f32 %v7887, %v7894
    %v7907 = vadd.f32 %v7888, %v7894
    %v7908 = vadd.f32 %v7889, %v7894
    %v7909 = vadd.f32 %v7890, %v7894
    %v7910 = vadd.f32 %v7891, %v7894
    %v7911 = vadd.f32 %v7892, %v7894
    %v7912 = vpack.c.bf16 %v7897, %v7896
    %v7913 = vpack.c.bf16 %v7899, %v7898
    %v7914 = vpack.c.bf16 %v7901, %v7900
    %v7915 = vpack.c.bf16 %v7903, %v7902
    %v7916 = vpack.c.bf16 %v7905, %v7904
    %v7917 = vpack.c.bf16 %v7907, %v7906
    %v7918 = vpack.c.bf16 %v7909, %v7908
    %v7919 = vpack.c.bf16 %v7911, %v7910
    %v7920 = vld [vmem:[#allocation27] sm:$0xf]
    %v7921 = vld [vmem:[#allocation27 + $0x4] sm:$0xf]
    %v7922 = vld [vmem:[#allocation27 + $0x8] sm:$0xf]
    %v7923 = vld [vmem:[#allocation27 + $0xc] sm:$0xf]
    %v7924 = vld [vmem:[#allocation27 + $0x10] sm:$0xf]
    %v7925 = vld [vmem:[#allocation27 + $0x14] sm:$0xf]
    %v7926 = vld [vmem:[#allocation27 + $0x18] sm:$0xf]
    %v7927 = vld [vmem:[#allocation27 + $0x1c] sm:$0xf]
    %v7928 = vld [vmem:[#allocation27 + $0x20] sm:$0xf]
    %v7929 = vld [vmem:[#allocation27 + $0x24] sm:$0xf]
    %v7930 = vld [vmem:[#allocation27 + $0x28] sm:$0xf]
    %v7931 = vld [vmem:[#allocation27 + $0x2c] sm:$0xf]
    %v7932 = vld [vmem:[#allocation27 + $0x30] sm:$0xf]
    %v7933 = vld [vmem:[#allocation27 + $0x34] sm:$0xf]
    %v7934 = vld [vmem:[#allocation27 + $0x38] sm:$0xf]
    %v7935 = vld [vmem:[#allocation27 + $0x3c] sm:$0xf]
    %v7936 = vld [vmem:[%s23] sm:$0x1]
    %v7938 = vperm.slane %v7936, 0
    %v7956 = vunpack.c.l.b16 %v7920
    %v7957 = vunpack.c.l.b16 %v7921
    %v7958 = vunpack.c.l.b16 %v7922
    %v7959 = vunpack.c.l.b16 %v7923
    %v7960 = vunpack.c.l.b16 %v7924
    %v7961 = vunpack.c.l.b16 %v7925
    %v7962 = vunpack.c.l.b16 %v7926
    %v7963 = vunpack.c.l.b16 %v7927
    %v7964 = vunpack.c.l.b16 %v7928
    %v7965 = vunpack.c.l.b16 %v7929
    %v7966 = vunpack.c.l.b16 %v7930
    %v7967 = vunpack.c.l.b16 %v7931
    %v7968 = vunpack.c.l.b16 %v7932
    %v7969 = vunpack.c.l.b16 %v7933
    %v7970 = vunpack.c.l.b16 %v7934
    %v7971 = vunpack.c.l.b16 %v7935
    %v7972 = vpack.c.b16 %v7957, %v7956
    %v7973 = vpack.c.b16 %v7959, %v7958
    %v7974 = vpack.c.b16 %v7961, %v7960
    %v7975 = vpack.c.b16 %v7963, %v7962
    %v7976 = vpack.c.b16 %v7965, %v7964
    %v7977 = vpack.c.b16 %v7967, %v7966
    %v7978 = vpack.c.b16 %v7969, %v7968
    %v7979 = vpack.c.b16 %v7971, %v7970
    %7988 = vmatpush.bf16.msra.mxu0 %v7979
    %7989 = vmatpush.bf16.msra.mxu0 %v7978
    %7990 = vmatpush.bf16.msra.mxu0 %v7977
    %7991 = vmatpush.bf16.msra.mxu0 %v7976
    %7992 = vmatpush.bf16.msra.mxu0 %v7975
    %7993 = vmatpush.bf16.msra.mxu0 %v7974
    %7994 = vmatpush.bf16.msra.mxu0 %v7973
    %7995 = vmatpush.bf16.msra.mxu0 %v7972
    %7996 = vmatmul.bf16.gmra.mxu0 %v7912
    %v7997 = vpop.f32.mrf.mxu0
    %v7998 = vadd.f32 %v7938, %v7997
    %v7999 = vpop.f32.mrf.mxu0
    %v8000 = vadd.f32 %v7938, %v7999
    %8001 = vmatmul.bf16.gmra.mxu0 %v7913
    %v8002 = vpop.f32.mrf.mxu0
    %v8003 = vadd.f32 %v7938, %v8002
    %v8004 = vpop.f32.mrf.mxu0
    %v8005 = vadd.f32 %v7938, %v8004
    %8006 = vmatmul.bf16.gmra.mxu0 %v7914
    %v8007 = vpop.f32.mrf.mxu0
    %v8008 = vadd.f32 %v7938, %v8007
    %v8009 = vpop.f32.mrf.mxu0
    %v8010 = vadd.f32 %v7938, %v8009
    %8011 = vmatmul.bf16.gmra.mxu0 %v7915
    %v8012 = vpop.f32.mrf.mxu0
    %v8013 = vadd.f32 %v7938, %v8012
    %v8014 = vpop.f32.mrf.mxu0
    %v8015 = vadd.f32 %v7938, %v8014
    %8016 = vmatmul.bf16.gmra.mxu0 %v7916
    %v8017 = vpop.f32.mrf.mxu0
    %v8018 = vadd.f32 %v7938, %v8017
    %v8019 = vpop.f32.mrf.mxu0
    %v8020 = vadd.f32 %v7938, %v8019
    %8021 = vmatmul.bf16.gmra.mxu0 %v7917
    %v8022 = vpop.f32.mrf.mxu0
    %v8023 = vadd.f32 %v7938, %v8022
    %v8024 = vpop.f32.mrf.mxu0
    %v8025 = vadd.f32 %v7938, %v8024
    %8026 = vmatmul.bf16.gmra.mxu0 %v7918
    %v8027 = vpop.f32.mrf.mxu0
    %v8028 = vadd.f32 %v7938, %v8027
    %v8029 = vpop.f32.mrf.mxu0
    %v8030 = vadd.f32 %v7938, %v8029
    %8031 = vmatmul.bf16.gmra.mxu0 %v7919
    %v8032 = vpop.f32.mrf.mxu0
    %v8033 = vadd.f32 %v7938, %v8032
    %v8034 = vpop.f32.mrf.mxu0
    %v8035 = vadd.f32 %v7938, %v8034
    %8036 = vdwg.mxu0
    %8037 = vst [vmem:[#allocation29] sm:$0xff] %v7998
    %8038 = vst [vmem:[#allocation29 + $0x8] sm:$0xff] %v8000
    %8039 = vst [vmem:[#allocation29 + $0x10] sm:$0xff] %v8003
    %8040 = vst [vmem:[#allocation29 + $0x18] sm:$0xff] %v8005
    %8041 = vst [vmem:[#allocation29 + $0x20] sm:$0xff] %v8008
    %8042 = vst [vmem:[#allocation29 + $0x28] sm:$0xff] %v8010
    %8043 = vst [vmem:[#allocation29 + $0x30] sm:$0xff] %v8013
    %8044 = vst [vmem:[#allocation29 + $0x38] sm:$0xff] %v8015
    %8045 = vst [vmem:[#allocation29 + $0x40] sm:$0xff] %v8018
    %8046 = vst [vmem:[#allocation29 + $0x48] sm:$0xff] %v8020
    %8047 = vst [vmem:[#allocation29 + $0x50] sm:$0xff] %v8023
    %8048 = vst [vmem:[#allocation29 + $0x58] sm:$0xff] %v8025
    %8049 = vst [vmem:[#allocation29 + $0x60] sm:$0xff] %v8028
    %8050 = vst [vmem:[#allocation29 + $0x68] sm:$0xff] %v8030
    %8051 = vst [vmem:[#allocation29 + $0x70] sm:$0xff] %v8033
    %8052 = vst [vmem:[#allocation29 + $0x78] sm:$0xff] %v8035
    %8053 = vst [vmem:[#allocation30] sm:$0xff] %v4836
    %8054 = vst [vmem:[#allocation30 + $0x8] sm:$0xff] %v4837
    %8055 = vst [vmem:[#allocation30 + $0x10] sm:$0xff] %v4838
    %8056 = vst [vmem:[#allocation30 + $0x18] sm:$0xff] %v4839
    %8057 = vst [vmem:[#allocation30 + $0x20] sm:$0xff] %v4840
    %8058 = vst [vmem:[#allocation30 + $0x28] sm:$0xff] %v4841
    %8059 = vst [vmem:[#allocation30 + $0x30] sm:$0xff] %v4842
    %8060 = vst [vmem:[#allocation30 + $0x38] sm:$0xff] %v4843
    %8061 = vst [vmem:[#allocation30 + $0x40] sm:$0xff] %v4844
    %8062 = vst [vmem:[#allocation30 + $0x48] sm:$0xff] %v4845
    %8063 = vst [vmem:[#allocation30 + $0x50] sm:$0xff] %v4846
    %8064 = vst [vmem:[#allocation30 + $0x58] sm:$0xff] %v4847
    %8065 = vst [vmem:[#allocation30 + $0x60] sm:$0xff] %v4848
    %8066 = vst [vmem:[#allocation30 + $0x68] sm:$0xff] %v4849
    %8067 = vst [vmem:[#allocation30 + $0x70] sm:$0xff] %v4850
    %8068 = vst [vmem:[#allocation30 + $0x78] sm:$0xff] %v4851
    // Predicated region
    $region162: #{tpu_custom_call.1} parent=1 // pred_check
      _
    $region163: #{tpu_custom_call.1} parent=1 // pred_check_branch
      %8070 = sbr.rel (0) target = $region165
    $region164: #{tpu_custom_call.1} parent=1 // pred_region
      %8072 = vsyncadd [#allocation5], 0
      %s8073 = sshll.u32 [#allocation29], 4
      %s8074 = int_to_ptr.vmem [resolvable:$true] %s8073
      %s8075 = sshll.u32 %s24, 4
      %s8076 = int_to_ptr.hbm [resolvable:$true] %s8075
      %8081 = dma.vmem_to_hbm [thread:$0]  %s8074, 2048, %s8076, [#allocation5], 128, 128, 8
    $region165: #{tpu_custom_call.1} parent=1 // pred_fallthru
      _
    // Predicated region
    $region166: #{tpu_custom_call.1} parent=1 // pred_check
      _
    $region167: #{tpu_custom_call.1} parent=1 // pred_check_branch
      %8083 = sbr.rel (0) target = $region169
    $region168: #{tpu_custom_call.1} parent=1 // pred_region
      %8085 = vsyncadd [#allocation31], 0
      %s8086 = sshll.u32 [#allocation30], 4
      %s8087 = int_to_ptr.vmem [resolvable:$true] %s8086
      %s8088 = sshll.u32 %s25, 4
      %s8089 = int_to_ptr.hbm [resolvable:$true] %s8088
      %8094 = dma.vmem_to_hbm [thread:$0]  %s8087, 2048, %s8089, [#allocation31], 128, 128, 8
    $region169: #{tpu_custom_call.1} parent=1 // pred_fallthru
      _
    // Predicated region
    $region170: #{tpu_custom_call.1} parent=1 // pred_check
      _
    $region171: #{tpu_custom_call.1} parent=1 // pred_check_branch
      %8096 = sbr.rel (0) target = $region173
    $region172: #{tpu_custom_call.1} parent=1 // pred_region
      %8098 = dma.done [#allocation5], 2048
    $region173: #{tpu_custom_call.1} parent=1 // pred_fallthru
      _
    // Predicated region
    $region174: #{tpu_custom_call.1} parent=1 // pred_check
      _
    $region175: #{tpu_custom_call.1} parent=1 // pred_check_branch
      %8100 = sbr.rel (0) target = $region177
    $region176: #{tpu_custom_call.1} parent=1 // pred_region
      %8102 = dma.done [#allocation31], 2048
    $region177: #{tpu_custom_call.1} parent=1 // pred_fallthru
      _
    %8103 = vsyncpa [#allocation4], 1
    %8104 = vsyncpa [#allocation7], 1
    %8105 = vsyncpa [#allocation10], 1
    %8106 = vsyncpa [#allocation13], 1
    %8107 = vsyncpa [#allocation16], 1
    %8108 = vsyncpa [#allocation19], 1
    %8109 = vsyncpa [#allocation22], 1
    %8110 = vsyncpa [#allocation25], 1
    %8111 = vsyncpa [#allocation28], 1
    %8112 = vsyncpa [#allocation5], 1
    %8113 = vsyncpa [#allocation31], 1

</llo_original>
